<compile_context>
chip_gen: v5e
topology: v5e:2x2
jax: 0.10.0
libtpu: 0.0.40
codegen_flags: <defaults>
</compile_context>

<pallas_src>
import jax
import jax.numpy as jnp
from jax import lax
from jax.experimental import pallas as pl
from jax.experimental.pallas import tpu as pltpu

# ---------------------------------------------------------------------------
# Problem sizes (small, consistent with the module defaults dim=4, motiflen=25)
# ---------------------------------------------------------------------------
B = 2          # batch
DIM = 4        # input channels (one-hot DNA)
L = 256        # sequence length (any L works; dilations >= L only see padding)
C_HID = 64     # hidden channels
MOTIF = 25     # conv1 / convtranspose kernel size
PAD = MOTIF // 2
N_DIL = 9      # residual dilated blocks, dilation 2^1 .. 2^9
BN_EPS = 1e-5


# ---------------------------------------------------------------------------
# Pallas kernel: full BPNet forward for one batch element, length-major (L, C).
# ---------------------------------------------------------------------------
def bpnet_kernel(xcol_ref, w1_ref, b1_ref, wd_ref, bd_ref, wt_ref, bt_ref,
                 out_ref):
    # ---- conv1 as a single wide-K matmul (im2col built in the wrapper) ----
    xcol = xcol_ref[0]                                          # (L, MOTIF*DIM)
    x = jnp.dot(xcol, w1_ref[...], preferred_element_type=jnp.float32)
    x = jnp.maximum(x + b1_ref[...], 0.0)                       # (L, C_HID)

    # ---- 9 residual dilated conv blocks (BN folded into the weights) ------
    for i in range(N_DIL):
        d = 2 ** (i + 1)
        w = wd_ref[i]                                           # (3*C_HID, C_HID)
        if d < L:
            zpad = jnp.zeros((d, C_HID), jnp.float32)
            xp = jnp.concatenate([zpad, x, zpad], axis=0)       # (L + 2d, C)
            # im2col along lanes: [x[l-d] | x[l] | x[l+d]]  -> K = 192 matmul
            xim = jnp.concatenate([xp[0:L, :], x, xp[2 * d:2 * d + L, :]],
                                  axis=1)                       # (L, 3*C_HID)
            y = jnp.dot(xim, w, preferred_element_type=jnp.float32)
        else:
            # Side taps at l +/- d fall entirely into zero padding: center only.
            y = jnp.dot(x, w[C_HID:2 * C_HID, :],
                        preferred_element_type=jnp.float32)
        y = jnp.maximum(y + bd_ref[i], 0.0)
        x = y + x                                               # residual add

    # ---- ConvTranspose1d(64 -> 1, k=25, pad=12), stride 1 -----------------
    # == correlation of x with the flipped kernel, "same" length.  With a single
    # output channel this is 25 broadcast-FMAs + one lane reduction.
    zpad = jnp.zeros((PAD, C_HID), jnp.float32)
    xpad = jnp.concatenate([zpad, x, zpad], axis=0)             # (L + 24, C)
    acc = xpad[0:L, :] * wt_ref[0]
    for k in range(1, MOTIF):
        acc = acc + xpad[k:k + L, :] * wt_ref[k]                # (L, C_HID)
    out_col = jnp.sum(acc, axis=1, keepdims=True) + bt_ref[...]  # (L, 1)

    out_ref[...] = out_col[None].astype(out_ref.dtype)           # (1, L, 1)


def bpnet_forward(xcol, params):
    """xcol: (B, L, MOTIF*DIM) im2col'd conv1 input (length-major)."""
    w1, b1, wd, bd, wt, bt = params

    def full(a):
        nd = a.ndim
        return pl.BlockSpec(a.shape, lambda b, _n=nd: (0,) * _n)

    in_specs = [
        pl.BlockSpec((1, L, xcol.shape[2]), lambda b: (b, 0, 0)),  # activations
        full(w1), full(b1), full(wd), full(bd), full(wt), full(bt),
    ]

    return pl.pallas_call(
        bpnet_kernel,
        out_shape=jax.ShapeDtypeStruct((B, L, 1), jnp.float32),
        grid_spec=pltpu.PrefetchScalarGridSpec(
            num_scalar_prefetch=0,
            grid=(B,),
            in_specs=in_specs,
            out_specs=pl.BlockSpec((1, L, 1), lambda b: (b, 0, 0)),
        ),
        compiler_params=pltpu.CompilerParams(
            dimension_semantics=("parallel",)),   # v7x: shard batch over 2 TCs
    )(xcol, w1, b1, wd, bd, wt, bt)


# ---------------------------------------------------------------------------
# Wrapper-side layout plumbing
# ---------------------------------------------------------------------------
def build_conv1_im2col(x_ncl):
    """(B, DIM, L) NCL input -> (B, L, MOTIF*DIM) im2col for conv1 (pad=12)."""
    x_lc = jnp.transpose(x_ncl, (0, 2, 1))                      # (B, L, DIM)
    xp = jnp.pad(x_lc, ((0, 0), (PAD, PAD), (0, 0)))            # (B, L+24, DIM)
    cols = [xp[:, k:k + L, :] for k in range(MOTIF)]
    return jnp.concatenate(cols, axis=2)                        # [.., k*DIM + c]


def xavier_uniform(key, shape, fan_in, fan_out):
    a = jnp.sqrt(6.0 / (fan_in + fan_out))
    return jax.random.uniform(key, shape, jnp.float32, minval=-a, maxval=a)


def make_params(key):
    ks = jax.random.split(key, N_DIL + 2)
    # PyTorch layouts: Conv1d (O, I, K); ConvTranspose1d (I, O, K); zero biases.
    w1_t = xavier_uniform(ks[0], (C_HID, DIM, MOTIF), DIM * MOTIF, C_HID * MOTIF)
    b1_t = jnp.zeros((C_HID,), jnp.float32)
    wd_t = [xavier_uniform(ks[1 + i], (C_HID, C_HID, 3), C_HID * 3, C_HID * 3)
            for i in range(N_DIL)]
    bd_t = [jnp.zeros((C_HID,), jnp.float32) for _ in range(N_DIL)]
    wT_t = xavier_uniform(ks[N_DIL + 1], (C_HID, 1, MOTIF), C_HID * MOTIF, MOTIF)
    bT_t = jnp.zeros((1,), jnp.float32)
    torch_params = (w1_t, b1_t, wd_t, bd_t, wT_t, bT_t)

    # --- convert to kernel layouts -----------------------------------------
    # BatchNorm1d eval fold (gamma=1, beta=0, mean=0, var=1): per-channel scale.
    s = 1.0 / jnp.sqrt(1.0 + BN_EPS)

    # conv1: (O, I, K) -> (K*I, O) matching the im2col column order k*DIM + c.
    w1_k = jnp.transpose(w1_t, (2, 1, 0)).reshape(MOTIF * DIM, C_HID)
    b1_k = b1_t.reshape(1, C_HID)

    # dilated convs: (O, I, 3) -> (3*C_HID, O), BN scale folded in; tap order
    # matches the lane-concat [x[l-d] | x[l] | x[l+d]] in the kernel.
    wd_k = jnp.stack(
        [(jnp.transpose(w, (2, 1, 0)) * s).reshape(3 * C_HID, C_HID)
         for w in wd_t])                                        # (9, 192, 64)
    bd_k = jnp.stack(bd_t).reshape(N_DIL, 1, C_HID)

    # convtranspose: flipped kernel, wflip[k, i] = wT[i, 0, MOTIF-1-k].
    wt_k = jnp.transpose(wT_t[:, 0, ::-1], (1, 0)).reshape(MOTIF, 1, C_HID)
    bt_k = bT_t.reshape(1, 1)

    kernel_params = (w1_k, b1_k, wd_k, bd_k, wt_k, bt_k)
    return torch_params, kernel_params


# ---------------------------------------------------------------------------
# Pure-JAX reference mirroring the PyTorch forward (inference mode), NCL layout.
# ---------------------------------------------------------------------------
def reference_forward(x_ncl, torch_params):
    w1, b1, wds, bds, wT, bT = torch_params
    dn = ('NCH', 'OIH', 'NCH')

    y = lax.conv_general_dilated(x_ncl, w1, (1,), [(PAD, PAD)],
                                 dimension_numbers=dn)
    x = jnp.maximum(y + b1[None, :, None], 0.0)

    s = 1.0 / jnp.sqrt(1.0 + BN_EPS)   # BN eval with fresh-init running stats
    for i in range(N_DIL):
        d = 2 ** (i + 1)
        y = lax.conv_general_dilated(x * s, wds[i], (1,), [(d, d)],
                                     rhs_dilation=(d,), dimension_numbers=dn)
        y = jnp.maximum(y + bds[i][None, :, None], 0.0)
        x = y + x

    # ConvTranspose1d(stride=1, pad=12) == Conv1d with flipped kernel, pad=12.
    w_flip = jnp.transpose(wT, (1, 0, 2))[:, :, ::-1]           # (1, 64, 25)
    out = lax.conv_general_dilated(x, w_flip, (1,), [(PAD, PAD)],
                                   dimension_numbers=dn)
    return out + bT[None, :, None]


if __name__ == "__main__":
    key = jax.random.PRNGKey(0)
    k_x, k_p = jax.random.split(key)

    x_ncl = jax.random.normal(k_x, (B, DIM, L), jnp.float32)    # PyTorch layout
    torch_params, kernel_params = make_params(k_p)

    xcol = build_conv1_im2col(x_ncl)                            # (B, L, 100)
    out = bpnet_forward(xcol, kernel_params)                    # (B, L, 1)
    out = jax.block_until_ready(out)
    out_ncl = jnp.transpose(out, (0, 2, 1))                     # (B, 1, L)

    ref = reference_forward(x_ncl, torch_params)
    assert out_ncl.shape == ref.shape == (B, 1, L)
    max_err = float(jnp.max(jnp.abs(out_ncl - ref)))
    assert jnp.allclose(out_ncl, ref, rtol=2e-4, atol=2e-4), max_err

    print("KERNEL_OK")
</pallas_src>

<mosaic_0001>
module attributes {stable_mosaic.version = 11 : i64} {
  func.func @bpnet_kernel(%arg0: i32, %arg1: memref<1x256x100xf32, #tpu.memory_space<vmem>>, %arg2: memref<100x64xf32, #tpu.memory_space<vmem>>, %arg3: memref<1x64xf32, #tpu.memory_space<vmem>>, %arg4: memref<9x192x64xf32, #tpu.memory_space<vmem>>, %arg5: memref<9x1x64xf32, #tpu.memory_space<vmem>>, %arg6: memref<25x1x64xf32, #tpu.memory_space<vmem>>, %arg7: memref<1x1xf32, #tpu.memory_space<vmem>>, %arg8: memref<1x256x1xf32, #tpu.memory_space<vmem>>) attributes {dimension_semantics = [#tpu.dimension_semantics<parallel>], iteration_bounds = array<i64: 2>, scalar_prefetch = 0 : i64, scratch_operands = 0 : i64, tpu.core_type = #tpu.core_type<tc>, window_params = [{transform_indices = @transform_0, window_bounds = array<i64: 1, 256, 100>}, {pipeline_mode = #tpu.pipeline_mode<synchronous>, transform_indices = @transform_1, window_bounds = array<i64: 100, 64>}, {pipeline_mode = #tpu.pipeline_mode<synchronous>, transform_indices = @transform_2, window_bounds = array<i64: 1, 64>}, {pipeline_mode = #tpu.pipeline_mode<synchronous>, transform_indices = @transform_3, window_bounds = array<i64: 9, 192, 64>}, {pipeline_mode = #tpu.pipeline_mode<synchronous>, transform_indices = @transform_4, window_bounds = array<i64: 9, 1, 64>}, {pipeline_mode = #tpu.pipeline_mode<synchronous>, transform_indices = @transform_5, window_bounds = array<i64: 25, 1, 64>}, {pipeline_mode = #tpu.pipeline_mode<synchronous>, transform_indices = @transform_6, window_bounds = array<i64: 1, 1>}, {transform_indices = @transform_7, window_bounds = array<i64: 1, 256, 1>}]} {
    %c0 = arith.constant 0 : index
    %c0_0 = arith.constant 0 : index
    %c0_1 = arith.constant 0 : index
    %0 = vector.load %arg1[%c0, %c0_0, %c0_1] : memref<1x256x100xf32, #tpu.memory_space<vmem>>, vector<1x256x100xf32>
    %1 = vector.shape_cast %0 : vector<1x256x100xf32> to vector<256x100xf32>
    %c0_2 = arith.constant 0 : index
    %c0_3 = arith.constant 0 : index
    %2 = vector.load %arg2[%c0_2, %c0_3] : memref<100x64xf32, #tpu.memory_space<vmem>>, vector<100x64xf32>
    %cst = arith.constant dense<0.000000e+00> : vector<256x64xf32>
    %3 = tpu.matmul %1, %2, %cst {dimension_numbers = #tpu.dot_dimension_numbers<[1], [0], [0], [1], [0, 0, 1, 1], [], []>} : vector<256x100xf32>, vector<100x64xf32>, vector<256x64xf32> -> vector<256x64xf32>
    %c0_4 = arith.constant 0 : index
    %c0_5 = arith.constant 0 : index
    %4 = vector.load %arg3[%c0_4, %c0_5] : memref<1x64xf32, #tpu.memory_space<vmem>>, vector<1x64xf32>
    %5 = vector.broadcast %4 : vector<1x64xf32> to vector<256x64xf32>
    %6 = arith.addf %3, %5 : vector<256x64xf32>
    %cst_6 = arith.constant 0.000000e+00 : f32
    %7 = vector.broadcast %cst_6 : f32 to vector<256x64xf32>
    %8 = arith.maximumf %6, %7 : vector<256x64xf32>
    %c0_7 = arith.constant 0 : index
    %c0_8 = arith.constant 0 : index
    %c0_9 = arith.constant 0 : index
    %9 = vector.load %arg4[%c0_7, %c0_8, %c0_9] : memref<9x192x64xf32, #tpu.memory_space<vmem>>, vector<1x192x64xf32>
    %10 = vector.shape_cast %9 : vector<1x192x64xf32> to vector<192x64xf32>
    %cst_10 = arith.constant 0.000000e+00 : f32
    %11 = vector.broadcast %cst_10 : f32 to vector<2x64xf32>
    %12 = tpu.concatenate %11, %8, %11 in 0 : vector<2x64xf32>, vector<256x64xf32>, vector<2x64xf32> -> vector<260x64xf32>
    %13 = vector.extract_strided_slice %12 {offsets = [0, 0], sizes = [256, 64], strides = [1, 1]} : vector<260x64xf32> to vector<256x64xf32>
    %14 = vector.extract_strided_slice %12 {offsets = [4, 0], sizes = [256, 64], strides = [1, 1]} : vector<260x64xf32> to vector<256x64xf32>
    %15 = tpu.concatenate %13, %8, %14 in 1 : vector<256x64xf32>, vector<256x64xf32>, vector<256x64xf32> -> vector<256x192xf32>
    %cst_11 = arith.constant dense<0.000000e+00> : vector<256x64xf32>
    %16 = tpu.matmul %15, %10, %cst_11 {dimension_numbers = #tpu.dot_dimension_numbers<[1], [0], [0], [1], [0, 0, 1, 1], [], []>} : vector<256x192xf32>, vector<192x64xf32>, vector<256x64xf32> -> vector<256x64xf32>
    %c0_12 = arith.constant 0 : index
    %c0_13 = arith.constant 0 : index
    %c0_14 = arith.constant 0 : index
    %17 = vector.load %arg5[%c0_12, %c0_13, %c0_14] : memref<9x1x64xf32, #tpu.memory_space<vmem>>, vector<1x1x64xf32>
    %18 = vector.shape_cast %17 : vector<1x1x64xf32> to vector<1x64xf32>
    %19 = vector.broadcast %18 : vector<1x64xf32> to vector<256x64xf32>
    %20 = arith.addf %16, %19 : vector<256x64xf32>
    %cst_15 = arith.constant 0.000000e+00 : f32
    %21 = vector.broadcast %cst_15 : f32 to vector<256x64xf32>
    %22 = arith.maximumf %20, %21 : vector<256x64xf32>
    %23 = arith.addf %22, %8 : vector<256x64xf32>
    %c1 = arith.constant 1 : index
    %c0_16 = arith.constant 0 : index
    %c0_17 = arith.constant 0 : index
    %24 = vector.load %arg4[%c1, %c0_16, %c0_17] : memref<9x192x64xf32, #tpu.memory_space<vmem>>, vector<1x192x64xf32>
    %25 = vector.shape_cast %24 : vector<1x192x64xf32> to vector<192x64xf32>
    %cst_18 = arith.constant 0.000000e+00 : f32
    %26 = vector.broadcast %cst_18 : f32 to vector<4x64xf32>
    %27 = tpu.concatenate %26, %23, %26 in 0 : vector<4x64xf32>, vector<256x64xf32>, vector<4x64xf32> -> vector<264x64xf32>
    %28 = vector.extract_strided_slice %27 {offsets = [0, 0], sizes = [256, 64], strides = [1, 1]} : vector<264x64xf32> to vector<256x64xf32>
    %29 = vector.extract_strided_slice %27 {offsets = [8, 0], sizes = [256, 64], strides = [1, 1]} : vector<264x64xf32> to vector<256x64xf32>
    %30 = tpu.concatenate %28, %23, %29 in 1 : vector<256x64xf32>, vector<256x64xf32>, vector<256x64xf32> -> vector<256x192xf32>
    %cst_19 = arith.constant dense<0.000000e+00> : vector<256x64xf32>
    %31 = tpu.matmul %30, %25, %cst_19 {dimension_numbers = #tpu.dot_dimension_numbers<[1], [0], [0], [1], [0, 0, 1, 1], [], []>} : vector<256x192xf32>, vector<192x64xf32>, vector<256x64xf32> -> vector<256x64xf32>
    %c1_20 = arith.constant 1 : index
    %c0_21 = arith.constant 0 : index
    %c0_22 = arith.constant 0 : index
    %32 = vector.load %arg5[%c1_20, %c0_21, %c0_22] : memref<9x1x64xf32, #tpu.memory_space<vmem>>, vector<1x1x64xf32>
    %33 = vector.shape_cast %32 : vector<1x1x64xf32> to vector<1x64xf32>
    %34 = vector.broadcast %33 : vector<1x64xf32> to vector<256x64xf32>
    %35 = arith.addf %31, %34 : vector<256x64xf32>
    %cst_23 = arith.constant 0.000000e+00 : f32
    %36 = vector.broadcast %cst_23 : f32 to vector<256x64xf32>
    %37 = arith.maximumf %35, %36 : vector<256x64xf32>
    %38 = arith.addf %37, %23 : vector<256x64xf32>
    %c2 = arith.constant 2 : index
    %c0_24 = arith.constant 0 : index
    %c0_25 = arith.constant 0 : index
    %39 = vector.load %arg4[%c2, %c0_24, %c0_25] : memref<9x192x64xf32, #tpu.memory_space<vmem>>, vector<1x192x64xf32>
    %40 = vector.shape_cast %39 : vector<1x192x64xf32> to vector<192x64xf32>
    %cst_26 = arith.constant 0.000000e+00 : f32
    %41 = vector.broadcast %cst_26 : f32 to vector<8x64xf32>
    %42 = tpu.concatenate %41, %38, %41 in 0 : vector<8x64xf32>, vector<256x64xf32>, vector<8x64xf32> -> vector<272x64xf32>
    %43 = vector.extract_strided_slice %42 {offsets = [0, 0], sizes = [256, 64], strides = [1, 1]} : vector<272x64xf32> to vector<256x64xf32>
    %44 = vector.extract_strided_slice %42 {offsets = [16, 0], sizes = [256, 64], strides = [1, 1]} : vector<272x64xf32> to vector<256x64xf32>
    %45 = tpu.concatenate %43, %38, %44 in 1 : vector<256x64xf32>, vector<256x64xf32>, vector<256x64xf32> -> vector<256x192xf32>
    %cst_27 = arith.constant dense<0.000000e+00> : vector<256x64xf32>
    %46 = tpu.matmul %45, %40, %cst_27 {dimension_numbers = #tpu.dot_dimension_numbers<[1], [0], [0], [1], [0, 0, 1, 1], [], []>} : vector<256x192xf32>, vector<192x64xf32>, vector<256x64xf32> -> vector<256x64xf32>
    %c2_28 = arith.constant 2 : index
    %c0_29 = arith.constant 0 : index
    %c0_30 = arith.constant 0 : index
    %47 = vector.load %arg5[%c2_28, %c0_29, %c0_30] : memref<9x1x64xf32, #tpu.memory_space<vmem>>, vector<1x1x64xf32>
    %48 = vector.shape_cast %47 : vector<1x1x64xf32> to vector<1x64xf32>
    %49 = vector.broadcast %48 : vector<1x64xf32> to vector<256x64xf32>
    %50 = arith.addf %46, %49 : vector<256x64xf32>
    %cst_31 = arith.constant 0.000000e+00 : f32
    %51 = vector.broadcast %cst_31 : f32 to vector<256x64xf32>
    %52 = arith.maximumf %50, %51 : vector<256x64xf32>
    %53 = arith.addf %52, %38 : vector<256x64xf32>
    %c3 = arith.constant 3 : index
    %c0_32 = arith.constant 0 : index
    %c0_33 = arith.constant 0 : index
    %54 = vector.load %arg4[%c3, %c0_32, %c0_33] : memref<9x192x64xf32, #tpu.memory_space<vmem>>, vector<1x192x64xf32>
    %55 = vector.shape_cast %54 : vector<1x192x64xf32> to vector<192x64xf32>
    %cst_34 = arith.constant 0.000000e+00 : f32
    %56 = vector.broadcast %cst_34 : f32 to vector<16x64xf32>
    %57 = tpu.concatenate %56, %53, %56 in 0 : vector<16x64xf32>, vector<256x64xf32>, vector<16x64xf32> -> vector<288x64xf32>
    %58 = vector.extract_strided_slice %57 {offsets = [0, 0], sizes = [256, 64], strides = [1, 1]} : vector<288x64xf32> to vector<256x64xf32>
    %59 = vector.extract_strided_slice %57 {offsets = [32, 0], sizes = [256, 64], strides = [1, 1]} : vector<288x64xf32> to vector<256x64xf32>
    %60 = tpu.concatenate %58, %53, %59 in 1 : vector<256x64xf32>, vector<256x64xf32>, vector<256x64xf32> -> vector<256x192xf32>
    %cst_35 = arith.constant dense<0.000000e+00> : vector<256x64xf32>
    %61 = tpu.matmul %60, %55, %cst_35 {dimension_numbers = #tpu.dot_dimension_numbers<[1], [0], [0], [1], [0, 0, 1, 1], [], []>} : vector<256x192xf32>, vector<192x64xf32>, vector<256x64xf32> -> vector<256x64xf32>
    %c3_36 = arith.constant 3 : index
    %c0_37 = arith.constant 0 : index
    %c0_38 = arith.constant 0 : index
    %62 = vector.load %arg5[%c3_36, %c0_37, %c0_38] : memref<9x1x64xf32, #tpu.memory_space<vmem>>, vector<1x1x64xf32>
    %63 = vector.shape_cast %62 : vector<1x1x64xf32> to vector<1x64xf32>
    %64 = vector.broadcast %63 : vector<1x64xf32> to vector<256x64xf32>
    %65 = arith.addf %61, %64 : vector<256x64xf32>
    %cst_39 = arith.constant 0.000000e+00 : f32
    %66 = vector.broadcast %cst_39 : f32 to vector<256x64xf32>
    %67 = arith.maximumf %65, %66 : vector<256x64xf32>
    %68 = arith.addf %67, %53 : vector<256x64xf32>
    %c4 = arith.constant 4 : index
    %c0_40 = arith.constant 0 : index
    %c0_41 = arith.constant 0 : index
    %69 = vector.load %arg4[%c4, %c0_40, %c0_41] : memref<9x192x64xf32, #tpu.memory_space<vmem>>, vector<1x192x64xf32>
    %70 = vector.shape_cast %69 : vector<1x192x64xf32> to vector<192x64xf32>
    %cst_42 = arith.constant 0.000000e+00 : f32
    %71 = vector.broadcast %cst_42 : f32 to vector<32x64xf32>
    %72 = tpu.concatenate %71, %68, %71 in 0 : vector<32x64xf32>, vector<256x64xf32>, vector<32x64xf32> -> vector<320x64xf32>
    %73 = vector.extract_strided_slice %72 {offsets = [0, 0], sizes = [256, 64], strides = [1, 1]} : vector<320x64xf32> to vector<256x64xf32>
    %74 = vector.extract_strided_slice %72 {offsets = [64, 0], sizes = [256, 64], strides = [1, 1]} : vector<320x64xf32> to vector<256x64xf32>
    %75 = tpu.concatenate %73, %68, %74 in 1 : vector<256x64xf32>, vector<256x64xf32>, vector<256x64xf32> -> vector<256x192xf32>
    %cst_43 = arith.constant dense<0.000000e+00> : vector<256x64xf32>
    %76 = tpu.matmul %75, %70, %cst_43 {dimension_numbers = #tpu.dot_dimension_numbers<[1], [0], [0], [1], [0, 0, 1, 1], [], []>} : vector<256x192xf32>, vector<192x64xf32>, vector<256x64xf32> -> vector<256x64xf32>
    %c4_44 = arith.constant 4 : index
    %c0_45 = arith.constant 0 : index
    %c0_46 = arith.constant 0 : index
    %77 = vector.load %arg5[%c4_44, %c0_45, %c0_46] : memref<9x1x64xf32, #tpu.memory_space<vmem>>, vector<1x1x64xf32>
    %78 = vector.shape_cast %77 : vector<1x1x64xf32> to vector<1x64xf32>
    %79 = vector.broadcast %78 : vector<1x64xf32> to vector<256x64xf32>
    %80 = arith.addf %76, %79 : vector<256x64xf32>
    %cst_47 = arith.constant 0.000000e+00 : f32
    %81 = vector.broadcast %cst_47 : f32 to vector<256x64xf32>
    %82 = arith.maximumf %80, %81 : vector<256x64xf32>
    %83 = arith.addf %82, %68 : vector<256x64xf32>
    %c5 = arith.constant 5 : index
    %c0_48 = arith.constant 0 : index
    %c0_49 = arith.constant 0 : index
    %84 = vector.load %arg4[%c5, %c0_48, %c0_49] : memref<9x192x64xf32, #tpu.memory_space<vmem>>, vector<1x192x64xf32>
    %85 = vector.shape_cast %84 : vector<1x192x64xf32> to vector<192x64xf32>
    %cst_50 = arith.constant 0.000000e+00 : f32
    %86 = vector.broadcast %cst_50 : f32 to vector<64x64xf32>
    %87 = tpu.concatenate %86, %83, %86 in 0 : vector<64x64xf32>, vector<256x64xf32>, vector<64x64xf32> -> vector<384x64xf32>
    %88 = vector.extract_strided_slice %87 {offsets = [0, 0], sizes = [256, 64], strides = [1, 1]} : vector<384x64xf32> to vector<256x64xf32>
    %89 = vector.extract_strided_slice %87 {offsets = [128, 0], sizes = [256, 64], strides = [1, 1]} : vector<384x64xf32> to vector<256x64xf32>
    %90 = tpu.concatenate %88, %83, %89 in 1 : vector<256x64xf32>, vector<256x64xf32>, vector<256x64xf32> -> vector<256x192xf32>
    %cst_51 = arith.constant dense<0.000000e+00> : vector<256x64xf32>
    %91 = tpu.matmul %90, %85, %cst_51 {dimension_numbers = #tpu.dot_dimension_numbers<[1], [0], [0], [1], [0, 0, 1, 1], [], []>} : vector<256x192xf32>, vector<192x64xf32>, vector<256x64xf32> -> vector<256x64xf32>
    %c5_52 = arith.constant 5 : index
    %c0_53 = arith.constant 0 : index
    %c0_54 = arith.constant 0 : index
    %92 = vector.load %arg5[%c5_52, %c0_53, %c0_54] : memref<9x1x64xf32, #tpu.memory_space<vmem>>, vector<1x1x64xf32>
    %93 = vector.shape_cast %92 : vector<1x1x64xf32> to vector<1x64xf32>
    %94 = vector.broadcast %93 : vector<1x64xf32> to vector<256x64xf32>
    %95 = arith.addf %91, %94 : vector<256x64xf32>
    %cst_55 = arith.constant 0.000000e+00 : f32
    %96 = vector.broadcast %cst_55 : f32 to vector<256x64xf32>
    %97 = arith.maximumf %95, %96 : vector<256x64xf32>
    %98 = arith.addf %97, %83 : vector<256x64xf32>
    %c6 = arith.constant 6 : index
    %c0_56 = arith.constant 0 : index
    %c0_57 = arith.constant 0 : index
    %99 = vector.load %arg4[%c6, %c0_56, %c0_57] : memref<9x192x64xf32, #tpu.memory_space<vmem>>, vector<1x192x64xf32>
    %100 = vector.shape_cast %99 : vector<1x192x64xf32> to vector<192x64xf32>
    %cst_58 = arith.constant 0.000000e+00 : f32
    %101 = vector.broadcast %cst_58 : f32 to vector<128x64xf32>
    %102 = tpu.concatenate %101, %98, %101 in 0 : vector<128x64xf32>, vector<256x64xf32>, vector<128x64xf32> -> vector<512x64xf32>
    %103 = vector.extract_strided_slice %102 {offsets = [0, 0], sizes = [256, 64], strides = [1, 1]} : vector<512x64xf32> to vector<256x64xf32>
    %104 = vector.extract_strided_slice %102 {offsets = [256, 0], sizes = [256, 64], strides = [1, 1]} : vector<512x64xf32> to vector<256x64xf32>
    %105 = tpu.concatenate %103, %98, %104 in 1 : vector<256x64xf32>, vector<256x64xf32>, vector<256x64xf32> -> vector<256x192xf32>
    %cst_59 = arith.constant dense<0.000000e+00> : vector<256x64xf32>
    %106 = tpu.matmul %105, %100, %cst_59 {dimension_numbers = #tpu.dot_dimension_numbers<[1], [0], [0], [1], [0, 0, 1, 1], [], []>} : vector<256x192xf32>, vector<192x64xf32>, vector<256x64xf32> -> vector<256x64xf32>
    %c6_60 = arith.constant 6 : index
    %c0_61 = arith.constant 0 : index
    %c0_62 = arith.constant 0 : index
    %107 = vector.load %arg5[%c6_60, %c0_61, %c0_62] : memref<9x1x64xf32, #tpu.memory_space<vmem>>, vector<1x1x64xf32>
    %108 = vector.shape_cast %107 : vector<1x1x64xf32> to vector<1x64xf32>
    %109 = vector.broadcast %108 : vector<1x64xf32> to vector<256x64xf32>
    %110 = arith.addf %106, %109 : vector<256x64xf32>
    %cst_63 = arith.constant 0.000000e+00 : f32
    %111 = vector.broadcast %cst_63 : f32 to vector<256x64xf32>
    %112 = arith.maximumf %110, %111 : vector<256x64xf32>
    %113 = arith.addf %112, %98 : vector<256x64xf32>
    %c7 = arith.constant 7 : index
    %c0_64 = arith.constant 0 : index
    %c0_65 = arith.constant 0 : index
    %114 = vector.load %arg4[%c7, %c0_64, %c0_65] : memref<9x192x64xf32, #tpu.memory_space<vmem>>, vector<1x192x64xf32>
    %115 = vector.shape_cast %114 : vector<1x192x64xf32> to vector<192x64xf32>
    %116 = vector.extract_strided_slice %115 {offsets = [64, 0], sizes = [64, 64], strides = [1, 1]} : vector<192x64xf32> to vector<64x64xf32>
    %cst_66 = arith.constant dense<0.000000e+00> : vector<256x64xf32>
    %117 = tpu.matmul %113, %116, %cst_66 {dimension_numbers = #tpu.dot_dimension_numbers<[1], [0], [0], [1], [0, 0, 1, 1], [], []>} : vector<256x64xf32>, vector<64x64xf32>, vector<256x64xf32> -> vector<256x64xf32>
    %c7_67 = arith.constant 7 : index
    %c0_68 = arith.constant 0 : index
    %c0_69 = arith.constant 0 : index
    %118 = vector.load %arg5[%c7_67, %c0_68, %c0_69] : memref<9x1x64xf32, #tpu.memory_space<vmem>>, vector<1x1x64xf32>
    %119 = vector.shape_cast %118 : vector<1x1x64xf32> to vector<1x64xf32>
    %120 = vector.broadcast %119 : vector<1x64xf32> to vector<256x64xf32>
    %121 = arith.addf %117, %120 : vector<256x64xf32>
    %cst_70 = arith.constant 0.000000e+00 : f32
    %122 = vector.broadcast %cst_70 : f32 to vector<256x64xf32>
    %123 = arith.maximumf %121, %122 : vector<256x64xf32>
    %124 = arith.addf %123, %113 : vector<256x64xf32>
    %c8 = arith.constant 8 : index
    %c0_71 = arith.constant 0 : index
    %c0_72 = arith.constant 0 : index
    %125 = vector.load %arg4[%c8, %c0_71, %c0_72] : memref<9x192x64xf32, #tpu.memory_space<vmem>>, vector<1x192x64xf32>
    %126 = vector.shape_cast %125 : vector<1x192x64xf32> to vector<192x64xf32>
    %127 = vector.extract_strided_slice %126 {offsets = [64, 0], sizes = [64, 64], strides = [1, 1]} : vector<192x64xf32> to vector<64x64xf32>
    %cst_73 = arith.constant dense<0.000000e+00> : vector<256x64xf32>
    %128 = tpu.matmul %124, %127, %cst_73 {dimension_numbers = #tpu.dot_dimension_numbers<[1], [0], [0], [1], [0, 0, 1, 1], [], []>} : vector<256x64xf32>, vector<64x64xf32>, vector<256x64xf32> -> vector<256x64xf32>
    %c8_74 = arith.constant 8 : index
    %c0_75 = arith.constant 0 : index
    %c0_76 = arith.constant 0 : index
    %129 = vector.load %arg5[%c8_74, %c0_75, %c0_76] : memref<9x1x64xf32, #tpu.memory_space<vmem>>, vector<1x1x64xf32>
    %130 = vector.shape_cast %129 : vector<1x1x64xf32> to vector<1x64xf32>
    %131 = vector.broadcast %130 : vector<1x64xf32> to vector<256x64xf32>
    %132 = arith.addf %128, %131 : vector<256x64xf32>
    %cst_77 = arith.constant 0.000000e+00 : f32
    %133 = vector.broadcast %cst_77 : f32 to vector<256x64xf32>
    %134 = arith.maximumf %132, %133 : vector<256x64xf32>
    %135 = arith.addf %134, %124 : vector<256x64xf32>
    %cst_78 = arith.constant 0.000000e+00 : f32
    %136 = vector.broadcast %cst_78 : f32 to vector<12x64xf32>
    %137 = tpu.concatenate %136, %135, %136 in 0 : vector<12x64xf32>, vector<256x64xf32>, vector<12x64xf32> -> vector<280x64xf32>
    %138 = vector.extract_strided_slice %137 {offsets = [0, 0], sizes = [256, 64], strides = [1, 1]} : vector<280x64xf32> to vector<256x64xf32>
    %c0_79 = arith.constant 0 : index
    %c0_80 = arith.constant 0 : index
    %c0_81 = arith.constant 0 : index
    %139 = vector.load %arg6[%c0_79, %c0_80, %c0_81] : memref<25x1x64xf32, #tpu.memory_space<vmem>>, vector<1x1x64xf32>
    %140 = vector.shape_cast %139 : vector<1x1x64xf32> to vector<1x64xf32>
    %141 = vector.broadcast %140 : vector<1x64xf32> to vector<256x64xf32>
    %142 = arith.mulf %138, %141 : vector<256x64xf32>
    %143 = vector.extract_strided_slice %137 {offsets = [1, 0], sizes = [256, 64], strides = [1, 1]} : vector<280x64xf32> to vector<256x64xf32>
    %c1_82 = arith.constant 1 : index
    %c0_83 = arith.constant 0 : index
    %c0_84 = arith.constant 0 : index
    %144 = vector.load %arg6[%c1_82, %c0_83, %c0_84] : memref<25x1x64xf32, #tpu.memory_space<vmem>>, vector<1x1x64xf32>
    %145 = vector.shape_cast %144 : vector<1x1x64xf32> to vector<1x64xf32>
    %146 = vector.broadcast %145 : vector<1x64xf32> to vector<256x64xf32>
    %147 = arith.mulf %143, %146 : vector<256x64xf32>
    %148 = arith.addf %142, %147 : vector<256x64xf32>
    %149 = vector.extract_strided_slice %137 {offsets = [2, 0], sizes = [256, 64], strides = [1, 1]} : vector<280x64xf32> to vector<256x64xf32>
    %c2_85 = arith.constant 2 : index
    %c0_86 = arith.constant 0 : index
    %c0_87 = arith.constant 0 : index
    %150 = vector.load %arg6[%c2_85, %c0_86, %c0_87] : memref<25x1x64xf32, #tpu.memory_space<vmem>>, vector<1x1x64xf32>
    %151 = vector.shape_cast %150 : vector<1x1x64xf32> to vector<1x64xf32>
    %152 = vector.broadcast %151 : vector<1x64xf32> to vector<256x64xf32>
    %153 = arith.mulf %149, %152 : vector<256x64xf32>
    %154 = arith.addf %148, %153 : vector<256x64xf32>
    %155 = vector.extract_strided_slice %137 {offsets = [3, 0], sizes = [256, 64], strides = [1, 1]} : vector<280x64xf32> to vector<256x64xf32>
    %c3_88 = arith.constant 3 : index
    %c0_89 = arith.constant 0 : index
    %c0_90 = arith.constant 0 : index
    %156 = vector.load %arg6[%c3_88, %c0_89, %c0_90] : memref<25x1x64xf32, #tpu.memory_space<vmem>>, vector<1x1x64xf32>
    %157 = vector.shape_cast %156 : vector<1x1x64xf32> to vector<1x64xf32>
    %158 = vector.broadcast %157 : vector<1x64xf32> to vector<256x64xf32>
    %159 = arith.mulf %155, %158 : vector<256x64xf32>
    %160 = arith.addf %154, %159 : vector<256x64xf32>
    %161 = vector.extract_strided_slice %137 {offsets = [4, 0], sizes = [256, 64], strides = [1, 1]} : vector<280x64xf32> to vector<256x64xf32>
    %c4_91 = arith.constant 4 : index
    %c0_92 = arith.constant 0 : index
    %c0_93 = arith.constant 0 : index
    %162 = vector.load %arg6[%c4_91, %c0_92, %c0_93] : memref<25x1x64xf32, #tpu.memory_space<vmem>>, vector<1x1x64xf32>
    %163 = vector.shape_cast %162 : vector<1x1x64xf32> to vector<1x64xf32>
    %164 = vector.broadcast %163 : vector<1x64xf32> to vector<256x64xf32>
    %165 = arith.mulf %161, %164 : vector<256x64xf32>
    %166 = arith.addf %160, %165 : vector<256x64xf32>
    %167 = vector.extract_strided_slice %137 {offsets = [5, 0], sizes = [256, 64], strides = [1, 1]} : vector<280x64xf32> to vector<256x64xf32>
    %c5_94 = arith.constant 5 : index
    %c0_95 = arith.constant 0 : index
    %c0_96 = arith.constant 0 : index
    %168 = vector.load %arg6[%c5_94, %c0_95, %c0_96] : memref<25x1x64xf32, #tpu.memory_space<vmem>>, vector<1x1x64xf32>
    %169 = vector.shape_cast %168 : vector<1x1x64xf32> to vector<1x64xf32>
    %170 = vector.broadcast %169 : vector<1x64xf32> to vector<256x64xf32>
    %171 = arith.mulf %167, %170 : vector<256x64xf32>
    %172 = arith.addf %166, %171 : vector<256x64xf32>
    %173 = vector.extract_strided_slice %137 {offsets = [6, 0], sizes = [256, 64], strides = [1, 1]} : vector<280x64xf32> to vector<256x64xf32>
    %c6_97 = arith.constant 6 : index
    %c0_98 = arith.constant 0 : index
    %c0_99 = arith.constant 0 : index
    %174 = vector.load %arg6[%c6_97, %c0_98, %c0_99] : memref<25x1x64xf32, #tpu.memory_space<vmem>>, vector<1x1x64xf32>
    %175 = vector.shape_cast %174 : vector<1x1x64xf32> to vector<1x64xf32>
    %176 = vector.broadcast %175 : vector<1x64xf32> to vector<256x64xf32>
    %177 = arith.mulf %173, %176 : vector<256x64xf32>
    %178 = arith.addf %172, %177 : vector<256x64xf32>
    %179 = vector.extract_strided_slice %137 {offsets = [7, 0], sizes = [256, 64], strides = [1, 1]} : vector<280x64xf32> to vector<256x64xf32>
    %c7_100 = arith.constant 7 : index
    %c0_101 = arith.constant 0 : index
    %c0_102 = arith.constant 0 : index
    %180 = vector.load %arg6[%c7_100, %c0_101, %c0_102] : memref<25x1x64xf32, #tpu.memory_space<vmem>>, vector<1x1x64xf32>
    %181 = vector.shape_cast %180 : vector<1x1x64xf32> to vector<1x64xf32>
    %182 = vector.broadcast %181 : vector<1x64xf32> to vector<256x64xf32>
    %183 = arith.mulf %179, %182 : vector<256x64xf32>
    %184 = arith.addf %178, %183 : vector<256x64xf32>
    %185 = vector.extract_strided_slice %137 {offsets = [8, 0], sizes = [256, 64], strides = [1, 1]} : vector<280x64xf32> to vector<256x64xf32>
    %c8_103 = arith.constant 8 : index
    %c0_104 = arith.constant 0 : index
    %c0_105 = arith.constant 0 : index
    %186 = vector.load %arg6[%c8_103, %c0_104, %c0_105] : memref<25x1x64xf32, #tpu.memory_space<vmem>>, vector<1x1x64xf32>
    %187 = vector.shape_cast %186 : vector<1x1x64xf32> to vector<1x64xf32>
    %188 = vector.broadcast %187 : vector<1x64xf32> to vector<256x64xf32>
    %189 = arith.mulf %185, %188 : vector<256x64xf32>
    %190 = arith.addf %184, %189 : vector<256x64xf32>
    %191 = vector.extract_strided_slice %137 {offsets = [9, 0], sizes = [256, 64], strides = [1, 1]} : vector<280x64xf32> to vector<256x64xf32>
    %c9 = arith.constant 9 : index
    %c0_106 = arith.constant 0 : index
    %c0_107 = arith.constant 0 : index
    %192 = vector.load %arg6[%c9, %c0_106, %c0_107] : memref<25x1x64xf32, #tpu.memory_space<vmem>>, vector<1x1x64xf32>
    %193 = vector.shape_cast %192 : vector<1x1x64xf32> to vector<1x64xf32>
    %194 = vector.broadcast %193 : vector<1x64xf32> to vector<256x64xf32>
    %195 = arith.mulf %191, %194 : vector<256x64xf32>
    %196 = arith.addf %190, %195 : vector<256x64xf32>
    %197 = vector.extract_strided_slice %137 {offsets = [10, 0], sizes = [256, 64], strides = [1, 1]} : vector<280x64xf32> to vector<256x64xf32>
    %c10 = arith.constant 10 : index
    %c0_108 = arith.constant 0 : index
    %c0_109 = arith.constant 0 : index
    %198 = vector.load %arg6[%c10, %c0_108, %c0_109] : memref<25x1x64xf32, #tpu.memory_space<vmem>>, vector<1x1x64xf32>
    %199 = vector.shape_cast %198 : vector<1x1x64xf32> to vector<1x64xf32>
    %200 = vector.broadcast %199 : vector<1x64xf32> to vector<256x64xf32>
    %201 = arith.mulf %197, %200 : vector<256x64xf32>
    %202 = arith.addf %196, %201 : vector<256x64xf32>
    %203 = vector.extract_strided_slice %137 {offsets = [11, 0], sizes = [256, 64], strides = [1, 1]} : vector<280x64xf32> to vector<256x64xf32>
    %c11 = arith.constant 11 : index
    %c0_110 = arith.constant 0 : index
    %c0_111 = arith.constant 0 : index
    %204 = vector.load %arg6[%c11, %c0_110, %c0_111] : memref<25x1x64xf32, #tpu.memory_space<vmem>>, vector<1x1x64xf32>
    %205 = vector.shape_cast %204 : vector<1x1x64xf32> to vector<1x64xf32>
    %206 = vector.broadcast %205 : vector<1x64xf32> to vector<256x64xf32>
    %207 = arith.mulf %203, %206 : vector<256x64xf32>
    %208 = arith.addf %202, %207 : vector<256x64xf32>
    %209 = vector.extract_strided_slice %137 {offsets = [12, 0], sizes = [256, 64], strides = [1, 1]} : vector<280x64xf32> to vector<256x64xf32>
    %c12 = arith.constant 12 : index
    %c0_112 = arith.constant 0 : index
    %c0_113 = arith.constant 0 : index
    %210 = vector.load %arg6[%c12, %c0_112, %c0_113] : memref<25x1x64xf32, #tpu.memory_space<vmem>>, vector<1x1x64xf32>
    %211 = vector.shape_cast %210 : vector<1x1x64xf32> to vector<1x64xf32>
    %212 = vector.broadcast %211 : vector<1x64xf32> to vector<256x64xf32>
    %213 = arith.mulf %209, %212 : vector<256x64xf32>
    %214 = arith.addf %208, %213 : vector<256x64xf32>
    %215 = vector.extract_strided_slice %137 {offsets = [13, 0], sizes = [256, 64], strides = [1, 1]} : vector<280x64xf32> to vector<256x64xf32>
    %c13 = arith.constant 13 : index
    %c0_114 = arith.constant 0 : index
    %c0_115 = arith.constant 0 : index
    %216 = vector.load %arg6[%c13, %c0_114, %c0_115] : memref<25x1x64xf32, #tpu.memory_space<vmem>>, vector<1x1x64xf32>
    %217 = vector.shape_cast %216 : vector<1x1x64xf32> to vector<1x64xf32>
    %218 = vector.broadcast %217 : vector<1x64xf32> to vector<256x64xf32>
    %219 = arith.mulf %215, %218 : vector<256x64xf32>
    %220 = arith.addf %214, %219 : vector<256x64xf32>
    %221 = vector.extract_strided_slice %137 {offsets = [14, 0], sizes = [256, 64], strides = [1, 1]} : vector<280x64xf32> to vector<256x64xf32>
    %c14 = arith.constant 14 : index
    %c0_116 = arith.constant 0 : index
    %c0_117 = arith.constant 0 : index
    %222 = vector.load %arg6[%c14, %c0_116, %c0_117] : memref<25x1x64xf32, #tpu.memory_space<vmem>>, vector<1x1x64xf32>
    %223 = vector.shape_cast %222 : vector<1x1x64xf32> to vector<1x64xf32>
    %224 = vector.broadcast %223 : vector<1x64xf32> to vector<256x64xf32>
    %225 = arith.mulf %221, %224 : vector<256x64xf32>
    %226 = arith.addf %220, %225 : vector<256x64xf32>
    %227 = vector.extract_strided_slice %137 {offsets = [15, 0], sizes = [256, 64], strides = [1, 1]} : vector<280x64xf32> to vector<256x64xf32>
    %c15 = arith.constant 15 : index
    %c0_118 = arith.constant 0 : index
    %c0_119 = arith.constant 0 : index
    %228 = vector.load %arg6[%c15, %c0_118, %c0_119] : memref<25x1x64xf32, #tpu.memory_space<vmem>>, vector<1x1x64xf32>
    %229 = vector.shape_cast %228 : vector<1x1x64xf32> to vector<1x64xf32>
    %230 = vector.broadcast %229 : vector<1x64xf32> to vector<256x64xf32>
    %231 = arith.mulf %227, %230 : vector<256x64xf32>
    %232 = arith.addf %226, %231 : vector<256x64xf32>
    %233 = vector.extract_strided_slice %137 {offsets = [16, 0], sizes = [256, 64], strides = [1, 1]} : vector<280x64xf32> to vector<256x64xf32>
    %c16 = arith.constant 16 : index
    %c0_120 = arith.constant 0 : index
    %c0_121 = arith.constant 0 : index
    %234 = vector.load %arg6[%c16, %c0_120, %c0_121] : memref<25x1x64xf32, #tpu.memory_space<vmem>>, vector<1x1x64xf32>
    %235 = vector.shape_cast %234 : vector<1x1x64xf32> to vector<1x64xf32>
    %236 = vector.broadcast %235 : vector<1x64xf32> to vector<256x64xf32>
    %237 = arith.mulf %233, %236 : vector<256x64xf32>
    %238 = arith.addf %232, %237 : vector<256x64xf32>
    %239 = vector.extract_strided_slice %137 {offsets = [17, 0], sizes = [256, 64], strides = [1, 1]} : vector<280x64xf32> to vector<256x64xf32>
    %c17 = arith.constant 17 : index
    %c0_122 = arith.constant 0 : index
    %c0_123 = arith.constant 0 : index
    %240 = vector.load %arg6[%c17, %c0_122, %c0_123] : memref<25x1x64xf32, #tpu.memory_space<vmem>>, vector<1x1x64xf32>
    %241 = vector.shape_cast %240 : vector<1x1x64xf32> to vector<1x64xf32>
    %242 = vector.broadcast %241 : vector<1x64xf32> to vector<256x64xf32>
    %243 = arith.mulf %239, %242 : vector<256x64xf32>
    %244 = arith.addf %238, %243 : vector<256x64xf32>
    %245 = vector.extract_strided_slice %137 {offsets = [18, 0], sizes = [256, 64], strides = [1, 1]} : vector<280x64xf32> to vector<256x64xf32>
    %c18 = arith.constant 18 : index
    %c0_124 = arith.constant 0 : index
    %c0_125 = arith.constant 0 : index
    %246 = vector.load %arg6[%c18, %c0_124, %c0_125] : memref<25x1x64xf32, #tpu.memory_space<vmem>>, vector<1x1x64xf32>
    %247 = vector.shape_cast %246 : vector<1x1x64xf32> to vector<1x64xf32>
    %248 = vector.broadcast %247 : vector<1x64xf32> to vector<256x64xf32>
    %249 = arith.mulf %245, %248 : vector<256x64xf32>
    %250 = arith.addf %244, %249 : vector<256x64xf32>
    %251 = vector.extract_strided_slice %137 {offsets = [19, 0], sizes = [256, 64], strides = [1, 1]} : vector<280x64xf32> to vector<256x64xf32>
    %c19 = arith.constant 19 : index
    %c0_126 = arith.constant 0 : index
    %c0_127 = arith.constant 0 : index
    %252 = vector.load %arg6[%c19, %c0_126, %c0_127] : memref<25x1x64xf32, #tpu.memory_space<vmem>>, vector<1x1x64xf32>
    %253 = vector.shape_cast %252 : vector<1x1x64xf32> to vector<1x64xf32>
    %254 = vector.broadcast %253 : vector<1x64xf32> to vector<256x64xf32>
    %255 = arith.mulf %251, %254 : vector<256x64xf32>
    %256 = arith.addf %250, %255 : vector<256x64xf32>
    %257 = vector.extract_strided_slice %137 {offsets = [20, 0], sizes = [256, 64], strides = [1, 1]} : vector<280x64xf32> to vector<256x64xf32>
    %c20 = arith.constant 20 : index
    %c0_128 = arith.constant 0 : index
    %c0_129 = arith.constant 0 : index
    %258 = vector.load %arg6[%c20, %c0_128, %c0_129] : memref<25x1x64xf32, #tpu.memory_space<vmem>>, vector<1x1x64xf32>
    %259 = vector.shape_cast %258 : vector<1x1x64xf32> to vector<1x64xf32>
    %260 = vector.broadcast %259 : vector<1x64xf32> to vector<256x64xf32>
    %261 = arith.mulf %257, %260 : vector<256x64xf32>
    %262 = arith.addf %256, %261 : vector<256x64xf32>
    %263 = vector.extract_strided_slice %137 {offsets = [21, 0], sizes = [256, 64], strides = [1, 1]} : vector<280x64xf32> to vector<256x64xf32>
    %c21 = arith.constant 21 : index
    %c0_130 = arith.constant 0 : index
    %c0_131 = arith.constant 0 : index
    %264 = vector.load %arg6[%c21, %c0_130, %c0_131] : memref<25x1x64xf32, #tpu.memory_space<vmem>>, vector<1x1x64xf32>
    %265 = vector.shape_cast %264 : vector<1x1x64xf32> to vector<1x64xf32>
    %266 = vector.broadcast %265 : vector<1x64xf32> to vector<256x64xf32>
    %267 = arith.mulf %263, %266 : vector<256x64xf32>
    %268 = arith.addf %262, %267 : vector<256x64xf32>
    %269 = vector.extract_strided_slice %137 {offsets = [22, 0], sizes = [256, 64], strides = [1, 1]} : vector<280x64xf32> to vector<256x64xf32>
    %c22 = arith.constant 22 : index
    %c0_132 = arith.constant 0 : index
    %c0_133 = arith.constant 0 : index
    %270 = vector.load %arg6[%c22, %c0_132, %c0_133] : memref<25x1x64xf32, #tpu.memory_space<vmem>>, vector<1x1x64xf32>
    %271 = vector.shape_cast %270 : vector<1x1x64xf32> to vector<1x64xf32>
    %272 = vector.broadcast %271 : vector<1x64xf32> to vector<256x64xf32>
    %273 = arith.mulf %269, %272 : vector<256x64xf32>
    %274 = arith.addf %268, %273 : vector<256x64xf32>
    %275 = vector.extract_strided_slice %137 {offsets = [23, 0], sizes = [256, 64], strides = [1, 1]} : vector<280x64xf32> to vector<256x64xf32>
    %c23 = arith.constant 23 : index
    %c0_134 = arith.constant 0 : index
    %c0_135 = arith.constant 0 : index
    %276 = vector.load %arg6[%c23, %c0_134, %c0_135] : memref<25x1x64xf32, #tpu.memory_space<vmem>>, vector<1x1x64xf32>
    %277 = vector.shape_cast %276 : vector<1x1x64xf32> to vector<1x64xf32>
    %278 = vector.broadcast %277 : vector<1x64xf32> to vector<256x64xf32>
    %279 = arith.mulf %275, %278 : vector<256x64xf32>
    %280 = arith.addf %274, %279 : vector<256x64xf32>
    %281 = vector.extract_strided_slice %137 {offsets = [24, 0], sizes = [256, 64], strides = [1, 1]} : vector<280x64xf32> to vector<256x64xf32>
    %c24 = arith.constant 24 : index
    %c0_136 = arith.constant 0 : index
    %c0_137 = arith.constant 0 : index
    %282 = vector.load %arg6[%c24, %c0_136, %c0_137] : memref<25x1x64xf32, #tpu.memory_space<vmem>>, vector<1x1x64xf32>
    %283 = vector.shape_cast %282 : vector<1x1x64xf32> to vector<1x64xf32>
    %284 = vector.broadcast %283 : vector<1x64xf32> to vector<256x64xf32>
    %285 = arith.mulf %281, %284 : vector<256x64xf32>
    %286 = arith.addf %280, %285 : vector<256x64xf32>
    %cst_138 = arith.constant dense<0.000000e+00> : vector<256xf32>
    %287 = vector.multi_reduction <add>, %286, %cst_138 [1] : vector<256x64xf32> to vector<256xf32>
    %288 = vector.shape_cast %287 : vector<256xf32> to vector<256x1xf32>
    %c0_139 = arith.constant 0 : index
    %c0_140 = arith.constant 0 : index
    %289 = vector.load %arg7[%c0_139, %c0_140] : memref<1x1xf32, #tpu.memory_space<vmem>>, vector<1x1xf32>
    %290 = vector.broadcast %289 : vector<1x1xf32> to vector<256x1xf32>
    %291 = arith.addf %288, %290 : vector<256x1xf32>
    %292 = vector.shape_cast %291 : vector<256x1xf32> to vector<1x256x1xf32>
    %c0_141 = arith.constant 0 : index
    %c0_142 = arith.constant 0 : index
    %c0_143 = arith.constant 0 : index
    %293 = vector.load %arg8[%c0_141, %c0_142, %c0_143] : memref<1x256x1xf32, #tpu.memory_space<vmem>>, vector<1x256x1xf32>
    tpu.vector_store %arg8[%c0_141, %c0_142, %c0_143], %292 {strides = array<i32>} : memref<1x256x1xf32, #tpu.memory_space<vmem>>, vector<1x256x1xf32>,
    return
  }
  func.func @transform_0(%arg0: i32) -> (i32, i32, i32) {
    %c0_i32 = arith.constant 0 : i32
    %c0_i32_0 = arith.constant 0 : i32
    %c0_i32_1 = arith.constant 0 : i32
    return %arg0, %c0_i32, %c0_i32_0 : i32, i32, i32
  }
  func.func @transform_1(%arg0: i32) -> (i32, i32) {
    %c0_i32 = arith.constant 0 : i32
    %c0_i32_0 = arith.constant 0 : i32
    %c0_i32_1 = arith.constant 0 : i32
    return %c0_i32, %c0_i32_0 : i32, i32
  }
  func.func @transform_2(%arg0: i32) -> (i32, i32) {
    %c0_i32 = arith.constant 0 : i32
    %c0_i32_0 = arith.constant 0 : i32
    %c0_i32_1 = arith.constant 0 : i32
    return %c0_i32, %c0_i32_0 : i32, i32
  }
  func.func @transform_3(%arg0: i32) -> (i32, i32, i32) {
    %c0_i32 = arith.constant 0 : i32
    %c0_i32_0 = arith.constant 0 : i32
    %c0_i32_1 = arith.constant 0 : i32
    %c0_i32_2 = arith.constant 0 : i32
    return %c0_i32, %c0_i32_0, %c0_i32_1 : i32, i32, i32
  }
  func.func @transform_4(%arg0: i32) -> (i32, i32, i32) {
    %c0_i32 = arith.constant 0 : i32
    %c0_i32_0 = arith.constant 0 : i32
    %c0_i32_1 = arith.constant 0 : i32
    %c0_i32_2 = arith.constant 0 : i32
    return %c0_i32, %c0_i32_0, %c0_i32_1 : i32, i32, i32
  }
  func.func @transform_5(%arg0: i32) -> (i32, i32, i32) {
    %c0_i32 = arith.constant 0 : i32
    %c0_i32_0 = arith.constant 0 : i32
    %c0_i32_1 = arith.constant 0 : i32
    %c0_i32_2 = arith.constant 0 : i32
    return %c0_i32, %c0_i32_0, %c0_i32_1 : i32, i32, i32
  }
  func.func @transform_6(%arg0: i32) -> (i32, i32) {
    %c0_i32 = arith.constant 0 : i32
    %c0_i32_0 = arith.constant 0 : i32
    %c0_i32_1 = arith.constant 0 : i32
    return %c0_i32, %c0_i32_0 : i32, i32
  }
  func.func @transform_7(%arg0: i32) -> (i32, i32, i32) {
    %c0_i32 = arith.constant 0 : i32
    %c0_i32_0 = arith.constant 0 : i32
    %c0_i32_1 = arith.constant 0 : i32
    return %arg0, %c0_i32, %c0_i32_0 : i32, i32, i32
  }
}

</mosaic_0001>

<llo_original>
// kernel: tpu_custom_call.1
$region0: #{tpu_custom_call.1}
  #allocation0 [shape = 'u32[]', space=smem, size = 0x4, offset = 0x4, fixed_abs, tag = 'smem constant byte address 0x4 - core index']
  #allocation1 [shape = 'u32[72,128]{1,0:T(1,128)}', space=vmem, size = 0x9000, scoped, tag = 'internal scratch']
  #allocation2 [shape = 'f32[1,1]{1,0:T(1,128)S(1)}', space=vmem, size = 0x200, scoped, tag = 'scoped memory for tpu_custom_call.1']
  %s0 = inlined_call_operand.vmem [shape: f32[2,256,100], index: 0, kind: input, shape index: {}]
  %s1 = inlined_call_operand.vmem [shape: f32[100,64], index: 1, kind: input, shape index: {}]
  %s2 = inlined_call_operand.vmem [shape: f32[1,64], index: 2, kind: input, shape index: {}]
  %s3 = inlined_call_operand.vmem [shape: f32[9,192,64], index: 3, kind: input, shape index: {}]
  %s4 = inlined_call_operand.vmem [shape: f32[9,1,64], index: 4, kind: input, shape index: {}]
  %s5 = inlined_call_operand.vmem [shape: f32[25,1,64], index: 5, kind: input, shape index: {}]
  %s6 = inlined_call_operand.<no memory space> [shape: f32[1,1], index: 6, kind: input, shape index: {}]
  %s7 = inlined_call_operand.vmem [shape: f32[2,256,1], index: 7, kind: output, shape index: {}]
  %s8 = sld [smem:[#allocation0]]
  $region61: #{tpu_custom_call.1} parent=0
    _
  %s10 = ssub.s32 1, %s8
  %s11 = scalar_select 0, %s10, %s8
  %v12 = vstv %s6
  %13 = vst [vmem:[#allocation2] sm:$0x1] %v12
  loop: start=0, step=1, limit=4
  $region2: #{tpu_custom_call.1} parent=0 // loop_pre_header
    _
  $region3: #{tpu_custom_call.1} parent=0 // loop_header
    %s15 = sphi 0, %s19
    %p16 = scmp.ge.s32.totalorder %s15, 4
    %s25 = sphi 0, %s27
    %s28 = sphi 0, %s25
    %s29 = sphi 0, %s28
    %s45 = sphi 0, %s29
    %s49 = sphi 0, %s49
    %s51 = sphi 0, %s49
    %s52 = sphi 0, %s51
    %s66 = sphi 0, %s52
    %s70 = sphi 0, %s70
    %s72 = sphi 0, %s70
    %s73 = sphi 0, %s72
    %s87 = sphi 0, %s73
    %s91 = sphi 0, %s91
    %s93 = sphi 0, %s91
    %s94 = sphi 0, %s93
    %s108 = sphi 0, %s94
    %s112 = sphi 0, %s112
    %s114 = sphi 0, %s112
    %s115 = sphi 0, %s114
    %s129 = sphi 0, %s115
    %s133 = sphi 0, %s133
    %s135 = sphi 0, %s133
    %s136 = sphi 0, %s135
    %s150 = sphi 0, %s136
    %s154 = sphi 0, %s154
    %s156 = sphi 0, %s154
    %s157 = sphi 0, %s156
    %s171 = sphi 0, %s157
    %s177 = sphi 0, %s179
    %s180 = sphi 0, %s177
    %s181 = sphi 0, %s180
    %s197 = sphi 0, %s181
  $region4: #{tpu_custom_call.1} parent=0 // loop_header_branch
    %18 = sbr.rel (%p16) target = $region8
  $region5: #{tpu_custom_call.1} parent=0 // loop_body
    %s20 = ssub.s32 %s15, 1
    %s21 = ssub.s32 %s15, 2
    %s22 = sadd.s32 %s15, 1
    %s23 = ssub.s32 %s15, %s22
    %p24 = scmp.eq.s32.totalorder %s23, 0
    %s26 = sadd.s32 %s25, 1
    %s27 = scalar_select %p24, %s25, %s26
    %p30 = pneg %p24
    %p31 = scmp.eq.s32.totalorder %s15, 1
    %p32 = por %p30, %p31
    %p33 = scmp.ne.s32.totalorder %s25, %s28
    %p34 = scmp.eq.s32.totalorder %s15, 0
    %p35 = por %p33, %p34
    %p36 = scmp.ne.s32.totalorder %s25, %s28
    %p37 = scmp.eq.s32.totalorder %s20, 1
    %p38 = por %p36, %p37
    %p39 = scmp.ne.s32.totalorder %s28, %s29
    %p40 = scmp.eq.s32.totalorder %s20, 0
    %p41 = por %p39, %p40
    %p42 = scmp.ne.s32.totalorder %s28, %s29
    %p43 = scmp.eq.s32.totalorder %s21, 1
    %p44 = por %p42, %p43
    %p46 = scmp.ne.s32.totalorder %s29, %s45
    %p47 = scmp.eq.s32.totalorder %s21, 0
    %p48 = por %p46, %p47
    %s50 = sadd.s32 %s49, 1
    %p53 = scmp.eq.s32.totalorder %s15, 1
    %p54 = scmp.ne.s32.totalorder %s49, %s51
    %p55 = scmp.eq.s32.totalorder %s15, 0
    %p56 = por %p54, %p55
    %p57 = scmp.ne.s32.totalorder %s49, %s51
    %p58 = scmp.eq.s32.totalorder %s20, 1
    %p59 = por %p57, %p58
    %p60 = scmp.ne.s32.totalorder %s51, %s52
    %p61 = scmp.eq.s32.totalorder %s20, 0
    %p62 = por %p60, %p61
    %p63 = scmp.ne.s32.totalorder %s51, %s52
    %p64 = scmp.eq.s32.totalorder %s21, 1
    %p65 = por %p63, %p64
    %p67 = scmp.ne.s32.totalorder %s52, %s66
    %p68 = scmp.eq.s32.totalorder %s21, 0
    %p69 = por %p67, %p68
    %s71 = sadd.s32 %s70, 1
    %p74 = scmp.eq.s32.totalorder %s15, 1
    %p75 = scmp.ne.s32.totalorder %s70, %s72
    %p76 = scmp.eq.s32.totalorder %s15, 0
    %p77 = por %p75, %p76
    %p78 = scmp.ne.s32.totalorder %s70, %s72
    %p79 = scmp.eq.s32.totalorder %s20, 1
    %p80 = por %p78, %p79
    %p81 = scmp.ne.s32.totalorder %s72, %s73
    %p82 = scmp.eq.s32.totalorder %s20, 0
    %p83 = por %p81, %p82
    %p84 = scmp.ne.s32.totalorder %s72, %s73
    %p85 = scmp.eq.s32.totalorder %s21, 1
    %p86 = por %p84, %p85
    %p88 = scmp.ne.s32.totalorder %s73, %s87
    %p89 = scmp.eq.s32.totalorder %s21, 0
    %p90 = por %p88, %p89
    %s92 = sadd.s32 %s91, 1
    %p95 = scmp.eq.s32.totalorder %s15, 1
    %p96 = scmp.ne.s32.totalorder %s91, %s93
    %p97 = scmp.eq.s32.totalorder %s15, 0
    %p98 = por %p96, %p97
    %p99 = scmp.ne.s32.totalorder %s91, %s93
    %p100 = scmp.eq.s32.totalorder %s20, 1
    %p101 = por %p99, %p100
    %p102 = scmp.ne.s32.totalorder %s93, %s94
    %p103 = scmp.eq.s32.totalorder %s20, 0
    %p104 = por %p102, %p103
    %p105 = scmp.ne.s32.totalorder %s93, %s94
    %p106 = scmp.eq.s32.totalorder %s21, 1
    %p107 = por %p105, %p106
    %p109 = scmp.ne.s32.totalorder %s94, %s108
    %p110 = scmp.eq.s32.totalorder %s21, 0
    %p111 = por %p109, %p110
    %s113 = sadd.s32 %s112, 1
    %p116 = scmp.eq.s32.totalorder %s15, 1
    %p117 = scmp.ne.s32.totalorder %s112, %s114
    %p118 = scmp.eq.s32.totalorder %s15, 0
    %p119 = por %p117, %p118
    %p120 = scmp.ne.s32.totalorder %s112, %s114
    %p121 = scmp.eq.s32.totalorder %s20, 1
    %p122 = por %p120, %p121
    %p123 = scmp.ne.s32.totalorder %s114, %s115
    %p124 = scmp.eq.s32.totalorder %s20, 0
    %p125 = por %p123, %p124
    %p126 = scmp.ne.s32.totalorder %s114, %s115
    %p127 = scmp.eq.s32.totalorder %s21, 1
    %p128 = por %p126, %p127
    %p130 = scmp.ne.s32.totalorder %s115, %s129
    %p131 = scmp.eq.s32.totalorder %s21, 0
    %p132 = por %p130, %p131
    %s134 = sadd.s32 %s133, 1
    %p137 = scmp.eq.s32.totalorder %s15, 1
    %p138 = scmp.ne.s32.totalorder %s133, %s135
    %p139 = scmp.eq.s32.totalorder %s15, 0
    %p140 = por %p138, %p139
    %p141 = scmp.ne.s32.totalorder %s133, %s135
    %p142 = scmp.eq.s32.totalorder %s20, 1
    %p143 = por %p141, %p142
    %p144 = scmp.ne.s32.totalorder %s135, %s136
    %p145 = scmp.eq.s32.totalorder %s20, 0
    %p146 = por %p144, %p145
    %p147 = scmp.ne.s32.totalorder %s135, %s136
    %p148 = scmp.eq.s32.totalorder %s21, 1
    %p149 = por %p147, %p148
    %p151 = scmp.ne.s32.totalorder %s136, %s150
    %p152 = scmp.eq.s32.totalorder %s21, 0
    %p153 = por %p151, %p152
    %s155 = sadd.s32 %s154, 1
    %p158 = scmp.eq.s32.totalorder %s15, 1
    %p159 = scmp.ne.s32.totalorder %s154, %s156
    %p160 = scmp.eq.s32.totalorder %s15, 0
    %p161 = por %p159, %p160
    %p162 = scmp.ne.s32.totalorder %s154, %s156
    %p163 = scmp.eq.s32.totalorder %s20, 1
    %p164 = por %p162, %p163
    %p165 = scmp.ne.s32.totalorder %s156, %s157
    %p166 = scmp.eq.s32.totalorder %s20, 0
    %p167 = por %p165, %p166
    %p168 = scmp.ne.s32.totalorder %s156, %s157
    %p169 = scmp.eq.s32.totalorder %s21, 1
    %p170 = por %p168, %p169
    %p172 = scmp.ne.s32.totalorder %s157, %s171
    %p173 = scmp.eq.s32.totalorder %s21, 0
    %p174 = por %p172, %p173
    %s175 = ssub.s32 %s15, %s22
    %p176 = scmp.eq.s32.totalorder %s175, 0
    %s178 = sadd.s32 %s177, 1
    %s179 = scalar_select %p176, %s177, %s178
    %p182 = pneg %p176
    %p183 = scmp.eq.s32.totalorder %s15, 1
    %p184 = por %p182, %p183
    %p185 = scmp.ne.s32.totalorder %s177, %s180
    %p186 = scmp.eq.s32.totalorder %s15, 0
    %p187 = por %p185, %p186
    %p188 = scmp.ne.s32.totalorder %s177, %s180
    %p189 = scmp.eq.s32.totalorder %s20, 1
    %p190 = por %p188, %p189
    %p191 = scmp.ne.s32.totalorder %s180, %s181
    %p192 = scmp.eq.s32.totalorder %s20, 0
    %p193 = por %p191, %p192
    %p194 = scmp.ne.s32.totalorder %s180, %s181
    %p195 = scmp.eq.s32.totalorder %s21, 1
    %p196 = por %p194, %p195
    %p198 = scmp.ne.s32.totalorder %s181, %s197
    %p199 = scmp.eq.s32.totalorder %s21, 0
    %p200 = por %p198, %p199
    %p201 = scmp.le.s32.totalorder 1, %s15
    %p202 = scmp.lt.s32.totalorder %s15, 3
    %p203 = pnand %p201, %p202
    %p204 = pneg %p203
    // Predicated region
    $region9: #{tpu_custom_call.1} parent=5 // pred_check
      _
    $region10: #{tpu_custom_call.1} parent=5 // pred_check_branch
      %206 = sbr.rel (%p203) target = $region12
    $region11: #{tpu_custom_call.1} parent=5 // pred_region
      %s207 = ssub.s32 %s15, 1
      // Predicated region
      $region13: #{tpu_custom_call.1} parent=11 // pred_check
        %p208 = pneg %p62
      $region14: #{tpu_custom_call.1} parent=11 // pred_check_branch
        %210 = sbr.rel (%p208) target = $region16
      $region15: #{tpu_custom_call.1} parent=11 // pred_region
        _
      $region16: #{tpu_custom_call.1} parent=11 // pred_fallthru
        _
      // Predicated region
      $region17: #{tpu_custom_call.1} parent=11 // pred_check
        %p211 = pneg %p83
      $region18: #{tpu_custom_call.1} parent=11 // pred_check_branch
        %213 = sbr.rel (%p211) target = $region20
      $region19: #{tpu_custom_call.1} parent=11 // pred_region
        _
      $region20: #{tpu_custom_call.1} parent=11 // pred_fallthru
        _
      // Predicated region
      $region21: #{tpu_custom_call.1} parent=11 // pred_check
        %p214 = pneg %p104
      $region22: #{tpu_custom_call.1} parent=11 // pred_check_branch
        %216 = sbr.rel (%p214) target = $region24
      $region23: #{tpu_custom_call.1} parent=11 // pred_region
        _
      $region24: #{tpu_custom_call.1} parent=11 // pred_fallthru
        _
      // Predicated region
      $region25: #{tpu_custom_call.1} parent=11 // pred_check
        %p217 = pneg %p125
      $region26: #{tpu_custom_call.1} parent=11 // pred_check_branch
        %219 = sbr.rel (%p217) target = $region28
      $region27: #{tpu_custom_call.1} parent=11 // pred_region
        _
      $region28: #{tpu_custom_call.1} parent=11 // pred_fallthru
        _
      // Predicated region
      $region29: #{tpu_custom_call.1} parent=11 // pred_check
        %p220 = pneg %p146
      $region30: #{tpu_custom_call.1} parent=11 // pred_check_branch
        %222 = sbr.rel (%p220) target = $region32
      $region31: #{tpu_custom_call.1} parent=11 // pred_region
        _
      $region32: #{tpu_custom_call.1} parent=11 // pred_fallthru
        _
      // Predicated region
      $region33: #{tpu_custom_call.1} parent=11 // pred_check
        %p223 = pneg %p167
      $region34: #{tpu_custom_call.1} parent=11 // pred_check_branch
        %225 = sbr.rel (%p223) target = $region36
      $region35: #{tpu_custom_call.1} parent=11 // pred_region
        _
      $region36: #{tpu_custom_call.1} parent=11 // pred_fallthru
        _
    $region12: #{tpu_custom_call.1} parent=5 // pred_fallthru
      _
    %p226 = scmp.lt.s32.totalorder %s15, 2
    // Predicated region
    $region37: #{tpu_custom_call.1} parent=5 // pred_check
      %p227 = pneg %p226
    $region38: #{tpu_custom_call.1} parent=5 // pred_check_branch
      %229 = sbr.rel (%p227) target = $region40
    $region39: #{tpu_custom_call.1} parent=5 // pred_region
      // Predicated region
      $region41: #{tpu_custom_call.1} parent=39 // pred_check
        %p230 = pneg %p35
      $region42: #{tpu_custom_call.1} parent=39 // pred_check_branch
        %232 = sbr.rel (%p230) target = $region44
      $region43: #{tpu_custom_call.1} parent=39 // pred_region
        %p233 = scmp.lt.s32.totalorder %s15, 1
        %s234 = scalar_select %p233, %s15, 1
        %s235 = smul.addr %s234, 32
        %s236 = smul.addr %s235, 8
        %s237 = scalar_lea.vmem %s0, %s236
      $region44: #{tpu_custom_call.1} parent=39 // pred_fallthru
        _
    $region40: #{tpu_custom_call.1} parent=5 // pred_fallthru
      _
    %p238 = scmp.le.s32.totalorder 1, %s15
    %p239 = scmp.lt.s32.totalorder %s15, 3
    %p240 = pnand %p238, %p239
    %p241 = pneg %p240
    // Predicated region
    $region45: #{tpu_custom_call.1} parent=5 // pred_check
      _
    $region46: #{tpu_custom_call.1} parent=5 // pred_check_branch
      %243 = sbr.rel (%p240) target = $region48
    $region47: #{tpu_custom_call.1} parent=5 // pred_region
      %s244 = ssub.s32 %s15, 1
      %p245 = scmp.lt.s32.totalorder %s20, 1
      %s246 = scalar_select %p245, %s20, 1
      %s247 = smul.addr %s246, 32
      %s248 = smul.addr %s247, 8
      %s249 = scalar_lea.vmem %s0, %s248
      %p250 = pneg %p41
      %p251 = pneg %p38
      %p252 = pneg %p62
      %p253 = pneg %p59
      %p254 = pneg %p83
      %p255 = pneg %p80
      %p256 = pneg %p104
      %p257 = pneg %p101
      %p258 = pneg %p125
      %p259 = pneg %p122
      %p260 = pneg %p146
      %p261 = pneg %p143
      %p262 = pneg %p167
      %p263 = pneg %p164
      %p264 = pneg %p193
      %p265 = pneg %p190
      %p266 = scmp.lt.s32.totalorder %s20, 1
      %s267 = scalar_select %p266, %s20, 1
      %s268 = smul.addr %s267, 32
      %s269 = smul.addr %s268, 8
      %s270 = scalar_lea.vmem %s7, %s269
      %p271 = scmp.lt.s32.totalorder %s20, 1
      %s272 = scalar_select %p271, %s20, 1
      %s273 = smul.addr %s272, 32
      %s274 = smul.addr %s273, 8
      %s275 = scalar_lea.vmem %s0, %s274
      %p276 = scmp.lt.s32.totalorder %s20, 1
      %s277 = scalar_select %p276, %s20, 1
      %s278 = smul.addr %s277, 32
      %s279 = smul.addr %s278, 8
      %s280 = scalar_lea.vmem %s7, %s279
      %v281 = vld [vmem:[%s275] sm:$0xff]
      %v282 = vld [vmem:[%s275 + $0x8] sm:$0xff]
      %v283 = vld [vmem:[%s275 + $0x10] sm:$0xff]
      %v284 = vld [vmem:[%s275 + $0x18] sm:$0xff]
      %v285 = vld [vmem:[%s275 + $0x20] sm:$0xff]
      %v286 = vld [vmem:[%s275 + $0x28] sm:$0xff]
      %v287 = vld [vmem:[%s275 + $0x30] sm:$0xff]
      %v288 = vld [vmem:[%s275 + $0x38] sm:$0xff]
      %v289 = vld [vmem:[%s275 + $0x40] sm:$0xff]
      %v290 = vld [vmem:[%s275 + $0x48] sm:$0xff]
      %v291 = vld [vmem:[%s275 + $0x50] sm:$0xff]
      %v292 = vld [vmem:[%s275 + $0x58] sm:$0xff]
      %v293 = vld [vmem:[%s275 + $0x60] sm:$0xff]
      %v294 = vld [vmem:[%s275 + $0x68] sm:$0xff]
      %v295 = vld [vmem:[%s275 + $0x70] sm:$0xff]
      %v296 = vld [vmem:[%s275 + $0x78] sm:$0xff]
      %v297 = vld [vmem:[%s275 + $0x80] sm:$0xff]
      %v298 = vld [vmem:[%s275 + $0x88] sm:$0xff]
      %v299 = vld [vmem:[%s275 + $0x90] sm:$0xff]
      %v300 = vld [vmem:[%s275 + $0x98] sm:$0xff]
      %v301 = vld [vmem:[%s275 + $0xa0] sm:$0xff]
      %v302 = vld [vmem:[%s275 + $0xa8] sm:$0xff]
      %v303 = vld [vmem:[%s275 + $0xb0] sm:$0xff]
      %v304 = vld [vmem:[%s275 + $0xb8] sm:$0xff]
      %v305 = vld [vmem:[%s275 + $0xc0] sm:$0xff]
      %v306 = vld [vmem:[%s275 + $0xc8] sm:$0xff]
      %v307 = vld [vmem:[%s275 + $0xd0] sm:$0xff]
      %v308 = vld [vmem:[%s275 + $0xd8] sm:$0xff]
      %v309 = vld [vmem:[%s275 + $0xe0] sm:$0xff]
      %v310 = vld [vmem:[%s275 + $0xe8] sm:$0xff]
      %v311 = vld [vmem:[%s275 + $0xf0] sm:$0xff]
      %v312 = vld [vmem:[%s275 + $0xf8] sm:$0xff]
      %v313 = vld [vmem:[%s1] sm:$0xff]
      %v314 = vld [vmem:[%s1 + $0x8] sm:$0xff]
      %v315 = vld [vmem:[%s1 + $0x10] sm:$0xff]
      %v316 = vld [vmem:[%s1 + $0x18] sm:$0xff]
      %v317 = vld [vmem:[%s1 + $0x20] sm:$0xff]
      %v318 = vld [vmem:[%s1 + $0x28] sm:$0xff]
      %v319 = vld [vmem:[%s1 + $0x30] sm:$0xff]
      %v320 = vld [vmem:[%s1 + $0x38] sm:$0xff]
      %v321 = vld [vmem:[%s1 + $0x40] sm:$0xff]
      %v322 = vld [vmem:[%s1 + $0x48] sm:$0xff]
      %v323 = vld [vmem:[%s1 + $0x50] sm:$0xff]
      %v324 = vld [vmem:[%s1 + $0x58] sm:$0xff]
      %v325 = vld [vmem:[%s1 + $0x60] sm:$0xf]
      %v326 = vld [vmem:[%s2] sm:$0x1]
      %v328 = vperm.slane %v326, 0
      %vm330 = vcmask 818176
      %v332 = vsel %vm330, %v281, 0
      %v335 = vsel %vm330, %v282, 0
      %v338 = vsel %vm330, %v283, 0
      %v341 = vsel %vm330, %v284, 0
      %v344 = vsel %vm330, %v285, 0
      %v347 = vsel %vm330, %v286, 0
      %v350 = vsel %vm330, %v287, 0
      %v353 = vsel %vm330, %v288, 0
      %v356 = vsel %vm330, %v289, 0
      %v359 = vsel %vm330, %v290, 0
      %v362 = vsel %vm330, %v291, 0
      %v365 = vsel %vm330, %v292, 0
      %v368 = vsel %vm330, %v293, 0
      %v371 = vsel %vm330, %v294, 0
      %v374 = vsel %vm330, %v295, 0
      %v377 = vsel %vm330, %v296, 0
      %v380 = vsel %vm330, %v297, 0
      %v383 = vsel %vm330, %v298, 0
      %v386 = vsel %vm330, %v299, 0
      %v389 = vsel %vm330, %v300, 0
      %v392 = vsel %vm330, %v301, 0
      %v395 = vsel %vm330, %v302, 0
      %v398 = vsel %vm330, %v303, 0
      %v401 = vsel %vm330, %v304, 0
      %v404 = vsel %vm330, %v305, 0
      %v407 = vsel %vm330, %v306, 0
      %v410 = vsel %vm330, %v307, 0
      %v413 = vsel %vm330, %v308, 0
      %v416 = vsel %vm330, %v309, 0
      %v419 = vsel %vm330, %v310, 0
      %v422 = vsel %vm330, %v311, 0
      %v425 = vsel %vm330, %v312, 0
      %vm427 = vcmask 1043456
      %v429 = vsel %vm427, %v325, 0
      %431 = vmatpush.msra.mxu0 0.0
      %432 = vmatpush.msra.mxu0 0.0
      %433 = vmatpush.msra.mxu0 0.0
      %434 = vmatpush.msra.mxu0 %v429
      %435 = vmatpush.msra.mxu0 %v324
      %436 = vmatpush.msra.mxu0 %v323
      %437 = vmatpush.msra.mxu0 %v322
      %438 = vmatpush.msra.mxu0 %v321
      %439 = vmatpush.msra.mxu0 %v320
      %440 = vmatpush.msra.mxu0 %v319
      %441 = vmatpush.msra.mxu0 %v318
      %442 = vmatpush.msra.mxu0 %v317
      %443 = vmatpush.msra.mxu0 %v316
      %444 = vmatpush.msra.mxu0 %v315
      %445 = vmatpush.msra.mxu0 %v314
      %446 = vmatpush.msra.mxu0 %v313
      %447 = vmatmul.f32.gmra.mxu0 %v332
      %v448 = vpop.f32.mrf.mxu0
      %v449 = vadd.f32 %v328, %v448
      %450 = vmatmul.f32.gmra.mxu0 %v335
      %v451 = vpop.f32.mrf.mxu0
      %v452 = vadd.f32 %v328, %v451
      %453 = vmatmul.f32.gmra.mxu0 %v338
      %v454 = vpop.f32.mrf.mxu0
      %v455 = vadd.f32 %v328, %v454
      %456 = vmatmul.f32.gmra.mxu0 %v341
      %v457 = vpop.f32.mrf.mxu0
      %v458 = vadd.f32 %v328, %v457
      %459 = vmatmul.f32.gmra.mxu0 %v344
      %v460 = vpop.f32.mrf.mxu0
      %v461 = vadd.f32 %v328, %v460
      %462 = vmatmul.f32.gmra.mxu0 %v347
      %v463 = vpop.f32.mrf.mxu0
      %v464 = vadd.f32 %v328, %v463
      %465 = vmatmul.f32.gmra.mxu0 %v350
      %v466 = vpop.f32.mrf.mxu0
      %v467 = vadd.f32 %v328, %v466
      %468 = vmatmul.f32.gmra.mxu0 %v353
      %v469 = vpop.f32.mrf.mxu0
      %v470 = vadd.f32 %v328, %v469
      %471 = vmatmul.f32.gmra.mxu0 %v356
      %v472 = vpop.f32.mrf.mxu0
      %v473 = vadd.f32 %v328, %v472
      %474 = vmatmul.f32.gmra.mxu0 %v359
      %v475 = vpop.f32.mrf.mxu0
      %v476 = vadd.f32 %v328, %v475
      %477 = vmatmul.f32.gmra.mxu0 %v362
      %v478 = vpop.f32.mrf.mxu0
      %v479 = vadd.f32 %v328, %v478
      %480 = vmatmul.f32.gmra.mxu0 %v365
      %v481 = vpop.f32.mrf.mxu0
      %v482 = vadd.f32 %v328, %v481
      %483 = vmatmul.f32.gmra.mxu0 %v368
      %v484 = vpop.f32.mrf.mxu0
      %v485 = vadd.f32 %v328, %v484
      %486 = vmatmul.f32.gmra.mxu0 %v371
      %v487 = vpop.f32.mrf.mxu0
      %v488 = vadd.f32 %v328, %v487
      %489 = vmatmul.f32.gmra.mxu0 %v374
      %v490 = vpop.f32.mrf.mxu0
      %v491 = vadd.f32 %v328, %v490
      %492 = vmatmul.f32.gmra.mxu0 %v377
      %v493 = vpop.f32.mrf.mxu0
      %v494 = vadd.f32 %v328, %v493
      %495 = vmatmul.f32.gmra.mxu0 %v380
      %v496 = vpop.f32.mrf.mxu0
      %v497 = vadd.f32 %v328, %v496
      %498 = vmatmul.f32.gmra.mxu0 %v383
      %v499 = vpop.f32.mrf.mxu0
      %v500 = vadd.f32 %v328, %v499
      %501 = vmatmul.f32.gmra.mxu0 %v386
      %v502 = vpop.f32.mrf.mxu0
      %v503 = vadd.f32 %v328, %v502
      %504 = vmatmul.f32.gmra.mxu0 %v389
      %v505 = vpop.f32.mrf.mxu0
      %v506 = vadd.f32 %v328, %v505
      %507 = vmatmul.f32.gmra.mxu0 %v392
      %v508 = vpop.f32.mrf.mxu0
      %v509 = vadd.f32 %v328, %v508
      %510 = vmatmul.f32.gmra.mxu0 %v395
      %v511 = vpop.f32.mrf.mxu0
      %v512 = vadd.f32 %v328, %v511
      %513 = vmatmul.f32.gmra.mxu0 %v398
      %v514 = vpop.f32.mrf.mxu0
      %v515 = vadd.f32 %v328, %v514
      %516 = vmatmul.f32.gmra.mxu0 %v401
      %v517 = vpop.f32.mrf.mxu0
      %v518 = vadd.f32 %v328, %v517
      %519 = vmatmul.f32.gmra.mxu0 %v404
      %v520 = vpop.f32.mrf.mxu0
      %v521 = vadd.f32 %v328, %v520
      %522 = vmatmul.f32.gmra.mxu0 %v407
      %v523 = vpop.f32.mrf.mxu0
      %v524 = vadd.f32 %v328, %v523
      %525 = vmatmul.f32.gmra.mxu0 %v410
      %v526 = vpop.f32.mrf.mxu0
      %v527 = vadd.f32 %v328, %v526
      %528 = vmatmul.f32.gmra.mxu0 %v413
      %v529 = vpop.f32.mrf.mxu0
      %v530 = vadd.f32 %v328, %v529
      %531 = vmatmul.f32.gmra.mxu0 %v416
      %v532 = vpop.f32.mrf.mxu0
      %v533 = vadd.f32 %v328, %v532
      %534 = vmatmul.f32.gmra.mxu0 %v419
      %v535 = vpop.f32.mrf.mxu0
      %v536 = vadd.f32 %v328, %v535
      %537 = vmatmul.f32.gmra.mxu0 %v422
      %v538 = vpop.f32.mrf.mxu0
      %v539 = vadd.f32 %v328, %v538
      %540 = vmatmul.f32.gmra.mxu0 %v425
      %v541 = vpop.f32.mrf.mxu0
      %v542 = vadd.f32 %v328, %v541
      %543 = vdwg.mxu0
      %v544 = vmax.f32 %v449, 0.0
      %v545 = vmax.f32 %v452, 0.0
      %v546 = vmax.f32 %v455, 0.0
      %v547 = vmax.f32 %v458, 0.0
      %v548 = vmax.f32 %v461, 0.0
      %v549 = vmax.f32 %v464, 0.0
      %v550 = vmax.f32 %v467, 0.0
      %v551 = vmax.f32 %v470, 0.0
      %v552 = vmax.f32 %v473, 0.0
      %v553 = vmax.f32 %v476, 0.0
      %v554 = vmax.f32 %v479, 0.0
      %v555 = vmax.f32 %v482, 0.0
      %v556 = vmax.f32 %v485, 0.0
      %v557 = vmax.f32 %v488, 0.0
      %v558 = vmax.f32 %v491, 0.0
      %v559 = vmax.f32 %v494, 0.0
      %v560 = vmax.f32 %v497, 0.0
      %v561 = vmax.f32 %v500, 0.0
      %v562 = vmax.f32 %v503, 0.0
      %v563 = vmax.f32 %v506, 0.0
      %v564 = vmax.f32 %v509, 0.0
      %v565 = vmax.f32 %v512, 0.0
      %v566 = vmax.f32 %v515, 0.0
      %v567 = vmax.f32 %v518, 0.0
      %v568 = vmax.f32 %v521, 0.0
      %v569 = vmax.f32 %v524, 0.0
      %v570 = vmax.f32 %v527, 0.0
      %v571 = vmax.f32 %v530, 0.0
      %v572 = vmax.f32 %v533, 0.0
      %v573 = vmax.f32 %v536, 0.0
      %v574 = vmax.f32 %v539, 0.0
      %v575 = vmax.f32 %v542, 0.0
      %v576 = vld [vmem:[%s3] sm:$0xff]
      %v577 = vld [vmem:[%s3 + $0x8] sm:$0xff]
      %v578 = vld [vmem:[%s3 + $0x10] sm:$0xff]
      %v579 = vld [vmem:[%s3 + $0x18] sm:$0xff]
      %v580 = vld [vmem:[%s3 + $0x20] sm:$0xff]
      %v581 = vld [vmem:[%s3 + $0x28] sm:$0xff]
      %v582 = vld [vmem:[%s3 + $0x30] sm:$0xff]
      %v583 = vld [vmem:[%s3 + $0x38] sm:$0xff]
      %v584 = vld [vmem:[%s3 + $0x40] sm:$0xff]
      %v585 = vld [vmem:[%s3 + $0x48] sm:$0xff]
      %v586 = vld [vmem:[%s3 + $0x50] sm:$0xff]
      %v587 = vld [vmem:[%s3 + $0x58] sm:$0xff]
      %v588 = vld [vmem:[%s3 + $0x60] sm:$0xff]
      %v589 = vld [vmem:[%s3 + $0x68] sm:$0xff]
      %v590 = vld [vmem:[%s3 + $0x70] sm:$0xff]
      %v591 = vld [vmem:[%s3 + $0x78] sm:$0xff]
      %v592 = vld [vmem:[%s3 + $0x80] sm:$0xff]
      %v593 = vld [vmem:[%s3 + $0x88] sm:$0xff]
      %v594 = vld [vmem:[%s3 + $0x90] sm:$0xff]
      %v595 = vld [vmem:[%s3 + $0x98] sm:$0xff]
      %v596 = vld [vmem:[%s3 + $0xa0] sm:$0xff]
      %v597 = vld [vmem:[%s3 + $0xa8] sm:$0xff]
      %v598 = vld [vmem:[%s3 + $0xb0] sm:$0xff]
      %v599 = vld [vmem:[%s3 + $0xb8] sm:$0xff]
      %vm632 = vcmask 1041408
      %v633 = vrot.slane %v544, 6
      %v634 = vrot.slane %v545, 6
      %v635 = vsel %vm632, %v633, %v634
      %v636 = vrot.slane %v546, 6
      %v637 = vsel %vm632, %v634, %v636
      %v638 = vrot.slane %v547, 6
      %v639 = vsel %vm632, %v636, %v638
      %v640 = vrot.slane %v548, 6
      %v641 = vsel %vm632, %v638, %v640
      %v642 = vrot.slane %v549, 6
      %v643 = vsel %vm632, %v640, %v642
      %v644 = vrot.slane %v550, 6
      %v645 = vsel %vm632, %v642, %v644
      %v646 = vrot.slane %v551, 6
      %v647 = vsel %vm632, %v644, %v646
      %v648 = vrot.slane %v552, 6
      %v649 = vsel %vm632, %v646, %v648
      %v650 = vrot.slane %v553, 6
      %v651 = vsel %vm632, %v648, %v650
      %v652 = vrot.slane %v554, 6
      %v653 = vsel %vm632, %v650, %v652
      %v654 = vrot.slane %v555, 6
      %v655 = vsel %vm632, %v652, %v654
      %v656 = vrot.slane %v556, 6
      %v657 = vsel %vm632, %v654, %v656
      %v658 = vrot.slane %v557, 6
      %v659 = vsel %vm632, %v656, %v658
      %v660 = vrot.slane %v558, 6
      %v661 = vsel %vm632, %v658, %v660
      %v662 = vrot.slane %v559, 6
      %v663 = vsel %vm632, %v660, %v662
      %v664 = vrot.slane %v560, 6
      %v665 = vsel %vm632, %v662, %v664
      %v666 = vrot.slane %v561, 6
      %v667 = vsel %vm632, %v664, %v666
      %v668 = vrot.slane %v562, 6
      %v669 = vsel %vm632, %v666, %v668
      %v670 = vrot.slane %v563, 6
      %v671 = vsel %vm632, %v668, %v670
      %v672 = vrot.slane %v564, 6
      %v673 = vsel %vm632, %v670, %v672
      %v674 = vrot.slane %v565, 6
      %v675 = vsel %vm632, %v672, %v674
      %v676 = vrot.slane %v566, 6
      %v677 = vsel %vm632, %v674, %v676
      %v678 = vrot.slane %v567, 6
      %v679 = vsel %vm632, %v676, %v678
      %v680 = vrot.slane %v568, 6
      %v681 = vsel %vm632, %v678, %v680
      %v682 = vrot.slane %v569, 6
      %v683 = vsel %vm632, %v680, %v682
      %v684 = vrot.slane %v570, 6
      %v685 = vsel %vm632, %v682, %v684
      %v686 = vrot.slane %v571, 6
      %v687 = vsel %vm632, %v684, %v686
      %v688 = vrot.slane %v572, 6
      %v689 = vsel %vm632, %v686, %v688
      %v690 = vrot.slane %v573, 6
      %v691 = vsel %vm632, %v688, %v690
      %v692 = vrot.slane %v574, 6
      %v693 = vsel %vm632, %v690, %v692
      %v694 = vrot.slane %v575, 6
      %v695 = vsel %vm632, %v692, %v694
      %v729 = vsel %vm632, 0.0, %v633
      %v730 = vsel %vm632, %v694, 0.0
      %731 = vrot.lane.b32.xlu0 %v544, 64
      %v732 = vpop.permute.xlu0 %731
      %733 = vrot.lane.b32.xlu0 %v545, 64
      %v734 = vpop.permute.xlu0 %733
      %735 = vrot.lane.b32.xlu0 %v546, 64
      %v736 = vpop.permute.xlu0 %735
      %737 = vrot.lane.b32.xlu0 %v547, 64
      %v738 = vpop.permute.xlu0 %737
      %739 = vrot.lane.b32.xlu0 %v548, 64
      %v740 = vpop.permute.xlu0 %739
      %741 = vrot.lane.b32.xlu0 %v549, 64
      %v742 = vpop.permute.xlu0 %741
      %743 = vrot.lane.b32.xlu0 %v550, 64
      %v744 = vpop.permute.xlu0 %743
      %745 = vrot.lane.b32.xlu0 %v551, 64
      %v746 = vpop.permute.xlu0 %745
      %747 = vrot.lane.b32.xlu0 %v552, 64
      %v748 = vpop.permute.xlu0 %747
      %749 = vrot.lane.b32.xlu0 %v553, 64
      %v750 = vpop.permute.xlu0 %749
      %751 = vrot.lane.b32.xlu0 %v554, 64
      %v752 = vpop.permute.xlu0 %751
      %753 = vrot.lane.b32.xlu0 %v555, 64
      %v754 = vpop.permute.xlu0 %753
      %755 = vrot.lane.b32.xlu0 %v556, 64
      %v756 = vpop.permute.xlu0 %755
      %757 = vrot.lane.b32.xlu0 %v557, 64
      %v758 = vpop.permute.xlu0 %757
      %759 = vrot.lane.b32.xlu0 %v558, 64
      %v760 = vpop.permute.xlu0 %759
      %761 = vrot.lane.b32.xlu0 %v559, 64
      %v762 = vpop.permute.xlu0 %761
      %763 = vrot.lane.b32.xlu0 %v560, 64
      %v764 = vpop.permute.xlu0 %763
      %765 = vrot.lane.b32.xlu0 %v561, 64
      %v766 = vpop.permute.xlu0 %765
      %767 = vrot.lane.b32.xlu0 %v562, 64
      %v768 = vpop.permute.xlu0 %767
      %769 = vrot.lane.b32.xlu0 %v563, 64
      %v770 = vpop.permute.xlu0 %769
      %771 = vrot.lane.b32.xlu0 %v564, 64
      %v772 = vpop.permute.xlu0 %771
      %773 = vrot.lane.b32.xlu0 %v565, 64
      %v774 = vpop.permute.xlu0 %773
      %775 = vrot.lane.b32.xlu0 %v566, 64
      %v776 = vpop.permute.xlu0 %775
      %777 = vrot.lane.b32.xlu0 %v567, 64
      %v778 = vpop.permute.xlu0 %777
      %779 = vrot.lane.b32.xlu0 %v568, 64
      %v780 = vpop.permute.xlu0 %779
      %781 = vrot.lane.b32.xlu0 %v569, 64
      %v782 = vpop.permute.xlu0 %781
      %783 = vrot.lane.b32.xlu0 %v570, 64
      %v784 = vpop.permute.xlu0 %783
      %785 = vrot.lane.b32.xlu0 %v571, 64
      %v786 = vpop.permute.xlu0 %785
      %787 = vrot.lane.b32.xlu0 %v572, 64
      %v788 = vpop.permute.xlu0 %787
      %789 = vrot.lane.b32.xlu0 %v573, 64
      %v790 = vpop.permute.xlu0 %789
      %791 = vrot.lane.b32.xlu0 %v574, 64
      %v792 = vpop.permute.xlu0 %791
      %793 = vrot.lane.b32.xlu0 %v575, 64
      %v794 = vpop.permute.xlu0 %793
      %v829 = vrot.slane %v729, 4
      %v830 = vrot.slane %v635, 4
      %v831 = vsel %vm427, %v829, %v830
      %v832 = vrot.slane %v637, 4
      %v833 = vsel %vm427, %v830, %v832
      %v834 = vrot.slane %v639, 4
      %v835 = vsel %vm427, %v832, %v834
      %v836 = vrot.slane %v641, 4
      %v837 = vsel %vm427, %v834, %v836
      %v838 = vrot.slane %v643, 4
      %v839 = vsel %vm427, %v836, %v838
      %v840 = vrot.slane %v645, 4
      %v841 = vsel %vm427, %v838, %v840
      %v842 = vrot.slane %v647, 4
      %v843 = vsel %vm427, %v840, %v842
      %v844 = vrot.slane %v649, 4
      %v845 = vsel %vm427, %v842, %v844
      %v846 = vrot.slane %v651, 4
      %v847 = vsel %vm427, %v844, %v846
      %v848 = vrot.slane %v653, 4
      %v849 = vsel %vm427, %v846, %v848
      %v850 = vrot.slane %v655, 4
      %v851 = vsel %vm427, %v848, %v850
      %v852 = vrot.slane %v657, 4
      %v853 = vsel %vm427, %v850, %v852
      %v854 = vrot.slane %v659, 4
      %v855 = vsel %vm427, %v852, %v854
      %v856 = vrot.slane %v661, 4
      %v857 = vsel %vm427, %v854, %v856
      %v858 = vrot.slane %v663, 4
      %v859 = vsel %vm427, %v856, %v858
      %v860 = vrot.slane %v665, 4
      %v861 = vsel %vm427, %v858, %v860
      %v862 = vrot.slane %v667, 4
      %v863 = vsel %vm427, %v860, %v862
      %v864 = vrot.slane %v669, 4
      %v865 = vsel %vm427, %v862, %v864
      %v866 = vrot.slane %v671, 4
      %v867 = vsel %vm427, %v864, %v866
      %v868 = vrot.slane %v673, 4
      %v869 = vsel %vm427, %v866, %v868
      %v870 = vrot.slane %v675, 4
      %v871 = vsel %vm427, %v868, %v870
      %v872 = vrot.slane %v677, 4
      %v873 = vsel %vm427, %v870, %v872
      %v874 = vrot.slane %v679, 4
      %v875 = vsel %vm427, %v872, %v874
      %v876 = vrot.slane %v681, 4
      %v877 = vsel %vm427, %v874, %v876
      %v878 = vrot.slane %v683, 4
      %v879 = vsel %vm427, %v876, %v878
      %v880 = vrot.slane %v685, 4
      %v881 = vsel %vm427, %v878, %v880
      %v882 = vrot.slane %v687, 4
      %v883 = vsel %vm427, %v880, %v882
      %v884 = vrot.slane %v689, 4
      %v885 = vsel %vm427, %v882, %v884
      %v886 = vrot.slane %v691, 4
      %v887 = vsel %vm427, %v884, %v886
      %v888 = vrot.slane %v693, 4
      %v889 = vsel %vm427, %v886, %v888
      %v890 = vrot.slane %v695, 4
      %v891 = vsel %vm427, %v888, %v890
      %v892 = vrot.slane %v730, 4
      %v893 = vsel %vm427, %v890, %v892
      %vm894 = vcmask 523264
      %v895 = vsel %vm894, %v729, %v732
      %v896 = vsel %vm894, %v635, %v734
      %v897 = vsel %vm894, %v637, %v736
      %v898 = vsel %vm894, %v639, %v738
      %v899 = vsel %vm894, %v641, %v740
      %v900 = vsel %vm894, %v643, %v742
      %v901 = vsel %vm894, %v645, %v744
      %v902 = vsel %vm894, %v647, %v746
      %v903 = vsel %vm894, %v649, %v748
      %v904 = vsel %vm894, %v651, %v750
      %v905 = vsel %vm894, %v653, %v752
      %v906 = vsel %vm894, %v655, %v754
      %v907 = vsel %vm894, %v657, %v756
      %v908 = vsel %vm894, %v659, %v758
      %v909 = vsel %vm894, %v661, %v760
      %v910 = vsel %vm894, %v663, %v762
      %v911 = vsel %vm894, %v665, %v764
      %v912 = vsel %vm894, %v667, %v766
      %v913 = vsel %vm894, %v669, %v768
      %v914 = vsel %vm894, %v671, %v770
      %v915 = vsel %vm894, %v673, %v772
      %v916 = vsel %vm894, %v675, %v774
      %v917 = vsel %vm894, %v677, %v776
      %v918 = vsel %vm894, %v679, %v778
      %v919 = vsel %vm894, %v681, %v780
      %v920 = vsel %vm894, %v683, %v782
      %v921 = vsel %vm894, %v685, %v784
      %v922 = vsel %vm894, %v687, %v786
      %v923 = vsel %vm894, %v689, %v788
      %v924 = vsel %vm894, %v691, %v790
      %v925 = vsel %vm894, %v693, %v792
      %v926 = vsel %vm894, %v695, %v794
      %v927 = vld [vmem:[%s4] sm:$0x1]
      %v929 = vperm.slane %v927, 0
      %v931 = vsel %vm894, %v831, 0
      %v933 = vsel %vm894, %v833, 0
      %v935 = vsel %vm894, %v835, 0
      %v937 = vsel %vm894, %v837, 0
      %v939 = vsel %vm894, %v839, 0
      %v941 = vsel %vm894, %v841, 0
      %v943 = vsel %vm894, %v843, 0
      %v945 = vsel %vm894, %v845, 0
      %v947 = vsel %vm894, %v847, 0
      %v949 = vsel %vm894, %v849, 0
      %v951 = vsel %vm894, %v851, 0
      %v953 = vsel %vm894, %v853, 0
      %v955 = vsel %vm894, %v855, 0
      %v957 = vsel %vm894, %v857, 0
      %v959 = vsel %vm894, %v859, 0
      %v961 = vsel %vm894, %v861, 0
      %v963 = vsel %vm894, %v863, 0
      %v965 = vsel %vm894, %v865, 0
      %v967 = vsel %vm894, %v867, 0
      %v969 = vsel %vm894, %v869, 0
      %v971 = vsel %vm894, %v871, 0
      %v973 = vsel %vm894, %v873, 0
      %v975 = vsel %vm894, %v875, 0
      %v977 = vsel %vm894, %v877, 0
      %v979 = vsel %vm894, %v879, 0
      %v981 = vsel %vm894, %v881, 0
      %v983 = vsel %vm894, %v883, 0
      %v985 = vsel %vm894, %v885, 0
      %v987 = vsel %vm894, %v887, 0
      %v989 = vsel %vm894, %v889, 0
      %v991 = vsel %vm894, %v891, 0
      %v993 = vsel %vm894, %v893, 0
      %995 = vmatpush.msra.mxu0 %v591
      %996 = vmatpush.msra.mxu0 %v590
      %997 = vmatpush.msra.mxu0 %v589
      %998 = vmatpush.msra.mxu0 %v588
      %999 = vmatpush.msra.mxu0 %v587
      %1000 = vmatpush.msra.mxu0 %v586
      %1001 = vmatpush.msra.mxu0 %v585
      %1002 = vmatpush.msra.mxu0 %v584
      %1003 = vmatpush.msra.mxu0 %v583
      %1004 = vmatpush.msra.mxu0 %v582
      %1005 = vmatpush.msra.mxu0 %v581
      %1006 = vmatpush.msra.mxu0 %v580
      %1007 = vmatpush.msra.mxu0 %v579
      %1008 = vmatpush.msra.mxu0 %v578
      %1009 = vmatpush.msra.mxu0 %v577
      %1010 = vmatpush.msra.mxu0 %v576
      %1011 = vmatmul.f32.gmra.mxu0 %v895
      %v1012 = vpop.f32.mrf.mxu0
      %v1013 = vadd.f32 %v929, %v1012
      %1014 = vmatmul.f32.gmra.mxu0 %v896
      %v1015 = vpop.f32.mrf.mxu0
      %v1016 = vadd.f32 %v929, %v1015
      %1017 = vmatmul.f32.gmra.mxu0 %v897
      %v1018 = vpop.f32.mrf.mxu0
      %v1019 = vadd.f32 %v929, %v1018
      %1020 = vmatmul.f32.gmra.mxu0 %v898
      %v1021 = vpop.f32.mrf.mxu0
      %v1022 = vadd.f32 %v929, %v1021
      %1023 = vmatmul.f32.gmra.mxu0 %v899
      %v1024 = vpop.f32.mrf.mxu0
      %v1025 = vadd.f32 %v929, %v1024
      %1026 = vmatmul.f32.gmra.mxu0 %v900
      %v1027 = vpop.f32.mrf.mxu0
      %v1028 = vadd.f32 %v929, %v1027
      %1029 = vmatmul.f32.gmra.mxu0 %v901
      %v1030 = vpop.f32.mrf.mxu0
      %v1031 = vadd.f32 %v929, %v1030
      %1032 = vmatmul.f32.gmra.mxu0 %v902
      %v1033 = vpop.f32.mrf.mxu0
      %v1034 = vadd.f32 %v929, %v1033
      %1035 = vmatmul.f32.gmra.mxu0 %v903
      %v1036 = vpop.f32.mrf.mxu0
      %v1037 = vadd.f32 %v929, %v1036
      %1038 = vmatmul.f32.gmra.mxu0 %v904
      %v1039 = vpop.f32.mrf.mxu0
      %v1040 = vadd.f32 %v929, %v1039
      %1041 = vmatmul.f32.gmra.mxu0 %v905
      %v1042 = vpop.f32.mrf.mxu0
      %v1043 = vadd.f32 %v929, %v1042
      %1044 = vmatmul.f32.gmra.mxu0 %v906
      %v1045 = vpop.f32.mrf.mxu0
      %v1046 = vadd.f32 %v929, %v1045
      %1047 = vmatmul.f32.gmra.mxu0 %v907
      %v1048 = vpop.f32.mrf.mxu0
      %v1049 = vadd.f32 %v929, %v1048
      %1050 = vmatmul.f32.gmra.mxu0 %v908
      %v1051 = vpop.f32.mrf.mxu0
      %v1052 = vadd.f32 %v929, %v1051
      %1053 = vmatmul.f32.gmra.mxu0 %v909
      %v1054 = vpop.f32.mrf.mxu0
      %v1055 = vadd.f32 %v929, %v1054
      %1056 = vmatmul.f32.gmra.mxu0 %v910
      %v1057 = vpop.f32.mrf.mxu0
      %v1058 = vadd.f32 %v929, %v1057
      %1059 = vmatmul.f32.gmra.mxu0 %v911
      %v1060 = vpop.f32.mrf.mxu0
      %v1061 = vadd.f32 %v929, %v1060
      %1062 = vmatmul.f32.gmra.mxu0 %v912
      %v1063 = vpop.f32.mrf.mxu0
      %v1064 = vadd.f32 %v929, %v1063
      %1065 = vmatmul.f32.gmra.mxu0 %v913
      %v1066 = vpop.f32.mrf.mxu0
      %v1067 = vadd.f32 %v929, %v1066
      %1068 = vmatmul.f32.gmra.mxu0 %v914
      %v1069 = vpop.f32.mrf.mxu0
      %v1070 = vadd.f32 %v929, %v1069
      %1071 = vmatmul.f32.gmra.mxu0 %v915
      %v1072 = vpop.f32.mrf.mxu0
      %v1073 = vadd.f32 %v929, %v1072
      %1074 = vmatmul.f32.gmra.mxu0 %v916
      %v1075 = vpop.f32.mrf.mxu0
      %v1076 = vadd.f32 %v929, %v1075
      %1077 = vmatmul.f32.gmra.mxu0 %v917
      %v1078 = vpop.f32.mrf.mxu0
      %v1079 = vadd.f32 %v929, %v1078
      %1080 = vmatmul.f32.gmra.mxu0 %v918
      %v1081 = vpop.f32.mrf.mxu0
      %v1082 = vadd.f32 %v929, %v1081
      %1083 = vmatmul.f32.gmra.mxu0 %v919
      %v1084 = vpop.f32.mrf.mxu0
      %v1085 = vadd.f32 %v929, %v1084
      %1086 = vmatmul.f32.gmra.mxu0 %v920
      %v1087 = vpop.f32.mrf.mxu0
      %v1088 = vadd.f32 %v929, %v1087
      %1089 = vmatmul.f32.gmra.mxu0 %v921
      %v1090 = vpop.f32.mrf.mxu0
      %v1091 = vadd.f32 %v929, %v1090
      %1092 = vmatmul.f32.gmra.mxu0 %v922
      %v1093 = vpop.f32.mrf.mxu0
      %v1094 = vadd.f32 %v929, %v1093
      %1095 = vmatmul.f32.gmra.mxu0 %v923
      %v1096 = vpop.f32.mrf.mxu0
      %v1097 = vadd.f32 %v929, %v1096
      %1098 = vmatmul.f32.gmra.mxu0 %v924
      %v1099 = vpop.f32.mrf.mxu0
      %v1100 = vadd.f32 %v929, %v1099
      %1101 = vmatmul.f32.gmra.mxu0 %v925
      %v1102 = vpop.f32.mrf.mxu0
      %v1103 = vadd.f32 %v929, %v1102
      %1104 = vmatmul.f32.gmra.mxu0 %v926
      %v1105 = vpop.f32.mrf.mxu0
      %v1106 = vadd.f32 %v929, %v1105
      %1107 = vdwg.mxu0
      %1108 = vmatpush.msra.mxu0 0.0
      %1109 = vmatpush.msra.mxu0 0.0
      %1110 = vmatpush.msra.mxu0 0.0
      %1111 = vmatpush.msra.mxu0 0.0
      %1112 = vmatpush.msra.mxu0 0.0
      %1113 = vmatpush.msra.mxu0 0.0
      %1114 = vmatpush.msra.mxu0 0.0
      %1115 = vmatpush.msra.mxu0 0.0
      %1116 = vmatpush.msra.mxu0 %v599
      %1117 = vmatpush.msra.mxu0 %v598
      %1118 = vmatpush.msra.mxu0 %v597
      %1119 = vmatpush.msra.mxu0 %v596
      %1120 = vmatpush.msra.mxu0 %v595
      %1121 = vmatpush.msra.mxu0 %v594
      %1122 = vmatpush.msra.mxu0 %v593
      %1123 = vmatpush.msra.mxu0 %v592
      %1124 = vmatmul.f32.gmra.mxu0 %v931
      %v1125 = vpop.f32.mrf.mxu0
      %v1126 = vadd.f32 %v1013, %v1125
      %1127 = vmatmul.f32.gmra.mxu0 %v933
      %v1128 = vpop.f32.mrf.mxu0
      %v1129 = vadd.f32 %v1016, %v1128
      %1130 = vmatmul.f32.gmra.mxu0 %v935
      %v1131 = vpop.f32.mrf.mxu0
      %v1132 = vadd.f32 %v1019, %v1131
      %1133 = vmatmul.f32.gmra.mxu0 %v937
      %v1134 = vpop.f32.mrf.mxu0
      %v1135 = vadd.f32 %v1022, %v1134
      %1136 = vmatmul.f32.gmra.mxu0 %v939
      %v1137 = vpop.f32.mrf.mxu0
      %v1138 = vadd.f32 %v1025, %v1137
      %1139 = vmatmul.f32.gmra.mxu0 %v941
      %v1140 = vpop.f32.mrf.mxu0
      %v1141 = vadd.f32 %v1028, %v1140
      %1142 = vmatmul.f32.gmra.mxu0 %v943
      %v1143 = vpop.f32.mrf.mxu0
      %v1144 = vadd.f32 %v1031, %v1143
      %1145 = vmatmul.f32.gmra.mxu0 %v945
      %v1146 = vpop.f32.mrf.mxu0
      %v1147 = vadd.f32 %v1034, %v1146
      %1148 = vmatmul.f32.gmra.mxu0 %v947
      %v1149 = vpop.f32.mrf.mxu0
      %v1150 = vadd.f32 %v1037, %v1149
      %1151 = vmatmul.f32.gmra.mxu0 %v949
      %v1152 = vpop.f32.mrf.mxu0
      %v1153 = vadd.f32 %v1040, %v1152
      %1154 = vmatmul.f32.gmra.mxu0 %v951
      %v1155 = vpop.f32.mrf.mxu0
      %v1156 = vadd.f32 %v1043, %v1155
      %1157 = vmatmul.f32.gmra.mxu0 %v953
      %v1158 = vpop.f32.mrf.mxu0
      %v1159 = vadd.f32 %v1046, %v1158
      %1160 = vmatmul.f32.gmra.mxu0 %v955
      %v1161 = vpop.f32.mrf.mxu0
      %v1162 = vadd.f32 %v1049, %v1161
      %1163 = vmatmul.f32.gmra.mxu0 %v957
      %v1164 = vpop.f32.mrf.mxu0
      %v1165 = vadd.f32 %v1052, %v1164
      %1166 = vmatmul.f32.gmra.mxu0 %v959
      %v1167 = vpop.f32.mrf.mxu0
      %v1168 = vadd.f32 %v1055, %v1167
      %1169 = vmatmul.f32.gmra.mxu0 %v961
      %v1170 = vpop.f32.mrf.mxu0
      %v1171 = vadd.f32 %v1058, %v1170
      %1172 = vmatmul.f32.gmra.mxu0 %v963
      %v1173 = vpop.f32.mrf.mxu0
      %v1174 = vadd.f32 %v1061, %v1173
      %1175 = vmatmul.f32.gmra.mxu0 %v965
      %v1176 = vpop.f32.mrf.mxu0
      %v1177 = vadd.f32 %v1064, %v1176
      %1178 = vmatmul.f32.gmra.mxu0 %v967
      %v1179 = vpop.f32.mrf.mxu0
      %v1180 = vadd.f32 %v1067, %v1179
      %1181 = vmatmul.f32.gmra.mxu0 %v969
      %v1182 = vpop.f32.mrf.mxu0
      %v1183 = vadd.f32 %v1070, %v1182
      %1184 = vmatmul.f32.gmra.mxu0 %v971
      %v1185 = vpop.f32.mrf.mxu0
      %v1186 = vadd.f32 %v1073, %v1185
      %1187 = vmatmul.f32.gmra.mxu0 %v973
      %v1188 = vpop.f32.mrf.mxu0
      %v1189 = vadd.f32 %v1076, %v1188
      %1190 = vmatmul.f32.gmra.mxu0 %v975
      %v1191 = vpop.f32.mrf.mxu0
      %v1192 = vadd.f32 %v1079, %v1191
      %1193 = vmatmul.f32.gmra.mxu0 %v977
      %v1194 = vpop.f32.mrf.mxu0
      %v1195 = vadd.f32 %v1082, %v1194
      %1196 = vmatmul.f32.gmra.mxu0 %v979
      %v1197 = vpop.f32.mrf.mxu0
      %v1198 = vadd.f32 %v1085, %v1197
      %1199 = vmatmul.f32.gmra.mxu0 %v981
      %v1200 = vpop.f32.mrf.mxu0
      %v1201 = vadd.f32 %v1088, %v1200
      %1202 = vmatmul.f32.gmra.mxu0 %v983
      %v1203 = vpop.f32.mrf.mxu0
      %v1204 = vadd.f32 %v1091, %v1203
      %1205 = vmatmul.f32.gmra.mxu0 %v985
      %v1206 = vpop.f32.mrf.mxu0
      %v1207 = vadd.f32 %v1094, %v1206
      %1208 = vmatmul.f32.gmra.mxu0 %v987
      %v1209 = vpop.f32.mrf.mxu0
      %v1210 = vadd.f32 %v1097, %v1209
      %1211 = vmatmul.f32.gmra.mxu0 %v989
      %v1212 = vpop.f32.mrf.mxu0
      %v1213 = vadd.f32 %v1100, %v1212
      %1214 = vmatmul.f32.gmra.mxu0 %v991
      %v1215 = vpop.f32.mrf.mxu0
      %v1216 = vadd.f32 %v1103, %v1215
      %1217 = vmatmul.f32.gmra.mxu0 %v993
      %v1218 = vpop.f32.mrf.mxu0
      %v1219 = vadd.f32 %v1106, %v1218
      %1220 = vdwg.mxu0
      %v1221 = vmax.f32 %v1126, 0.0
      %v1222 = vmax.f32 %v1129, 0.0
      %v1223 = vmax.f32 %v1132, 0.0
      %v1224 = vmax.f32 %v1135, 0.0
      %v1225 = vmax.f32 %v1138, 0.0
      %v1226 = vmax.f32 %v1141, 0.0
      %v1227 = vmax.f32 %v1144, 0.0
      %v1228 = vmax.f32 %v1147, 0.0
      %v1229 = vmax.f32 %v1150, 0.0
      %v1230 = vmax.f32 %v1153, 0.0
      %v1231 = vmax.f32 %v1156, 0.0
      %v1232 = vmax.f32 %v1159, 0.0
      %v1233 = vmax.f32 %v1162, 0.0
      %v1234 = vmax.f32 %v1165, 0.0
      %v1235 = vmax.f32 %v1168, 0.0
      %v1236 = vmax.f32 %v1171, 0.0
      %v1237 = vmax.f32 %v1174, 0.0
      %v1238 = vmax.f32 %v1177, 0.0
      %v1239 = vmax.f32 %v1180, 0.0
      %v1240 = vmax.f32 %v1183, 0.0
      %v1241 = vmax.f32 %v1186, 0.0
      %v1242 = vmax.f32 %v1189, 0.0
      %v1243 = vmax.f32 %v1192, 0.0
      %v1244 = vmax.f32 %v1195, 0.0
      %v1245 = vmax.f32 %v1198, 0.0
      %v1246 = vmax.f32 %v1201, 0.0
      %v1247 = vmax.f32 %v1204, 0.0
      %v1248 = vmax.f32 %v1207, 0.0
      %v1249 = vmax.f32 %v1210, 0.0
      %v1250 = vmax.f32 %v1213, 0.0
      %v1251 = vmax.f32 %v1216, 0.0
      %v1252 = vmax.f32 %v1219, 0.0
      %v1253 = vadd.f32 %v1221, %v544
      %v1254 = vadd.f32 %v1222, %v545
      %v1255 = vadd.f32 %v1223, %v546
      %v1256 = vadd.f32 %v1224, %v547
      %v1257 = vadd.f32 %v1225, %v548
      %v1258 = vadd.f32 %v1226, %v549
      %v1259 = vadd.f32 %v1227, %v550
      %v1260 = vadd.f32 %v1228, %v551
      %v1261 = vadd.f32 %v1229, %v552
      %v1262 = vadd.f32 %v1230, %v553
      %v1263 = vadd.f32 %v1231, %v554
      %v1264 = vadd.f32 %v1232, %v555
      %v1265 = vadd.f32 %v1233, %v556
      %v1266 = vadd.f32 %v1234, %v557
      %v1267 = vadd.f32 %v1235, %v558
      %v1268 = vadd.f32 %v1236, %v559
      %v1269 = vadd.f32 %v1237, %v560
      %v1270 = vadd.f32 %v1238, %v561
      %v1271 = vadd.f32 %v1239, %v562
      %v1272 = vadd.f32 %v1240, %v563
      %v1273 = vadd.f32 %v1241, %v564
      %v1274 = vadd.f32 %v1242, %v565
      %v1275 = vadd.f32 %v1243, %v566
      %v1276 = vadd.f32 %v1244, %v567
      %v1277 = vadd.f32 %v1245, %v568
      %v1278 = vadd.f32 %v1246, %v569
      %v1279 = vadd.f32 %v1247, %v570
      %v1280 = vadd.f32 %v1248, %v571
      %v1281 = vadd.f32 %v1249, %v572
      %v1282 = vadd.f32 %v1250, %v573
      %v1283 = vadd.f32 %v1251, %v574
      %v1284 = vadd.f32 %v1252, %v575
      %s1285 = scalar_lea.vmem %s3, 192
      %v1286 = vld [vmem:[%s1285] sm:$0xff]
      %v1287 = vld [vmem:[%s1285 + $0x8] sm:$0xff]
      %v1288 = vld [vmem:[%s1285 + $0x10] sm:$0xff]
      %v1289 = vld [vmem:[%s1285 + $0x18] sm:$0xff]
      %v1290 = vld [vmem:[%s1285 + $0x20] sm:$0xff]
      %v1291 = vld [vmem:[%s1285 + $0x28] sm:$0xff]
      %v1292 = vld [vmem:[%s1285 + $0x30] sm:$0xff]
      %v1293 = vld [vmem:[%s1285 + $0x38] sm:$0xff]
      %v1294 = vld [vmem:[%s1285 + $0x40] sm:$0xff]
      %v1295 = vld [vmem:[%s1285 + $0x48] sm:$0xff]
      %v1296 = vld [vmem:[%s1285 + $0x50] sm:$0xff]
      %v1297 = vld [vmem:[%s1285 + $0x58] sm:$0xff]
      %v1298 = vld [vmem:[%s1285 + $0x60] sm:$0xff]
      %v1299 = vld [vmem:[%s1285 + $0x68] sm:$0xff]
      %v1300 = vld [vmem:[%s1285 + $0x70] sm:$0xff]
      %v1301 = vld [vmem:[%s1285 + $0x78] sm:$0xff]
      %v1302 = vld [vmem:[%s1285 + $0x80] sm:$0xff]
      %v1303 = vld [vmem:[%s1285 + $0x88] sm:$0xff]
      %v1304 = vld [vmem:[%s1285 + $0x90] sm:$0xff]
      %v1305 = vld [vmem:[%s1285 + $0x98] sm:$0xff]
      %v1306 = vld [vmem:[%s1285 + $0xa0] sm:$0xff]
      %v1307 = vld [vmem:[%s1285 + $0xa8] sm:$0xff]
      %v1308 = vld [vmem:[%s1285 + $0xb0] sm:$0xff]
      %v1309 = vld [vmem:[%s1285 + $0xb8] sm:$0xff]
      %v1342 = vrot.slane %v1253, 4
      %v1343 = vrot.slane %v1254, 4
      %v1344 = vsel %vm427, %v1342, %v1343
      %v1345 = vrot.slane %v1255, 4
      %v1346 = vsel %vm427, %v1343, %v1345
      %v1347 = vrot.slane %v1256, 4
      %v1348 = vsel %vm427, %v1345, %v1347
      %v1349 = vrot.slane %v1257, 4
      %v1350 = vsel %vm427, %v1347, %v1349
      %v1351 = vrot.slane %v1258, 4
      %v1352 = vsel %vm427, %v1349, %v1351
      %v1353 = vrot.slane %v1259, 4
      %v1354 = vsel %vm427, %v1351, %v1353
      %v1355 = vrot.slane %v1260, 4
      %v1356 = vsel %vm427, %v1353, %v1355
      %v1357 = vrot.slane %v1261, 4
      %v1358 = vsel %vm427, %v1355, %v1357
      %v1359 = vrot.slane %v1262, 4
      %v1360 = vsel %vm427, %v1357, %v1359
      %v1361 = vrot.slane %v1263, 4
      %v1362 = vsel %vm427, %v1359, %v1361
      %v1363 = vrot.slane %v1264, 4
      %v1364 = vsel %vm427, %v1361, %v1363
      %v1365 = vrot.slane %v1265, 4
      %v1366 = vsel %vm427, %v1363, %v1365
      %v1367 = vrot.slane %v1266, 4
      %v1368 = vsel %vm427, %v1365, %v1367
      %v1369 = vrot.slane %v1267, 4
      %v1370 = vsel %vm427, %v1367, %v1369
      %v1371 = vrot.slane %v1268, 4
      %v1372 = vsel %vm427, %v1369, %v1371
      %v1373 = vrot.slane %v1269, 4
      %v1374 = vsel %vm427, %v1371, %v1373
      %v1375 = vrot.slane %v1270, 4
      %v1376 = vsel %vm427, %v1373, %v1375
      %v1377 = vrot.slane %v1271, 4
      %v1378 = vsel %vm427, %v1375, %v1377
      %v1379 = vrot.slane %v1272, 4
      %v1380 = vsel %vm427, %v1377, %v1379
      %v1381 = vrot.slane %v1273, 4
      %v1382 = vsel %vm427, %v1379, %v1381
      %v1383 = vrot.slane %v1274, 4
      %v1384 = vsel %vm427, %v1381, %v1383
      %v1385 = vrot.slane %v1275, 4
      %v1386 = vsel %vm427, %v1383, %v1385
      %v1387 = vrot.slane %v1276, 4
      %v1388 = vsel %vm427, %v1385, %v1387
      %v1389 = vrot.slane %v1277, 4
      %v1390 = vsel %vm427, %v1387, %v1389
      %v1391 = vrot.slane %v1278, 4
      %v1392 = vsel %vm427, %v1389, %v1391
      %v1393 = vrot.slane %v1279, 4
      %v1394 = vsel %vm427, %v1391, %v1393
      %v1395 = vrot.slane %v1280, 4
      %v1396 = vsel %vm427, %v1393, %v1395
      %v1397 = vrot.slane %v1281, 4
      %v1398 = vsel %vm427, %v1395, %v1397
      %v1399 = vrot.slane %v1282, 4
      %v1400 = vsel %vm427, %v1397, %v1399
      %v1401 = vrot.slane %v1283, 4
      %v1402 = vsel %vm427, %v1399, %v1401
      %v1403 = vrot.slane %v1284, 4
      %v1404 = vsel %vm427, %v1401, %v1403
      %v1438 = vsel %vm427, 0.0, %v1342
      %v1439 = vsel %vm427, %v1403, 0.0
      %1440 = vrot.lane.b32.xlu0 %v1253, 64
      %v1441 = vpop.permute.xlu0 %1440
      %1442 = vrot.lane.b32.xlu0 %v1254, 64
      %v1443 = vpop.permute.xlu0 %1442
      %1444 = vrot.lane.b32.xlu0 %v1255, 64
      %v1445 = vpop.permute.xlu0 %1444
      %1446 = vrot.lane.b32.xlu0 %v1256, 64
      %v1447 = vpop.permute.xlu0 %1446
      %1448 = vrot.lane.b32.xlu0 %v1257, 64
      %v1449 = vpop.permute.xlu0 %1448
      %1450 = vrot.lane.b32.xlu0 %v1258, 64
      %v1451 = vpop.permute.xlu0 %1450
      %1452 = vrot.lane.b32.xlu0 %v1259, 64
      %v1453 = vpop.permute.xlu0 %1452
      %1454 = vrot.lane.b32.xlu0 %v1260, 64
      %v1455 = vpop.permute.xlu0 %1454
      %1456 = vrot.lane.b32.xlu0 %v1261, 64
      %v1457 = vpop.permute.xlu0 %1456
      %1458 = vrot.lane.b32.xlu0 %v1262, 64
      %v1459 = vpop.permute.xlu0 %1458
      %1460 = vrot.lane.b32.xlu0 %v1263, 64
      %v1461 = vpop.permute.xlu0 %1460
      %1462 = vrot.lane.b32.xlu0 %v1264, 64
      %v1463 = vpop.permute.xlu0 %1462
      %1464 = vrot.lane.b32.xlu0 %v1265, 64
      %v1465 = vpop.permute.xlu0 %1464
      %1466 = vrot.lane.b32.xlu0 %v1266, 64
      %v1467 = vpop.permute.xlu0 %1466
      %1468 = vrot.lane.b32.xlu0 %v1267, 64
      %v1469 = vpop.permute.xlu0 %1468
      %1470 = vrot.lane.b32.xlu0 %v1268, 64
      %v1471 = vpop.permute.xlu0 %1470
      %1472 = vrot.lane.b32.xlu0 %v1269, 64
      %v1473 = vpop.permute.xlu0 %1472
      %1474 = vrot.lane.b32.xlu0 %v1270, 64
      %v1475 = vpop.permute.xlu0 %1474
      %1476 = vrot.lane.b32.xlu0 %v1271, 64
      %v1477 = vpop.permute.xlu0 %1476
      %1478 = vrot.lane.b32.xlu0 %v1272, 64
      %v1479 = vpop.permute.xlu0 %1478
      %1480 = vrot.lane.b32.xlu0 %v1273, 64
      %v1481 = vpop.permute.xlu0 %1480
      %1482 = vrot.lane.b32.xlu0 %v1274, 64
      %v1483 = vpop.permute.xlu0 %1482
      %1484 = vrot.lane.b32.xlu0 %v1275, 64
      %v1485 = vpop.permute.xlu0 %1484
      %1486 = vrot.lane.b32.xlu0 %v1276, 64
      %v1487 = vpop.permute.xlu0 %1486
      %1488 = vrot.lane.b32.xlu0 %v1277, 64
      %v1489 = vpop.permute.xlu0 %1488
      %1490 = vrot.lane.b32.xlu0 %v1278, 64
      %v1491 = vpop.permute.xlu0 %1490
      %1492 = vrot.lane.b32.xlu0 %v1279, 64
      %v1493 = vpop.permute.xlu0 %1492
      %1494 = vrot.lane.b32.xlu0 %v1280, 64
      %v1495 = vpop.permute.xlu0 %1494
      %1496 = vrot.lane.b32.xlu0 %v1281, 64
      %v1497 = vpop.permute.xlu0 %1496
      %1498 = vrot.lane.b32.xlu0 %v1282, 64
      %v1499 = vpop.permute.xlu0 %1498
      %1500 = vrot.lane.b32.xlu0 %v1283, 64
      %v1501 = vpop.permute.xlu0 %1500
      %1502 = vrot.lane.b32.xlu0 %v1284, 64
      %v1503 = vpop.permute.xlu0 %1502
      %v1536 = vsel %vm894, %v1438, %v1441
      %v1537 = vsel %vm894, %v1344, %v1443
      %v1538 = vsel %vm894, %v1346, %v1445
      %v1539 = vsel %vm894, %v1348, %v1447
      %v1540 = vsel %vm894, %v1350, %v1449
      %v1541 = vsel %vm894, %v1352, %v1451
      %v1542 = vsel %vm894, %v1354, %v1453
      %v1543 = vsel %vm894, %v1356, %v1455
      %v1544 = vsel %vm894, %v1358, %v1457
      %v1545 = vsel %vm894, %v1360, %v1459
      %v1546 = vsel %vm894, %v1362, %v1461
      %v1547 = vsel %vm894, %v1364, %v1463
      %v1548 = vsel %vm894, %v1366, %v1465
      %v1549 = vsel %vm894, %v1368, %v1467
      %v1550 = vsel %vm894, %v1370, %v1469
      %v1551 = vsel %vm894, %v1372, %v1471
      %v1552 = vsel %vm894, %v1374, %v1473
      %v1553 = vsel %vm894, %v1376, %v1475
      %v1554 = vsel %vm894, %v1378, %v1477
      %v1555 = vsel %vm894, %v1380, %v1479
      %v1556 = vsel %vm894, %v1382, %v1481
      %v1557 = vsel %vm894, %v1384, %v1483
      %v1558 = vsel %vm894, %v1386, %v1485
      %v1559 = vsel %vm894, %v1388, %v1487
      %v1560 = vsel %vm894, %v1390, %v1489
      %v1561 = vsel %vm894, %v1392, %v1491
      %v1562 = vsel %vm894, %v1394, %v1493
      %v1563 = vsel %vm894, %v1396, %v1495
      %v1564 = vsel %vm894, %v1398, %v1497
      %v1565 = vsel %vm894, %v1400, %v1499
      %v1566 = vsel %vm894, %v1402, %v1501
      %v1567 = vsel %vm894, %v1404, %v1503
      %s1568 = scalar_lea.vmem %s4, 1
      %v1569 = vld [vmem:[%s1568] sm:$0x1]
      %v1571 = vperm.slane %v1569, 0
      %v1573 = vsel %vm894, %v1344, 0
      %v1575 = vsel %vm894, %v1346, 0
      %v1577 = vsel %vm894, %v1348, 0
      %v1579 = vsel %vm894, %v1350, 0
      %v1581 = vsel %vm894, %v1352, 0
      %v1583 = vsel %vm894, %v1354, 0
      %v1585 = vsel %vm894, %v1356, 0
      %v1587 = vsel %vm894, %v1358, 0
      %v1589 = vsel %vm894, %v1360, 0
      %v1591 = vsel %vm894, %v1362, 0
      %v1593 = vsel %vm894, %v1364, 0
      %v1595 = vsel %vm894, %v1366, 0
      %v1597 = vsel %vm894, %v1368, 0
      %v1599 = vsel %vm894, %v1370, 0
      %v1601 = vsel %vm894, %v1372, 0
      %v1603 = vsel %vm894, %v1374, 0
      %v1605 = vsel %vm894, %v1376, 0
      %v1607 = vsel %vm894, %v1378, 0
      %v1609 = vsel %vm894, %v1380, 0
      %v1611 = vsel %vm894, %v1382, 0
      %v1613 = vsel %vm894, %v1384, 0
      %v1615 = vsel %vm894, %v1386, 0
      %v1617 = vsel %vm894, %v1388, 0
      %v1619 = vsel %vm894, %v1390, 0
      %v1621 = vsel %vm894, %v1392, 0
      %v1623 = vsel %vm894, %v1394, 0
      %v1625 = vsel %vm894, %v1396, 0
      %v1627 = vsel %vm894, %v1398, 0
      %v1629 = vsel %vm894, %v1400, 0
      %v1631 = vsel %vm894, %v1402, 0
      %v1633 = vsel %vm894, %v1404, 0
      %v1636 = vsel %vm894, %v1439, 0
      %1638 = vmatpush.msra.mxu0 %v1301
      %1639 = vmatpush.msra.mxu0 %v1300
      %1640 = vmatpush.msra.mxu0 %v1299
      %1641 = vmatpush.msra.mxu0 %v1298
      %1642 = vmatpush.msra.mxu0 %v1297
      %1643 = vmatpush.msra.mxu0 %v1296
      %1644 = vmatpush.msra.mxu0 %v1295
      %1645 = vmatpush.msra.mxu0 %v1294
      %1646 = vmatpush.msra.mxu0 %v1293
      %1647 = vmatpush.msra.mxu0 %v1292
      %1648 = vmatpush.msra.mxu0 %v1291
      %1649 = vmatpush.msra.mxu0 %v1290
      %1650 = vmatpush.msra.mxu0 %v1289
      %1651 = vmatpush.msra.mxu0 %v1288
      %1652 = vmatpush.msra.mxu0 %v1287
      %1653 = vmatpush.msra.mxu0 %v1286
      %1654 = vmatmul.f32.gmra.mxu0 %v1536
      %v1655 = vpop.f32.mrf.mxu0
      %v1656 = vadd.f32 %v1571, %v1655
      %1657 = vmatmul.f32.gmra.mxu0 %v1537
      %v1658 = vpop.f32.mrf.mxu0
      %v1659 = vadd.f32 %v1571, %v1658
      %1660 = vmatmul.f32.gmra.mxu0 %v1538
      %v1661 = vpop.f32.mrf.mxu0
      %v1662 = vadd.f32 %v1571, %v1661
      %1663 = vmatmul.f32.gmra.mxu0 %v1539
      %v1664 = vpop.f32.mrf.mxu0
      %v1665 = vadd.f32 %v1571, %v1664
      %1666 = vmatmul.f32.gmra.mxu0 %v1540
      %v1667 = vpop.f32.mrf.mxu0
      %v1668 = vadd.f32 %v1571, %v1667
      %1669 = vmatmul.f32.gmra.mxu0 %v1541
      %v1670 = vpop.f32.mrf.mxu0
      %v1671 = vadd.f32 %v1571, %v1670
      %1672 = vmatmul.f32.gmra.mxu0 %v1542
      %v1673 = vpop.f32.mrf.mxu0
      %v1674 = vadd.f32 %v1571, %v1673
      %1675 = vmatmul.f32.gmra.mxu0 %v1543
      %v1676 = vpop.f32.mrf.mxu0
      %v1677 = vadd.f32 %v1571, %v1676
      %1678 = vmatmul.f32.gmra.mxu0 %v1544
      %v1679 = vpop.f32.mrf.mxu0
      %v1680 = vadd.f32 %v1571, %v1679
      %1681 = vmatmul.f32.gmra.mxu0 %v1545
      %v1682 = vpop.f32.mrf.mxu0
      %v1683 = vadd.f32 %v1571, %v1682
      %1684 = vmatmul.f32.gmra.mxu0 %v1546
      %v1685 = vpop.f32.mrf.mxu0
      %v1686 = vadd.f32 %v1571, %v1685
      %1687 = vmatmul.f32.gmra.mxu0 %v1547
      %v1688 = vpop.f32.mrf.mxu0
      %v1689 = vadd.f32 %v1571, %v1688
      %1690 = vmatmul.f32.gmra.mxu0 %v1548
      %v1691 = vpop.f32.mrf.mxu0
      %v1692 = vadd.f32 %v1571, %v1691
      %1693 = vmatmul.f32.gmra.mxu0 %v1549
      %v1694 = vpop.f32.mrf.mxu0
      %v1695 = vadd.f32 %v1571, %v1694
      %1696 = vmatmul.f32.gmra.mxu0 %v1550
      %v1697 = vpop.f32.mrf.mxu0
      %v1698 = vadd.f32 %v1571, %v1697
      %1699 = vmatmul.f32.gmra.mxu0 %v1551
      %v1700 = vpop.f32.mrf.mxu0
      %v1701 = vadd.f32 %v1571, %v1700
      %1702 = vmatmul.f32.gmra.mxu0 %v1552
      %v1703 = vpop.f32.mrf.mxu0
      %v1704 = vadd.f32 %v1571, %v1703
      %1705 = vmatmul.f32.gmra.mxu0 %v1553
      %v1706 = vpop.f32.mrf.mxu0
      %v1707 = vadd.f32 %v1571, %v1706
      %1708 = vmatmul.f32.gmra.mxu0 %v1554
      %v1709 = vpop.f32.mrf.mxu0
      %v1710 = vadd.f32 %v1571, %v1709
      %1711 = vmatmul.f32.gmra.mxu0 %v1555
      %v1712 = vpop.f32.mrf.mxu0
      %v1713 = vadd.f32 %v1571, %v1712
      %1714 = vmatmul.f32.gmra.mxu0 %v1556
      %v1715 = vpop.f32.mrf.mxu0
      %v1716 = vadd.f32 %v1571, %v1715
      %1717 = vmatmul.f32.gmra.mxu0 %v1557
      %v1718 = vpop.f32.mrf.mxu0
      %v1719 = vadd.f32 %v1571, %v1718
      %1720 = vmatmul.f32.gmra.mxu0 %v1558
      %v1721 = vpop.f32.mrf.mxu0
      %v1722 = vadd.f32 %v1571, %v1721
      %1723 = vmatmul.f32.gmra.mxu0 %v1559
      %v1724 = vpop.f32.mrf.mxu0
      %v1725 = vadd.f32 %v1571, %v1724
      %1726 = vmatmul.f32.gmra.mxu0 %v1560
      %v1727 = vpop.f32.mrf.mxu0
      %v1728 = vadd.f32 %v1571, %v1727
      %1729 = vmatmul.f32.gmra.mxu0 %v1561
      %v1730 = vpop.f32.mrf.mxu0
      %v1731 = vadd.f32 %v1571, %v1730
      %1732 = vmatmul.f32.gmra.mxu0 %v1562
      %v1733 = vpop.f32.mrf.mxu0
      %v1734 = vadd.f32 %v1571, %v1733
      %1735 = vmatmul.f32.gmra.mxu0 %v1563
      %v1736 = vpop.f32.mrf.mxu0
      %v1737 = vadd.f32 %v1571, %v1736
      %1738 = vmatmul.f32.gmra.mxu0 %v1564
      %v1739 = vpop.f32.mrf.mxu0
      %v1740 = vadd.f32 %v1571, %v1739
      %1741 = vmatmul.f32.gmra.mxu0 %v1565
      %v1742 = vpop.f32.mrf.mxu0
      %v1743 = vadd.f32 %v1571, %v1742
      %1744 = vmatmul.f32.gmra.mxu0 %v1566
      %v1745 = vpop.f32.mrf.mxu0
      %v1746 = vadd.f32 %v1571, %v1745
      %1747 = vmatmul.f32.gmra.mxu0 %v1567
      %v1748 = vpop.f32.mrf.mxu0
      %v1749 = vadd.f32 %v1571, %v1748
      %1750 = vdwg.mxu0
      %1751 = vmatpush.msra.mxu0 0.0
      %1752 = vmatpush.msra.mxu0 0.0
      %1753 = vmatpush.msra.mxu0 0.0
      %1754 = vmatpush.msra.mxu0 0.0
      %1755 = vmatpush.msra.mxu0 0.0
      %1756 = vmatpush.msra.mxu0 0.0
      %1757 = vmatpush.msra.mxu0 0.0
      %1758 = vmatpush.msra.mxu0 0.0
      %1759 = vmatpush.msra.mxu0 %v1309
      %1760 = vmatpush.msra.mxu0 %v1308
      %1761 = vmatpush.msra.mxu0 %v1307
      %1762 = vmatpush.msra.mxu0 %v1306
      %1763 = vmatpush.msra.mxu0 %v1305
      %1764 = vmatpush.msra.mxu0 %v1304
      %1765 = vmatpush.msra.mxu0 %v1303
      %1766 = vmatpush.msra.mxu0 %v1302
      %1767 = vmatmul.f32.gmra.mxu0 %v1573
      %v1768 = vpop.f32.mrf.mxu0
      %v1769 = vadd.f32 %v1656, %v1768
      %1770 = vmatmul.f32.gmra.mxu0 %v1575
      %v1771 = vpop.f32.mrf.mxu0
      %v1772 = vadd.f32 %v1659, %v1771
      %1773 = vmatmul.f32.gmra.mxu0 %v1577
      %v1774 = vpop.f32.mrf.mxu0
      %v1775 = vadd.f32 %v1662, %v1774
      %1776 = vmatmul.f32.gmra.mxu0 %v1579
      %v1777 = vpop.f32.mrf.mxu0
      %v1778 = vadd.f32 %v1665, %v1777
      %1779 = vmatmul.f32.gmra.mxu0 %v1581
      %v1780 = vpop.f32.mrf.mxu0
      %v1781 = vadd.f32 %v1668, %v1780
      %1782 = vmatmul.f32.gmra.mxu0 %v1583
      %v1783 = vpop.f32.mrf.mxu0
      %v1784 = vadd.f32 %v1671, %v1783
      %1785 = vmatmul.f32.gmra.mxu0 %v1585
      %v1786 = vpop.f32.mrf.mxu0
      %v1787 = vadd.f32 %v1674, %v1786
      %1788 = vmatmul.f32.gmra.mxu0 %v1587
      %v1789 = vpop.f32.mrf.mxu0
      %v1790 = vadd.f32 %v1677, %v1789
      %1791 = vmatmul.f32.gmra.mxu0 %v1589
      %v1792 = vpop.f32.mrf.mxu0
      %v1793 = vadd.f32 %v1680, %v1792
      %1794 = vmatmul.f32.gmra.mxu0 %v1591
      %v1795 = vpop.f32.mrf.mxu0
      %v1796 = vadd.f32 %v1683, %v1795
      %1797 = vmatmul.f32.gmra.mxu0 %v1593
      %v1798 = vpop.f32.mrf.mxu0
      %v1799 = vadd.f32 %v1686, %v1798
      %1800 = vmatmul.f32.gmra.mxu0 %v1595
      %v1801 = vpop.f32.mrf.mxu0
      %v1802 = vadd.f32 %v1689, %v1801
      %1803 = vmatmul.f32.gmra.mxu0 %v1597
      %v1804 = vpop.f32.mrf.mxu0
      %v1805 = vadd.f32 %v1692, %v1804
      %1806 = vmatmul.f32.gmra.mxu0 %v1599
      %v1807 = vpop.f32.mrf.mxu0
      %v1808 = vadd.f32 %v1695, %v1807
      %1809 = vmatmul.f32.gmra.mxu0 %v1601
      %v1810 = vpop.f32.mrf.mxu0
      %v1811 = vadd.f32 %v1698, %v1810
      %1812 = vmatmul.f32.gmra.mxu0 %v1603
      %v1813 = vpop.f32.mrf.mxu0
      %v1814 = vadd.f32 %v1701, %v1813
      %1815 = vmatmul.f32.gmra.mxu0 %v1605
      %v1816 = vpop.f32.mrf.mxu0
      %v1817 = vadd.f32 %v1704, %v1816
      %1818 = vmatmul.f32.gmra.mxu0 %v1607
      %v1819 = vpop.f32.mrf.mxu0
      %v1820 = vadd.f32 %v1707, %v1819
      %1821 = vmatmul.f32.gmra.mxu0 %v1609
      %v1822 = vpop.f32.mrf.mxu0
      %v1823 = vadd.f32 %v1710, %v1822
      %1824 = vmatmul.f32.gmra.mxu0 %v1611
      %v1825 = vpop.f32.mrf.mxu0
      %v1826 = vadd.f32 %v1713, %v1825
      %1827 = vmatmul.f32.gmra.mxu0 %v1613
      %v1828 = vpop.f32.mrf.mxu0
      %v1829 = vadd.f32 %v1716, %v1828
      %1830 = vmatmul.f32.gmra.mxu0 %v1615
      %v1831 = vpop.f32.mrf.mxu0
      %v1832 = vadd.f32 %v1719, %v1831
      %1833 = vmatmul.f32.gmra.mxu0 %v1617
      %v1834 = vpop.f32.mrf.mxu0
      %v1835 = vadd.f32 %v1722, %v1834
      %1836 = vmatmul.f32.gmra.mxu0 %v1619
      %v1837 = vpop.f32.mrf.mxu0
      %v1838 = vadd.f32 %v1725, %v1837
      %1839 = vmatmul.f32.gmra.mxu0 %v1621
      %v1840 = vpop.f32.mrf.mxu0
      %v1841 = vadd.f32 %v1728, %v1840
      %1842 = vmatmul.f32.gmra.mxu0 %v1623
      %v1843 = vpop.f32.mrf.mxu0
      %v1844 = vadd.f32 %v1731, %v1843
      %1845 = vmatmul.f32.gmra.mxu0 %v1625
      %v1846 = vpop.f32.mrf.mxu0
      %v1847 = vadd.f32 %v1734, %v1846
      %1848 = vmatmul.f32.gmra.mxu0 %v1627
      %v1849 = vpop.f32.mrf.mxu0
      %v1850 = vadd.f32 %v1737, %v1849
      %1851 = vmatmul.f32.gmra.mxu0 %v1629
      %v1852 = vpop.f32.mrf.mxu0
      %v1853 = vadd.f32 %v1740, %v1852
      %1854 = vmatmul.f32.gmra.mxu0 %v1631
      %v1855 = vpop.f32.mrf.mxu0
      %v1856 = vadd.f32 %v1743, %v1855
      %1857 = vmatmul.f32.gmra.mxu0 %v1633
      %v1858 = vpop.f32.mrf.mxu0
      %v1859 = vadd.f32 %v1746, %v1858
      %1860 = vmatmul.f32.gmra.mxu0 %v1636
      %v1861 = vpop.f32.mrf.mxu0
      %v1862 = vadd.f32 %v1749, %v1861
      %1863 = vdwg.mxu0
      %v1864 = vmax.f32 %v1769, 0.0
      %v1865 = vmax.f32 %v1772, 0.0
      %v1866 = vmax.f32 %v1775, 0.0
      %v1867 = vmax.f32 %v1778, 0.0
      %v1868 = vmax.f32 %v1781, 0.0
      %v1869 = vmax.f32 %v1784, 0.0
      %v1870 = vmax.f32 %v1787, 0.0
      %v1871 = vmax.f32 %v1790, 0.0
      %v1872 = vmax.f32 %v1793, 0.0
      %v1873 = vmax.f32 %v1796, 0.0
      %v1874 = vmax.f32 %v1799, 0.0
      %v1875 = vmax.f32 %v1802, 0.0
      %v1876 = vmax.f32 %v1805, 0.0
      %v1877 = vmax.f32 %v1808, 0.0
      %v1878 = vmax.f32 %v1811, 0.0
      %v1879 = vmax.f32 %v1814, 0.0
      %v1880 = vmax.f32 %v1817, 0.0
      %v1881 = vmax.f32 %v1820, 0.0
      %v1882 = vmax.f32 %v1823, 0.0
      %v1883 = vmax.f32 %v1826, 0.0
      %v1884 = vmax.f32 %v1829, 0.0
      %v1885 = vmax.f32 %v1832, 0.0
      %v1886 = vmax.f32 %v1835, 0.0
      %v1887 = vmax.f32 %v1838, 0.0
      %v1888 = vmax.f32 %v1841, 0.0
      %v1889 = vmax.f32 %v1844, 0.0
      %v1890 = vmax.f32 %v1847, 0.0
      %v1891 = vmax.f32 %v1850, 0.0
      %v1892 = vmax.f32 %v1853, 0.0
      %v1893 = vmax.f32 %v1856, 0.0
      %v1894 = vmax.f32 %v1859, 0.0
      %v1895 = vmax.f32 %v1862, 0.0
      %v1896 = vadd.f32 %v1864, %v1253
      %v1897 = vadd.f32 %v1865, %v1254
      %v1898 = vadd.f32 %v1866, %v1255
      %v1899 = vadd.f32 %v1867, %v1256
      %v1900 = vadd.f32 %v1868, %v1257
      %v1901 = vadd.f32 %v1869, %v1258
      %v1902 = vadd.f32 %v1870, %v1259
      %v1903 = vadd.f32 %v1871, %v1260
      %v1904 = vadd.f32 %v1872, %v1261
      %v1905 = vadd.f32 %v1873, %v1262
      %v1906 = vadd.f32 %v1874, %v1263
      %v1907 = vadd.f32 %v1875, %v1264
      %v1908 = vadd.f32 %v1876, %v1265
      %v1909 = vadd.f32 %v1877, %v1266
      %v1910 = vadd.f32 %v1878, %v1267
      %v1911 = vadd.f32 %v1879, %v1268
      %v1912 = vadd.f32 %v1880, %v1269
      %v1913 = vadd.f32 %v1881, %v1270
      %v1914 = vadd.f32 %v1882, %v1271
      %v1915 = vadd.f32 %v1883, %v1272
      %v1916 = vadd.f32 %v1884, %v1273
      %v1917 = vadd.f32 %v1885, %v1274
      %v1918 = vadd.f32 %v1886, %v1275
      %v1919 = vadd.f32 %v1887, %v1276
      %v1920 = vadd.f32 %v1888, %v1277
      %v1921 = vadd.f32 %v1889, %v1278
      %v1922 = vadd.f32 %v1890, %v1279
      %v1923 = vadd.f32 %v1891, %v1280
      %v1924 = vadd.f32 %v1892, %v1281
      %v1925 = vadd.f32 %v1893, %v1282
      %v1926 = vadd.f32 %v1894, %v1283
      %v1927 = vadd.f32 %v1895, %v1284
      %s1928 = scalar_lea.vmem %s3, 384
      %v1929 = vld [vmem:[%s1928] sm:$0xff]
      %v1930 = vld [vmem:[%s1928 + $0x8] sm:$0xff]
      %v1931 = vld [vmem:[%s1928 + $0x10] sm:$0xff]
      %v1932 = vld [vmem:[%s1928 + $0x18] sm:$0xff]
      %v1933 = vld [vmem:[%s1928 + $0x20] sm:$0xff]
      %v1934 = vld [vmem:[%s1928 + $0x28] sm:$0xff]
      %v1935 = vld [vmem:[%s1928 + $0x30] sm:$0xff]
      %v1936 = vld [vmem:[%s1928 + $0x38] sm:$0xff]
      %v1937 = vld [vmem:[%s1928 + $0x40] sm:$0xff]
      %v1938 = vld [vmem:[%s1928 + $0x48] sm:$0xff]
      %v1939 = vld [vmem:[%s1928 + $0x50] sm:$0xff]
      %v1940 = vld [vmem:[%s1928 + $0x58] sm:$0xff]
      %v1941 = vld [vmem:[%s1928 + $0x60] sm:$0xff]
      %v1942 = vld [vmem:[%s1928 + $0x68] sm:$0xff]
      %v1943 = vld [vmem:[%s1928 + $0x70] sm:$0xff]
      %v1944 = vld [vmem:[%s1928 + $0x78] sm:$0xff]
      %v1945 = vld [vmem:[%s1928 + $0x80] sm:$0xff]
      %v1946 = vld [vmem:[%s1928 + $0x88] sm:$0xff]
      %v1947 = vld [vmem:[%s1928 + $0x90] sm:$0xff]
      %v1948 = vld [vmem:[%s1928 + $0x98] sm:$0xff]
      %v1949 = vld [vmem:[%s1928 + $0xa0] sm:$0xff]
      %v1950 = vld [vmem:[%s1928 + $0xa8] sm:$0xff]
      %v1951 = vld [vmem:[%s1928 + $0xb0] sm:$0xff]
      %v1952 = vld [vmem:[%s1928 + $0xb8] sm:$0xff]
      %1985 = vrot.lane.b32.xlu0 %v1896, 64
      %v1986 = vpop.permute.xlu0 %1985
      %1987 = vrot.lane.b32.xlu0 %v1897, 64
      %v1988 = vpop.permute.xlu0 %1987
      %1989 = vrot.lane.b32.xlu0 %v1898, 64
      %v1990 = vpop.permute.xlu0 %1989
      %1991 = vrot.lane.b32.xlu0 %v1899, 64
      %v1992 = vpop.permute.xlu0 %1991
      %1993 = vrot.lane.b32.xlu0 %v1900, 64
      %v1994 = vpop.permute.xlu0 %1993
      %1995 = vrot.lane.b32.xlu0 %v1901, 64
      %v1996 = vpop.permute.xlu0 %1995
      %1997 = vrot.lane.b32.xlu0 %v1902, 64
      %v1998 = vpop.permute.xlu0 %1997
      %1999 = vrot.lane.b32.xlu0 %v1903, 64
      %v2000 = vpop.permute.xlu0 %1999
      %2001 = vrot.lane.b32.xlu0 %v1904, 64
      %v2002 = vpop.permute.xlu0 %2001
      %2003 = vrot.lane.b32.xlu0 %v1905, 64
      %v2004 = vpop.permute.xlu0 %2003
      %2005 = vrot.lane.b32.xlu0 %v1906, 64
      %v2006 = vpop.permute.xlu0 %2005
      %2007 = vrot.lane.b32.xlu0 %v1907, 64
      %v2008 = vpop.permute.xlu0 %2007
      %2009 = vrot.lane.b32.xlu0 %v1908, 64
      %v2010 = vpop.permute.xlu0 %2009
      %2011 = vrot.lane.b32.xlu0 %v1909, 64
      %v2012 = vpop.permute.xlu0 %2011
      %2013 = vrot.lane.b32.xlu0 %v1910, 64
      %v2014 = vpop.permute.xlu0 %2013
      %2015 = vrot.lane.b32.xlu0 %v1911, 64
      %v2016 = vpop.permute.xlu0 %2015
      %2017 = vrot.lane.b32.xlu0 %v1912, 64
      %v2018 = vpop.permute.xlu0 %2017
      %2019 = vrot.lane.b32.xlu0 %v1913, 64
      %v2020 = vpop.permute.xlu0 %2019
      %2021 = vrot.lane.b32.xlu0 %v1914, 64
      %v2022 = vpop.permute.xlu0 %2021
      %2023 = vrot.lane.b32.xlu0 %v1915, 64
      %v2024 = vpop.permute.xlu0 %2023
      %2025 = vrot.lane.b32.xlu0 %v1916, 64
      %v2026 = vpop.permute.xlu0 %2025
      %2027 = vrot.lane.b32.xlu0 %v1917, 64
      %v2028 = vpop.permute.xlu0 %2027
      %2029 = vrot.lane.b32.xlu0 %v1918, 64
      %v2030 = vpop.permute.xlu0 %2029
      %2031 = vrot.lane.b32.xlu0 %v1919, 64
      %v2032 = vpop.permute.xlu0 %2031
      %2033 = vrot.lane.b32.xlu0 %v1920, 64
      %v2034 = vpop.permute.xlu0 %2033
      %2035 = vrot.lane.b32.xlu0 %v1921, 64
      %v2036 = vpop.permute.xlu0 %2035
      %2037 = vrot.lane.b32.xlu0 %v1922, 64
      %v2038 = vpop.permute.xlu0 %2037
      %2039 = vrot.lane.b32.xlu0 %v1923, 64
      %v2040 = vpop.permute.xlu0 %2039
      %2041 = vrot.lane.b32.xlu0 %v1924, 64
      %v2042 = vpop.permute.xlu0 %2041
      %2043 = vrot.lane.b32.xlu0 %v1925, 64
      %v2044 = vpop.permute.xlu0 %2043
      %2045 = vrot.lane.b32.xlu0 %v1926, 64
      %v2046 = vpop.permute.xlu0 %2045
      %2047 = vrot.lane.b32.xlu0 %v1927, 64
      %v2048 = vpop.permute.xlu0 %2047
      %v2081 = vsel %vm894, 0.0, %v1986
      %v2082 = vsel %vm894, %v1896, %v1988
      %v2083 = vsel %vm894, %v1897, %v1990
      %v2084 = vsel %vm894, %v1898, %v1992
      %v2085 = vsel %vm894, %v1899, %v1994
      %v2086 = vsel %vm894, %v1900, %v1996
      %v2087 = vsel %vm894, %v1901, %v1998
      %v2088 = vsel %vm894, %v1902, %v2000
      %v2089 = vsel %vm894, %v1903, %v2002
      %v2090 = vsel %vm894, %v1904, %v2004
      %v2091 = vsel %vm894, %v1905, %v2006
      %v2092 = vsel %vm894, %v1906, %v2008
      %v2093 = vsel %vm894, %v1907, %v2010
      %v2094 = vsel %vm894, %v1908, %v2012
      %v2095 = vsel %vm894, %v1909, %v2014
      %v2096 = vsel %vm894, %v1910, %v2016
      %v2097 = vsel %vm894, %v1911, %v2018
      %v2098 = vsel %vm894, %v1912, %v2020
      %v2099 = vsel %vm894, %v1913, %v2022
      %v2100 = vsel %vm894, %v1914, %v2024
      %v2101 = vsel %vm894, %v1915, %v2026
      %v2102 = vsel %vm894, %v1916, %v2028
      %v2103 = vsel %vm894, %v1917, %v2030
      %v2104 = vsel %vm894, %v1918, %v2032
      %v2105 = vsel %vm894, %v1919, %v2034
      %v2106 = vsel %vm894, %v1920, %v2036
      %v2107 = vsel %vm894, %v1921, %v2038
      %v2108 = vsel %vm894, %v1922, %v2040
      %v2109 = vsel %vm894, %v1923, %v2042
      %v2110 = vsel %vm894, %v1924, %v2044
      %v2111 = vsel %vm894, %v1925, %v2046
      %v2112 = vsel %vm894, %v1926, %v2048
      %s2113 = scalar_lea.vmem %s4, 2
      %v2114 = vld [vmem:[%s2113] sm:$0x1]
      %v2116 = vperm.slane %v2114, 0
      %v2118 = vsel %vm894, %v1897, 0
      %v2120 = vsel %vm894, %v1898, 0
      %v2122 = vsel %vm894, %v1899, 0
      %v2124 = vsel %vm894, %v1900, 0
      %v2126 = vsel %vm894, %v1901, 0
      %v2128 = vsel %vm894, %v1902, 0
      %v2130 = vsel %vm894, %v1903, 0
      %v2132 = vsel %vm894, %v1904, 0
      %v2134 = vsel %vm894, %v1905, 0
      %v2136 = vsel %vm894, %v1906, 0
      %v2138 = vsel %vm894, %v1907, 0
      %v2140 = vsel %vm894, %v1908, 0
      %v2142 = vsel %vm894, %v1909, 0
      %v2144 = vsel %vm894, %v1910, 0
      %v2146 = vsel %vm894, %v1911, 0
      %v2148 = vsel %vm894, %v1912, 0
      %v2150 = vsel %vm894, %v1913, 0
      %v2152 = vsel %vm894, %v1914, 0
      %v2154 = vsel %vm894, %v1915, 0
      %v2156 = vsel %vm894, %v1916, 0
      %v2158 = vsel %vm894, %v1917, 0
      %v2160 = vsel %vm894, %v1918, 0
      %v2162 = vsel %vm894, %v1919, 0
      %v2164 = vsel %vm894, %v1920, 0
      %v2166 = vsel %vm894, %v1921, 0
      %v2168 = vsel %vm894, %v1922, 0
      %v2170 = vsel %vm894, %v1923, 0
      %v2172 = vsel %vm894, %v1924, 0
      %v2174 = vsel %vm894, %v1925, 0
      %v2176 = vsel %vm894, %v1926, 0
      %v2178 = vsel %vm894, %v1927, 0
      %v2181 = vsel %vm894, 0.0, 0
      %2183 = vmatpush.msra.mxu0 %v1944
      %2184 = vmatpush.msra.mxu0 %v1943
      %2185 = vmatpush.msra.mxu0 %v1942
      %2186 = vmatpush.msra.mxu0 %v1941
      %2187 = vmatpush.msra.mxu0 %v1940
      %2188 = vmatpush.msra.mxu0 %v1939
      %2189 = vmatpush.msra.mxu0 %v1938
      %2190 = vmatpush.msra.mxu0 %v1937
      %2191 = vmatpush.msra.mxu0 %v1936
      %2192 = vmatpush.msra.mxu0 %v1935
      %2193 = vmatpush.msra.mxu0 %v1934
      %2194 = vmatpush.msra.mxu0 %v1933
      %2195 = vmatpush.msra.mxu0 %v1932
      %2196 = vmatpush.msra.mxu0 %v1931
      %2197 = vmatpush.msra.mxu0 %v1930
      %2198 = vmatpush.msra.mxu0 %v1929
      %2199 = vmatmul.f32.gmra.mxu0 %v2081
      %v2200 = vpop.f32.mrf.mxu0
      %v2201 = vadd.f32 %v2116, %v2200
      %2202 = vmatmul.f32.gmra.mxu0 %v2082
      %v2203 = vpop.f32.mrf.mxu0
      %v2204 = vadd.f32 %v2116, %v2203
      %2205 = vmatmul.f32.gmra.mxu0 %v2083
      %v2206 = vpop.f32.mrf.mxu0
      %v2207 = vadd.f32 %v2116, %v2206
      %2208 = vmatmul.f32.gmra.mxu0 %v2084
      %v2209 = vpop.f32.mrf.mxu0
      %v2210 = vadd.f32 %v2116, %v2209
      %2211 = vmatmul.f32.gmra.mxu0 %v2085
      %v2212 = vpop.f32.mrf.mxu0
      %v2213 = vadd.f32 %v2116, %v2212
      %2214 = vmatmul.f32.gmra.mxu0 %v2086
      %v2215 = vpop.f32.mrf.mxu0
      %v2216 = vadd.f32 %v2116, %v2215
      %2217 = vmatmul.f32.gmra.mxu0 %v2087
      %v2218 = vpop.f32.mrf.mxu0
      %v2219 = vadd.f32 %v2116, %v2218
      %2220 = vmatmul.f32.gmra.mxu0 %v2088
      %v2221 = vpop.f32.mrf.mxu0
      %v2222 = vadd.f32 %v2116, %v2221
      %2223 = vmatmul.f32.gmra.mxu0 %v2089
      %v2224 = vpop.f32.mrf.mxu0
      %v2225 = vadd.f32 %v2116, %v2224
      %2226 = vmatmul.f32.gmra.mxu0 %v2090
      %v2227 = vpop.f32.mrf.mxu0
      %v2228 = vadd.f32 %v2116, %v2227
      %2229 = vmatmul.f32.gmra.mxu0 %v2091
      %v2230 = vpop.f32.mrf.mxu0
      %v2231 = vadd.f32 %v2116, %v2230
      %2232 = vmatmul.f32.gmra.mxu0 %v2092
      %v2233 = vpop.f32.mrf.mxu0
      %v2234 = vadd.f32 %v2116, %v2233
      %2235 = vmatmul.f32.gmra.mxu0 %v2093
      %v2236 = vpop.f32.mrf.mxu0
      %v2237 = vadd.f32 %v2116, %v2236
      %2238 = vmatmul.f32.gmra.mxu0 %v2094
      %v2239 = vpop.f32.mrf.mxu0
      %v2240 = vadd.f32 %v2116, %v2239
      %2241 = vmatmul.f32.gmra.mxu0 %v2095
      %v2242 = vpop.f32.mrf.mxu0
      %v2243 = vadd.f32 %v2116, %v2242
      %2244 = vmatmul.f32.gmra.mxu0 %v2096
      %v2245 = vpop.f32.mrf.mxu0
      %v2246 = vadd.f32 %v2116, %v2245
      %2247 = vmatmul.f32.gmra.mxu0 %v2097
      %v2248 = vpop.f32.mrf.mxu0
      %v2249 = vadd.f32 %v2116, %v2248
      %2250 = vmatmul.f32.gmra.mxu0 %v2098
      %v2251 = vpop.f32.mrf.mxu0
      %v2252 = vadd.f32 %v2116, %v2251
      %2253 = vmatmul.f32.gmra.mxu0 %v2099
      %v2254 = vpop.f32.mrf.mxu0
      %v2255 = vadd.f32 %v2116, %v2254
      %2256 = vmatmul.f32.gmra.mxu0 %v2100
      %v2257 = vpop.f32.mrf.mxu0
      %v2258 = vadd.f32 %v2116, %v2257
      %2259 = vmatmul.f32.gmra.mxu0 %v2101
      %v2260 = vpop.f32.mrf.mxu0
      %v2261 = vadd.f32 %v2116, %v2260
      %2262 = vmatmul.f32.gmra.mxu0 %v2102
      %v2263 = vpop.f32.mrf.mxu0
      %v2264 = vadd.f32 %v2116, %v2263
      %2265 = vmatmul.f32.gmra.mxu0 %v2103
      %v2266 = vpop.f32.mrf.mxu0
      %v2267 = vadd.f32 %v2116, %v2266
      %2268 = vmatmul.f32.gmra.mxu0 %v2104
      %v2269 = vpop.f32.mrf.mxu0
      %v2270 = vadd.f32 %v2116, %v2269
      %2271 = vmatmul.f32.gmra.mxu0 %v2105
      %v2272 = vpop.f32.mrf.mxu0
      %v2273 = vadd.f32 %v2116, %v2272
      %2274 = vmatmul.f32.gmra.mxu0 %v2106
      %v2275 = vpop.f32.mrf.mxu0
      %v2276 = vadd.f32 %v2116, %v2275
      %2277 = vmatmul.f32.gmra.mxu0 %v2107
      %v2278 = vpop.f32.mrf.mxu0
      %v2279 = vadd.f32 %v2116, %v2278
      %2280 = vmatmul.f32.gmra.mxu0 %v2108
      %v2281 = vpop.f32.mrf.mxu0
      %v2282 = vadd.f32 %v2116, %v2281
      %2283 = vmatmul.f32.gmra.mxu0 %v2109
      %v2284 = vpop.f32.mrf.mxu0
      %v2285 = vadd.f32 %v2116, %v2284
      %2286 = vmatmul.f32.gmra.mxu0 %v2110
      %v2287 = vpop.f32.mrf.mxu0
      %v2288 = vadd.f32 %v2116, %v2287
      %2289 = vmatmul.f32.gmra.mxu0 %v2111
      %v2290 = vpop.f32.mrf.mxu0
      %v2291 = vadd.f32 %v2116, %v2290
      %2292 = vmatmul.f32.gmra.mxu0 %v2112
      %v2293 = vpop.f32.mrf.mxu0
      %v2294 = vadd.f32 %v2116, %v2293
      %2295 = vdwg.mxu0
      %2296 = vmatpush.msra.mxu0 0.0
      %2297 = vmatpush.msra.mxu0 0.0
      %2298 = vmatpush.msra.mxu0 0.0
      %2299 = vmatpush.msra.mxu0 0.0
      %2300 = vmatpush.msra.mxu0 0.0
      %2301 = vmatpush.msra.mxu0 0.0
      %2302 = vmatpush.msra.mxu0 0.0
      %2303 = vmatpush.msra.mxu0 0.0
      %2304 = vmatpush.msra.mxu0 %v1952
      %2305 = vmatpush.msra.mxu0 %v1951
      %2306 = vmatpush.msra.mxu0 %v1950
      %2307 = vmatpush.msra.mxu0 %v1949
      %2308 = vmatpush.msra.mxu0 %v1948
      %2309 = vmatpush.msra.mxu0 %v1947
      %2310 = vmatpush.msra.mxu0 %v1946
      %2311 = vmatpush.msra.mxu0 %v1945
      %2312 = vmatmul.f32.gmra.mxu0 %v2118
      %v2313 = vpop.f32.mrf.mxu0
      %v2314 = vadd.f32 %v2201, %v2313
      %2315 = vmatmul.f32.gmra.mxu0 %v2120
      %v2316 = vpop.f32.mrf.mxu0
      %v2317 = vadd.f32 %v2204, %v2316
      %2318 = vmatmul.f32.gmra.mxu0 %v2122
      %v2319 = vpop.f32.mrf.mxu0
      %v2320 = vadd.f32 %v2207, %v2319
      %2321 = vmatmul.f32.gmra.mxu0 %v2124
      %v2322 = vpop.f32.mrf.mxu0
      %v2323 = vadd.f32 %v2210, %v2322
      %2324 = vmatmul.f32.gmra.mxu0 %v2126
      %v2325 = vpop.f32.mrf.mxu0
      %v2326 = vadd.f32 %v2213, %v2325
      %2327 = vmatmul.f32.gmra.mxu0 %v2128
      %v2328 = vpop.f32.mrf.mxu0
      %v2329 = vadd.f32 %v2216, %v2328
      %2330 = vmatmul.f32.gmra.mxu0 %v2130
      %v2331 = vpop.f32.mrf.mxu0
      %v2332 = vadd.f32 %v2219, %v2331
      %2333 = vmatmul.f32.gmra.mxu0 %v2132
      %v2334 = vpop.f32.mrf.mxu0
      %v2335 = vadd.f32 %v2222, %v2334
      %2336 = vmatmul.f32.gmra.mxu0 %v2134
      %v2337 = vpop.f32.mrf.mxu0
      %v2338 = vadd.f32 %v2225, %v2337
      %2339 = vmatmul.f32.gmra.mxu0 %v2136
      %v2340 = vpop.f32.mrf.mxu0
      %v2341 = vadd.f32 %v2228, %v2340
      %2342 = vmatmul.f32.gmra.mxu0 %v2138
      %v2343 = vpop.f32.mrf.mxu0
      %v2344 = vadd.f32 %v2231, %v2343
      %2345 = vmatmul.f32.gmra.mxu0 %v2140
      %v2346 = vpop.f32.mrf.mxu0
      %v2347 = vadd.f32 %v2234, %v2346
      %2348 = vmatmul.f32.gmra.mxu0 %v2142
      %v2349 = vpop.f32.mrf.mxu0
      %v2350 = vadd.f32 %v2237, %v2349
      %2351 = vmatmul.f32.gmra.mxu0 %v2144
      %v2352 = vpop.f32.mrf.mxu0
      %v2353 = vadd.f32 %v2240, %v2352
      %2354 = vmatmul.f32.gmra.mxu0 %v2146
      %v2355 = vpop.f32.mrf.mxu0
      %v2356 = vadd.f32 %v2243, %v2355
      %2357 = vmatmul.f32.gmra.mxu0 %v2148
      %v2358 = vpop.f32.mrf.mxu0
      %v2359 = vadd.f32 %v2246, %v2358
      %2360 = vmatmul.f32.gmra.mxu0 %v2150
      %v2361 = vpop.f32.mrf.mxu0
      %v2362 = vadd.f32 %v2249, %v2361
      %2363 = vmatmul.f32.gmra.mxu0 %v2152
      %v2364 = vpop.f32.mrf.mxu0
      %v2365 = vadd.f32 %v2252, %v2364
      %2366 = vmatmul.f32.gmra.mxu0 %v2154
      %v2367 = vpop.f32.mrf.mxu0
      %v2368 = vadd.f32 %v2255, %v2367
      %2369 = vmatmul.f32.gmra.mxu0 %v2156
      %v2370 = vpop.f32.mrf.mxu0
      %v2371 = vadd.f32 %v2258, %v2370
      %2372 = vmatmul.f32.gmra.mxu0 %v2158
      %v2373 = vpop.f32.mrf.mxu0
      %v2374 = vadd.f32 %v2261, %v2373
      %2375 = vmatmul.f32.gmra.mxu0 %v2160
      %v2376 = vpop.f32.mrf.mxu0
      %v2377 = vadd.f32 %v2264, %v2376
      %2378 = vmatmul.f32.gmra.mxu0 %v2162
      %v2379 = vpop.f32.mrf.mxu0
      %v2380 = vadd.f32 %v2267, %v2379
      %2381 = vmatmul.f32.gmra.mxu0 %v2164
      %v2382 = vpop.f32.mrf.mxu0
      %v2383 = vadd.f32 %v2270, %v2382
      %2384 = vmatmul.f32.gmra.mxu0 %v2166
      %v2385 = vpop.f32.mrf.mxu0
      %v2386 = vadd.f32 %v2273, %v2385
      %2387 = vmatmul.f32.gmra.mxu0 %v2168
      %v2388 = vpop.f32.mrf.mxu0
      %v2389 = vadd.f32 %v2276, %v2388
      %2390 = vmatmul.f32.gmra.mxu0 %v2170
      %v2391 = vpop.f32.mrf.mxu0
      %v2392 = vadd.f32 %v2279, %v2391
      %2393 = vmatmul.f32.gmra.mxu0 %v2172
      %v2394 = vpop.f32.mrf.mxu0
      %v2395 = vadd.f32 %v2282, %v2394
      %2396 = vmatmul.f32.gmra.mxu0 %v2174
      %v2397 = vpop.f32.mrf.mxu0
      %v2398 = vadd.f32 %v2285, %v2397
      %2399 = vmatmul.f32.gmra.mxu0 %v2176
      %v2400 = vpop.f32.mrf.mxu0
      %v2401 = vadd.f32 %v2288, %v2400
      %2402 = vmatmul.f32.gmra.mxu0 %v2178
      %v2403 = vpop.f32.mrf.mxu0
      %v2404 = vadd.f32 %v2291, %v2403
      %2405 = vmatmul.f32.gmra.mxu0 %v2181
      %v2406 = vpop.f32.mrf.mxu0
      %v2407 = vadd.f32 %v2294, %v2406
      %2408 = vdwg.mxu0
      %v2409 = vmax.f32 %v2314, 0.0
      %v2410 = vmax.f32 %v2317, 0.0
      %v2411 = vmax.f32 %v2320, 0.0
      %v2412 = vmax.f32 %v2323, 0.0
      %v2413 = vmax.f32 %v2326, 0.0
      %v2414 = vmax.f32 %v2329, 0.0
      %v2415 = vmax.f32 %v2332, 0.0
      %v2416 = vmax.f32 %v2335, 0.0
      %v2417 = vmax.f32 %v2338, 0.0
      %v2418 = vmax.f32 %v2341, 0.0
      %v2419 = vmax.f32 %v2344, 0.0
      %v2420 = vmax.f32 %v2347, 0.0
      %v2421 = vmax.f32 %v2350, 0.0
      %v2422 = vmax.f32 %v2353, 0.0
      %v2423 = vmax.f32 %v2356, 0.0
      %v2424 = vmax.f32 %v2359, 0.0
      %v2425 = vmax.f32 %v2362, 0.0
      %v2426 = vmax.f32 %v2365, 0.0
      %v2427 = vmax.f32 %v2368, 0.0
      %v2428 = vmax.f32 %v2371, 0.0
      %v2429 = vmax.f32 %v2374, 0.0
      %v2430 = vmax.f32 %v2377, 0.0
      %v2431 = vmax.f32 %v2380, 0.0
      %v2432 = vmax.f32 %v2383, 0.0
      %v2433 = vmax.f32 %v2386, 0.0
      %v2434 = vmax.f32 %v2389, 0.0
      %v2435 = vmax.f32 %v2392, 0.0
      %v2436 = vmax.f32 %v2395, 0.0
      %v2437 = vmax.f32 %v2398, 0.0
      %v2438 = vmax.f32 %v2401, 0.0
      %v2439 = vmax.f32 %v2404, 0.0
      %v2440 = vmax.f32 %v2407, 0.0
      %v2441 = vadd.f32 %v2409, %v1896
      %v2442 = vadd.f32 %v2410, %v1897
      %v2443 = vadd.f32 %v2411, %v1898
      %v2444 = vadd.f32 %v2412, %v1899
      %v2445 = vadd.f32 %v2413, %v1900
      %v2446 = vadd.f32 %v2414, %v1901
      %v2447 = vadd.f32 %v2415, %v1902
      %v2448 = vadd.f32 %v2416, %v1903
      %v2449 = vadd.f32 %v2417, %v1904
      %v2450 = vadd.f32 %v2418, %v1905
      %v2451 = vadd.f32 %v2419, %v1906
      %v2452 = vadd.f32 %v2420, %v1907
      %v2453 = vadd.f32 %v2421, %v1908
      %v2454 = vadd.f32 %v2422, %v1909
      %v2455 = vadd.f32 %v2423, %v1910
      %v2456 = vadd.f32 %v2424, %v1911
      %v2457 = vadd.f32 %v2425, %v1912
      %v2458 = vadd.f32 %v2426, %v1913
      %v2459 = vadd.f32 %v2427, %v1914
      %v2460 = vadd.f32 %v2428, %v1915
      %v2461 = vadd.f32 %v2429, %v1916
      %v2462 = vadd.f32 %v2430, %v1917
      %v2463 = vadd.f32 %v2431, %v1918
      %v2464 = vadd.f32 %v2432, %v1919
      %v2465 = vadd.f32 %v2433, %v1920
      %v2466 = vadd.f32 %v2434, %v1921
      %v2467 = vadd.f32 %v2435, %v1922
      %v2468 = vadd.f32 %v2436, %v1923
      %v2469 = vadd.f32 %v2437, %v1924
      %v2470 = vadd.f32 %v2438, %v1925
      %v2471 = vadd.f32 %v2439, %v1926
      %v2472 = vadd.f32 %v2440, %v1927
      %s2473 = scalar_lea.vmem %s3, 576
      %v2474 = vld [vmem:[%s2473] sm:$0xff]
      %v2475 = vld [vmem:[%s2473 + $0x8] sm:$0xff]
      %v2476 = vld [vmem:[%s2473 + $0x10] sm:$0xff]
      %v2477 = vld [vmem:[%s2473 + $0x18] sm:$0xff]
      %v2478 = vld [vmem:[%s2473 + $0x20] sm:$0xff]
      %v2479 = vld [vmem:[%s2473 + $0x28] sm:$0xff]
      %v2480 = vld [vmem:[%s2473 + $0x30] sm:$0xff]
      %v2481 = vld [vmem:[%s2473 + $0x38] sm:$0xff]
      %v2482 = vld [vmem:[%s2473 + $0x40] sm:$0xff]
      %v2483 = vld [vmem:[%s2473 + $0x48] sm:$0xff]
      %v2484 = vld [vmem:[%s2473 + $0x50] sm:$0xff]
      %v2485 = vld [vmem:[%s2473 + $0x58] sm:$0xff]
      %v2486 = vld [vmem:[%s2473 + $0x60] sm:$0xff]
      %v2487 = vld [vmem:[%s2473 + $0x68] sm:$0xff]
      %v2488 = vld [vmem:[%s2473 + $0x70] sm:$0xff]
      %v2489 = vld [vmem:[%s2473 + $0x78] sm:$0xff]
      %v2490 = vld [vmem:[%s2473 + $0x80] sm:$0xff]
      %v2491 = vld [vmem:[%s2473 + $0x88] sm:$0xff]
      %v2492 = vld [vmem:[%s2473 + $0x90] sm:$0xff]
      %v2493 = vld [vmem:[%s2473 + $0x98] sm:$0xff]
      %v2494 = vld [vmem:[%s2473 + $0xa0] sm:$0xff]
      %v2495 = vld [vmem:[%s2473 + $0xa8] sm:$0xff]
      %v2496 = vld [vmem:[%s2473 + $0xb0] sm:$0xff]
      %v2497 = vld [vmem:[%s2473 + $0xb8] sm:$0xff]
      %2530 = vrot.lane.b32.xlu0 %v2441, 64
      %v2531 = vpop.permute.xlu0 %2530
      %2532 = vrot.lane.b32.xlu0 %v2442, 64
      %v2533 = vpop.permute.xlu0 %2532
      %2534 = vrot.lane.b32.xlu0 %v2443, 64
      %v2535 = vpop.permute.xlu0 %2534
      %2536 = vrot.lane.b32.xlu0 %v2444, 64
      %v2537 = vpop.permute.xlu0 %2536
      %2538 = vrot.lane.b32.xlu0 %v2445, 64
      %v2539 = vpop.permute.xlu0 %2538
      %2540 = vrot.lane.b32.xlu0 %v2446, 64
      %v2541 = vpop.permute.xlu0 %2540
      %2542 = vrot.lane.b32.xlu0 %v2447, 64
      %v2543 = vpop.permute.xlu0 %2542
      %2544 = vrot.lane.b32.xlu0 %v2448, 64
      %v2545 = vpop.permute.xlu0 %2544
      %2546 = vrot.lane.b32.xlu0 %v2449, 64
      %v2547 = vpop.permute.xlu0 %2546
      %2548 = vrot.lane.b32.xlu0 %v2450, 64
      %v2549 = vpop.permute.xlu0 %2548
      %2550 = vrot.lane.b32.xlu0 %v2451, 64
      %v2551 = vpop.permute.xlu0 %2550
      %2552 = vrot.lane.b32.xlu0 %v2452, 64
      %v2553 = vpop.permute.xlu0 %2552
      %2554 = vrot.lane.b32.xlu0 %v2453, 64
      %v2555 = vpop.permute.xlu0 %2554
      %2556 = vrot.lane.b32.xlu0 %v2454, 64
      %v2557 = vpop.permute.xlu0 %2556
      %2558 = vrot.lane.b32.xlu0 %v2455, 64
      %v2559 = vpop.permute.xlu0 %2558
      %2560 = vrot.lane.b32.xlu0 %v2456, 64
      %v2561 = vpop.permute.xlu0 %2560
      %2562 = vrot.lane.b32.xlu0 %v2457, 64
      %v2563 = vpop.permute.xlu0 %2562
      %2564 = vrot.lane.b32.xlu0 %v2458, 64
      %v2565 = vpop.permute.xlu0 %2564
      %2566 = vrot.lane.b32.xlu0 %v2459, 64
      %v2567 = vpop.permute.xlu0 %2566
      %2568 = vrot.lane.b32.xlu0 %v2460, 64
      %v2569 = vpop.permute.xlu0 %2568
      %2570 = vrot.lane.b32.xlu0 %v2461, 64
      %v2571 = vpop.permute.xlu0 %2570
      %2572 = vrot.lane.b32.xlu0 %v2462, 64
      %v2573 = vpop.permute.xlu0 %2572
      %2574 = vrot.lane.b32.xlu0 %v2463, 64
      %v2575 = vpop.permute.xlu0 %2574
      %2576 = vrot.lane.b32.xlu0 %v2464, 64
      %v2577 = vpop.permute.xlu0 %2576
      %2578 = vrot.lane.b32.xlu0 %v2465, 64
      %v2579 = vpop.permute.xlu0 %2578
      %2580 = vrot.lane.b32.xlu0 %v2466, 64
      %v2581 = vpop.permute.xlu0 %2580
      %2582 = vrot.lane.b32.xlu0 %v2467, 64
      %v2583 = vpop.permute.xlu0 %2582
      %2584 = vrot.lane.b32.xlu0 %v2468, 64
      %v2585 = vpop.permute.xlu0 %2584
      %2586 = vrot.lane.b32.xlu0 %v2469, 64
      %v2587 = vpop.permute.xlu0 %2586
      %2588 = vrot.lane.b32.xlu0 %v2470, 64
      %v2589 = vpop.permute.xlu0 %2588
      %2590 = vrot.lane.b32.xlu0 %v2471, 64
      %v2591 = vpop.permute.xlu0 %2590
      %2592 = vrot.lane.b32.xlu0 %v2472, 64
      %v2593 = vpop.permute.xlu0 %2592
      %v2626 = vsel %vm894, 0.0, %v2531
      %v2627 = vsel %vm894, 0.0, %v2533
      %v2628 = vsel %vm894, %v2441, %v2535
      %v2629 = vsel %vm894, %v2442, %v2537
      %v2630 = vsel %vm894, %v2443, %v2539
      %v2631 = vsel %vm894, %v2444, %v2541
      %v2632 = vsel %vm894, %v2445, %v2543
      %v2633 = vsel %vm894, %v2446, %v2545
      %v2634 = vsel %vm894, %v2447, %v2547
      %v2635 = vsel %vm894, %v2448, %v2549
      %v2636 = vsel %vm894, %v2449, %v2551
      %v2637 = vsel %vm894, %v2450, %v2553
      %v2638 = vsel %vm894, %v2451, %v2555
      %v2639 = vsel %vm894, %v2452, %v2557
      %v2640 = vsel %vm894, %v2453, %v2559
      %v2641 = vsel %vm894, %v2454, %v2561
      %v2642 = vsel %vm894, %v2455, %v2563
      %v2643 = vsel %vm894, %v2456, %v2565
      %v2644 = vsel %vm894, %v2457, %v2567
      %v2645 = vsel %vm894, %v2458, %v2569
      %v2646 = vsel %vm894, %v2459, %v2571
      %v2647 = vsel %vm894, %v2460, %v2573
      %v2648 = vsel %vm894, %v2461, %v2575
      %v2649 = vsel %vm894, %v2462, %v2577
      %v2650 = vsel %vm894, %v2463, %v2579
      %v2651 = vsel %vm894, %v2464, %v2581
      %v2652 = vsel %vm894, %v2465, %v2583
      %v2653 = vsel %vm894, %v2466, %v2585
      %v2654 = vsel %vm894, %v2467, %v2587
      %v2655 = vsel %vm894, %v2468, %v2589
      %v2656 = vsel %vm894, %v2469, %v2591
      %v2657 = vsel %vm894, %v2470, %v2593
      %s2658 = scalar_lea.vmem %s4, 3
      %v2659 = vld [vmem:[%s2658] sm:$0x1]
      %v2661 = vperm.slane %v2659, 0
      %v2663 = vsel %vm894, %v2443, 0
      %v2665 = vsel %vm894, %v2444, 0
      %v2667 = vsel %vm894, %v2445, 0
      %v2669 = vsel %vm894, %v2446, 0
      %v2671 = vsel %vm894, %v2447, 0
      %v2673 = vsel %vm894, %v2448, 0
      %v2675 = vsel %vm894, %v2449, 0
      %v2677 = vsel %vm894, %v2450, 0
      %v2679 = vsel %vm894, %v2451, 0
      %v2681 = vsel %vm894, %v2452, 0
      %v2683 = vsel %vm894, %v2453, 0
      %v2685 = vsel %vm894, %v2454, 0
      %v2687 = vsel %vm894, %v2455, 0
      %v2689 = vsel %vm894, %v2456, 0
      %v2691 = vsel %vm894, %v2457, 0
      %v2693 = vsel %vm894, %v2458, 0
      %v2695 = vsel %vm894, %v2459, 0
      %v2697 = vsel %vm894, %v2460, 0
      %v2699 = vsel %vm894, %v2461, 0
      %v2701 = vsel %vm894, %v2462, 0
      %v2703 = vsel %vm894, %v2463, 0
      %v2705 = vsel %vm894, %v2464, 0
      %v2707 = vsel %vm894, %v2465, 0
      %v2709 = vsel %vm894, %v2466, 0
      %v2711 = vsel %vm894, %v2467, 0
      %v2713 = vsel %vm894, %v2468, 0
      %v2715 = vsel %vm894, %v2469, 0
      %v2717 = vsel %vm894, %v2470, 0
      %v2719 = vsel %vm894, %v2471, 0
      %v2721 = vsel %vm894, %v2472, 0
      %2723 = vmatpush.msra.mxu0 %v2489
      %2724 = vmatpush.msra.mxu0 %v2488
      %2725 = vmatpush.msra.mxu0 %v2487
      %2726 = vmatpush.msra.mxu0 %v2486
      %2727 = vmatpush.msra.mxu0 %v2485
      %2728 = vmatpush.msra.mxu0 %v2484
      %2729 = vmatpush.msra.mxu0 %v2483
      %2730 = vmatpush.msra.mxu0 %v2482
      %2731 = vmatpush.msra.mxu0 %v2481
      %2732 = vmatpush.msra.mxu0 %v2480
      %2733 = vmatpush.msra.mxu0 %v2479
      %2734 = vmatpush.msra.mxu0 %v2478
      %2735 = vmatpush.msra.mxu0 %v2477
      %2736 = vmatpush.msra.mxu0 %v2476
      %2737 = vmatpush.msra.mxu0 %v2475
      %2738 = vmatpush.msra.mxu0 %v2474
      %2739 = vmatmul.f32.gmra.mxu0 %v2626
      %v2740 = vpop.f32.mrf.mxu0
      %v2741 = vadd.f32 %v2661, %v2740
      %2742 = vmatmul.f32.gmra.mxu0 %v2627
      %v2743 = vpop.f32.mrf.mxu0
      %v2744 = vadd.f32 %v2661, %v2743
      %2745 = vmatmul.f32.gmra.mxu0 %v2628
      %v2746 = vpop.f32.mrf.mxu0
      %v2747 = vadd.f32 %v2661, %v2746
      %2748 = vmatmul.f32.gmra.mxu0 %v2629
      %v2749 = vpop.f32.mrf.mxu0
      %v2750 = vadd.f32 %v2661, %v2749
      %2751 = vmatmul.f32.gmra.mxu0 %v2630
      %v2752 = vpop.f32.mrf.mxu0
      %v2753 = vadd.f32 %v2661, %v2752
      %2754 = vmatmul.f32.gmra.mxu0 %v2631
      %v2755 = vpop.f32.mrf.mxu0
      %v2756 = vadd.f32 %v2661, %v2755
      %2757 = vmatmul.f32.gmra.mxu0 %v2632
      %v2758 = vpop.f32.mrf.mxu0
      %v2759 = vadd.f32 %v2661, %v2758
      %2760 = vmatmul.f32.gmra.mxu0 %v2633
      %v2761 = vpop.f32.mrf.mxu0
      %v2762 = vadd.f32 %v2661, %v2761
      %2763 = vmatmul.f32.gmra.mxu0 %v2634
      %v2764 = vpop.f32.mrf.mxu0
      %v2765 = vadd.f32 %v2661, %v2764
      %2766 = vmatmul.f32.gmra.mxu0 %v2635
      %v2767 = vpop.f32.mrf.mxu0
      %v2768 = vadd.f32 %v2661, %v2767
      %2769 = vmatmul.f32.gmra.mxu0 %v2636
      %v2770 = vpop.f32.mrf.mxu0
      %v2771 = vadd.f32 %v2661, %v2770
      %2772 = vmatmul.f32.gmra.mxu0 %v2637
      %v2773 = vpop.f32.mrf.mxu0
      %v2774 = vadd.f32 %v2661, %v2773
      %2775 = vmatmul.f32.gmra.mxu0 %v2638
      %v2776 = vpop.f32.mrf.mxu0
      %v2777 = vadd.f32 %v2661, %v2776
      %2778 = vmatmul.f32.gmra.mxu0 %v2639
      %v2779 = vpop.f32.mrf.mxu0
      %v2780 = vadd.f32 %v2661, %v2779
      %2781 = vmatmul.f32.gmra.mxu0 %v2640
      %v2782 = vpop.f32.mrf.mxu0
      %v2783 = vadd.f32 %v2661, %v2782
      %2784 = vmatmul.f32.gmra.mxu0 %v2641
      %v2785 = vpop.f32.mrf.mxu0
      %v2786 = vadd.f32 %v2661, %v2785
      %2787 = vmatmul.f32.gmra.mxu0 %v2642
      %v2788 = vpop.f32.mrf.mxu0
      %v2789 = vadd.f32 %v2661, %v2788
      %2790 = vmatmul.f32.gmra.mxu0 %v2643
      %v2791 = vpop.f32.mrf.mxu0
      %v2792 = vadd.f32 %v2661, %v2791
      %2793 = vmatmul.f32.gmra.mxu0 %v2644
      %v2794 = vpop.f32.mrf.mxu0
      %v2795 = vadd.f32 %v2661, %v2794
      %2796 = vmatmul.f32.gmra.mxu0 %v2645
      %v2797 = vpop.f32.mrf.mxu0
      %v2798 = vadd.f32 %v2661, %v2797
      %2799 = vmatmul.f32.gmra.mxu0 %v2646
      %v2800 = vpop.f32.mrf.mxu0
      %v2801 = vadd.f32 %v2661, %v2800
      %2802 = vmatmul.f32.gmra.mxu0 %v2647
      %v2803 = vpop.f32.mrf.mxu0
      %v2804 = vadd.f32 %v2661, %v2803
      %2805 = vmatmul.f32.gmra.mxu0 %v2648
      %v2806 = vpop.f32.mrf.mxu0
      %v2807 = vadd.f32 %v2661, %v2806
      %2808 = vmatmul.f32.gmra.mxu0 %v2649
      %v2809 = vpop.f32.mrf.mxu0
      %v2810 = vadd.f32 %v2661, %v2809
      %2811 = vmatmul.f32.gmra.mxu0 %v2650
      %v2812 = vpop.f32.mrf.mxu0
      %v2813 = vadd.f32 %v2661, %v2812
      %2814 = vmatmul.f32.gmra.mxu0 %v2651
      %v2815 = vpop.f32.mrf.mxu0
      %v2816 = vadd.f32 %v2661, %v2815
      %2817 = vmatmul.f32.gmra.mxu0 %v2652
      %v2818 = vpop.f32.mrf.mxu0
      %v2819 = vadd.f32 %v2661, %v2818
      %2820 = vmatmul.f32.gmra.mxu0 %v2653
      %v2821 = vpop.f32.mrf.mxu0
      %v2822 = vadd.f32 %v2661, %v2821
      %2823 = vmatmul.f32.gmra.mxu0 %v2654
      %v2824 = vpop.f32.mrf.mxu0
      %v2825 = vadd.f32 %v2661, %v2824
      %2826 = vmatmul.f32.gmra.mxu0 %v2655
      %v2827 = vpop.f32.mrf.mxu0
      %v2828 = vadd.f32 %v2661, %v2827
      %2829 = vmatmul.f32.gmra.mxu0 %v2656
      %v2830 = vpop.f32.mrf.mxu0
      %v2831 = vadd.f32 %v2661, %v2830
      %2832 = vmatmul.f32.gmra.mxu0 %v2657
      %v2833 = vpop.f32.mrf.mxu0
      %v2834 = vadd.f32 %v2661, %v2833
      %2835 = vdwg.mxu0
      %2836 = vmatpush.msra.mxu0 0.0
      %2837 = vmatpush.msra.mxu0 0.0
      %2838 = vmatpush.msra.mxu0 0.0
      %2839 = vmatpush.msra.mxu0 0.0
      %2840 = vmatpush.msra.mxu0 0.0
      %2841 = vmatpush.msra.mxu0 0.0
      %2842 = vmatpush.msra.mxu0 0.0
      %2843 = vmatpush.msra.mxu0 0.0
      %2844 = vmatpush.msra.mxu0 %v2497
      %2845 = vmatpush.msra.mxu0 %v2496
      %2846 = vmatpush.msra.mxu0 %v2495
      %2847 = vmatpush.msra.mxu0 %v2494
      %2848 = vmatpush.msra.mxu0 %v2493
      %2849 = vmatpush.msra.mxu0 %v2492
      %2850 = vmatpush.msra.mxu0 %v2491
      %2851 = vmatpush.msra.mxu0 %v2490
      %2852 = vmatmul.f32.gmra.mxu0 %v2663
      %v2853 = vpop.f32.mrf.mxu0
      %v2854 = vadd.f32 %v2741, %v2853
      %2855 = vmatmul.f32.gmra.mxu0 %v2665
      %v2856 = vpop.f32.mrf.mxu0
      %v2857 = vadd.f32 %v2744, %v2856
      %2858 = vmatmul.f32.gmra.mxu0 %v2667
      %v2859 = vpop.f32.mrf.mxu0
      %v2860 = vadd.f32 %v2747, %v2859
      %2861 = vmatmul.f32.gmra.mxu0 %v2669
      %v2862 = vpop.f32.mrf.mxu0
      %v2863 = vadd.f32 %v2750, %v2862
      %2864 = vmatmul.f32.gmra.mxu0 %v2671
      %v2865 = vpop.f32.mrf.mxu0
      %v2866 = vadd.f32 %v2753, %v2865
      %2867 = vmatmul.f32.gmra.mxu0 %v2673
      %v2868 = vpop.f32.mrf.mxu0
      %v2869 = vadd.f32 %v2756, %v2868
      %2870 = vmatmul.f32.gmra.mxu0 %v2675
      %v2871 = vpop.f32.mrf.mxu0
      %v2872 = vadd.f32 %v2759, %v2871
      %2873 = vmatmul.f32.gmra.mxu0 %v2677
      %v2874 = vpop.f32.mrf.mxu0
      %v2875 = vadd.f32 %v2762, %v2874
      %2876 = vmatmul.f32.gmra.mxu0 %v2679
      %v2877 = vpop.f32.mrf.mxu0
      %v2878 = vadd.f32 %v2765, %v2877
      %2879 = vmatmul.f32.gmra.mxu0 %v2681
      %v2880 = vpop.f32.mrf.mxu0
      %v2881 = vadd.f32 %v2768, %v2880
      %2882 = vmatmul.f32.gmra.mxu0 %v2683
      %v2883 = vpop.f32.mrf.mxu0
      %v2884 = vadd.f32 %v2771, %v2883
      %2885 = vmatmul.f32.gmra.mxu0 %v2685
      %v2886 = vpop.f32.mrf.mxu0
      %v2887 = vadd.f32 %v2774, %v2886
      %2888 = vmatmul.f32.gmra.mxu0 %v2687
      %v2889 = vpop.f32.mrf.mxu0
      %v2890 = vadd.f32 %v2777, %v2889
      %2891 = vmatmul.f32.gmra.mxu0 %v2689
      %v2892 = vpop.f32.mrf.mxu0
      %v2893 = vadd.f32 %v2780, %v2892
      %2894 = vmatmul.f32.gmra.mxu0 %v2691
      %v2895 = vpop.f32.mrf.mxu0
      %v2896 = vadd.f32 %v2783, %v2895
      %2897 = vmatmul.f32.gmra.mxu0 %v2693
      %v2898 = vpop.f32.mrf.mxu0
      %v2899 = vadd.f32 %v2786, %v2898
      %2900 = vmatmul.f32.gmra.mxu0 %v2695
      %v2901 = vpop.f32.mrf.mxu0
      %v2902 = vadd.f32 %v2789, %v2901
      %2903 = vmatmul.f32.gmra.mxu0 %v2697
      %v2904 = vpop.f32.mrf.mxu0
      %v2905 = vadd.f32 %v2792, %v2904
      %2906 = vmatmul.f32.gmra.mxu0 %v2699
      %v2907 = vpop.f32.mrf.mxu0
      %v2908 = vadd.f32 %v2795, %v2907
      %2909 = vmatmul.f32.gmra.mxu0 %v2701
      %v2910 = vpop.f32.mrf.mxu0
      %v2911 = vadd.f32 %v2798, %v2910
      %2912 = vmatmul.f32.gmra.mxu0 %v2703
      %v2913 = vpop.f32.mrf.mxu0
      %v2914 = vadd.f32 %v2801, %v2913
      %2915 = vmatmul.f32.gmra.mxu0 %v2705
      %v2916 = vpop.f32.mrf.mxu0
      %v2917 = vadd.f32 %v2804, %v2916
      %2918 = vmatmul.f32.gmra.mxu0 %v2707
      %v2919 = vpop.f32.mrf.mxu0
      %v2920 = vadd.f32 %v2807, %v2919
      %2921 = vmatmul.f32.gmra.mxu0 %v2709
      %v2922 = vpop.f32.mrf.mxu0
      %v2923 = vadd.f32 %v2810, %v2922
      %2924 = vmatmul.f32.gmra.mxu0 %v2711
      %v2925 = vpop.f32.mrf.mxu0
      %v2926 = vadd.f32 %v2813, %v2925
      %2927 = vmatmul.f32.gmra.mxu0 %v2713
      %v2928 = vpop.f32.mrf.mxu0
      %v2929 = vadd.f32 %v2816, %v2928
      %2930 = vmatmul.f32.gmra.mxu0 %v2715
      %v2931 = vpop.f32.mrf.mxu0
      %v2932 = vadd.f32 %v2819, %v2931
      %2933 = vmatmul.f32.gmra.mxu0 %v2717
      %v2934 = vpop.f32.mrf.mxu0
      %v2935 = vadd.f32 %v2822, %v2934
      %2936 = vmatmul.f32.gmra.mxu0 %v2719
      %v2937 = vpop.f32.mrf.mxu0
      %v2938 = vadd.f32 %v2825, %v2937
      %2939 = vmatmul.f32.gmra.mxu0 %v2721
      %v2940 = vpop.f32.mrf.mxu0
      %v2941 = vadd.f32 %v2828, %v2940
      %2942 = vmatmul.f32.gmra.mxu0 %v2181
      %v2943 = vpop.f32.mrf.mxu0
      %v2944 = vadd.f32 %v2831, %v2943
      %2945 = vmatmul.f32.gmra.mxu0 %v2181
      %v2946 = vpop.f32.mrf.mxu0
      %v2947 = vadd.f32 %v2834, %v2946
      %2948 = vdwg.mxu0
      %v2949 = vmax.f32 %v2854, 0.0
      %v2950 = vmax.f32 %v2857, 0.0
      %v2951 = vmax.f32 %v2860, 0.0
      %v2952 = vmax.f32 %v2863, 0.0
      %v2953 = vmax.f32 %v2866, 0.0
      %v2954 = vmax.f32 %v2869, 0.0
      %v2955 = vmax.f32 %v2872, 0.0
      %v2956 = vmax.f32 %v2875, 0.0
      %v2957 = vmax.f32 %v2878, 0.0
      %v2958 = vmax.f32 %v2881, 0.0
      %v2959 = vmax.f32 %v2884, 0.0
      %v2960 = vmax.f32 %v2887, 0.0
      %v2961 = vmax.f32 %v2890, 0.0
      %v2962 = vmax.f32 %v2893, 0.0
      %v2963 = vmax.f32 %v2896, 0.0
      %v2964 = vmax.f32 %v2899, 0.0
      %v2965 = vmax.f32 %v2902, 0.0
      %v2966 = vmax.f32 %v2905, 0.0
      %v2967 = vmax.f32 %v2908, 0.0
      %v2968 = vmax.f32 %v2911, 0.0
      %v2969 = vmax.f32 %v2914, 0.0
      %v2970 = vmax.f32 %v2917, 0.0
      %v2971 = vmax.f32 %v2920, 0.0
      %v2972 = vmax.f32 %v2923, 0.0
      %v2973 = vmax.f32 %v2926, 0.0
      %v2974 = vmax.f32 %v2929, 0.0
      %v2975 = vmax.f32 %v2932, 0.0
      %v2976 = vmax.f32 %v2935, 0.0
      %v2977 = vmax.f32 %v2938, 0.0
      %v2978 = vmax.f32 %v2941, 0.0
      %v2979 = vmax.f32 %v2944, 0.0
      %v2980 = vmax.f32 %v2947, 0.0
      %v2981 = vadd.f32 %v2949, %v2441
      %v2982 = vadd.f32 %v2950, %v2442
      %v2983 = vadd.f32 %v2951, %v2443
      %v2984 = vadd.f32 %v2952, %v2444
      %v2985 = vadd.f32 %v2953, %v2445
      %v2986 = vadd.f32 %v2954, %v2446
      %v2987 = vadd.f32 %v2955, %v2447
      %v2988 = vadd.f32 %v2956, %v2448
      %v2989 = vadd.f32 %v2957, %v2449
      %v2990 = vadd.f32 %v2958, %v2450
      %v2991 = vadd.f32 %v2959, %v2451
      %v2992 = vadd.f32 %v2960, %v2452
      %v2993 = vadd.f32 %v2961, %v2453
      %v2994 = vadd.f32 %v2962, %v2454
      %v2995 = vadd.f32 %v2963, %v2455
      %v2996 = vadd.f32 %v2964, %v2456
      %v2997 = vadd.f32 %v2965, %v2457
      %v2998 = vadd.f32 %v2966, %v2458
      %v2999 = vadd.f32 %v2967, %v2459
      %v3000 = vadd.f32 %v2968, %v2460
      %v3001 = vadd.f32 %v2969, %v2461
      %v3002 = vadd.f32 %v2970, %v2462
      %v3003 = vadd.f32 %v2971, %v2463
      %v3004 = vadd.f32 %v2972, %v2464
      %v3005 = vadd.f32 %v2973, %v2465
      %v3006 = vadd.f32 %v2974, %v2466
      %v3007 = vadd.f32 %v2975, %v2467
      %v3008 = vadd.f32 %v2976, %v2468
      %v3009 = vadd.f32 %v2977, %v2469
      %v3010 = vadd.f32 %v2978, %v2470
      %v3011 = vadd.f32 %v2979, %v2471
      %v3012 = vadd.f32 %v2980, %v2472
      %s3013 = scalar_lea.vmem %s3, 768
      %v3014 = vld [vmem:[%s3013] sm:$0xff]
      %v3015 = vld [vmem:[%s3013 + $0x8] sm:$0xff]
      %v3016 = vld [vmem:[%s3013 + $0x10] sm:$0xff]
      %v3017 = vld [vmem:[%s3013 + $0x18] sm:$0xff]
      %v3018 = vld [vmem:[%s3013 + $0x20] sm:$0xff]
      %v3019 = vld [vmem:[%s3013 + $0x28] sm:$0xff]
      %v3020 = vld [vmem:[%s3013 + $0x30] sm:$0xff]
      %v3021 = vld [vmem:[%s3013 + $0x38] sm:$0xff]
      %v3022 = vld [vmem:[%s3013 + $0x40] sm:$0xff]
      %v3023 = vld [vmem:[%s3013 + $0x48] sm:$0xff]
      %v3024 = vld [vmem:[%s3013 + $0x50] sm:$0xff]
      %v3025 = vld [vmem:[%s3013 + $0x58] sm:$0xff]
      %v3026 = vld [vmem:[%s3013 + $0x60] sm:$0xff]
      %v3027 = vld [vmem:[%s3013 + $0x68] sm:$0xff]
      %v3028 = vld [vmem:[%s3013 + $0x70] sm:$0xff]
      %v3029 = vld [vmem:[%s3013 + $0x78] sm:$0xff]
      %v3030 = vld [vmem:[%s3013 + $0x80] sm:$0xff]
      %v3031 = vld [vmem:[%s3013 + $0x88] sm:$0xff]
      %v3032 = vld [vmem:[%s3013 + $0x90] sm:$0xff]
      %v3033 = vld [vmem:[%s3013 + $0x98] sm:$0xff]
      %v3034 = vld [vmem:[%s3013 + $0xa0] sm:$0xff]
      %v3035 = vld [vmem:[%s3013 + $0xa8] sm:$0xff]
      %v3036 = vld [vmem:[%s3013 + $0xb0] sm:$0xff]
      %v3037 = vld [vmem:[%s3013 + $0xb8] sm:$0xff]
      %3070 = vrot.lane.b32.xlu0 %v2981, 64
      %v3071 = vpop.permute.xlu0 %3070
      %3072 = vrot.lane.b32.xlu0 %v2982, 64
      %v3073 = vpop.permute.xlu0 %3072
      %3074 = vrot.lane.b32.xlu0 %v2983, 64
      %v3075 = vpop.permute.xlu0 %3074
      %3076 = vrot.lane.b32.xlu0 %v2984, 64
      %v3077 = vpop.permute.xlu0 %3076
      %3078 = vrot.lane.b32.xlu0 %v2985, 64
      %v3079 = vpop.permute.xlu0 %3078
      %3080 = vrot.lane.b32.xlu0 %v2986, 64
      %v3081 = vpop.permute.xlu0 %3080
      %3082 = vrot.lane.b32.xlu0 %v2987, 64
      %v3083 = vpop.permute.xlu0 %3082
      %3084 = vrot.lane.b32.xlu0 %v2988, 64
      %v3085 = vpop.permute.xlu0 %3084
      %3086 = vrot.lane.b32.xlu0 %v2989, 64
      %v3087 = vpop.permute.xlu0 %3086
      %3088 = vrot.lane.b32.xlu0 %v2990, 64
      %v3089 = vpop.permute.xlu0 %3088
      %3090 = vrot.lane.b32.xlu0 %v2991, 64
      %v3091 = vpop.permute.xlu0 %3090
      %3092 = vrot.lane.b32.xlu0 %v2992, 64
      %v3093 = vpop.permute.xlu0 %3092
      %3094 = vrot.lane.b32.xlu0 %v2993, 64
      %v3095 = vpop.permute.xlu0 %3094
      %3096 = vrot.lane.b32.xlu0 %v2994, 64
      %v3097 = vpop.permute.xlu0 %3096
      %3098 = vrot.lane.b32.xlu0 %v2995, 64
      %v3099 = vpop.permute.xlu0 %3098
      %3100 = vrot.lane.b32.xlu0 %v2996, 64
      %v3101 = vpop.permute.xlu0 %3100
      %3102 = vrot.lane.b32.xlu0 %v2997, 64
      %v3103 = vpop.permute.xlu0 %3102
      %3104 = vrot.lane.b32.xlu0 %v2998, 64
      %v3105 = vpop.permute.xlu0 %3104
      %3106 = vrot.lane.b32.xlu0 %v2999, 64
      %v3107 = vpop.permute.xlu0 %3106
      %3108 = vrot.lane.b32.xlu0 %v3000, 64
      %v3109 = vpop.permute.xlu0 %3108
      %3110 = vrot.lane.b32.xlu0 %v3001, 64
      %v3111 = vpop.permute.xlu0 %3110
      %3112 = vrot.lane.b32.xlu0 %v3002, 64
      %v3113 = vpop.permute.xlu0 %3112
      %3114 = vrot.lane.b32.xlu0 %v3003, 64
      %v3115 = vpop.permute.xlu0 %3114
      %3116 = vrot.lane.b32.xlu0 %v3004, 64
      %v3117 = vpop.permute.xlu0 %3116
      %3118 = vrot.lane.b32.xlu0 %v3005, 64
      %v3119 = vpop.permute.xlu0 %3118
      %3120 = vrot.lane.b32.xlu0 %v3006, 64
      %v3121 = vpop.permute.xlu0 %3120
      %3122 = vrot.lane.b32.xlu0 %v3007, 64
      %v3123 = vpop.permute.xlu0 %3122
      %3124 = vrot.lane.b32.xlu0 %v3008, 64
      %v3125 = vpop.permute.xlu0 %3124
      %3126 = vrot.lane.b32.xlu0 %v3009, 64
      %v3127 = vpop.permute.xlu0 %3126
      %3128 = vrot.lane.b32.xlu0 %v3010, 64
      %v3129 = vpop.permute.xlu0 %3128
      %3130 = vrot.lane.b32.xlu0 %v3011, 64
      %v3131 = vpop.permute.xlu0 %3130
      %3132 = vrot.lane.b32.xlu0 %v3012, 64
      %v3133 = vpop.permute.xlu0 %3132
      %v3166 = vsel %vm894, 0.0, %v3071
      %v3167 = vsel %vm894, 0.0, %v3073
      %v3168 = vsel %vm894, 0.0, %v3075
      %v3169 = vsel %vm894, 0.0, %v3077
      %v3170 = vsel %vm894, %v2981, %v3079
      %v3171 = vsel %vm894, %v2982, %v3081
      %v3172 = vsel %vm894, %v2983, %v3083
      %v3173 = vsel %vm894, %v2984, %v3085
      %v3174 = vsel %vm894, %v2985, %v3087
      %v3175 = vsel %vm894, %v2986, %v3089
      %v3176 = vsel %vm894, %v2987, %v3091
      %v3177 = vsel %vm894, %v2988, %v3093
      %v3178 = vsel %vm894, %v2989, %v3095
      %v3179 = vsel %vm894, %v2990, %v3097
      %v3180 = vsel %vm894, %v2991, %v3099
      %v3181 = vsel %vm894, %v2992, %v3101
      %v3182 = vsel %vm894, %v2993, %v3103
      %v3183 = vsel %vm894, %v2994, %v3105
      %v3184 = vsel %vm894, %v2995, %v3107
      %v3185 = vsel %vm894, %v2996, %v3109
      %v3186 = vsel %vm894, %v2997, %v3111
      %v3187 = vsel %vm894, %v2998, %v3113
      %v3188 = vsel %vm894, %v2999, %v3115
      %v3189 = vsel %vm894, %v3000, %v3117
      %v3190 = vsel %vm894, %v3001, %v3119
      %v3191 = vsel %vm894, %v3002, %v3121
      %v3192 = vsel %vm894, %v3003, %v3123
      %v3193 = vsel %vm894, %v3004, %v3125
      %v3194 = vsel %vm894, %v3005, %v3127
      %v3195 = vsel %vm894, %v3006, %v3129
      %v3196 = vsel %vm894, %v3007, %v3131
      %v3197 = vsel %vm894, %v3008, %v3133
      %s3198 = scalar_lea.vmem %s4, 4
      %v3199 = vld [vmem:[%s3198] sm:$0x1]
      %v3201 = vperm.slane %v3199, 0
      %v3203 = vsel %vm894, %v2985, 0
      %v3205 = vsel %vm894, %v2986, 0
      %v3207 = vsel %vm894, %v2987, 0
      %v3209 = vsel %vm894, %v2988, 0
      %v3211 = vsel %vm894, %v2989, 0
      %v3213 = vsel %vm894, %v2990, 0
      %v3215 = vsel %vm894, %v2991, 0
      %v3217 = vsel %vm894, %v2992, 0
      %v3219 = vsel %vm894, %v2993, 0
      %v3221 = vsel %vm894, %v2994, 0
      %v3223 = vsel %vm894, %v2995, 0
      %v3225 = vsel %vm894, %v2996, 0
      %v3227 = vsel %vm894, %v2997, 0
      %v3229 = vsel %vm894, %v2998, 0
      %v3231 = vsel %vm894, %v2999, 0
      %v3233 = vsel %vm894, %v3000, 0
      %v3235 = vsel %vm894, %v3001, 0
      %v3237 = vsel %vm894, %v3002, 0
      %v3239 = vsel %vm894, %v3003, 0
      %v3241 = vsel %vm894, %v3004, 0
      %v3243 = vsel %vm894, %v3005, 0
      %v3245 = vsel %vm894, %v3006, 0
      %v3247 = vsel %vm894, %v3007, 0
      %v3249 = vsel %vm894, %v3008, 0
      %v3251 = vsel %vm894, %v3009, 0
      %v3253 = vsel %vm894, %v3010, 0
      %v3255 = vsel %vm894, %v3011, 0
      %v3257 = vsel %vm894, %v3012, 0
      %3259 = vmatpush.msra.mxu0 %v3029
      %3260 = vmatpush.msra.mxu0 %v3028
      %3261 = vmatpush.msra.mxu0 %v3027
      %3262 = vmatpush.msra.mxu0 %v3026
      %3263 = vmatpush.msra.mxu0 %v3025
      %3264 = vmatpush.msra.mxu0 %v3024
      %3265 = vmatpush.msra.mxu0 %v3023
      %3266 = vmatpush.msra.mxu0 %v3022
      %3267 = vmatpush.msra.mxu0 %v3021
      %3268 = vmatpush.msra.mxu0 %v3020
      %3269 = vmatpush.msra.mxu0 %v3019
      %3270 = vmatpush.msra.mxu0 %v3018
      %3271 = vmatpush.msra.mxu0 %v3017
      %3272 = vmatpush.msra.mxu0 %v3016
      %3273 = vmatpush.msra.mxu0 %v3015
      %3274 = vmatpush.msra.mxu0 %v3014
      %3275 = vmatmul.f32.gmra.mxu0 %v3166
      %v3276 = vpop.f32.mrf.mxu0
      %v3277 = vadd.f32 %v3201, %v3276
      %3278 = vmatmul.f32.gmra.mxu0 %v3167
      %v3279 = vpop.f32.mrf.mxu0
      %v3280 = vadd.f32 %v3201, %v3279
      %3281 = vmatmul.f32.gmra.mxu0 %v3168
      %v3282 = vpop.f32.mrf.mxu0
      %v3283 = vadd.f32 %v3201, %v3282
      %3284 = vmatmul.f32.gmra.mxu0 %v3169
      %v3285 = vpop.f32.mrf.mxu0
      %v3286 = vadd.f32 %v3201, %v3285
      %3287 = vmatmul.f32.gmra.mxu0 %v3170
      %v3288 = vpop.f32.mrf.mxu0
      %v3289 = vadd.f32 %v3201, %v3288
      %3290 = vmatmul.f32.gmra.mxu0 %v3171
      %v3291 = vpop.f32.mrf.mxu0
      %v3292 = vadd.f32 %v3201, %v3291
      %3293 = vmatmul.f32.gmra.mxu0 %v3172
      %v3294 = vpop.f32.mrf.mxu0
      %v3295 = vadd.f32 %v3201, %v3294
      %3296 = vmatmul.f32.gmra.mxu0 %v3173
      %v3297 = vpop.f32.mrf.mxu0
      %v3298 = vadd.f32 %v3201, %v3297
      %3299 = vmatmul.f32.gmra.mxu0 %v3174
      %v3300 = vpop.f32.mrf.mxu0
      %v3301 = vadd.f32 %v3201, %v3300
      %3302 = vmatmul.f32.gmra.mxu0 %v3175
      %v3303 = vpop.f32.mrf.mxu0
      %v3304 = vadd.f32 %v3201, %v3303
      %3305 = vmatmul.f32.gmra.mxu0 %v3176
      %v3306 = vpop.f32.mrf.mxu0
      %v3307 = vadd.f32 %v3201, %v3306
      %3308 = vmatmul.f32.gmra.mxu0 %v3177
      %v3309 = vpop.f32.mrf.mxu0
      %v3310 = vadd.f32 %v3201, %v3309
      %3311 = vmatmul.f32.gmra.mxu0 %v3178
      %v3312 = vpop.f32.mrf.mxu0
      %v3313 = vadd.f32 %v3201, %v3312
      %3314 = vmatmul.f32.gmra.mxu0 %v3179
      %v3315 = vpop.f32.mrf.mxu0
      %v3316 = vadd.f32 %v3201, %v3315
      %3317 = vmatmul.f32.gmra.mxu0 %v3180
      %v3318 = vpop.f32.mrf.mxu0
      %v3319 = vadd.f32 %v3201, %v3318
      %3320 = vmatmul.f32.gmra.mxu0 %v3181
      %v3321 = vpop.f32.mrf.mxu0
      %v3322 = vadd.f32 %v3201, %v3321
      %3323 = vmatmul.f32.gmra.mxu0 %v3182
      %v3324 = vpop.f32.mrf.mxu0
      %v3325 = vadd.f32 %v3201, %v3324
      %3326 = vmatmul.f32.gmra.mxu0 %v3183
      %v3327 = vpop.f32.mrf.mxu0
      %v3328 = vadd.f32 %v3201, %v3327
      %3329 = vmatmul.f32.gmra.mxu0 %v3184
      %v3330 = vpop.f32.mrf.mxu0
      %v3331 = vadd.f32 %v3201, %v3330
      %3332 = vmatmul.f32.gmra.mxu0 %v3185
      %v3333 = vpop.f32.mrf.mxu0
      %v3334 = vadd.f32 %v3201, %v3333
      %3335 = vmatmul.f32.gmra.mxu0 %v3186
      %v3336 = vpop.f32.mrf.mxu0
      %v3337 = vadd.f32 %v3201, %v3336
      %3338 = vmatmul.f32.gmra.mxu0 %v3187
      %v3339 = vpop.f32.mrf.mxu0
      %v3340 = vadd.f32 %v3201, %v3339
      %3341 = vmatmul.f32.gmra.mxu0 %v3188
      %v3342 = vpop.f32.mrf.mxu0
      %v3343 = vadd.f32 %v3201, %v3342
      %3344 = vmatmul.f32.gmra.mxu0 %v3189
      %v3345 = vpop.f32.mrf.mxu0
      %v3346 = vadd.f32 %v3201, %v3345
      %3347 = vmatmul.f32.gmra.mxu0 %v3190
      %v3348 = vpop.f32.mrf.mxu0
      %v3349 = vadd.f32 %v3201, %v3348
      %3350 = vmatmul.f32.gmra.mxu0 %v3191
      %v3351 = vpop.f32.mrf.mxu0
      %v3352 = vadd.f32 %v3201, %v3351
      %3353 = vmatmul.f32.gmra.mxu0 %v3192
      %v3354 = vpop.f32.mrf.mxu0
      %v3355 = vadd.f32 %v3201, %v3354
      %3356 = vmatmul.f32.gmra.mxu0 %v3193
      %v3357 = vpop.f32.mrf.mxu0
      %v3358 = vadd.f32 %v3201, %v3357
      %3359 = vmatmul.f32.gmra.mxu0 %v3194
      %v3360 = vpop.f32.mrf.mxu0
      %v3361 = vadd.f32 %v3201, %v3360
      %3362 = vmatmul.f32.gmra.mxu0 %v3195
      %v3363 = vpop.f32.mrf.mxu0
      %v3364 = vadd.f32 %v3201, %v3363
      %3365 = vmatmul.f32.gmra.mxu0 %v3196
      %v3366 = vpop.f32.mrf.mxu0
      %v3367 = vadd.f32 %v3201, %v3366
      %3368 = vmatmul.f32.gmra.mxu0 %v3197
      %v3369 = vpop.f32.mrf.mxu0
      %v3370 = vadd.f32 %v3201, %v3369
      %3371 = vdwg.mxu0
      %3372 = vmatpush.msra.mxu0 0.0
      %3373 = vmatpush.msra.mxu0 0.0
      %3374 = vmatpush.msra.mxu0 0.0
      %3375 = vmatpush.msra.mxu0 0.0
      %3376 = vmatpush.msra.mxu0 0.0
      %3377 = vmatpush.msra.mxu0 0.0
      %3378 = vmatpush.msra.mxu0 0.0
      %3379 = vmatpush.msra.mxu0 0.0
      %3380 = vmatpush.msra.mxu0 %v3037
      %3381 = vmatpush.msra.mxu0 %v3036
      %3382 = vmatpush.msra.mxu0 %v3035
      %3383 = vmatpush.msra.mxu0 %v3034
      %3384 = vmatpush.msra.mxu0 %v3033
      %3385 = vmatpush.msra.mxu0 %v3032
      %3386 = vmatpush.msra.mxu0 %v3031
      %3387 = vmatpush.msra.mxu0 %v3030
      %3388 = vmatmul.f32.gmra.mxu0 %v3203
      %v3389 = vpop.f32.mrf.mxu0
      %v3390 = vadd.f32 %v3277, %v3389
      %3391 = vmatmul.f32.gmra.mxu0 %v3205
      %v3392 = vpop.f32.mrf.mxu0
      %v3393 = vadd.f32 %v3280, %v3392
      %3394 = vmatmul.f32.gmra.mxu0 %v3207
      %v3395 = vpop.f32.mrf.mxu0
      %v3396 = vadd.f32 %v3283, %v3395
      %3397 = vmatmul.f32.gmra.mxu0 %v3209
      %v3398 = vpop.f32.mrf.mxu0
      %v3399 = vadd.f32 %v3286, %v3398
      %3400 = vmatmul.f32.gmra.mxu0 %v3211
      %v3401 = vpop.f32.mrf.mxu0
      %v3402 = vadd.f32 %v3289, %v3401
      %3403 = vmatmul.f32.gmra.mxu0 %v3213
      %v3404 = vpop.f32.mrf.mxu0
      %v3405 = vadd.f32 %v3292, %v3404
      %3406 = vmatmul.f32.gmra.mxu0 %v3215
      %v3407 = vpop.f32.mrf.mxu0
      %v3408 = vadd.f32 %v3295, %v3407
      %3409 = vmatmul.f32.gmra.mxu0 %v3217
      %v3410 = vpop.f32.mrf.mxu0
      %v3411 = vadd.f32 %v3298, %v3410
      %3412 = vmatmul.f32.gmra.mxu0 %v3219
      %v3413 = vpop.f32.mrf.mxu0
      %v3414 = vadd.f32 %v3301, %v3413
      %3415 = vmatmul.f32.gmra.mxu0 %v3221
      %v3416 = vpop.f32.mrf.mxu0
      %v3417 = vadd.f32 %v3304, %v3416
      %3418 = vmatmul.f32.gmra.mxu0 %v3223
      %v3419 = vpop.f32.mrf.mxu0
      %v3420 = vadd.f32 %v3307, %v3419
      %3421 = vmatmul.f32.gmra.mxu0 %v3225
      %v3422 = vpop.f32.mrf.mxu0
      %v3423 = vadd.f32 %v3310, %v3422
      %3424 = vmatmul.f32.gmra.mxu0 %v3227
      %v3425 = vpop.f32.mrf.mxu0
      %v3426 = vadd.f32 %v3313, %v3425
      %3427 = vmatmul.f32.gmra.mxu0 %v3229
      %v3428 = vpop.f32.mrf.mxu0
      %v3429 = vadd.f32 %v3316, %v3428
      %3430 = vmatmul.f32.gmra.mxu0 %v3231
      %v3431 = vpop.f32.mrf.mxu0
      %v3432 = vadd.f32 %v3319, %v3431
      %3433 = vmatmul.f32.gmra.mxu0 %v3233
      %v3434 = vpop.f32.mrf.mxu0
      %v3435 = vadd.f32 %v3322, %v3434
      %3436 = vmatmul.f32.gmra.mxu0 %v3235
      %v3437 = vpop.f32.mrf.mxu0
      %v3438 = vadd.f32 %v3325, %v3437
      %3439 = vmatmul.f32.gmra.mxu0 %v3237
      %v3440 = vpop.f32.mrf.mxu0
      %v3441 = vadd.f32 %v3328, %v3440
      %3442 = vmatmul.f32.gmra.mxu0 %v3239
      %v3443 = vpop.f32.mrf.mxu0
      %v3444 = vadd.f32 %v3331, %v3443
      %3445 = vmatmul.f32.gmra.mxu0 %v3241
      %v3446 = vpop.f32.mrf.mxu0
      %v3447 = vadd.f32 %v3334, %v3446
      %3448 = vmatmul.f32.gmra.mxu0 %v3243
      %v3449 = vpop.f32.mrf.mxu0
      %v3450 = vadd.f32 %v3337, %v3449
      %3451 = vmatmul.f32.gmra.mxu0 %v3245
      %v3452 = vpop.f32.mrf.mxu0
      %v3453 = vadd.f32 %v3340, %v3452
      %3454 = vmatmul.f32.gmra.mxu0 %v3247
      %v3455 = vpop.f32.mrf.mxu0
      %v3456 = vadd.f32 %v3343, %v3455
      %3457 = vmatmul.f32.gmra.mxu0 %v3249
      %v3458 = vpop.f32.mrf.mxu0
      %v3459 = vadd.f32 %v3346, %v3458
      %3460 = vmatmul.f32.gmra.mxu0 %v3251
      %v3461 = vpop.f32.mrf.mxu0
      %v3462 = vadd.f32 %v3349, %v3461
      %3463 = vmatmul.f32.gmra.mxu0 %v3253
      %v3464 = vpop.f32.mrf.mxu0
      %v3465 = vadd.f32 %v3352, %v3464
      %3466 = vmatmul.f32.gmra.mxu0 %v3255
      %v3467 = vpop.f32.mrf.mxu0
      %v3468 = vadd.f32 %v3355, %v3467
      %3469 = vmatmul.f32.gmra.mxu0 %v3257
      %v3470 = vpop.f32.mrf.mxu0
      %v3471 = vadd.f32 %v3358, %v3470
      %3472 = vmatmul.f32.gmra.mxu0 %v2181
      %v3473 = vpop.f32.mrf.mxu0
      %v3474 = vadd.f32 %v3361, %v3473
      %3475 = vmatmul.f32.gmra.mxu0 %v2181
      %v3476 = vpop.f32.mrf.mxu0
      %v3477 = vadd.f32 %v3364, %v3476
      %3478 = vmatmul.f32.gmra.mxu0 %v2181
      %v3479 = vpop.f32.mrf.mxu0
      %v3480 = vadd.f32 %v3367, %v3479
      %3481 = vmatmul.f32.gmra.mxu0 %v2181
      %v3482 = vpop.f32.mrf.mxu0
      %v3483 = vadd.f32 %v3370, %v3482
      %3484 = vdwg.mxu0
      %v3485 = vmax.f32 %v3390, 0.0
      %v3486 = vmax.f32 %v3393, 0.0
      %v3487 = vmax.f32 %v3396, 0.0
      %v3488 = vmax.f32 %v3399, 0.0
      %v3489 = vmax.f32 %v3402, 0.0
      %v3490 = vmax.f32 %v3405, 0.0
      %v3491 = vmax.f32 %v3408, 0.0
      %v3492 = vmax.f32 %v3411, 0.0
      %v3493 = vmax.f32 %v3414, 0.0
      %v3494 = vmax.f32 %v3417, 0.0
      %v3495 = vmax.f32 %v3420, 0.0
      %v3496 = vmax.f32 %v3423, 0.0
      %v3497 = vmax.f32 %v3426, 0.0
      %v3498 = vmax.f32 %v3429, 0.0
      %v3499 = vmax.f32 %v3432, 0.0
      %v3500 = vmax.f32 %v3435, 0.0
      %v3501 = vmax.f32 %v3438, 0.0
      %v3502 = vmax.f32 %v3441, 0.0
      %v3503 = vmax.f32 %v3444, 0.0
      %v3504 = vmax.f32 %v3447, 0.0
      %v3505 = vmax.f32 %v3450, 0.0
      %v3506 = vmax.f32 %v3453, 0.0
      %v3507 = vmax.f32 %v3456, 0.0
      %v3508 = vmax.f32 %v3459, 0.0
      %v3509 = vmax.f32 %v3462, 0.0
      %v3510 = vmax.f32 %v3465, 0.0
      %v3511 = vmax.f32 %v3468, 0.0
      %v3512 = vmax.f32 %v3471, 0.0
      %v3513 = vmax.f32 %v3474, 0.0
      %v3514 = vmax.f32 %v3477, 0.0
      %v3515 = vmax.f32 %v3480, 0.0
      %v3516 = vmax.f32 %v3483, 0.0
      %v3517 = vadd.f32 %v3485, %v2981
      %v3518 = vadd.f32 %v3486, %v2982
      %v3519 = vadd.f32 %v3487, %v2983
      %v3520 = vadd.f32 %v3488, %v2984
      %v3521 = vadd.f32 %v3489, %v2985
      %v3522 = vadd.f32 %v3490, %v2986
      %v3523 = vadd.f32 %v3491, %v2987
      %v3524 = vadd.f32 %v3492, %v2988
      %v3525 = vadd.f32 %v3493, %v2989
      %v3526 = vadd.f32 %v3494, %v2990
      %v3527 = vadd.f32 %v3495, %v2991
      %v3528 = vadd.f32 %v3496, %v2992
      %v3529 = vadd.f32 %v3497, %v2993
      %v3530 = vadd.f32 %v3498, %v2994
      %v3531 = vadd.f32 %v3499, %v2995
      %v3532 = vadd.f32 %v3500, %v2996
      %v3533 = vadd.f32 %v3501, %v2997
      %v3534 = vadd.f32 %v3502, %v2998
      %v3535 = vadd.f32 %v3503, %v2999
      %v3536 = vadd.f32 %v3504, %v3000
      %v3537 = vadd.f32 %v3505, %v3001
      %v3538 = vadd.f32 %v3506, %v3002
      %v3539 = vadd.f32 %v3507, %v3003
      %v3540 = vadd.f32 %v3508, %v3004
      %v3541 = vadd.f32 %v3509, %v3005
      %v3542 = vadd.f32 %v3510, %v3006
      %v3543 = vadd.f32 %v3511, %v3007
      %v3544 = vadd.f32 %v3512, %v3008
      %v3545 = vadd.f32 %v3513, %v3009
      %v3546 = vadd.f32 %v3514, %v3010
      %v3547 = vadd.f32 %v3515, %v3011
      %v3548 = vadd.f32 %v3516, %v3012
      %s3549 = scalar_lea.vmem %s3, 960
      %v3550 = vld [vmem:[%s3549] sm:$0xff]
      %v3551 = vld [vmem:[%s3549 + $0x8] sm:$0xff]
      %v3552 = vld [vmem:[%s3549 + $0x10] sm:$0xff]
      %v3553 = vld [vmem:[%s3549 + $0x18] sm:$0xff]
      %v3554 = vld [vmem:[%s3549 + $0x20] sm:$0xff]
      %v3555 = vld [vmem:[%s3549 + $0x28] sm:$0xff]
      %v3556 = vld [vmem:[%s3549 + $0x30] sm:$0xff]
      %v3557 = vld [vmem:[%s3549 + $0x38] sm:$0xff]
      %v3558 = vld [vmem:[%s3549 + $0x40] sm:$0xff]
      %v3559 = vld [vmem:[%s3549 + $0x48] sm:$0xff]
      %v3560 = vld [vmem:[%s3549 + $0x50] sm:$0xff]
      %v3561 = vld [vmem:[%s3549 + $0x58] sm:$0xff]
      %v3562 = vld [vmem:[%s3549 + $0x60] sm:$0xff]
      %v3563 = vld [vmem:[%s3549 + $0x68] sm:$0xff]
      %v3564 = vld [vmem:[%s3549 + $0x70] sm:$0xff]
      %v3565 = vld [vmem:[%s3549 + $0x78] sm:$0xff]
      %v3566 = vld [vmem:[%s3549 + $0x80] sm:$0xff]
      %v3567 = vld [vmem:[%s3549 + $0x88] sm:$0xff]
      %v3568 = vld [vmem:[%s3549 + $0x90] sm:$0xff]
      %v3569 = vld [vmem:[%s3549 + $0x98] sm:$0xff]
      %v3570 = vld [vmem:[%s3549 + $0xa0] sm:$0xff]
      %v3571 = vld [vmem:[%s3549 + $0xa8] sm:$0xff]
      %v3572 = vld [vmem:[%s3549 + $0xb0] sm:$0xff]
      %v3573 = vld [vmem:[%s3549 + $0xb8] sm:$0xff]
      %3606 = vrot.lane.b32.xlu0 %v3517, 64
      %v3607 = vpop.permute.xlu0 %3606
      %3608 = vrot.lane.b32.xlu0 %v3518, 64
      %v3609 = vpop.permute.xlu0 %3608
      %3610 = vrot.lane.b32.xlu0 %v3519, 64
      %v3611 = vpop.permute.xlu0 %3610
      %3612 = vrot.lane.b32.xlu0 %v3520, 64
      %v3613 = vpop.permute.xlu0 %3612
      %3614 = vrot.lane.b32.xlu0 %v3521, 64
      %v3615 = vpop.permute.xlu0 %3614
      %3616 = vrot.lane.b32.xlu0 %v3522, 64
      %v3617 = vpop.permute.xlu0 %3616
      %3618 = vrot.lane.b32.xlu0 %v3523, 64
      %v3619 = vpop.permute.xlu0 %3618
      %3620 = vrot.lane.b32.xlu0 %v3524, 64
      %v3621 = vpop.permute.xlu0 %3620
      %3622 = vrot.lane.b32.xlu0 %v3525, 64
      %v3623 = vpop.permute.xlu0 %3622
      %3624 = vrot.lane.b32.xlu0 %v3526, 64
      %v3625 = vpop.permute.xlu0 %3624
      %3626 = vrot.lane.b32.xlu0 %v3527, 64
      %v3627 = vpop.permute.xlu0 %3626
      %3628 = vrot.lane.b32.xlu0 %v3528, 64
      %v3629 = vpop.permute.xlu0 %3628
      %3630 = vrot.lane.b32.xlu0 %v3529, 64
      %v3631 = vpop.permute.xlu0 %3630
      %3632 = vrot.lane.b32.xlu0 %v3530, 64
      %v3633 = vpop.permute.xlu0 %3632
      %3634 = vrot.lane.b32.xlu0 %v3531, 64
      %v3635 = vpop.permute.xlu0 %3634
      %3636 = vrot.lane.b32.xlu0 %v3532, 64
      %v3637 = vpop.permute.xlu0 %3636
      %3638 = vrot.lane.b32.xlu0 %v3533, 64
      %v3639 = vpop.permute.xlu0 %3638
      %3640 = vrot.lane.b32.xlu0 %v3534, 64
      %v3641 = vpop.permute.xlu0 %3640
      %3642 = vrot.lane.b32.xlu0 %v3535, 64
      %v3643 = vpop.permute.xlu0 %3642
      %3644 = vrot.lane.b32.xlu0 %v3536, 64
      %v3645 = vpop.permute.xlu0 %3644
      %3646 = vrot.lane.b32.xlu0 %v3537, 64
      %v3647 = vpop.permute.xlu0 %3646
      %3648 = vrot.lane.b32.xlu0 %v3538, 64
      %v3649 = vpop.permute.xlu0 %3648
      %3650 = vrot.lane.b32.xlu0 %v3539, 64
      %v3651 = vpop.permute.xlu0 %3650
      %3652 = vrot.lane.b32.xlu0 %v3540, 64
      %v3653 = vpop.permute.xlu0 %3652
      %3654 = vrot.lane.b32.xlu0 %v3541, 64
      %v3655 = vpop.permute.xlu0 %3654
      %3656 = vrot.lane.b32.xlu0 %v3542, 64
      %v3657 = vpop.permute.xlu0 %3656
      %3658 = vrot.lane.b32.xlu0 %v3543, 64
      %v3659 = vpop.permute.xlu0 %3658
      %3660 = vrot.lane.b32.xlu0 %v3544, 64
      %v3661 = vpop.permute.xlu0 %3660
      %3662 = vrot.lane.b32.xlu0 %v3545, 64
      %v3663 = vpop.permute.xlu0 %3662
      %3664 = vrot.lane.b32.xlu0 %v3546, 64
      %v3665 = vpop.permute.xlu0 %3664
      %3666 = vrot.lane.b32.xlu0 %v3547, 64
      %v3667 = vpop.permute.xlu0 %3666
      %3668 = vrot.lane.b32.xlu0 %v3548, 64
      %v3669 = vpop.permute.xlu0 %3668
      %v3702 = vsel %vm894, 0.0, %v3607
      %v3703 = vsel %vm894, 0.0, %v3609
      %v3704 = vsel %vm894, 0.0, %v3611
      %v3705 = vsel %vm894, 0.0, %v3613
      %v3706 = vsel %vm894, 0.0, %v3615
      %v3707 = vsel %vm894, 0.0, %v3617
      %v3708 = vsel %vm894, 0.0, %v3619
      %v3709 = vsel %vm894, 0.0, %v3621
      %v3710 = vsel %vm894, %v3517, %v3623
      %v3711 = vsel %vm894, %v3518, %v3625
      %v3712 = vsel %vm894, %v3519, %v3627
      %v3713 = vsel %vm894, %v3520, %v3629
      %v3714 = vsel %vm894, %v3521, %v3631
      %v3715 = vsel %vm894, %v3522, %v3633
      %v3716 = vsel %vm894, %v3523, %v3635
      %v3717 = vsel %vm894, %v3524, %v3637
      %v3718 = vsel %vm894, %v3525, %v3639
      %v3719 = vsel %vm894, %v3526, %v3641
      %v3720 = vsel %vm894, %v3527, %v3643
      %v3721 = vsel %vm894, %v3528, %v3645
      %v3722 = vsel %vm894, %v3529, %v3647
      %v3723 = vsel %vm894, %v3530, %v3649
      %v3724 = vsel %vm894, %v3531, %v3651
      %v3725 = vsel %vm894, %v3532, %v3653
      %v3726 = vsel %vm894, %v3533, %v3655
      %v3727 = vsel %vm894, %v3534, %v3657
      %v3728 = vsel %vm894, %v3535, %v3659
      %v3729 = vsel %vm894, %v3536, %v3661
      %v3730 = vsel %vm894, %v3537, %v3663
      %v3731 = vsel %vm894, %v3538, %v3665
      %v3732 = vsel %vm894, %v3539, %v3667
      %v3733 = vsel %vm894, %v3540, %v3669
      %s3734 = scalar_lea.vmem %s4, 5
      %v3735 = vld [vmem:[%s3734] sm:$0x1]
      %v3737 = vperm.slane %v3735, 0
      %v3739 = vsel %vm894, %v3525, 0
      %v3741 = vsel %vm894, %v3526, 0
      %v3743 = vsel %vm894, %v3527, 0
      %v3745 = vsel %vm894, %v3528, 0
      %v3747 = vsel %vm894, %v3529, 0
      %v3749 = vsel %vm894, %v3530, 0
      %v3751 = vsel %vm894, %v3531, 0
      %v3753 = vsel %vm894, %v3532, 0
      %v3755 = vsel %vm894, %v3533, 0
      %v3757 = vsel %vm894, %v3534, 0
      %v3759 = vsel %vm894, %v3535, 0
      %v3761 = vsel %vm894, %v3536, 0
      %v3763 = vsel %vm894, %v3537, 0
      %v3765 = vsel %vm894, %v3538, 0
      %v3767 = vsel %vm894, %v3539, 0
      %v3769 = vsel %vm894, %v3540, 0
      %v3771 = vsel %vm894, %v3541, 0
      %v3773 = vsel %vm894, %v3542, 0
      %v3775 = vsel %vm894, %v3543, 0
      %v3777 = vsel %vm894, %v3544, 0
      %v3779 = vsel %vm894, %v3545, 0
      %v3781 = vsel %vm894, %v3546, 0
      %v3783 = vsel %vm894, %v3547, 0
      %v3785 = vsel %vm894, %v3548, 0
      %3787 = vmatpush.msra.mxu0 %v3565
      %3788 = vmatpush.msra.mxu0 %v3564
      %3789 = vmatpush.msra.mxu0 %v3563
      %3790 = vmatpush.msra.mxu0 %v3562
      %3791 = vmatpush.msra.mxu0 %v3561
      %3792 = vmatpush.msra.mxu0 %v3560
      %3793 = vmatpush.msra.mxu0 %v3559
      %3794 = vmatpush.msra.mxu0 %v3558
      %3795 = vmatpush.msra.mxu0 %v3557
      %3796 = vmatpush.msra.mxu0 %v3556
      %3797 = vmatpush.msra.mxu0 %v3555
      %3798 = vmatpush.msra.mxu0 %v3554
      %3799 = vmatpush.msra.mxu0 %v3553
      %3800 = vmatpush.msra.mxu0 %v3552
      %3801 = vmatpush.msra.mxu0 %v3551
      %3802 = vmatpush.msra.mxu0 %v3550
      %3803 = vmatmul.f32.gmra.mxu0 %v3702
      %v3804 = vpop.f32.mrf.mxu0
      %v3805 = vadd.f32 %v3737, %v3804
      %3806 = vmatmul.f32.gmra.mxu0 %v3703
      %v3807 = vpop.f32.mrf.mxu0
      %v3808 = vadd.f32 %v3737, %v3807
      %3809 = vmatmul.f32.gmra.mxu0 %v3704
      %v3810 = vpop.f32.mrf.mxu0
      %v3811 = vadd.f32 %v3737, %v3810
      %3812 = vmatmul.f32.gmra.mxu0 %v3705
      %v3813 = vpop.f32.mrf.mxu0
      %v3814 = vadd.f32 %v3737, %v3813
      %3815 = vmatmul.f32.gmra.mxu0 %v3706
      %v3816 = vpop.f32.mrf.mxu0
      %v3817 = vadd.f32 %v3737, %v3816
      %3818 = vmatmul.f32.gmra.mxu0 %v3707
      %v3819 = vpop.f32.mrf.mxu0
      %v3820 = vadd.f32 %v3737, %v3819
      %3821 = vmatmul.f32.gmra.mxu0 %v3708
      %v3822 = vpop.f32.mrf.mxu0
      %v3823 = vadd.f32 %v3737, %v3822
      %3824 = vmatmul.f32.gmra.mxu0 %v3709
      %v3825 = vpop.f32.mrf.mxu0
      %v3826 = vadd.f32 %v3737, %v3825
      %3827 = vmatmul.f32.gmra.mxu0 %v3710
      %v3828 = vpop.f32.mrf.mxu0
      %v3829 = vadd.f32 %v3737, %v3828
      %3830 = vmatmul.f32.gmra.mxu0 %v3711
      %v3831 = vpop.f32.mrf.mxu0
      %v3832 = vadd.f32 %v3737, %v3831
      %3833 = vmatmul.f32.gmra.mxu0 %v3712
      %v3834 = vpop.f32.mrf.mxu0
      %v3835 = vadd.f32 %v3737, %v3834
      %3836 = vmatmul.f32.gmra.mxu0 %v3713
      %v3837 = vpop.f32.mrf.mxu0
      %v3838 = vadd.f32 %v3737, %v3837
      %3839 = vmatmul.f32.gmra.mxu0 %v3714
      %v3840 = vpop.f32.mrf.mxu0
      %v3841 = vadd.f32 %v3737, %v3840
      %3842 = vmatmul.f32.gmra.mxu0 %v3715
      %v3843 = vpop.f32.mrf.mxu0
      %v3844 = vadd.f32 %v3737, %v3843
      %3845 = vmatmul.f32.gmra.mxu0 %v3716
      %v3846 = vpop.f32.mrf.mxu0
      %v3847 = vadd.f32 %v3737, %v3846
      %3848 = vmatmul.f32.gmra.mxu0 %v3717
      %v3849 = vpop.f32.mrf.mxu0
      %v3850 = vadd.f32 %v3737, %v3849
      %3851 = vmatmul.f32.gmra.mxu0 %v3718
      %v3852 = vpop.f32.mrf.mxu0
      %v3853 = vadd.f32 %v3737, %v3852
      %3854 = vmatmul.f32.gmra.mxu0 %v3719
      %v3855 = vpop.f32.mrf.mxu0
      %v3856 = vadd.f32 %v3737, %v3855
      %3857 = vmatmul.f32.gmra.mxu0 %v3720
      %v3858 = vpop.f32.mrf.mxu0
      %v3859 = vadd.f32 %v3737, %v3858
      %3860 = vmatmul.f32.gmra.mxu0 %v3721
      %v3861 = vpop.f32.mrf.mxu0
      %v3862 = vadd.f32 %v3737, %v3861
      %3863 = vmatmul.f32.gmra.mxu0 %v3722
      %v3864 = vpop.f32.mrf.mxu0
      %v3865 = vadd.f32 %v3737, %v3864
      %3866 = vmatmul.f32.gmra.mxu0 %v3723
      %v3867 = vpop.f32.mrf.mxu0
      %v3868 = vadd.f32 %v3737, %v3867
      %3869 = vmatmul.f32.gmra.mxu0 %v3724
      %v3870 = vpop.f32.mrf.mxu0
      %v3871 = vadd.f32 %v3737, %v3870
      %3872 = vmatmul.f32.gmra.mxu0 %v3725
      %v3873 = vpop.f32.mrf.mxu0
      %v3874 = vadd.f32 %v3737, %v3873
      %3875 = vmatmul.f32.gmra.mxu0 %v3726
      %v3876 = vpop.f32.mrf.mxu0
      %v3877 = vadd.f32 %v3737, %v3876
      %3878 = vmatmul.f32.gmra.mxu0 %v3727
      %v3879 = vpop.f32.mrf.mxu0
      %v3880 = vadd.f32 %v3737, %v3879
      %3881 = vmatmul.f32.gmra.mxu0 %v3728
      %v3882 = vpop.f32.mrf.mxu0
      %v3883 = vadd.f32 %v3737, %v3882
      %3884 = vmatmul.f32.gmra.mxu0 %v3729
      %v3885 = vpop.f32.mrf.mxu0
      %v3886 = vadd.f32 %v3737, %v3885
      %3887 = vmatmul.f32.gmra.mxu0 %v3730
      %v3888 = vpop.f32.mrf.mxu0
      %v3889 = vadd.f32 %v3737, %v3888
      %3890 = vmatmul.f32.gmra.mxu0 %v3731
      %v3891 = vpop.f32.mrf.mxu0
      %v3892 = vadd.f32 %v3737, %v3891
      %3893 = vmatmul.f32.gmra.mxu0 %v3732
      %v3894 = vpop.f32.mrf.mxu0
      %v3895 = vadd.f32 %v3737, %v3894
      %3896 = vmatmul.f32.gmra.mxu0 %v3733
      %v3897 = vpop.f32.mrf.mxu0
      %v3898 = vadd.f32 %v3737, %v3897
      %3899 = vdwg.mxu0
      %3900 = vmatpush.msra.mxu0 0.0
      %3901 = vmatpush.msra.mxu0 0.0
      %3902 = vmatpush.msra.mxu0 0.0
      %3903 = vmatpush.msra.mxu0 0.0
      %3904 = vmatpush.msra.mxu0 0.0
      %3905 = vmatpush.msra.mxu0 0.0
      %3906 = vmatpush.msra.mxu0 0.0
      %3907 = vmatpush.msra.mxu0 0.0
      %3908 = vmatpush.msra.mxu0 %v3573
      %3909 = vmatpush.msra.mxu0 %v3572
      %3910 = vmatpush.msra.mxu0 %v3571
      %3911 = vmatpush.msra.mxu0 %v3570
      %3912 = vmatpush.msra.mxu0 %v3569
      %3913 = vmatpush.msra.mxu0 %v3568
      %3914 = vmatpush.msra.mxu0 %v3567
      %3915 = vmatpush.msra.mxu0 %v3566
      %3916 = vmatmul.f32.gmra.mxu0 %v3739
      %v3917 = vpop.f32.mrf.mxu0
      %v3918 = vadd.f32 %v3805, %v3917
      %3919 = vmatmul.f32.gmra.mxu0 %v3741
      %v3920 = vpop.f32.mrf.mxu0
      %v3921 = vadd.f32 %v3808, %v3920
      %3922 = vmatmul.f32.gmra.mxu0 %v3743
      %v3923 = vpop.f32.mrf.mxu0
      %v3924 = vadd.f32 %v3811, %v3923
      %3925 = vmatmul.f32.gmra.mxu0 %v3745
      %v3926 = vpop.f32.mrf.mxu0
      %v3927 = vadd.f32 %v3814, %v3926
      %3928 = vmatmul.f32.gmra.mxu0 %v3747
      %v3929 = vpop.f32.mrf.mxu0
      %v3930 = vadd.f32 %v3817, %v3929
      %3931 = vmatmul.f32.gmra.mxu0 %v3749
      %v3932 = vpop.f32.mrf.mxu0
      %v3933 = vadd.f32 %v3820, %v3932
      %3934 = vmatmul.f32.gmra.mxu0 %v3751
      %v3935 = vpop.f32.mrf.mxu0
      %v3936 = vadd.f32 %v3823, %v3935
      %3937 = vmatmul.f32.gmra.mxu0 %v3753
      %v3938 = vpop.f32.mrf.mxu0
      %v3939 = vadd.f32 %v3826, %v3938
      %3940 = vmatmul.f32.gmra.mxu0 %v3755
      %v3941 = vpop.f32.mrf.mxu0
      %v3942 = vadd.f32 %v3829, %v3941
      %3943 = vmatmul.f32.gmra.mxu0 %v3757
      %v3944 = vpop.f32.mrf.mxu0
      %v3945 = vadd.f32 %v3832, %v3944
      %3946 = vmatmul.f32.gmra.mxu0 %v3759
      %v3947 = vpop.f32.mrf.mxu0
      %v3948 = vadd.f32 %v3835, %v3947
      %3949 = vmatmul.f32.gmra.mxu0 %v3761
      %v3950 = vpop.f32.mrf.mxu0
      %v3951 = vadd.f32 %v3838, %v3950
      %3952 = vmatmul.f32.gmra.mxu0 %v3763
      %v3953 = vpop.f32.mrf.mxu0
      %v3954 = vadd.f32 %v3841, %v3953
      %3955 = vmatmul.f32.gmra.mxu0 %v3765
      %v3956 = vpop.f32.mrf.mxu0
      %v3957 = vadd.f32 %v3844, %v3956
      %3958 = vmatmul.f32.gmra.mxu0 %v3767
      %v3959 = vpop.f32.mrf.mxu0
      %v3960 = vadd.f32 %v3847, %v3959
      %3961 = vmatmul.f32.gmra.mxu0 %v3769
      %v3962 = vpop.f32.mrf.mxu0
      %v3963 = vadd.f32 %v3850, %v3962
      %3964 = vmatmul.f32.gmra.mxu0 %v3771
      %v3965 = vpop.f32.mrf.mxu0
      %v3966 = vadd.f32 %v3853, %v3965
      %3967 = vmatmul.f32.gmra.mxu0 %v3773
      %v3968 = vpop.f32.mrf.mxu0
      %v3969 = vadd.f32 %v3856, %v3968
      %3970 = vmatmul.f32.gmra.mxu0 %v3775
      %v3971 = vpop.f32.mrf.mxu0
      %v3972 = vadd.f32 %v3859, %v3971
      %3973 = vmatmul.f32.gmra.mxu0 %v3777
      %v3974 = vpop.f32.mrf.mxu0
      %v3975 = vadd.f32 %v3862, %v3974
      %3976 = vmatmul.f32.gmra.mxu0 %v3779
      %v3977 = vpop.f32.mrf.mxu0
      %v3978 = vadd.f32 %v3865, %v3977
      %3979 = vmatmul.f32.gmra.mxu0 %v3781
      %v3980 = vpop.f32.mrf.mxu0
      %v3981 = vadd.f32 %v3868, %v3980
      %3982 = vmatmul.f32.gmra.mxu0 %v3783
      %v3983 = vpop.f32.mrf.mxu0
      %v3984 = vadd.f32 %v3871, %v3983
      %3985 = vmatmul.f32.gmra.mxu0 %v3785
      %v3986 = vpop.f32.mrf.mxu0
      %v3987 = vadd.f32 %v3874, %v3986
      %3988 = vmatmul.f32.gmra.mxu0 %v2181
      %v3989 = vpop.f32.mrf.mxu0
      %v3990 = vadd.f32 %v3877, %v3989
      %3991 = vmatmul.f32.gmra.mxu0 %v2181
      %v3992 = vpop.f32.mrf.mxu0
      %v3993 = vadd.f32 %v3880, %v3992
      %3994 = vmatmul.f32.gmra.mxu0 %v2181
      %v3995 = vpop.f32.mrf.mxu0
      %v3996 = vadd.f32 %v3883, %v3995
      %3997 = vmatmul.f32.gmra.mxu0 %v2181
      %v3998 = vpop.f32.mrf.mxu0
      %v3999 = vadd.f32 %v3886, %v3998
      %4000 = vmatmul.f32.gmra.mxu0 %v2181
      %v4001 = vpop.f32.mrf.mxu0
      %v4002 = vadd.f32 %v3889, %v4001
      %4003 = vmatmul.f32.gmra.mxu0 %v2181
      %v4004 = vpop.f32.mrf.mxu0
      %v4005 = vadd.f32 %v3892, %v4004
      %4006 = vmatmul.f32.gmra.mxu0 %v2181
      %v4007 = vpop.f32.mrf.mxu0
      %v4008 = vadd.f32 %v3895, %v4007
      %4009 = vmatmul.f32.gmra.mxu0 %v2181
      %v4010 = vpop.f32.mrf.mxu0
      %v4011 = vadd.f32 %v3898, %v4010
      %4012 = vdwg.mxu0
      %v4013 = vmax.f32 %v3918, 0.0
      %v4014 = vmax.f32 %v3921, 0.0
      %v4015 = vmax.f32 %v3924, 0.0
      %v4016 = vmax.f32 %v3927, 0.0
      %v4017 = vmax.f32 %v3930, 0.0
      %v4018 = vmax.f32 %v3933, 0.0
      %v4019 = vmax.f32 %v3936, 0.0
      %v4020 = vmax.f32 %v3939, 0.0
      %v4021 = vmax.f32 %v3942, 0.0
      %v4022 = vmax.f32 %v3945, 0.0
      %v4023 = vmax.f32 %v3948, 0.0
      %v4024 = vmax.f32 %v3951, 0.0
      %v4025 = vmax.f32 %v3954, 0.0
      %v4026 = vmax.f32 %v3957, 0.0
      %v4027 = vmax.f32 %v3960, 0.0
      %v4028 = vmax.f32 %v3963, 0.0
      %v4029 = vmax.f32 %v3966, 0.0
      %v4030 = vmax.f32 %v3969, 0.0
      %v4031 = vmax.f32 %v3972, 0.0
      %v4032 = vmax.f32 %v3975, 0.0
      %v4033 = vmax.f32 %v3978, 0.0
      %v4034 = vmax.f32 %v3981, 0.0
      %v4035 = vmax.f32 %v3984, 0.0
      %v4036 = vmax.f32 %v3987, 0.0
      %v4037 = vmax.f32 %v3990, 0.0
      %v4038 = vmax.f32 %v3993, 0.0
      %v4039 = vmax.f32 %v3996, 0.0
      %v4040 = vmax.f32 %v3999, 0.0
      %v4041 = vmax.f32 %v4002, 0.0
      %v4042 = vmax.f32 %v4005, 0.0
      %v4043 = vmax.f32 %v4008, 0.0
      %v4044 = vmax.f32 %v4011, 0.0
      %v4045 = vadd.f32 %v4013, %v3517
      %v4046 = vadd.f32 %v4014, %v3518
      %v4047 = vadd.f32 %v4015, %v3519
      %v4048 = vadd.f32 %v4016, %v3520
      %v4049 = vadd.f32 %v4017, %v3521
      %v4050 = vadd.f32 %v4018, %v3522
      %v4051 = vadd.f32 %v4019, %v3523
      %v4052 = vadd.f32 %v4020, %v3524
      %v4053 = vadd.f32 %v4021, %v3525
      %v4054 = vadd.f32 %v4022, %v3526
      %v4055 = vadd.f32 %v4023, %v3527
      %v4056 = vadd.f32 %v4024, %v3528
      %v4057 = vadd.f32 %v4025, %v3529
      %v4058 = vadd.f32 %v4026, %v3530
      %v4059 = vadd.f32 %v4027, %v3531
      %v4060 = vadd.f32 %v4028, %v3532
      %v4061 = vadd.f32 %v4029, %v3533
      %v4062 = vadd.f32 %v4030, %v3534
      %v4063 = vadd.f32 %v4031, %v3535
      %v4064 = vadd.f32 %v4032, %v3536
      %v4065 = vadd.f32 %v4033, %v3537
      %v4066 = vadd.f32 %v4034, %v3538
      %v4067 = vadd.f32 %v4035, %v3539
      %v4068 = vadd.f32 %v4036, %v3540
      %v4069 = vadd.f32 %v4037, %v3541
      %v4070 = vadd.f32 %v4038, %v3542
      %v4071 = vadd.f32 %v4039, %v3543
      %v4072 = vadd.f32 %v4040, %v3544
      %v4073 = vadd.f32 %v4041, %v3545
      %v4074 = vadd.f32 %v4042, %v3546
      %v4075 = vadd.f32 %v4043, %v3547
      %v4076 = vadd.f32 %v4044, %v3548
      %s4077 = scalar_lea.vmem %s3, 1152
      %v4078 = vld [vmem:[%s4077] sm:$0xff]
      %v4079 = vld [vmem:[%s4077 + $0x8] sm:$0xff]
      %v4080 = vld [vmem:[%s4077 + $0x10] sm:$0xff]
      %v4081 = vld [vmem:[%s4077 + $0x18] sm:$0xff]
      %v4082 = vld [vmem:[%s4077 + $0x20] sm:$0xff]
      %v4083 = vld [vmem:[%s4077 + $0x28] sm:$0xff]
      %v4084 = vld [vmem:[%s4077 + $0x30] sm:$0xff]
      %v4085 = vld [vmem:[%s4077 + $0x38] sm:$0xff]
      %v4086 = vld [vmem:[%s4077 + $0x40] sm:$0xff]
      %v4087 = vld [vmem:[%s4077 + $0x48] sm:$0xff]
      %v4088 = vld [vmem:[%s4077 + $0x50] sm:$0xff]
      %v4089 = vld [vmem:[%s4077 + $0x58] sm:$0xff]
      %v4090 = vld [vmem:[%s4077 + $0x60] sm:$0xff]
      %v4091 = vld [vmem:[%s4077 + $0x68] sm:$0xff]
      %v4092 = vld [vmem:[%s4077 + $0x70] sm:$0xff]
      %v4093 = vld [vmem:[%s4077 + $0x78] sm:$0xff]
      %v4094 = vld [vmem:[%s4077 + $0x80] sm:$0xff]
      %v4095 = vld [vmem:[%s4077 + $0x88] sm:$0xff]
      %v4096 = vld [vmem:[%s4077 + $0x90] sm:$0xff]
      %v4097 = vld [vmem:[%s4077 + $0x98] sm:$0xff]
      %v4098 = vld [vmem:[%s4077 + $0xa0] sm:$0xff]
      %v4099 = vld [vmem:[%s4077 + $0xa8] sm:$0xff]
      %v4100 = vld [vmem:[%s4077 + $0xb0] sm:$0xff]
      %v4101 = vld [vmem:[%s4077 + $0xb8] sm:$0xff]
      %4134 = vrot.lane.b32.xlu0 %v4045, 64
      %v4135 = vpop.permute.xlu0 %4134
      %4136 = vrot.lane.b32.xlu0 %v4046, 64
      %v4137 = vpop.permute.xlu0 %4136
      %4138 = vrot.lane.b32.xlu0 %v4047, 64
      %v4139 = vpop.permute.xlu0 %4138
      %4140 = vrot.lane.b32.xlu0 %v4048, 64
      %v4141 = vpop.permute.xlu0 %4140
      %4142 = vrot.lane.b32.xlu0 %v4049, 64
      %v4143 = vpop.permute.xlu0 %4142
      %4144 = vrot.lane.b32.xlu0 %v4050, 64
      %v4145 = vpop.permute.xlu0 %4144
      %4146 = vrot.lane.b32.xlu0 %v4051, 64
      %v4147 = vpop.permute.xlu0 %4146
      %4148 = vrot.lane.b32.xlu0 %v4052, 64
      %v4149 = vpop.permute.xlu0 %4148
      %4150 = vrot.lane.b32.xlu0 %v4053, 64
      %v4151 = vpop.permute.xlu0 %4150
      %4152 = vrot.lane.b32.xlu0 %v4054, 64
      %v4153 = vpop.permute.xlu0 %4152
      %4154 = vrot.lane.b32.xlu0 %v4055, 64
      %v4155 = vpop.permute.xlu0 %4154
      %4156 = vrot.lane.b32.xlu0 %v4056, 64
      %v4157 = vpop.permute.xlu0 %4156
      %4158 = vrot.lane.b32.xlu0 %v4057, 64
      %v4159 = vpop.permute.xlu0 %4158
      %4160 = vrot.lane.b32.xlu0 %v4058, 64
      %v4161 = vpop.permute.xlu0 %4160
      %4162 = vrot.lane.b32.xlu0 %v4059, 64
      %v4163 = vpop.permute.xlu0 %4162
      %4164 = vrot.lane.b32.xlu0 %v4060, 64
      %v4165 = vpop.permute.xlu0 %4164
      %4166 = vrot.lane.b32.xlu0 %v4061, 64
      %v4167 = vpop.permute.xlu0 %4166
      %4168 = vrot.lane.b32.xlu0 %v4062, 64
      %v4169 = vpop.permute.xlu0 %4168
      %4170 = vrot.lane.b32.xlu0 %v4063, 64
      %v4171 = vpop.permute.xlu0 %4170
      %4172 = vrot.lane.b32.xlu0 %v4064, 64
      %v4173 = vpop.permute.xlu0 %4172
      %4174 = vrot.lane.b32.xlu0 %v4065, 64
      %v4175 = vpop.permute.xlu0 %4174
      %4176 = vrot.lane.b32.xlu0 %v4066, 64
      %v4177 = vpop.permute.xlu0 %4176
      %4178 = vrot.lane.b32.xlu0 %v4067, 64
      %v4179 = vpop.permute.xlu0 %4178
      %4180 = vrot.lane.b32.xlu0 %v4068, 64
      %v4181 = vpop.permute.xlu0 %4180
      %4182 = vrot.lane.b32.xlu0 %v4069, 64
      %v4183 = vpop.permute.xlu0 %4182
      %4184 = vrot.lane.b32.xlu0 %v4070, 64
      %v4185 = vpop.permute.xlu0 %4184
      %4186 = vrot.lane.b32.xlu0 %v4071, 64
      %v4187 = vpop.permute.xlu0 %4186
      %4188 = vrot.lane.b32.xlu0 %v4072, 64
      %v4189 = vpop.permute.xlu0 %4188
      %4190 = vrot.lane.b32.xlu0 %v4073, 64
      %v4191 = vpop.permute.xlu0 %4190
      %4192 = vrot.lane.b32.xlu0 %v4074, 64
      %v4193 = vpop.permute.xlu0 %4192
      %4194 = vrot.lane.b32.xlu0 %v4075, 64
      %v4195 = vpop.permute.xlu0 %4194
      %4196 = vrot.lane.b32.xlu0 %v4076, 64
      %v4197 = vpop.permute.xlu0 %4196
      %v4230 = vsel %vm894, 0.0, %v4135
      %v4231 = vsel %vm894, 0.0, %v4137
      %v4232 = vsel %vm894, 0.0, %v4139
      %v4233 = vsel %vm894, 0.0, %v4141
      %v4234 = vsel %vm894, 0.0, %v4143
      %v4235 = vsel %vm894, 0.0, %v4145
      %v4236 = vsel %vm894, 0.0, %v4147
      %v4237 = vsel %vm894, 0.0, %v4149
      %v4238 = vsel %vm894, 0.0, %v4151
      %v4239 = vsel %vm894, 0.0, %v4153
      %v4240 = vsel %vm894, 0.0, %v4155
      %v4241 = vsel %vm894, 0.0, %v4157
      %v4242 = vsel %vm894, 0.0, %v4159
      %v4243 = vsel %vm894, 0.0, %v4161
      %v4244 = vsel %vm894, 0.0, %v4163
      %v4245 = vsel %vm894, 0.0, %v4165
      %v4246 = vsel %vm894, %v4045, %v4167
      %v4247 = vsel %vm894, %v4046, %v4169
      %v4248 = vsel %vm894, %v4047, %v4171
      %v4249 = vsel %vm894, %v4048, %v4173
      %v4250 = vsel %vm894, %v4049, %v4175
      %v4251 = vsel %vm894, %v4050, %v4177
      %v4252 = vsel %vm894, %v4051, %v4179
      %v4253 = vsel %vm894, %v4052, %v4181
      %v4254 = vsel %vm894, %v4053, %v4183
      %v4255 = vsel %vm894, %v4054, %v4185
      %v4256 = vsel %vm894, %v4055, %v4187
      %v4257 = vsel %vm894, %v4056, %v4189
      %v4258 = vsel %vm894, %v4057, %v4191
      %v4259 = vsel %vm894, %v4058, %v4193
      %v4260 = vsel %vm894, %v4059, %v4195
      %v4261 = vsel %vm894, %v4060, %v4197
      %s4262 = scalar_lea.vmem %s4, 6
      %v4263 = vld [vmem:[%s4262] sm:$0x1]
      %v4265 = vperm.slane %v4263, 0
      %v4267 = vsel %vm894, %v4061, 0
      %v4269 = vsel %vm894, %v4062, 0
      %v4271 = vsel %vm894, %v4063, 0
      %v4273 = vsel %vm894, %v4064, 0
      %v4275 = vsel %vm894, %v4065, 0
      %v4277 = vsel %vm894, %v4066, 0
      %v4279 = vsel %vm894, %v4067, 0
      %v4281 = vsel %vm894, %v4068, 0
      %v4283 = vsel %vm894, %v4069, 0
      %v4285 = vsel %vm894, %v4070, 0
      %v4287 = vsel %vm894, %v4071, 0
      %v4289 = vsel %vm894, %v4072, 0
      %v4291 = vsel %vm894, %v4073, 0
      %v4293 = vsel %vm894, %v4074, 0
      %v4295 = vsel %vm894, %v4075, 0
      %v4297 = vsel %vm894, %v4076, 0
      %4299 = vmatpush.msra.mxu0 %v4093
      %4300 = vmatpush.msra.mxu0 %v4092
      %4301 = vmatpush.msra.mxu0 %v4091
      %4302 = vmatpush.msra.mxu0 %v4090
      %4303 = vmatpush.msra.mxu0 %v4089
      %4304 = vmatpush.msra.mxu0 %v4088
      %4305 = vmatpush.msra.mxu0 %v4087
      %4306 = vmatpush.msra.mxu0 %v4086
      %4307 = vmatpush.msra.mxu0 %v4085
      %4308 = vmatpush.msra.mxu0 %v4084
      %4309 = vmatpush.msra.mxu0 %v4083
      %4310 = vmatpush.msra.mxu0 %v4082
      %4311 = vmatpush.msra.mxu0 %v4081
      %4312 = vmatpush.msra.mxu0 %v4080
      %4313 = vmatpush.msra.mxu0 %v4079
      %4314 = vmatpush.msra.mxu0 %v4078
      %4315 = vmatmul.f32.gmra.mxu0 %v4230
      %v4316 = vpop.f32.mrf.mxu0
      %v4317 = vadd.f32 %v4265, %v4316
      %4318 = vmatmul.f32.gmra.mxu0 %v4231
      %v4319 = vpop.f32.mrf.mxu0
      %v4320 = vadd.f32 %v4265, %v4319
      %4321 = vmatmul.f32.gmra.mxu0 %v4232
      %v4322 = vpop.f32.mrf.mxu0
      %v4323 = vadd.f32 %v4265, %v4322
      %4324 = vmatmul.f32.gmra.mxu0 %v4233
      %v4325 = vpop.f32.mrf.mxu0
      %v4326 = vadd.f32 %v4265, %v4325
      %4327 = vmatmul.f32.gmra.mxu0 %v4234
      %v4328 = vpop.f32.mrf.mxu0
      %v4329 = vadd.f32 %v4265, %v4328
      %4330 = vmatmul.f32.gmra.mxu0 %v4235
      %v4331 = vpop.f32.mrf.mxu0
      %v4332 = vadd.f32 %v4265, %v4331
      %4333 = vmatmul.f32.gmra.mxu0 %v4236
      %v4334 = vpop.f32.mrf.mxu0
      %v4335 = vadd.f32 %v4265, %v4334
      %4336 = vmatmul.f32.gmra.mxu0 %v4237
      %v4337 = vpop.f32.mrf.mxu0
      %v4338 = vadd.f32 %v4265, %v4337
      %4339 = vmatmul.f32.gmra.mxu0 %v4238
      %v4340 = vpop.f32.mrf.mxu0
      %v4341 = vadd.f32 %v4265, %v4340
      %4342 = vmatmul.f32.gmra.mxu0 %v4239
      %v4343 = vpop.f32.mrf.mxu0
      %v4344 = vadd.f32 %v4265, %v4343
      %4345 = vmatmul.f32.gmra.mxu0 %v4240
      %v4346 = vpop.f32.mrf.mxu0
      %v4347 = vadd.f32 %v4265, %v4346
      %4348 = vmatmul.f32.gmra.mxu0 %v4241
      %v4349 = vpop.f32.mrf.mxu0
      %v4350 = vadd.f32 %v4265, %v4349
      %4351 = vmatmul.f32.gmra.mxu0 %v4242
      %v4352 = vpop.f32.mrf.mxu0
      %v4353 = vadd.f32 %v4265, %v4352
      %4354 = vmatmul.f32.gmra.mxu0 %v4243
      %v4355 = vpop.f32.mrf.mxu0
      %v4356 = vadd.f32 %v4265, %v4355
      %4357 = vmatmul.f32.gmra.mxu0 %v4244
      %v4358 = vpop.f32.mrf.mxu0
      %v4359 = vadd.f32 %v4265, %v4358
      %4360 = vmatmul.f32.gmra.mxu0 %v4245
      %v4361 = vpop.f32.mrf.mxu0
      %v4362 = vadd.f32 %v4265, %v4361
      %4363 = vmatmul.f32.gmra.mxu0 %v4246
      %v4364 = vpop.f32.mrf.mxu0
      %v4365 = vadd.f32 %v4265, %v4364
      %4366 = vmatmul.f32.gmra.mxu0 %v4247
      %v4367 = vpop.f32.mrf.mxu0
      %v4368 = vadd.f32 %v4265, %v4367
      %4369 = vmatmul.f32.gmra.mxu0 %v4248
      %v4370 = vpop.f32.mrf.mxu0
      %v4371 = vadd.f32 %v4265, %v4370
      %4372 = vmatmul.f32.gmra.mxu0 %v4249
      %v4373 = vpop.f32.mrf.mxu0
      %v4374 = vadd.f32 %v4265, %v4373
      %4375 = vmatmul.f32.gmra.mxu0 %v4250
      %v4376 = vpop.f32.mrf.mxu0
      %v4377 = vadd.f32 %v4265, %v4376
      %4378 = vmatmul.f32.gmra.mxu0 %v4251
      %v4379 = vpop.f32.mrf.mxu0
      %v4380 = vadd.f32 %v4265, %v4379
      %4381 = vmatmul.f32.gmra.mxu0 %v4252
      %v4382 = vpop.f32.mrf.mxu0
      %v4383 = vadd.f32 %v4265, %v4382
      %4384 = vmatmul.f32.gmra.mxu0 %v4253
      %v4385 = vpop.f32.mrf.mxu0
      %v4386 = vadd.f32 %v4265, %v4385
      %4387 = vmatmul.f32.gmra.mxu0 %v4254
      %v4388 = vpop.f32.mrf.mxu0
      %v4389 = vadd.f32 %v4265, %v4388
      %4390 = vmatmul.f32.gmra.mxu0 %v4255
      %v4391 = vpop.f32.mrf.mxu0
      %v4392 = vadd.f32 %v4265, %v4391
      %4393 = vmatmul.f32.gmra.mxu0 %v4256
      %v4394 = vpop.f32.mrf.mxu0
      %v4395 = vadd.f32 %v4265, %v4394
      %4396 = vmatmul.f32.gmra.mxu0 %v4257
      %v4397 = vpop.f32.mrf.mxu0
      %v4398 = vadd.f32 %v4265, %v4397
      %4399 = vmatmul.f32.gmra.mxu0 %v4258
      %v4400 = vpop.f32.mrf.mxu0
      %v4401 = vadd.f32 %v4265, %v4400
      %4402 = vmatmul.f32.gmra.mxu0 %v4259
      %v4403 = vpop.f32.mrf.mxu0
      %v4404 = vadd.f32 %v4265, %v4403
      %4405 = vmatmul.f32.gmra.mxu0 %v4260
      %v4406 = vpop.f32.mrf.mxu0
      %v4407 = vadd.f32 %v4265, %v4406
      %4408 = vmatmul.f32.gmra.mxu0 %v4261
      %v4409 = vpop.f32.mrf.mxu0
      %v4410 = vadd.f32 %v4265, %v4409
      %4411 = vdwg.mxu0
      %4412 = vmatpush.msra.mxu0 0.0
      %4413 = vmatpush.msra.mxu0 0.0
      %4414 = vmatpush.msra.mxu0 0.0
      %4415 = vmatpush.msra.mxu0 0.0
      %4416 = vmatpush.msra.mxu0 0.0
      %4417 = vmatpush.msra.mxu0 0.0
      %4418 = vmatpush.msra.mxu0 0.0
      %4419 = vmatpush.msra.mxu0 0.0
      %4420 = vmatpush.msra.mxu0 %v4101
      %4421 = vmatpush.msra.mxu0 %v4100
      %4422 = vmatpush.msra.mxu0 %v4099
      %4423 = vmatpush.msra.mxu0 %v4098
      %4424 = vmatpush.msra.mxu0 %v4097
      %4425 = vmatpush.msra.mxu0 %v4096
      %4426 = vmatpush.msra.mxu0 %v4095
      %4427 = vmatpush.msra.mxu0 %v4094
      %4428 = vmatmul.f32.gmra.mxu0 %v4267
      %v4429 = vpop.f32.mrf.mxu0
      %v4430 = vadd.f32 %v4317, %v4429
      %4431 = vmatmul.f32.gmra.mxu0 %v4269
      %v4432 = vpop.f32.mrf.mxu0
      %v4433 = vadd.f32 %v4320, %v4432
      %4434 = vmatmul.f32.gmra.mxu0 %v4271
      %v4435 = vpop.f32.mrf.mxu0
      %v4436 = vadd.f32 %v4323, %v4435
      %4437 = vmatmul.f32.gmra.mxu0 %v4273
      %v4438 = vpop.f32.mrf.mxu0
      %v4439 = vadd.f32 %v4326, %v4438
      %4440 = vmatmul.f32.gmra.mxu0 %v4275
      %v4441 = vpop.f32.mrf.mxu0
      %v4442 = vadd.f32 %v4329, %v4441
      %4443 = vmatmul.f32.gmra.mxu0 %v4277
      %v4444 = vpop.f32.mrf.mxu0
      %v4445 = vadd.f32 %v4332, %v4444
      %4446 = vmatmul.f32.gmra.mxu0 %v4279
      %v4447 = vpop.f32.mrf.mxu0
      %v4448 = vadd.f32 %v4335, %v4447
      %4449 = vmatmul.f32.gmra.mxu0 %v4281
      %v4450 = vpop.f32.mrf.mxu0
      %v4451 = vadd.f32 %v4338, %v4450
      %4452 = vmatmul.f32.gmra.mxu0 %v4283
      %v4453 = vpop.f32.mrf.mxu0
      %v4454 = vadd.f32 %v4341, %v4453
      %4455 = vmatmul.f32.gmra.mxu0 %v4285
      %v4456 = vpop.f32.mrf.mxu0
      %v4457 = vadd.f32 %v4344, %v4456
      %4458 = vmatmul.f32.gmra.mxu0 %v4287
      %v4459 = vpop.f32.mrf.mxu0
      %v4460 = vadd.f32 %v4347, %v4459
      %4461 = vmatmul.f32.gmra.mxu0 %v4289
      %v4462 = vpop.f32.mrf.mxu0
      %v4463 = vadd.f32 %v4350, %v4462
      %4464 = vmatmul.f32.gmra.mxu0 %v4291
      %v4465 = vpop.f32.mrf.mxu0
      %v4466 = vadd.f32 %v4353, %v4465
      %4467 = vmatmul.f32.gmra.mxu0 %v4293
      %v4468 = vpop.f32.mrf.mxu0
      %v4469 = vadd.f32 %v4356, %v4468
      %4470 = vmatmul.f32.gmra.mxu0 %v4295
      %v4471 = vpop.f32.mrf.mxu0
      %v4472 = vadd.f32 %v4359, %v4471
      %4473 = vmatmul.f32.gmra.mxu0 %v4297
      %v4474 = vpop.f32.mrf.mxu0
      %v4475 = vadd.f32 %v4362, %v4474
      %4476 = vmatmul.f32.gmra.mxu0 %v2181
      %v4477 = vpop.f32.mrf.mxu0
      %v4478 = vadd.f32 %v4365, %v4477
      %4479 = vmatmul.f32.gmra.mxu0 %v2181
      %v4480 = vpop.f32.mrf.mxu0
      %v4481 = vadd.f32 %v4368, %v4480
      %4482 = vmatmul.f32.gmra.mxu0 %v2181
      %v4483 = vpop.f32.mrf.mxu0
      %v4484 = vadd.f32 %v4371, %v4483
      %4485 = vmatmul.f32.gmra.mxu0 %v2181
      %v4486 = vpop.f32.mrf.mxu0
      %v4487 = vadd.f32 %v4374, %v4486
      %4488 = vmatmul.f32.gmra.mxu0 %v2181
      %v4489 = vpop.f32.mrf.mxu0
      %v4490 = vadd.f32 %v4377, %v4489
      %4491 = vmatmul.f32.gmra.mxu0 %v2181
      %v4492 = vpop.f32.mrf.mxu0
      %v4493 = vadd.f32 %v4380, %v4492
      %4494 = vmatmul.f32.gmra.mxu0 %v2181
      %v4495 = vpop.f32.mrf.mxu0
      %v4496 = vadd.f32 %v4383, %v4495
      %4497 = vmatmul.f32.gmra.mxu0 %v2181
      %v4498 = vpop.f32.mrf.mxu0
      %v4499 = vadd.f32 %v4386, %v4498
      %4500 = vmatmul.f32.gmra.mxu0 %v2181
      %v4501 = vpop.f32.mrf.mxu0
      %v4502 = vadd.f32 %v4389, %v4501
      %4503 = vmatmul.f32.gmra.mxu0 %v2181
      %v4504 = vpop.f32.mrf.mxu0
      %v4505 = vadd.f32 %v4392, %v4504
      %4506 = vmatmul.f32.gmra.mxu0 %v2181
      %v4507 = vpop.f32.mrf.mxu0
      %v4508 = vadd.f32 %v4395, %v4507
      %4509 = vmatmul.f32.gmra.mxu0 %v2181
      %v4510 = vpop.f32.mrf.mxu0
      %v4511 = vadd.f32 %v4398, %v4510
      %4512 = vmatmul.f32.gmra.mxu0 %v2181
      %v4513 = vpop.f32.mrf.mxu0
      %v4514 = vadd.f32 %v4401, %v4513
      %4515 = vmatmul.f32.gmra.mxu0 %v2181
      %v4516 = vpop.f32.mrf.mxu0
      %v4517 = vadd.f32 %v4404, %v4516
      %4518 = vmatmul.f32.gmra.mxu0 %v2181
      %v4519 = vpop.f32.mrf.mxu0
      %v4520 = vadd.f32 %v4407, %v4519
      %4521 = vmatmul.f32.gmra.mxu0 %v2181
      %v4522 = vpop.f32.mrf.mxu0
      %v4523 = vadd.f32 %v4410, %v4522
      %4524 = vdwg.mxu0
      %v4525 = vmax.f32 %v4430, 0.0
      %v4526 = vmax.f32 %v4433, 0.0
      %v4527 = vmax.f32 %v4436, 0.0
      %v4528 = vmax.f32 %v4439, 0.0
      %v4529 = vmax.f32 %v4442, 0.0
      %v4530 = vmax.f32 %v4445, 0.0
      %v4531 = vmax.f32 %v4448, 0.0
      %v4532 = vmax.f32 %v4451, 0.0
      %v4533 = vmax.f32 %v4454, 0.0
      %v4534 = vmax.f32 %v4457, 0.0
      %v4535 = vmax.f32 %v4460, 0.0
      %v4536 = vmax.f32 %v4463, 0.0
      %v4537 = vmax.f32 %v4466, 0.0
      %v4538 = vmax.f32 %v4469, 0.0
      %v4539 = vmax.f32 %v4472, 0.0
      %v4540 = vmax.f32 %v4475, 0.0
      %v4541 = vmax.f32 %v4478, 0.0
      %v4542 = vmax.f32 %v4481, 0.0
      %v4543 = vmax.f32 %v4484, 0.0
      %v4544 = vmax.f32 %v4487, 0.0
      %v4545 = vmax.f32 %v4490, 0.0
      %v4546 = vmax.f32 %v4493, 0.0
      %v4547 = vmax.f32 %v4496, 0.0
      %v4548 = vmax.f32 %v4499, 0.0
      %v4549 = vmax.f32 %v4502, 0.0
      %v4550 = vmax.f32 %v4505, 0.0
      %v4551 = vmax.f32 %v4508, 0.0
      %v4552 = vmax.f32 %v4511, 0.0
      %v4553 = vmax.f32 %v4514, 0.0
      %v4554 = vmax.f32 %v4517, 0.0
      %v4555 = vmax.f32 %v4520, 0.0
      %v4556 = vmax.f32 %v4523, 0.0
      %v4557 = vadd.f32 %v4525, %v4045
      %v4558 = vadd.f32 %v4526, %v4046
      %v4559 = vadd.f32 %v4527, %v4047
      %v4560 = vadd.f32 %v4528, %v4048
      %v4561 = vadd.f32 %v4529, %v4049
      %v4562 = vadd.f32 %v4530, %v4050
      %v4563 = vadd.f32 %v4531, %v4051
      %v4564 = vadd.f32 %v4532, %v4052
      %v4565 = vadd.f32 %v4533, %v4053
      %v4566 = vadd.f32 %v4534, %v4054
      %v4567 = vadd.f32 %v4535, %v4055
      %v4568 = vadd.f32 %v4536, %v4056
      %v4569 = vadd.f32 %v4537, %v4057
      %v4570 = vadd.f32 %v4538, %v4058
      %v4571 = vadd.f32 %v4539, %v4059
      %v4572 = vadd.f32 %v4540, %v4060
      %v4573 = vadd.f32 %v4541, %v4061
      %v4574 = vadd.f32 %v4542, %v4062
      %v4575 = vadd.f32 %v4543, %v4063
      %v4576 = vadd.f32 %v4544, %v4064
      %v4577 = vadd.f32 %v4545, %v4065
      %v4578 = vadd.f32 %v4546, %v4066
      %v4579 = vadd.f32 %v4547, %v4067
      %v4580 = vadd.f32 %v4548, %v4068
      %v4581 = vadd.f32 %v4549, %v4069
      %v4582 = vadd.f32 %v4550, %v4070
      %v4583 = vadd.f32 %v4551, %v4071
      %v4584 = vadd.f32 %v4552, %v4072
      %v4585 = vadd.f32 %v4553, %v4073
      %v4586 = vadd.f32 %v4554, %v4074
      %v4587 = vadd.f32 %v4555, %v4075
      %v4588 = vadd.f32 %v4556, %v4076
      %s4589 = scalar_lea.vmem %s3, 1344
      %v4590 = vld [vmem:[%s4589 + $0x40] sm:$0xff]
      %v4591 = vld [vmem:[%s4589 + $0x48] sm:$0xff]
      %v4592 = vld [vmem:[%s4589 + $0x50] sm:$0xff]
      %v4593 = vld [vmem:[%s4589 + $0x58] sm:$0xff]
      %v4594 = vld [vmem:[%s4589 + $0x60] sm:$0xff]
      %v4595 = vld [vmem:[%s4589 + $0x68] sm:$0xff]
      %v4596 = vld [vmem:[%s4589 + $0x70] sm:$0xff]
      %v4597 = vld [vmem:[%s4589 + $0x78] sm:$0xff]
      %s4598 = scalar_lea.vmem %s4, 7
      %v4599 = vld [vmem:[%s4598] sm:$0x1]
      %v4601 = vperm.slane %v4599, 0
      %v4604 = vsel %vm894, %v4557, 0
      %v4607 = vsel %vm894, %v4558, 0
      %v4610 = vsel %vm894, %v4559, 0
      %v4613 = vsel %vm894, %v4560, 0
      %v4616 = vsel %vm894, %v4561, 0
      %v4619 = vsel %vm894, %v4562, 0
      %v4622 = vsel %vm894, %v4563, 0
      %v4625 = vsel %vm894, %v4564, 0
      %v4628 = vsel %vm894, %v4565, 0
      %v4631 = vsel %vm894, %v4566, 0
      %v4634 = vsel %vm894, %v4567, 0
      %v4637 = vsel %vm894, %v4568, 0
      %v4640 = vsel %vm894, %v4569, 0
      %v4643 = vsel %vm894, %v4570, 0
      %v4646 = vsel %vm894, %v4571, 0
      %v4649 = vsel %vm894, %v4572, 0
      %v4652 = vsel %vm894, %v4573, 0
      %v4655 = vsel %vm894, %v4574, 0
      %v4658 = vsel %vm894, %v4575, 0
      %v4661 = vsel %vm894, %v4576, 0
      %v4664 = vsel %vm894, %v4577, 0
      %v4667 = vsel %vm894, %v4578, 0
      %v4670 = vsel %vm894, %v4579, 0
      %v4673 = vsel %vm894, %v4580, 0
      %v4676 = vsel %vm894, %v4581, 0
      %v4679 = vsel %vm894, %v4582, 0
      %v4682 = vsel %vm894, %v4583, 0
      %v4685 = vsel %vm894, %v4584, 0
      %v4688 = vsel %vm894, %v4585, 0
      %v4691 = vsel %vm894, %v4586, 0
      %v4694 = vsel %vm894, %v4587, 0
      %v4697 = vsel %vm894, %v4588, 0
      %4699 = vmatpush.msra.mxu0 0.0
      %4700 = vmatpush.msra.mxu0 0.0
      %4701 = vmatpush.msra.mxu0 0.0
      %4702 = vmatpush.msra.mxu0 0.0
      %4703 = vmatpush.msra.mxu0 0.0
      %4704 = vmatpush.msra.mxu0 0.0
      %4705 = vmatpush.msra.mxu0 0.0
      %4706 = vmatpush.msra.mxu0 0.0
      %4707 = vmatpush.msra.mxu0 %v4597
      %4708 = vmatpush.msra.mxu0 %v4596
      %4709 = vmatpush.msra.mxu0 %v4595
      %4710 = vmatpush.msra.mxu0 %v4594
      %4711 = vmatpush.msra.mxu0 %v4593
      %4712 = vmatpush.msra.mxu0 %v4592
      %4713 = vmatpush.msra.mxu0 %v4591
      %4714 = vmatpush.msra.mxu0 %v4590
      %4715 = vmatmul.f32.gmra.mxu0 %v4604
      %v4716 = vpop.f32.mrf.mxu0
      %v4717 = vadd.f32 %v4601, %v4716
      %4718 = vmatmul.f32.gmra.mxu0 %v4607
      %v4719 = vpop.f32.mrf.mxu0
      %v4720 = vadd.f32 %v4601, %v4719
      %4721 = vmatmul.f32.gmra.mxu0 %v4610
      %v4722 = vpop.f32.mrf.mxu0
      %v4723 = vadd.f32 %v4601, %v4722
      %4724 = vmatmul.f32.gmra.mxu0 %v4613
      %v4725 = vpop.f32.mrf.mxu0
      %v4726 = vadd.f32 %v4601, %v4725
      %4727 = vmatmul.f32.gmra.mxu0 %v4616
      %v4728 = vpop.f32.mrf.mxu0
      %v4729 = vadd.f32 %v4601, %v4728
      %4730 = vmatmul.f32.gmra.mxu0 %v4619
      %v4731 = vpop.f32.mrf.mxu0
      %v4732 = vadd.f32 %v4601, %v4731
      %4733 = vmatmul.f32.gmra.mxu0 %v4622
      %v4734 = vpop.f32.mrf.mxu0
      %v4735 = vadd.f32 %v4601, %v4734
      %4736 = vmatmul.f32.gmra.mxu0 %v4625
      %v4737 = vpop.f32.mrf.mxu0
      %v4738 = vadd.f32 %v4601, %v4737
      %4739 = vmatmul.f32.gmra.mxu0 %v4628
      %v4740 = vpop.f32.mrf.mxu0
      %v4741 = vadd.f32 %v4601, %v4740
      %4742 = vmatmul.f32.gmra.mxu0 %v4631
      %v4743 = vpop.f32.mrf.mxu0
      %v4744 = vadd.f32 %v4601, %v4743
      %4745 = vmatmul.f32.gmra.mxu0 %v4634
      %v4746 = vpop.f32.mrf.mxu0
      %v4747 = vadd.f32 %v4601, %v4746
      %4748 = vmatmul.f32.gmra.mxu0 %v4637
      %v4749 = vpop.f32.mrf.mxu0
      %v4750 = vadd.f32 %v4601, %v4749
      %4751 = vmatmul.f32.gmra.mxu0 %v4640
      %v4752 = vpop.f32.mrf.mxu0
      %v4753 = vadd.f32 %v4601, %v4752
      %4754 = vmatmul.f32.gmra.mxu0 %v4643
      %v4755 = vpop.f32.mrf.mxu0
      %v4756 = vadd.f32 %v4601, %v4755
      %4757 = vmatmul.f32.gmra.mxu0 %v4646
      %v4758 = vpop.f32.mrf.mxu0
      %v4759 = vadd.f32 %v4601, %v4758
      %4760 = vmatmul.f32.gmra.mxu0 %v4649
      %v4761 = vpop.f32.mrf.mxu0
      %v4762 = vadd.f32 %v4601, %v4761
      %4763 = vmatmul.f32.gmra.mxu0 %v4652
      %v4764 = vpop.f32.mrf.mxu0
      %v4765 = vadd.f32 %v4601, %v4764
      %4766 = vmatmul.f32.gmra.mxu0 %v4655
      %v4767 = vpop.f32.mrf.mxu0
      %v4768 = vadd.f32 %v4601, %v4767
      %4769 = vmatmul.f32.gmra.mxu0 %v4658
      %v4770 = vpop.f32.mrf.mxu0
      %v4771 = vadd.f32 %v4601, %v4770
      %4772 = vmatmul.f32.gmra.mxu0 %v4661
      %v4773 = vpop.f32.mrf.mxu0
      %v4774 = vadd.f32 %v4601, %v4773
      %4775 = vmatmul.f32.gmra.mxu0 %v4664
      %v4776 = vpop.f32.mrf.mxu0
      %v4777 = vadd.f32 %v4601, %v4776
      %4778 = vmatmul.f32.gmra.mxu0 %v4667
      %v4779 = vpop.f32.mrf.mxu0
      %v4780 = vadd.f32 %v4601, %v4779
      %4781 = vmatmul.f32.gmra.mxu0 %v4670
      %v4782 = vpop.f32.mrf.mxu0
      %v4783 = vadd.f32 %v4601, %v4782
      %4784 = vmatmul.f32.gmra.mxu0 %v4673
      %v4785 = vpop.f32.mrf.mxu0
      %v4786 = vadd.f32 %v4601, %v4785
      %4787 = vmatmul.f32.gmra.mxu0 %v4676
      %v4788 = vpop.f32.mrf.mxu0
      %v4789 = vadd.f32 %v4601, %v4788
      %4790 = vmatmul.f32.gmra.mxu0 %v4679
      %v4791 = vpop.f32.mrf.mxu0
      %v4792 = vadd.f32 %v4601, %v4791
      %4793 = vmatmul.f32.gmra.mxu0 %v4682
      %v4794 = vpop.f32.mrf.mxu0
      %v4795 = vadd.f32 %v4601, %v4794
      %4796 = vmatmul.f32.gmra.mxu0 %v4685
      %v4797 = vpop.f32.mrf.mxu0
      %v4798 = vadd.f32 %v4601, %v4797
      %4799 = vmatmul.f32.gmra.mxu0 %v4688
      %v4800 = vpop.f32.mrf.mxu0
      %v4801 = vadd.f32 %v4601, %v4800
      %4802 = vmatmul.f32.gmra.mxu0 %v4691
      %v4803 = vpop.f32.mrf.mxu0
      %v4804 = vadd.f32 %v4601, %v4803
      %4805 = vmatmul.f32.gmra.mxu0 %v4694
      %v4806 = vpop.f32.mrf.mxu0
      %v4807 = vadd.f32 %v4601, %v4806
      %4808 = vmatmul.f32.gmra.mxu0 %v4697
      %v4809 = vpop.f32.mrf.mxu0
      %v4810 = vadd.f32 %v4601, %v4809
      %4811 = vdwg.mxu0
      %v4812 = vmax.f32 %v4717, 0.0
      %v4813 = vmax.f32 %v4720, 0.0
      %v4814 = vmax.f32 %v4723, 0.0
      %v4815 = vmax.f32 %v4726, 0.0
      %v4816 = vmax.f32 %v4729, 0.0
      %v4817 = vmax.f32 %v4732, 0.0
      %v4818 = vmax.f32 %v4735, 0.0
      %v4819 = vmax.f32 %v4738, 0.0
      %v4820 = vmax.f32 %v4741, 0.0
      %v4821 = vmax.f32 %v4744, 0.0
      %v4822 = vmax.f32 %v4747, 0.0
      %v4823 = vmax.f32 %v4750, 0.0
      %v4824 = vmax.f32 %v4753, 0.0
      %v4825 = vmax.f32 %v4756, 0.0
      %v4826 = vmax.f32 %v4759, 0.0
      %v4827 = vmax.f32 %v4762, 0.0
      %v4828 = vmax.f32 %v4765, 0.0
      %v4829 = vmax.f32 %v4768, 0.0
      %v4830 = vmax.f32 %v4771, 0.0
      %v4831 = vmax.f32 %v4774, 0.0
      %v4832 = vmax.f32 %v4777, 0.0
      %v4833 = vmax.f32 %v4780, 0.0
      %v4834 = vmax.f32 %v4783, 0.0
      %v4835 = vmax.f32 %v4786, 0.0
      %v4836 = vmax.f32 %v4789, 0.0
      %v4837 = vmax.f32 %v4792, 0.0
      %v4838 = vmax.f32 %v4795, 0.0
      %v4839 = vmax.f32 %v4798, 0.0
      %v4840 = vmax.f32 %v4801, 0.0
      %v4841 = vmax.f32 %v4804, 0.0
      %v4842 = vmax.f32 %v4807, 0.0
      %v4843 = vmax.f32 %v4810, 0.0
      %v4844 = vadd.f32 %v4812, %v4557
      %v4845 = vadd.f32 %v4813, %v4558
      %v4846 = vadd.f32 %v4814, %v4559
      %v4847 = vadd.f32 %v4815, %v4560
      %v4848 = vadd.f32 %v4816, %v4561
      %v4849 = vadd.f32 %v4817, %v4562
      %v4850 = vadd.f32 %v4818, %v4563
      %v4851 = vadd.f32 %v4819, %v4564
      %v4852 = vadd.f32 %v4820, %v4565
      %v4853 = vadd.f32 %v4821, %v4566
      %v4854 = vadd.f32 %v4822, %v4567
      %v4855 = vadd.f32 %v4823, %v4568
      %v4856 = vadd.f32 %v4824, %v4569
      %v4857 = vadd.f32 %v4825, %v4570
      %v4858 = vadd.f32 %v4826, %v4571
      %v4859 = vadd.f32 %v4827, %v4572
      %v4860 = vadd.f32 %v4828, %v4573
      %v4861 = vadd.f32 %v4829, %v4574
      %v4862 = vadd.f32 %v4830, %v4575
      %v4863 = vadd.f32 %v4831, %v4576
      %v4864 = vadd.f32 %v4832, %v4577
      %v4865 = vadd.f32 %v4833, %v4578
      %v4866 = vadd.f32 %v4834, %v4579
      %v4867 = vadd.f32 %v4835, %v4580
      %v4868 = vadd.f32 %v4836, %v4581
      %v4869 = vadd.f32 %v4837, %v4582
      %v4870 = vadd.f32 %v4838, %v4583
      %v4871 = vadd.f32 %v4839, %v4584
      %v4872 = vadd.f32 %v4840, %v4585
      %v4873 = vadd.f32 %v4841, %v4586
      %v4874 = vadd.f32 %v4842, %v4587
      %v4875 = vadd.f32 %v4843, %v4588
      %s4876 = scalar_lea.vmem %s3, 1536
      %v4877 = vld [vmem:[%s4876 + $0x40] sm:$0xff]
      %v4878 = vld [vmem:[%s4876 + $0x48] sm:$0xff]
      %v4879 = vld [vmem:[%s4876 + $0x50] sm:$0xff]
      %v4880 = vld [vmem:[%s4876 + $0x58] sm:$0xff]
      %v4881 = vld [vmem:[%s4876 + $0x60] sm:$0xff]
      %v4882 = vld [vmem:[%s4876 + $0x68] sm:$0xff]
      %v4883 = vld [vmem:[%s4876 + $0x70] sm:$0xff]
      %v4884 = vld [vmem:[%s4876 + $0x78] sm:$0xff]
      %s4885 = scalar_lea.vmem %s4, 8
      %v4886 = vld [vmem:[%s4885] sm:$0x1]
      %v4888 = vperm.slane %v4886, 0
      %v4891 = vsel %vm894, %v4844, 0
      %v4894 = vsel %vm894, %v4845, 0
      %v4897 = vsel %vm894, %v4846, 0
      %v4900 = vsel %vm894, %v4847, 0
      %v4903 = vsel %vm894, %v4848, 0
      %v4906 = vsel %vm894, %v4849, 0
      %v4909 = vsel %vm894, %v4850, 0
      %v4912 = vsel %vm894, %v4851, 0
      %v4915 = vsel %vm894, %v4852, 0
      %v4918 = vsel %vm894, %v4853, 0
      %v4921 = vsel %vm894, %v4854, 0
      %v4924 = vsel %vm894, %v4855, 0
      %v4927 = vsel %vm894, %v4856, 0
      %v4930 = vsel %vm894, %v4857, 0
      %v4933 = vsel %vm894, %v4858, 0
      %v4936 = vsel %vm894, %v4859, 0
      %v4939 = vsel %vm894, %v4860, 0
      %v4942 = vsel %vm894, %v4861, 0
      %v4945 = vsel %vm894, %v4862, 0
      %v4948 = vsel %vm894, %v4863, 0
      %v4951 = vsel %vm894, %v4864, 0
      %v4954 = vsel %vm894, %v4865, 0
      %v4957 = vsel %vm894, %v4866, 0
      %v4960 = vsel %vm894, %v4867, 0
      %v4963 = vsel %vm894, %v4868, 0
      %v4966 = vsel %vm894, %v4869, 0
      %v4969 = vsel %vm894, %v4870, 0
      %v4972 = vsel %vm894, %v4871, 0
      %v4975 = vsel %vm894, %v4872, 0
      %v4978 = vsel %vm894, %v4873, 0
      %v4981 = vsel %vm894, %v4874, 0
      %v4984 = vsel %vm894, %v4875, 0
      %4986 = vmatpush.msra.mxu0 0.0
      %4987 = vmatpush.msra.mxu0 0.0
      %4988 = vmatpush.msra.mxu0 0.0
      %4989 = vmatpush.msra.mxu0 0.0
      %4990 = vmatpush.msra.mxu0 0.0
      %4991 = vmatpush.msra.mxu0 0.0
      %4992 = vmatpush.msra.mxu0 0.0
      %4993 = vmatpush.msra.mxu0 0.0
      %4994 = vmatpush.msra.mxu0 %v4884
      %4995 = vmatpush.msra.mxu0 %v4883
      %4996 = vmatpush.msra.mxu0 %v4882
      %4997 = vmatpush.msra.mxu0 %v4881
      %4998 = vmatpush.msra.mxu0 %v4880
      %4999 = vmatpush.msra.mxu0 %v4879
      %5000 = vmatpush.msra.mxu0 %v4878
      %5001 = vmatpush.msra.mxu0 %v4877
      %5002 = vmatmul.f32.gmra.mxu0 %v4891
      %v5003 = vpop.f32.mrf.mxu0
      %v5004 = vadd.f32 %v4888, %v5003
      %5005 = vmatmul.f32.gmra.mxu0 %v4894
      %v5006 = vpop.f32.mrf.mxu0
      %v5007 = vadd.f32 %v4888, %v5006
      %5008 = vmatmul.f32.gmra.mxu0 %v4897
      %v5009 = vpop.f32.mrf.mxu0
      %v5010 = vadd.f32 %v4888, %v5009
      %5011 = vmatmul.f32.gmra.mxu0 %v4900
      %v5012 = vpop.f32.mrf.mxu0
      %v5013 = vadd.f32 %v4888, %v5012
      %5014 = vmatmul.f32.gmra.mxu0 %v4903
      %v5015 = vpop.f32.mrf.mxu0
      %v5016 = vadd.f32 %v4888, %v5015
      %5017 = vmatmul.f32.gmra.mxu0 %v4906
      %v5018 = vpop.f32.mrf.mxu0
      %v5019 = vadd.f32 %v4888, %v5018
      %5020 = vmatmul.f32.gmra.mxu0 %v4909
      %v5021 = vpop.f32.mrf.mxu0
      %v5022 = vadd.f32 %v4888, %v5021
      %5023 = vmatmul.f32.gmra.mxu0 %v4912
      %v5024 = vpop.f32.mrf.mxu0
      %v5025 = vadd.f32 %v4888, %v5024
      %5026 = vmatmul.f32.gmra.mxu0 %v4915
      %v5027 = vpop.f32.mrf.mxu0
      %v5028 = vadd.f32 %v4888, %v5027
      %5029 = vmatmul.f32.gmra.mxu0 %v4918
      %v5030 = vpop.f32.mrf.mxu0
      %v5031 = vadd.f32 %v4888, %v5030
      %5032 = vmatmul.f32.gmra.mxu0 %v4921
      %v5033 = vpop.f32.mrf.mxu0
      %v5034 = vadd.f32 %v4888, %v5033
      %5035 = vmatmul.f32.gmra.mxu0 %v4924
      %v5036 = vpop.f32.mrf.mxu0
      %v5037 = vadd.f32 %v4888, %v5036
      %5038 = vmatmul.f32.gmra.mxu0 %v4927
      %v5039 = vpop.f32.mrf.mxu0
      %v5040 = vadd.f32 %v4888, %v5039
      %5041 = vmatmul.f32.gmra.mxu0 %v4930
      %v5042 = vpop.f32.mrf.mxu0
      %v5043 = vadd.f32 %v4888, %v5042
      %5044 = vmatmul.f32.gmra.mxu0 %v4933
      %v5045 = vpop.f32.mrf.mxu0
      %v5046 = vadd.f32 %v4888, %v5045
      %5047 = vmatmul.f32.gmra.mxu0 %v4936
      %v5048 = vpop.f32.mrf.mxu0
      %v5049 = vadd.f32 %v4888, %v5048
      %5050 = vmatmul.f32.gmra.mxu0 %v4939
      %v5051 = vpop.f32.mrf.mxu0
      %v5052 = vadd.f32 %v4888, %v5051
      %5053 = vmatmul.f32.gmra.mxu0 %v4942
      %v5054 = vpop.f32.mrf.mxu0
      %v5055 = vadd.f32 %v4888, %v5054
      %5056 = vmatmul.f32.gmra.mxu0 %v4945
      %v5057 = vpop.f32.mrf.mxu0
      %v5058 = vadd.f32 %v4888, %v5057
      %5059 = vmatmul.f32.gmra.mxu0 %v4948
      %v5060 = vpop.f32.mrf.mxu0
      %v5061 = vadd.f32 %v4888, %v5060
      %5062 = vmatmul.f32.gmra.mxu0 %v4951
      %v5063 = vpop.f32.mrf.mxu0
      %v5064 = vadd.f32 %v4888, %v5063
      %5065 = vmatmul.f32.gmra.mxu0 %v4954
      %v5066 = vpop.f32.mrf.mxu0
      %v5067 = vadd.f32 %v4888, %v5066
      %5068 = vmatmul.f32.gmra.mxu0 %v4957
      %v5069 = vpop.f32.mrf.mxu0
      %v5070 = vadd.f32 %v4888, %v5069
      %5071 = vmatmul.f32.gmra.mxu0 %v4960
      %v5072 = vpop.f32.mrf.mxu0
      %v5073 = vadd.f32 %v4888, %v5072
      %5074 = vmatmul.f32.gmra.mxu0 %v4963
      %v5075 = vpop.f32.mrf.mxu0
      %v5076 = vadd.f32 %v4888, %v5075
      %5077 = vmatmul.f32.gmra.mxu0 %v4966
      %v5078 = vpop.f32.mrf.mxu0
      %v5079 = vadd.f32 %v4888, %v5078
      %5080 = vmatmul.f32.gmra.mxu0 %v4969
      %v5081 = vpop.f32.mrf.mxu0
      %v5082 = vadd.f32 %v4888, %v5081
      %5083 = vmatmul.f32.gmra.mxu0 %v4972
      %v5084 = vpop.f32.mrf.mxu0
      %v5085 = vadd.f32 %v4888, %v5084
      %5086 = vmatmul.f32.gmra.mxu0 %v4975
      %v5087 = vpop.f32.mrf.mxu0
      %v5088 = vadd.f32 %v4888, %v5087
      %5089 = vmatmul.f32.gmra.mxu0 %v4978
      %v5090 = vpop.f32.mrf.mxu0
      %v5091 = vadd.f32 %v4888, %v5090
      %5092 = vmatmul.f32.gmra.mxu0 %v4981
      %v5093 = vpop.f32.mrf.mxu0
      %v5094 = vadd.f32 %v4888, %v5093
      %5095 = vmatmul.f32.gmra.mxu0 %v4984
      %v5096 = vpop.f32.mrf.mxu0
      %v5097 = vadd.f32 %v4888, %v5096
      %5098 = vdwg.mxu0
      %v5099 = vmax.f32 %v5004, 0.0
      %v5100 = vmax.f32 %v5007, 0.0
      %v5101 = vmax.f32 %v5010, 0.0
      %v5102 = vmax.f32 %v5013, 0.0
      %v5103 = vmax.f32 %v5016, 0.0
      %v5104 = vmax.f32 %v5019, 0.0
      %v5105 = vmax.f32 %v5022, 0.0
      %v5106 = vmax.f32 %v5025, 0.0
      %v5107 = vmax.f32 %v5028, 0.0
      %v5108 = vmax.f32 %v5031, 0.0
      %v5109 = vmax.f32 %v5034, 0.0
      %v5110 = vmax.f32 %v5037, 0.0
      %v5111 = vmax.f32 %v5040, 0.0
      %v5112 = vmax.f32 %v5043, 0.0
      %v5113 = vmax.f32 %v5046, 0.0
      %v5114 = vmax.f32 %v5049, 0.0
      %v5115 = vmax.f32 %v5052, 0.0
      %v5116 = vmax.f32 %v5055, 0.0
      %v5117 = vmax.f32 %v5058, 0.0
      %v5118 = vmax.f32 %v5061, 0.0
      %v5119 = vmax.f32 %v5064, 0.0
      %v5120 = vmax.f32 %v5067, 0.0
      %v5121 = vmax.f32 %v5070, 0.0
      %v5122 = vmax.f32 %v5073, 0.0
      %v5123 = vmax.f32 %v5076, 0.0
      %v5124 = vmax.f32 %v5079, 0.0
      %v5125 = vmax.f32 %v5082, 0.0
      %v5126 = vmax.f32 %v5085, 0.0
      %v5127 = vmax.f32 %v5088, 0.0
      %v5128 = vmax.f32 %v5091, 0.0
      %v5129 = vmax.f32 %v5094, 0.0
      %v5130 = vmax.f32 %v5097, 0.0
      %v5131 = vadd.f32 %v5099, %v4844
      %v5132 = vadd.f32 %v5100, %v4845
      %v5133 = vadd.f32 %v5101, %v4846
      %v5134 = vadd.f32 %v5102, %v4847
      %v5135 = vadd.f32 %v5103, %v4848
      %v5136 = vadd.f32 %v5104, %v4849
      %v5137 = vadd.f32 %v5105, %v4850
      %v5138 = vadd.f32 %v5106, %v4851
      %v5139 = vadd.f32 %v5107, %v4852
      %v5140 = vadd.f32 %v5108, %v4853
      %v5141 = vadd.f32 %v5109, %v4854
      %v5142 = vadd.f32 %v5110, %v4855
      %v5143 = vadd.f32 %v5111, %v4856
      %v5144 = vadd.f32 %v5112, %v4857
      %v5145 = vadd.f32 %v5113, %v4858
      %v5146 = vadd.f32 %v5114, %v4859
      %v5147 = vadd.f32 %v5115, %v4860
      %v5148 = vadd.f32 %v5116, %v4861
      %v5149 = vadd.f32 %v5117, %v4862
      %v5150 = vadd.f32 %v5118, %v4863
      %v5151 = vadd.f32 %v5119, %v4864
      %v5152 = vadd.f32 %v5120, %v4865
      %v5153 = vadd.f32 %v5121, %v4866
      %v5154 = vadd.f32 %v5122, %v4867
      %v5155 = vadd.f32 %v5123, %v4868
      %v5156 = vadd.f32 %v5124, %v4869
      %v5157 = vadd.f32 %v5125, %v4870
      %v5158 = vadd.f32 %v5126, %v4871
      %v5159 = vadd.f32 %v5127, %v4872
      %v5160 = vadd.f32 %v5128, %v4873
      %v5161 = vadd.f32 %v5129, %v4874
      %v5162 = vadd.f32 %v5130, %v4875
      %v5195 = vrot.slane %v5131, 4
      %v5196 = vrot.slane %v5132, 4
      %v5197 = vsel %vm427, %v5195, %v5196
      %v5198 = vrot.slane %v5133, 4
      %v5199 = vsel %vm427, %v5196, %v5198
      %v5200 = vrot.slane %v5134, 4
      %v5201 = vsel %vm427, %v5198, %v5200
      %v5202 = vrot.slane %v5135, 4
      %v5203 = vsel %vm427, %v5200, %v5202
      %v5204 = vrot.slane %v5136, 4
      %v5205 = vsel %vm427, %v5202, %v5204
      %v5206 = vrot.slane %v5137, 4
      %v5207 = vsel %vm427, %v5204, %v5206
      %v5208 = vrot.slane %v5138, 4
      %v5209 = vsel %vm427, %v5206, %v5208
      %v5210 = vrot.slane %v5139, 4
      %v5211 = vsel %vm427, %v5208, %v5210
      %v5212 = vrot.slane %v5140, 4
      %v5213 = vsel %vm427, %v5210, %v5212
      %v5214 = vrot.slane %v5141, 4
      %v5215 = vsel %vm427, %v5212, %v5214
      %v5216 = vrot.slane %v5142, 4
      %v5217 = vsel %vm427, %v5214, %v5216
      %v5218 = vrot.slane %v5143, 4
      %v5219 = vsel %vm427, %v5216, %v5218
      %v5220 = vrot.slane %v5144, 4
      %v5221 = vsel %vm427, %v5218, %v5220
      %v5222 = vrot.slane %v5145, 4
      %v5223 = vsel %vm427, %v5220, %v5222
      %v5224 = vrot.slane %v5146, 4
      %v5225 = vsel %vm427, %v5222, %v5224
      %v5226 = vrot.slane %v5147, 4
      %v5227 = vsel %vm427, %v5224, %v5226
      %v5228 = vrot.slane %v5148, 4
      %v5229 = vsel %vm427, %v5226, %v5228
      %v5230 = vrot.slane %v5149, 4
      %v5231 = vsel %vm427, %v5228, %v5230
      %v5232 = vrot.slane %v5150, 4
      %v5233 = vsel %vm427, %v5230, %v5232
      %v5234 = vrot.slane %v5151, 4
      %v5235 = vsel %vm427, %v5232, %v5234
      %v5236 = vrot.slane %v5152, 4
      %v5237 = vsel %vm427, %v5234, %v5236
      %v5238 = vrot.slane %v5153, 4
      %v5239 = vsel %vm427, %v5236, %v5238
      %v5240 = vrot.slane %v5154, 4
      %v5241 = vsel %vm427, %v5238, %v5240
      %v5242 = vrot.slane %v5155, 4
      %v5243 = vsel %vm427, %v5240, %v5242
      %v5244 = vrot.slane %v5156, 4
      %v5245 = vsel %vm427, %v5242, %v5244
      %v5246 = vrot.slane %v5157, 4
      %v5247 = vsel %vm427, %v5244, %v5246
      %v5248 = vrot.slane %v5158, 4
      %v5249 = vsel %vm427, %v5246, %v5248
      %v5250 = vrot.slane %v5159, 4
      %v5251 = vsel %vm427, %v5248, %v5250
      %v5252 = vrot.slane %v5160, 4
      %v5253 = vsel %vm427, %v5250, %v5252
      %v5254 = vrot.slane %v5161, 4
      %v5255 = vsel %vm427, %v5252, %v5254
      %v5256 = vrot.slane %v5162, 4
      %v5257 = vsel %vm427, %v5254, %v5256
      %v5291 = vsel %vm427, 0.0, %v5195
      %v5292 = vsel %vm427, %v5256, 0.0
      %v5293 = vld [vmem:[%s5] sm:$0x1]
      %v5295 = vperm.slane %v5293, 0
      %v5297 = vmul.f32 %v5295, 0.0
      %v5298 = vmul.f32 %v5291, %v5295
      %v5299 = vmul.f32 %v5197, %v5295
      %v5300 = vmul.f32 %v5199, %v5295
      %v5301 = vmul.f32 %v5201, %v5295
      %v5302 = vmul.f32 %v5203, %v5295
      %v5303 = vmul.f32 %v5205, %v5295
      %v5304 = vmul.f32 %v5207, %v5295
      %v5305 = vmul.f32 %v5209, %v5295
      %v5306 = vmul.f32 %v5211, %v5295
      %v5307 = vmul.f32 %v5213, %v5295
      %v5308 = vmul.f32 %v5215, %v5295
      %v5309 = vmul.f32 %v5217, %v5295
      %v5310 = vmul.f32 %v5219, %v5295
      %v5311 = vmul.f32 %v5221, %v5295
      %v5312 = vmul.f32 %v5223, %v5295
      %v5313 = vmul.f32 %v5225, %v5295
      %v5314 = vmul.f32 %v5227, %v5295
      %v5315 = vmul.f32 %v5229, %v5295
      %v5316 = vmul.f32 %v5231, %v5295
      %v5317 = vmul.f32 %v5233, %v5295
      %v5318 = vmul.f32 %v5235, %v5295
      %v5319 = vmul.f32 %v5237, %v5295
      %v5320 = vmul.f32 %v5239, %v5295
      %v5321 = vmul.f32 %v5241, %v5295
      %v5322 = vmul.f32 %v5243, %v5295
      %v5323 = vmul.f32 %v5245, %v5295
      %v5324 = vmul.f32 %v5247, %v5295
      %v5325 = vmul.f32 %v5249, %v5295
      %v5326 = vmul.f32 %v5251, %v5295
      %v5327 = vmul.f32 %v5253, %v5295
      %v5328 = vmul.f32 %v5255, %v5295
      %s5329 = scalar_lea.vmem %s5, 1
      %v5330 = vld [vmem:[%s5329] sm:$0x1]
      %v5332 = vperm.slane %v5330, 0
      %v5334 = vmul.f32 %v5332, 0.0
      %v5335 = vmul.f32 %v5291, %v5332
      %v5336 = vmul.f32 %v5197, %v5332
      %v5337 = vmul.f32 %v5199, %v5332
      %v5338 = vmul.f32 %v5201, %v5332
      %v5339 = vmul.f32 %v5203, %v5332
      %v5340 = vmul.f32 %v5205, %v5332
      %v5341 = vmul.f32 %v5207, %v5332
      %v5342 = vmul.f32 %v5209, %v5332
      %v5343 = vmul.f32 %v5211, %v5332
      %v5344 = vmul.f32 %v5213, %v5332
      %v5345 = vmul.f32 %v5215, %v5332
      %v5346 = vmul.f32 %v5217, %v5332
      %v5347 = vmul.f32 %v5219, %v5332
      %v5348 = vmul.f32 %v5221, %v5332
      %v5349 = vmul.f32 %v5223, %v5332
      %v5350 = vmul.f32 %v5225, %v5332
      %v5351 = vmul.f32 %v5227, %v5332
      %v5352 = vmul.f32 %v5229, %v5332
      %v5353 = vmul.f32 %v5231, %v5332
      %v5354 = vmul.f32 %v5233, %v5332
      %v5355 = vmul.f32 %v5235, %v5332
      %v5356 = vmul.f32 %v5237, %v5332
      %v5357 = vmul.f32 %v5239, %v5332
      %v5358 = vmul.f32 %v5241, %v5332
      %v5359 = vmul.f32 %v5243, %v5332
      %v5360 = vmul.f32 %v5245, %v5332
      %v5361 = vmul.f32 %v5247, %v5332
      %v5362 = vmul.f32 %v5249, %v5332
      %v5363 = vmul.f32 %v5251, %v5332
      %v5364 = vmul.f32 %v5253, %v5332
      %v5365 = vmul.f32 %v5255, %v5332
      %v5366 = vmul.f32 %v5257, %v5332
      %vm5400 = vcmask 1046528
      %v5401 = vrot.slane %v5334, 1
      %v5402 = vrot.slane %v5335, 1
      %v5403 = vsel %vm5400, %v5401, %v5402
      %v5404 = vrot.slane %v5336, 1
      %v5405 = vsel %vm5400, %v5402, %v5404
      %v5406 = vrot.slane %v5337, 1
      %v5407 = vsel %vm5400, %v5404, %v5406
      %v5408 = vrot.slane %v5338, 1
      %v5409 = vsel %vm5400, %v5406, %v5408
      %v5410 = vrot.slane %v5339, 1
      %v5411 = vsel %vm5400, %v5408, %v5410
      %v5412 = vrot.slane %v5340, 1
      %v5413 = vsel %vm5400, %v5410, %v5412
      %v5414 = vrot.slane %v5341, 1
      %v5415 = vsel %vm5400, %v5412, %v5414
      %v5416 = vrot.slane %v5342, 1
      %v5417 = vsel %vm5400, %v5414, %v5416
      %v5418 = vrot.slane %v5343, 1
      %v5419 = vsel %vm5400, %v5416, %v5418
      %v5420 = vrot.slane %v5344, 1
      %v5421 = vsel %vm5400, %v5418, %v5420
      %v5422 = vrot.slane %v5345, 1
      %v5423 = vsel %vm5400, %v5420, %v5422
      %v5424 = vrot.slane %v5346, 1
      %v5425 = vsel %vm5400, %v5422, %v5424
      %v5426 = vrot.slane %v5347, 1
      %v5427 = vsel %vm5400, %v5424, %v5426
      %v5428 = vrot.slane %v5348, 1
      %v5429 = vsel %vm5400, %v5426, %v5428
      %v5430 = vrot.slane %v5349, 1
      %v5431 = vsel %vm5400, %v5428, %v5430
      %v5432 = vrot.slane %v5350, 1
      %v5433 = vsel %vm5400, %v5430, %v5432
      %v5434 = vrot.slane %v5351, 1
      %v5435 = vsel %vm5400, %v5432, %v5434
      %v5436 = vrot.slane %v5352, 1
      %v5437 = vsel %vm5400, %v5434, %v5436
      %v5438 = vrot.slane %v5353, 1
      %v5439 = vsel %vm5400, %v5436, %v5438
      %v5440 = vrot.slane %v5354, 1
      %v5441 = vsel %vm5400, %v5438, %v5440
      %v5442 = vrot.slane %v5355, 1
      %v5443 = vsel %vm5400, %v5440, %v5442
      %v5444 = vrot.slane %v5356, 1
      %v5445 = vsel %vm5400, %v5442, %v5444
      %v5446 = vrot.slane %v5357, 1
      %v5447 = vsel %vm5400, %v5444, %v5446
      %v5448 = vrot.slane %v5358, 1
      %v5449 = vsel %vm5400, %v5446, %v5448
      %v5450 = vrot.slane %v5359, 1
      %v5451 = vsel %vm5400, %v5448, %v5450
      %v5452 = vrot.slane %v5360, 1
      %v5453 = vsel %vm5400, %v5450, %v5452
      %v5454 = vrot.slane %v5361, 1
      %v5455 = vsel %vm5400, %v5452, %v5454
      %v5456 = vrot.slane %v5362, 1
      %v5457 = vsel %vm5400, %v5454, %v5456
      %v5458 = vrot.slane %v5363, 1
      %v5459 = vsel %vm5400, %v5456, %v5458
      %v5460 = vrot.slane %v5364, 1
      %v5461 = vsel %vm5400, %v5458, %v5460
      %v5462 = vrot.slane %v5365, 1
      %v5463 = vsel %vm5400, %v5460, %v5462
      %v5464 = vrot.slane %v5366, 1
      %v5465 = vsel %vm5400, %v5462, %v5464
      %v5498 = vadd.f32 %v5297, %v5403
      %v5499 = vadd.f32 %v5298, %v5405
      %v5500 = vadd.f32 %v5299, %v5407
      %v5501 = vadd.f32 %v5300, %v5409
      %v5502 = vadd.f32 %v5301, %v5411
      %v5503 = vadd.f32 %v5302, %v5413
      %v5504 = vadd.f32 %v5303, %v5415
      %v5505 = vadd.f32 %v5304, %v5417
      %v5506 = vadd.f32 %v5305, %v5419
      %v5507 = vadd.f32 %v5306, %v5421
      %v5508 = vadd.f32 %v5307, %v5423
      %v5509 = vadd.f32 %v5308, %v5425
      %v5510 = vadd.f32 %v5309, %v5427
      %v5511 = vadd.f32 %v5310, %v5429
      %v5512 = vadd.f32 %v5311, %v5431
      %v5513 = vadd.f32 %v5312, %v5433
      %v5514 = vadd.f32 %v5313, %v5435
      %v5515 = vadd.f32 %v5314, %v5437
      %v5516 = vadd.f32 %v5315, %v5439
      %v5517 = vadd.f32 %v5316, %v5441
      %v5518 = vadd.f32 %v5317, %v5443
      %v5519 = vadd.f32 %v5318, %v5445
      %v5520 = vadd.f32 %v5319, %v5447
      %v5521 = vadd.f32 %v5320, %v5449
      %v5522 = vadd.f32 %v5321, %v5451
      %v5523 = vadd.f32 %v5322, %v5453
      %v5524 = vadd.f32 %v5323, %v5455
      %v5525 = vadd.f32 %v5324, %v5457
      %v5526 = vadd.f32 %v5325, %v5459
      %v5527 = vadd.f32 %v5326, %v5461
      %v5528 = vadd.f32 %v5327, %v5463
      %v5529 = vadd.f32 %v5328, %v5465
      %s5530 = scalar_lea.vmem %s5, 2
      %v5531 = vld [vmem:[%s5530] sm:$0x1]
      %v5533 = vperm.slane %v5531, 0
      %v5535 = vmul.f32 %v5533, 0.0
      %v5536 = vmul.f32 %v5291, %v5533
      %v5537 = vmul.f32 %v5197, %v5533
      %v5538 = vmul.f32 %v5199, %v5533
      %v5539 = vmul.f32 %v5201, %v5533
      %v5540 = vmul.f32 %v5203, %v5533
      %v5541 = vmul.f32 %v5205, %v5533
      %v5542 = vmul.f32 %v5207, %v5533
      %v5543 = vmul.f32 %v5209, %v5533
      %v5544 = vmul.f32 %v5211, %v5533
      %v5545 = vmul.f32 %v5213, %v5533
      %v5546 = vmul.f32 %v5215, %v5533
      %v5547 = vmul.f32 %v5217, %v5533
      %v5548 = vmul.f32 %v5219, %v5533
      %v5549 = vmul.f32 %v5221, %v5533
      %v5550 = vmul.f32 %v5223, %v5533
      %v5551 = vmul.f32 %v5225, %v5533
      %v5552 = vmul.f32 %v5227, %v5533
      %v5553 = vmul.f32 %v5229, %v5533
      %v5554 = vmul.f32 %v5231, %v5533
      %v5555 = vmul.f32 %v5233, %v5533
      %v5556 = vmul.f32 %v5235, %v5533
      %v5557 = vmul.f32 %v5237, %v5533
      %v5558 = vmul.f32 %v5239, %v5533
      %v5559 = vmul.f32 %v5241, %v5533
      %v5560 = vmul.f32 %v5243, %v5533
      %v5561 = vmul.f32 %v5245, %v5533
      %v5562 = vmul.f32 %v5247, %v5533
      %v5563 = vmul.f32 %v5249, %v5533
      %v5564 = vmul.f32 %v5251, %v5533
      %v5565 = vmul.f32 %v5253, %v5533
      %v5566 = vmul.f32 %v5255, %v5533
      %v5567 = vmul.f32 %v5257, %v5533
      %vm5601 = vcmask 1045504
      %v5602 = vrot.slane %v5535, 2
      %v5603 = vrot.slane %v5536, 2
      %v5604 = vsel %vm5601, %v5602, %v5603
      %v5605 = vrot.slane %v5537, 2
      %v5606 = vsel %vm5601, %v5603, %v5605
      %v5607 = vrot.slane %v5538, 2
      %v5608 = vsel %vm5601, %v5605, %v5607
      %v5609 = vrot.slane %v5539, 2
      %v5610 = vsel %vm5601, %v5607, %v5609
      %v5611 = vrot.slane %v5540, 2
      %v5612 = vsel %vm5601, %v5609, %v5611
      %v5613 = vrot.slane %v5541, 2
      %v5614 = vsel %vm5601, %v5611, %v5613
      %v5615 = vrot.slane %v5542, 2
      %v5616 = vsel %vm5601, %v5613, %v5615
      %v5617 = vrot.slane %v5543, 2
      %v5618 = vsel %vm5601, %v5615, %v5617
      %v5619 = vrot.slane %v5544, 2
      %v5620 = vsel %vm5601, %v5617, %v5619
      %v5621 = vrot.slane %v5545, 2
      %v5622 = vsel %vm5601, %v5619, %v5621
      %v5623 = vrot.slane %v5546, 2
      %v5624 = vsel %vm5601, %v5621, %v5623
      %v5625 = vrot.slane %v5547, 2
      %v5626 = vsel %vm5601, %v5623, %v5625
      %v5627 = vrot.slane %v5548, 2
      %v5628 = vsel %vm5601, %v5625, %v5627
      %v5629 = vrot.slane %v5549, 2
      %v5630 = vsel %vm5601, %v5627, %v5629
      %v5631 = vrot.slane %v5550, 2
      %v5632 = vsel %vm5601, %v5629, %v5631
      %v5633 = vrot.slane %v5551, 2
      %v5634 = vsel %vm5601, %v5631, %v5633
      %v5635 = vrot.slane %v5552, 2
      %v5636 = vsel %vm5601, %v5633, %v5635
      %v5637 = vrot.slane %v5553, 2
      %v5638 = vsel %vm5601, %v5635, %v5637
      %v5639 = vrot.slane %v5554, 2
      %v5640 = vsel %vm5601, %v5637, %v5639
      %v5641 = vrot.slane %v5555, 2
      %v5642 = vsel %vm5601, %v5639, %v5641
      %v5643 = vrot.slane %v5556, 2
      %v5644 = vsel %vm5601, %v5641, %v5643
      %v5645 = vrot.slane %v5557, 2
      %v5646 = vsel %vm5601, %v5643, %v5645
      %v5647 = vrot.slane %v5558, 2
      %v5648 = vsel %vm5601, %v5645, %v5647
      %v5649 = vrot.slane %v5559, 2
      %v5650 = vsel %vm5601, %v5647, %v5649
      %v5651 = vrot.slane %v5560, 2
      %v5652 = vsel %vm5601, %v5649, %v5651
      %v5653 = vrot.slane %v5561, 2
      %v5654 = vsel %vm5601, %v5651, %v5653
      %v5655 = vrot.slane %v5562, 2
      %v5656 = vsel %vm5601, %v5653, %v5655
      %v5657 = vrot.slane %v5563, 2
      %v5658 = vsel %vm5601, %v5655, %v5657
      %v5659 = vrot.slane %v5564, 2
      %v5660 = vsel %vm5601, %v5657, %v5659
      %v5661 = vrot.slane %v5565, 2
      %v5662 = vsel %vm5601, %v5659, %v5661
      %v5663 = vrot.slane %v5566, 2
      %v5664 = vsel %vm5601, %v5661, %v5663
      %v5665 = vrot.slane %v5567, 2
      %v5666 = vsel %vm5601, %v5663, %v5665
      %v5699 = vadd.f32 %v5498, %v5604
      %v5700 = vadd.f32 %v5499, %v5606
      %v5701 = vadd.f32 %v5500, %v5608
      %v5702 = vadd.f32 %v5501, %v5610
      %v5703 = vadd.f32 %v5502, %v5612
      %v5704 = vadd.f32 %v5503, %v5614
      %v5705 = vadd.f32 %v5504, %v5616
      %v5706 = vadd.f32 %v5505, %v5618
      %v5707 = vadd.f32 %v5506, %v5620
      %v5708 = vadd.f32 %v5507, %v5622
      %v5709 = vadd.f32 %v5508, %v5624
      %v5710 = vadd.f32 %v5509, %v5626
      %v5711 = vadd.f32 %v5510, %v5628
      %v5712 = vadd.f32 %v5511, %v5630
      %v5713 = vadd.f32 %v5512, %v5632
      %v5714 = vadd.f32 %v5513, %v5634
      %v5715 = vadd.f32 %v5514, %v5636
      %v5716 = vadd.f32 %v5515, %v5638
      %v5717 = vadd.f32 %v5516, %v5640
      %v5718 = vadd.f32 %v5517, %v5642
      %v5719 = vadd.f32 %v5518, %v5644
      %v5720 = vadd.f32 %v5519, %v5646
      %v5721 = vadd.f32 %v5520, %v5648
      %v5722 = vadd.f32 %v5521, %v5650
      %v5723 = vadd.f32 %v5522, %v5652
      %v5724 = vadd.f32 %v5523, %v5654
      %v5725 = vadd.f32 %v5524, %v5656
      %v5726 = vadd.f32 %v5525, %v5658
      %v5727 = vadd.f32 %v5526, %v5660
      %v5728 = vadd.f32 %v5527, %v5662
      %v5729 = vadd.f32 %v5528, %v5664
      %v5730 = vadd.f32 %v5529, %v5666
      %s5731 = scalar_lea.vmem %s5, 3
      %v5732 = vld [vmem:[%s5731] sm:$0x1]
      %v5734 = vperm.slane %v5732, 0
      %v5736 = vmul.f32 %v5734, 0.0
      %v5737 = vmul.f32 %v5291, %v5734
      %v5738 = vmul.f32 %v5197, %v5734
      %v5739 = vmul.f32 %v5199, %v5734
      %v5740 = vmul.f32 %v5201, %v5734
      %v5741 = vmul.f32 %v5203, %v5734
      %v5742 = vmul.f32 %v5205, %v5734
      %v5743 = vmul.f32 %v5207, %v5734
      %v5744 = vmul.f32 %v5209, %v5734
      %v5745 = vmul.f32 %v5211, %v5734
      %v5746 = vmul.f32 %v5213, %v5734
      %v5747 = vmul.f32 %v5215, %v5734
      %v5748 = vmul.f32 %v5217, %v5734
      %v5749 = vmul.f32 %v5219, %v5734
      %v5750 = vmul.f32 %v5221, %v5734
      %v5751 = vmul.f32 %v5223, %v5734
      %v5752 = vmul.f32 %v5225, %v5734
      %v5753 = vmul.f32 %v5227, %v5734
      %v5754 = vmul.f32 %v5229, %v5734
      %v5755 = vmul.f32 %v5231, %v5734
      %v5756 = vmul.f32 %v5233, %v5734
      %v5757 = vmul.f32 %v5235, %v5734
      %v5758 = vmul.f32 %v5237, %v5734
      %v5759 = vmul.f32 %v5239, %v5734
      %v5760 = vmul.f32 %v5241, %v5734
      %v5761 = vmul.f32 %v5243, %v5734
      %v5762 = vmul.f32 %v5245, %v5734
      %v5763 = vmul.f32 %v5247, %v5734
      %v5764 = vmul.f32 %v5249, %v5734
      %v5765 = vmul.f32 %v5251, %v5734
      %v5766 = vmul.f32 %v5253, %v5734
      %v5767 = vmul.f32 %v5255, %v5734
      %v5768 = vmul.f32 %v5257, %v5734
      %vm5802 = vcmask 1044480
      %v5803 = vrot.slane %v5736, 3
      %v5804 = vrot.slane %v5737, 3
      %v5805 = vsel %vm5802, %v5803, %v5804
      %v5806 = vrot.slane %v5738, 3
      %v5807 = vsel %vm5802, %v5804, %v5806
      %v5808 = vrot.slane %v5739, 3
      %v5809 = vsel %vm5802, %v5806, %v5808
      %v5810 = vrot.slane %v5740, 3
      %v5811 = vsel %vm5802, %v5808, %v5810
      %v5812 = vrot.slane %v5741, 3
      %v5813 = vsel %vm5802, %v5810, %v5812
      %v5814 = vrot.slane %v5742, 3
      %v5815 = vsel %vm5802, %v5812, %v5814
      %v5816 = vrot.slane %v5743, 3
      %v5817 = vsel %vm5802, %v5814, %v5816
      %v5818 = vrot.slane %v5744, 3
      %v5819 = vsel %vm5802, %v5816, %v5818
      %v5820 = vrot.slane %v5745, 3
      %v5821 = vsel %vm5802, %v5818, %v5820
      %v5822 = vrot.slane %v5746, 3
      %v5823 = vsel %vm5802, %v5820, %v5822
      %v5824 = vrot.slane %v5747, 3
      %v5825 = vsel %vm5802, %v5822, %v5824
      %v5826 = vrot.slane %v5748, 3
      %v5827 = vsel %vm5802, %v5824, %v5826
      %v5828 = vrot.slane %v5749, 3
      %v5829 = vsel %vm5802, %v5826, %v5828
      %v5830 = vrot.slane %v5750, 3
      %v5831 = vsel %vm5802, %v5828, %v5830
      %v5832 = vrot.slane %v5751, 3
      %v5833 = vsel %vm5802, %v5830, %v5832
      %v5834 = vrot.slane %v5752, 3
      %v5835 = vsel %vm5802, %v5832, %v5834
      %v5836 = vrot.slane %v5753, 3
      %v5837 = vsel %vm5802, %v5834, %v5836
      %v5838 = vrot.slane %v5754, 3
      %v5839 = vsel %vm5802, %v5836, %v5838
      %v5840 = vrot.slane %v5755, 3
      %v5841 = vsel %vm5802, %v5838, %v5840
      %v5842 = vrot.slane %v5756, 3
      %v5843 = vsel %vm5802, %v5840, %v5842
      %v5844 = vrot.slane %v5757, 3
      %v5845 = vsel %vm5802, %v5842, %v5844
      %v5846 = vrot.slane %v5758, 3
      %v5847 = vsel %vm5802, %v5844, %v5846
      %v5848 = vrot.slane %v5759, 3
      %v5849 = vsel %vm5802, %v5846, %v5848
      %v5850 = vrot.slane %v5760, 3
      %v5851 = vsel %vm5802, %v5848, %v5850
      %v5852 = vrot.slane %v5761, 3
      %v5853 = vsel %vm5802, %v5850, %v5852
      %v5854 = vrot.slane %v5762, 3
      %v5855 = vsel %vm5802, %v5852, %v5854
      %v5856 = vrot.slane %v5763, 3
      %v5857 = vsel %vm5802, %v5854, %v5856
      %v5858 = vrot.slane %v5764, 3
      %v5859 = vsel %vm5802, %v5856, %v5858
      %v5860 = vrot.slane %v5765, 3
      %v5861 = vsel %vm5802, %v5858, %v5860
      %v5862 = vrot.slane %v5766, 3
      %v5863 = vsel %vm5802, %v5860, %v5862
      %v5864 = vrot.slane %v5767, 3
      %v5865 = vsel %vm5802, %v5862, %v5864
      %v5866 = vrot.slane %v5768, 3
      %v5867 = vsel %vm5802, %v5864, %v5866
      %v5900 = vadd.f32 %v5699, %v5805
      %v5901 = vadd.f32 %v5700, %v5807
      %v5902 = vadd.f32 %v5701, %v5809
      %v5903 = vadd.f32 %v5702, %v5811
      %v5904 = vadd.f32 %v5703, %v5813
      %v5905 = vadd.f32 %v5704, %v5815
      %v5906 = vadd.f32 %v5705, %v5817
      %v5907 = vadd.f32 %v5706, %v5819
      %v5908 = vadd.f32 %v5707, %v5821
      %v5909 = vadd.f32 %v5708, %v5823
      %v5910 = vadd.f32 %v5709, %v5825
      %v5911 = vadd.f32 %v5710, %v5827
      %v5912 = vadd.f32 %v5711, %v5829
      %v5913 = vadd.f32 %v5712, %v5831
      %v5914 = vadd.f32 %v5713, %v5833
      %v5915 = vadd.f32 %v5714, %v5835
      %v5916 = vadd.f32 %v5715, %v5837
      %v5917 = vadd.f32 %v5716, %v5839
      %v5918 = vadd.f32 %v5717, %v5841
      %v5919 = vadd.f32 %v5718, %v5843
      %v5920 = vadd.f32 %v5719, %v5845
      %v5921 = vadd.f32 %v5720, %v5847
      %v5922 = vadd.f32 %v5721, %v5849
      %v5923 = vadd.f32 %v5722, %v5851
      %v5924 = vadd.f32 %v5723, %v5853
      %v5925 = vadd.f32 %v5724, %v5855
      %v5926 = vadd.f32 %v5725, %v5857
      %v5927 = vadd.f32 %v5726, %v5859
      %v5928 = vadd.f32 %v5727, %v5861
      %v5929 = vadd.f32 %v5728, %v5863
      %v5930 = vadd.f32 %v5729, %v5865
      %v5931 = vadd.f32 %v5730, %v5867
      %s5932 = scalar_lea.vmem %s5, 4
      %v5933 = vld [vmem:[%s5932] sm:$0x1]
      %v5935 = vperm.slane %v5933, 0
      %v5937 = vmul.f32 %v5935, 0.0
      %v5938 = vmul.f32 %v5291, %v5935
      %v5939 = vmul.f32 %v5197, %v5935
      %v5940 = vmul.f32 %v5199, %v5935
      %v5941 = vmul.f32 %v5201, %v5935
      %v5942 = vmul.f32 %v5203, %v5935
      %v5943 = vmul.f32 %v5205, %v5935
      %v5944 = vmul.f32 %v5207, %v5935
      %v5945 = vmul.f32 %v5209, %v5935
      %v5946 = vmul.f32 %v5211, %v5935
      %v5947 = vmul.f32 %v5213, %v5935
      %v5948 = vmul.f32 %v5215, %v5935
      %v5949 = vmul.f32 %v5217, %v5935
      %v5950 = vmul.f32 %v5219, %v5935
      %v5951 = vmul.f32 %v5221, %v5935
      %v5952 = vmul.f32 %v5223, %v5935
      %v5953 = vmul.f32 %v5225, %v5935
      %v5954 = vmul.f32 %v5227, %v5935
      %v5955 = vmul.f32 %v5229, %v5935
      %v5956 = vmul.f32 %v5231, %v5935
      %v5957 = vmul.f32 %v5233, %v5935
      %v5958 = vmul.f32 %v5235, %v5935
      %v5959 = vmul.f32 %v5237, %v5935
      %v5960 = vmul.f32 %v5239, %v5935
      %v5961 = vmul.f32 %v5241, %v5935
      %v5962 = vmul.f32 %v5243, %v5935
      %v5963 = vmul.f32 %v5245, %v5935
      %v5964 = vmul.f32 %v5247, %v5935
      %v5965 = vmul.f32 %v5249, %v5935
      %v5966 = vmul.f32 %v5251, %v5935
      %v5967 = vmul.f32 %v5253, %v5935
      %v5968 = vmul.f32 %v5255, %v5935
      %v5969 = vmul.f32 %v5257, %v5935
      %v6003 = vrot.slane %v5937, 4
      %v6004 = vrot.slane %v5938, 4
      %v6005 = vsel %vm427, %v6003, %v6004
      %v6006 = vrot.slane %v5939, 4
      %v6007 = vsel %vm427, %v6004, %v6006
      %v6008 = vrot.slane %v5940, 4
      %v6009 = vsel %vm427, %v6006, %v6008
      %v6010 = vrot.slane %v5941, 4
      %v6011 = vsel %vm427, %v6008, %v6010
      %v6012 = vrot.slane %v5942, 4
      %v6013 = vsel %vm427, %v6010, %v6012
      %v6014 = vrot.slane %v5943, 4
      %v6015 = vsel %vm427, %v6012, %v6014
      %v6016 = vrot.slane %v5944, 4
      %v6017 = vsel %vm427, %v6014, %v6016
      %v6018 = vrot.slane %v5945, 4
      %v6019 = vsel %vm427, %v6016, %v6018
      %v6020 = vrot.slane %v5946, 4
      %v6021 = vsel %vm427, %v6018, %v6020
      %v6022 = vrot.slane %v5947, 4
      %v6023 = vsel %vm427, %v6020, %v6022
      %v6024 = vrot.slane %v5948, 4
      %v6025 = vsel %vm427, %v6022, %v6024
      %v6026 = vrot.slane %v5949, 4
      %v6027 = vsel %vm427, %v6024, %v6026
      %v6028 = vrot.slane %v5950, 4
      %v6029 = vsel %vm427, %v6026, %v6028
      %v6030 = vrot.slane %v5951, 4
      %v6031 = vsel %vm427, %v6028, %v6030
      %v6032 = vrot.slane %v5952, 4
      %v6033 = vsel %vm427, %v6030, %v6032
      %v6034 = vrot.slane %v5953, 4
      %v6035 = vsel %vm427, %v6032, %v6034
      %v6036 = vrot.slane %v5954, 4
      %v6037 = vsel %vm427, %v6034, %v6036
      %v6038 = vrot.slane %v5955, 4
      %v6039 = vsel %vm427, %v6036, %v6038
      %v6040 = vrot.slane %v5956, 4
      %v6041 = vsel %vm427, %v6038, %v6040
      %v6042 = vrot.slane %v5957, 4
      %v6043 = vsel %vm427, %v6040, %v6042
      %v6044 = vrot.slane %v5958, 4
      %v6045 = vsel %vm427, %v6042, %v6044
      %v6046 = vrot.slane %v5959, 4
      %v6047 = vsel %vm427, %v6044, %v6046
      %v6048 = vrot.slane %v5960, 4
      %v6049 = vsel %vm427, %v6046, %v6048
      %v6050 = vrot.slane %v5961, 4
      %v6051 = vsel %vm427, %v6048, %v6050
      %v6052 = vrot.slane %v5962, 4
      %v6053 = vsel %vm427, %v6050, %v6052
      %v6054 = vrot.slane %v5963, 4
      %v6055 = vsel %vm427, %v6052, %v6054
      %v6056 = vrot.slane %v5964, 4
      %v6057 = vsel %vm427, %v6054, %v6056
      %v6058 = vrot.slane %v5965, 4
      %v6059 = vsel %vm427, %v6056, %v6058
      %v6060 = vrot.slane %v5966, 4
      %v6061 = vsel %vm427, %v6058, %v6060
      %v6062 = vrot.slane %v5967, 4
      %v6063 = vsel %vm427, %v6060, %v6062
      %v6064 = vrot.slane %v5968, 4
      %v6065 = vsel %vm427, %v6062, %v6064
      %v6066 = vrot.slane %v5969, 4
      %v6067 = vsel %vm427, %v6064, %v6066
      %v6100 = vadd.f32 %v5900, %v6005
      %v6101 = vadd.f32 %v5901, %v6007
      %v6102 = vadd.f32 %v5902, %v6009
      %v6103 = vadd.f32 %v5903, %v6011
      %v6104 = vadd.f32 %v5904, %v6013
      %v6105 = vadd.f32 %v5905, %v6015
      %v6106 = vadd.f32 %v5906, %v6017
      %v6107 = vadd.f32 %v5907, %v6019
      %v6108 = vadd.f32 %v5908, %v6021
      %v6109 = vadd.f32 %v5909, %v6023
      %v6110 = vadd.f32 %v5910, %v6025
      %v6111 = vadd.f32 %v5911, %v6027
      %v6112 = vadd.f32 %v5912, %v6029
      %v6113 = vadd.f32 %v5913, %v6031
      %v6114 = vadd.f32 %v5914, %v6033
      %v6115 = vadd.f32 %v5915, %v6035
      %v6116 = vadd.f32 %v5916, %v6037
      %v6117 = vadd.f32 %v5917, %v6039
      %v6118 = vadd.f32 %v5918, %v6041
      %v6119 = vadd.f32 %v5919, %v6043
      %v6120 = vadd.f32 %v5920, %v6045
      %v6121 = vadd.f32 %v5921, %v6047
      %v6122 = vadd.f32 %v5922, %v6049
      %v6123 = vadd.f32 %v5923, %v6051
      %v6124 = vadd.f32 %v5924, %v6053
      %v6125 = vadd.f32 %v5925, %v6055
      %v6126 = vadd.f32 %v5926, %v6057
      %v6127 = vadd.f32 %v5927, %v6059
      %v6128 = vadd.f32 %v5928, %v6061
      %v6129 = vadd.f32 %v5929, %v6063
      %v6130 = vadd.f32 %v5930, %v6065
      %v6131 = vadd.f32 %v5931, %v6067
      %s6132 = scalar_lea.vmem %s5, 5
      %v6133 = vld [vmem:[%s6132] sm:$0x1]
      %v6135 = vperm.slane %v6133, 0
      %v6137 = vmul.f32 %v6135, 0.0
      %v6138 = vmul.f32 %v5291, %v6135
      %v6139 = vmul.f32 %v5197, %v6135
      %v6140 = vmul.f32 %v5199, %v6135
      %v6141 = vmul.f32 %v5201, %v6135
      %v6142 = vmul.f32 %v5203, %v6135
      %v6143 = vmul.f32 %v5205, %v6135
      %v6144 = vmul.f32 %v5207, %v6135
      %v6145 = vmul.f32 %v5209, %v6135
      %v6146 = vmul.f32 %v5211, %v6135
      %v6147 = vmul.f32 %v5213, %v6135
      %v6148 = vmul.f32 %v5215, %v6135
      %v6149 = vmul.f32 %v5217, %v6135
      %v6150 = vmul.f32 %v5219, %v6135
      %v6151 = vmul.f32 %v5221, %v6135
      %v6152 = vmul.f32 %v5223, %v6135
      %v6153 = vmul.f32 %v5225, %v6135
      %v6154 = vmul.f32 %v5227, %v6135
      %v6155 = vmul.f32 %v5229, %v6135
      %v6156 = vmul.f32 %v5231, %v6135
      %v6157 = vmul.f32 %v5233, %v6135
      %v6158 = vmul.f32 %v5235, %v6135
      %v6159 = vmul.f32 %v5237, %v6135
      %v6160 = vmul.f32 %v5239, %v6135
      %v6161 = vmul.f32 %v5241, %v6135
      %v6162 = vmul.f32 %v5243, %v6135
      %v6163 = vmul.f32 %v5245, %v6135
      %v6164 = vmul.f32 %v5247, %v6135
      %v6165 = vmul.f32 %v5249, %v6135
      %v6166 = vmul.f32 %v5251, %v6135
      %v6167 = vmul.f32 %v5253, %v6135
      %v6168 = vmul.f32 %v5255, %v6135
      %v6169 = vmul.f32 %v5257, %v6135
      %vm6203 = vcmask 1042432
      %v6204 = vrot.slane %v6137, 5
      %v6205 = vrot.slane %v6138, 5
      %v6206 = vsel %vm6203, %v6204, %v6205
      %v6207 = vrot.slane %v6139, 5
      %v6208 = vsel %vm6203, %v6205, %v6207
      %v6209 = vrot.slane %v6140, 5
      %v6210 = vsel %vm6203, %v6207, %v6209
      %v6211 = vrot.slane %v6141, 5
      %v6212 = vsel %vm6203, %v6209, %v6211
      %v6213 = vrot.slane %v6142, 5
      %v6214 = vsel %vm6203, %v6211, %v6213
      %v6215 = vrot.slane %v6143, 5
      %v6216 = vsel %vm6203, %v6213, %v6215
      %v6217 = vrot.slane %v6144, 5
      %v6218 = vsel %vm6203, %v6215, %v6217
      %v6219 = vrot.slane %v6145, 5
      %v6220 = vsel %vm6203, %v6217, %v6219
      %v6221 = vrot.slane %v6146, 5
      %v6222 = vsel %vm6203, %v6219, %v6221
      %v6223 = vrot.slane %v6147, 5
      %v6224 = vsel %vm6203, %v6221, %v6223
      %v6225 = vrot.slane %v6148, 5
      %v6226 = vsel %vm6203, %v6223, %v6225
      %v6227 = vrot.slane %v6149, 5
      %v6228 = vsel %vm6203, %v6225, %v6227
      %v6229 = vrot.slane %v6150, 5
      %v6230 = vsel %vm6203, %v6227, %v6229
      %v6231 = vrot.slane %v6151, 5
      %v6232 = vsel %vm6203, %v6229, %v6231
      %v6233 = vrot.slane %v6152, 5
      %v6234 = vsel %vm6203, %v6231, %v6233
      %v6235 = vrot.slane %v6153, 5
      %v6236 = vsel %vm6203, %v6233, %v6235
      %v6237 = vrot.slane %v6154, 5
      %v6238 = vsel %vm6203, %v6235, %v6237
      %v6239 = vrot.slane %v6155, 5
      %v6240 = vsel %vm6203, %v6237, %v6239
      %v6241 = vrot.slane %v6156, 5
      %v6242 = vsel %vm6203, %v6239, %v6241
      %v6243 = vrot.slane %v6157, 5
      %v6244 = vsel %vm6203, %v6241, %v6243
      %v6245 = vrot.slane %v6158, 5
      %v6246 = vsel %vm6203, %v6243, %v6245
      %v6247 = vrot.slane %v6159, 5
      %v6248 = vsel %vm6203, %v6245, %v6247
      %v6249 = vrot.slane %v6160, 5
      %v6250 = vsel %vm6203, %v6247, %v6249
      %v6251 = vrot.slane %v6161, 5
      %v6252 = vsel %vm6203, %v6249, %v6251
      %v6253 = vrot.slane %v6162, 5
      %v6254 = vsel %vm6203, %v6251, %v6253
      %v6255 = vrot.slane %v6163, 5
      %v6256 = vsel %vm6203, %v6253, %v6255
      %v6257 = vrot.slane %v6164, 5
      %v6258 = vsel %vm6203, %v6255, %v6257
      %v6259 = vrot.slane %v6165, 5
      %v6260 = vsel %vm6203, %v6257, %v6259
      %v6261 = vrot.slane %v6166, 5
      %v6262 = vsel %vm6203, %v6259, %v6261
      %v6263 = vrot.slane %v6167, 5
      %v6264 = vsel %vm6203, %v6261, %v6263
      %v6265 = vrot.slane %v6168, 5
      %v6266 = vsel %vm6203, %v6263, %v6265
      %v6267 = vrot.slane %v6169, 5
      %v6268 = vsel %vm6203, %v6265, %v6267
      %v6301 = vadd.f32 %v6100, %v6206
      %v6302 = vadd.f32 %v6101, %v6208
      %v6303 = vadd.f32 %v6102, %v6210
      %v6304 = vadd.f32 %v6103, %v6212
      %v6305 = vadd.f32 %v6104, %v6214
      %v6306 = vadd.f32 %v6105, %v6216
      %v6307 = vadd.f32 %v6106, %v6218
      %v6308 = vadd.f32 %v6107, %v6220
      %v6309 = vadd.f32 %v6108, %v6222
      %v6310 = vadd.f32 %v6109, %v6224
      %v6311 = vadd.f32 %v6110, %v6226
      %v6312 = vadd.f32 %v6111, %v6228
      %v6313 = vadd.f32 %v6112, %v6230
      %v6314 = vadd.f32 %v6113, %v6232
      %v6315 = vadd.f32 %v6114, %v6234
      %v6316 = vadd.f32 %v6115, %v6236
      %v6317 = vadd.f32 %v6116, %v6238
      %v6318 = vadd.f32 %v6117, %v6240
      %v6319 = vadd.f32 %v6118, %v6242
      %v6320 = vadd.f32 %v6119, %v6244
      %v6321 = vadd.f32 %v6120, %v6246
      %v6322 = vadd.f32 %v6121, %v6248
      %v6323 = vadd.f32 %v6122, %v6250
      %v6324 = vadd.f32 %v6123, %v6252
      %v6325 = vadd.f32 %v6124, %v6254
      %v6326 = vadd.f32 %v6125, %v6256
      %v6327 = vadd.f32 %v6126, %v6258
      %v6328 = vadd.f32 %v6127, %v6260
      %v6329 = vadd.f32 %v6128, %v6262
      %v6330 = vadd.f32 %v6129, %v6264
      %v6331 = vadd.f32 %v6130, %v6266
      %v6332 = vadd.f32 %v6131, %v6268
      %s6333 = scalar_lea.vmem %s5, 6
      %v6334 = vld [vmem:[%s6333] sm:$0x1]
      %v6336 = vperm.slane %v6334, 0
      %v6338 = vmul.f32 %v6336, 0.0
      %v6339 = vmul.f32 %v5291, %v6336
      %v6340 = vmul.f32 %v5197, %v6336
      %v6341 = vmul.f32 %v5199, %v6336
      %v6342 = vmul.f32 %v5201, %v6336
      %v6343 = vmul.f32 %v5203, %v6336
      %v6344 = vmul.f32 %v5205, %v6336
      %v6345 = vmul.f32 %v5207, %v6336
      %v6346 = vmul.f32 %v5209, %v6336
      %v6347 = vmul.f32 %v5211, %v6336
      %v6348 = vmul.f32 %v5213, %v6336
      %v6349 = vmul.f32 %v5215, %v6336
      %v6350 = vmul.f32 %v5217, %v6336
      %v6351 = vmul.f32 %v5219, %v6336
      %v6352 = vmul.f32 %v5221, %v6336
      %v6353 = vmul.f32 %v5223, %v6336
      %v6354 = vmul.f32 %v5225, %v6336
      %v6355 = vmul.f32 %v5227, %v6336
      %v6356 = vmul.f32 %v5229, %v6336
      %v6357 = vmul.f32 %v5231, %v6336
      %v6358 = vmul.f32 %v5233, %v6336
      %v6359 = vmul.f32 %v5235, %v6336
      %v6360 = vmul.f32 %v5237, %v6336
      %v6361 = vmul.f32 %v5239, %v6336
      %v6362 = vmul.f32 %v5241, %v6336
      %v6363 = vmul.f32 %v5243, %v6336
      %v6364 = vmul.f32 %v5245, %v6336
      %v6365 = vmul.f32 %v5247, %v6336
      %v6366 = vmul.f32 %v5249, %v6336
      %v6367 = vmul.f32 %v5251, %v6336
      %v6368 = vmul.f32 %v5253, %v6336
      %v6369 = vmul.f32 %v5255, %v6336
      %v6370 = vmul.f32 %v5257, %v6336
      %v6404 = vrot.slane %v6338, 6
      %v6405 = vrot.slane %v6339, 6
      %v6406 = vsel %vm632, %v6404, %v6405
      %v6407 = vrot.slane %v6340, 6
      %v6408 = vsel %vm632, %v6405, %v6407
      %v6409 = vrot.slane %v6341, 6
      %v6410 = vsel %vm632, %v6407, %v6409
      %v6411 = vrot.slane %v6342, 6
      %v6412 = vsel %vm632, %v6409, %v6411
      %v6413 = vrot.slane %v6343, 6
      %v6414 = vsel %vm632, %v6411, %v6413
      %v6415 = vrot.slane %v6344, 6
      %v6416 = vsel %vm632, %v6413, %v6415
      %v6417 = vrot.slane %v6345, 6
      %v6418 = vsel %vm632, %v6415, %v6417
      %v6419 = vrot.slane %v6346, 6
      %v6420 = vsel %vm632, %v6417, %v6419
      %v6421 = vrot.slane %v6347, 6
      %v6422 = vsel %vm632, %v6419, %v6421
      %v6423 = vrot.slane %v6348, 6
      %v6424 = vsel %vm632, %v6421, %v6423
      %v6425 = vrot.slane %v6349, 6
      %v6426 = vsel %vm632, %v6423, %v6425
      %v6427 = vrot.slane %v6350, 6
      %v6428 = vsel %vm632, %v6425, %v6427
      %v6429 = vrot.slane %v6351, 6
      %v6430 = vsel %vm632, %v6427, %v6429
      %v6431 = vrot.slane %v6352, 6
      %v6432 = vsel %vm632, %v6429, %v6431
      %v6433 = vrot.slane %v6353, 6
      %v6434 = vsel %vm632, %v6431, %v6433
      %v6435 = vrot.slane %v6354, 6
      %v6436 = vsel %vm632, %v6433, %v6435
      %v6437 = vrot.slane %v6355, 6
      %v6438 = vsel %vm632, %v6435, %v6437
      %v6439 = vrot.slane %v6356, 6
      %v6440 = vsel %vm632, %v6437, %v6439
      %v6441 = vrot.slane %v6357, 6
      %v6442 = vsel %vm632, %v6439, %v6441
      %v6443 = vrot.slane %v6358, 6
      %v6444 = vsel %vm632, %v6441, %v6443
      %v6445 = vrot.slane %v6359, 6
      %v6446 = vsel %vm632, %v6443, %v6445
      %v6447 = vrot.slane %v6360, 6
      %v6448 = vsel %vm632, %v6445, %v6447
      %v6449 = vrot.slane %v6361, 6
      %v6450 = vsel %vm632, %v6447, %v6449
      %v6451 = vrot.slane %v6362, 6
      %v6452 = vsel %vm632, %v6449, %v6451
      %v6453 = vrot.slane %v6363, 6
      %v6454 = vsel %vm632, %v6451, %v6453
      %v6455 = vrot.slane %v6364, 6
      %v6456 = vsel %vm632, %v6453, %v6455
      %v6457 = vrot.slane %v6365, 6
      %v6458 = vsel %vm632, %v6455, %v6457
      %v6459 = vrot.slane %v6366, 6
      %v6460 = vsel %vm632, %v6457, %v6459
      %v6461 = vrot.slane %v6367, 6
      %v6462 = vsel %vm632, %v6459, %v6461
      %v6463 = vrot.slane %v6368, 6
      %v6464 = vsel %vm632, %v6461, %v6463
      %v6465 = vrot.slane %v6369, 6
      %v6466 = vsel %vm632, %v6463, %v6465
      %v6467 = vrot.slane %v6370, 6
      %v6468 = vsel %vm632, %v6465, %v6467
      %v6501 = vadd.f32 %v6301, %v6406
      %v6502 = vadd.f32 %v6302, %v6408
      %v6503 = vadd.f32 %v6303, %v6410
      %v6504 = vadd.f32 %v6304, %v6412
      %v6505 = vadd.f32 %v6305, %v6414
      %v6506 = vadd.f32 %v6306, %v6416
      %v6507 = vadd.f32 %v6307, %v6418
      %v6508 = vadd.f32 %v6308, %v6420
      %v6509 = vadd.f32 %v6309, %v6422
      %v6510 = vadd.f32 %v6310, %v6424
      %v6511 = vadd.f32 %v6311, %v6426
      %v6512 = vadd.f32 %v6312, %v6428
      %v6513 = vadd.f32 %v6313, %v6430
      %v6514 = vadd.f32 %v6314, %v6432
      %v6515 = vadd.f32 %v6315, %v6434
      %v6516 = vadd.f32 %v6316, %v6436
      %v6517 = vadd.f32 %v6317, %v6438
      %v6518 = vadd.f32 %v6318, %v6440
      %v6519 = vadd.f32 %v6319, %v6442
      %v6520 = vadd.f32 %v6320, %v6444
      %v6521 = vadd.f32 %v6321, %v6446
      %v6522 = vadd.f32 %v6322, %v6448
      %v6523 = vadd.f32 %v6323, %v6450
      %v6524 = vadd.f32 %v6324, %v6452
      %v6525 = vadd.f32 %v6325, %v6454
      %v6526 = vadd.f32 %v6326, %v6456
      %v6527 = vadd.f32 %v6327, %v6458
      %v6528 = vadd.f32 %v6328, %v6460
      %v6529 = vadd.f32 %v6329, %v6462
      %v6530 = vadd.f32 %v6330, %v6464
      %v6531 = vadd.f32 %v6331, %v6466
      %v6532 = vadd.f32 %v6332, %v6468
      %s6533 = scalar_lea.vmem %s5, 7
      %v6534 = vld [vmem:[%s6533] sm:$0x1]
      %v6536 = vperm.slane %v6534, 0
      %v6538 = vmul.f32 %v6536, 0.0
      %v6539 = vmul.f32 %v5291, %v6536
      %v6540 = vmul.f32 %v5197, %v6536
      %v6541 = vmul.f32 %v5199, %v6536
      %v6542 = vmul.f32 %v5201, %v6536
      %v6543 = vmul.f32 %v5203, %v6536
      %v6544 = vmul.f32 %v5205, %v6536
      %v6545 = vmul.f32 %v5207, %v6536
      %v6546 = vmul.f32 %v5209, %v6536
      %v6547 = vmul.f32 %v5211, %v6536
      %v6548 = vmul.f32 %v5213, %v6536
      %v6549 = vmul.f32 %v5215, %v6536
      %v6550 = vmul.f32 %v5217, %v6536
      %v6551 = vmul.f32 %v5219, %v6536
      %v6552 = vmul.f32 %v5221, %v6536
      %v6553 = vmul.f32 %v5223, %v6536
      %v6554 = vmul.f32 %v5225, %v6536
      %v6555 = vmul.f32 %v5227, %v6536
      %v6556 = vmul.f32 %v5229, %v6536
      %v6557 = vmul.f32 %v5231, %v6536
      %v6558 = vmul.f32 %v5233, %v6536
      %v6559 = vmul.f32 %v5235, %v6536
      %v6560 = vmul.f32 %v5237, %v6536
      %v6561 = vmul.f32 %v5239, %v6536
      %v6562 = vmul.f32 %v5241, %v6536
      %v6563 = vmul.f32 %v5243, %v6536
      %v6564 = vmul.f32 %v5245, %v6536
      %v6565 = vmul.f32 %v5247, %v6536
      %v6566 = vmul.f32 %v5249, %v6536
      %v6567 = vmul.f32 %v5251, %v6536
      %v6568 = vmul.f32 %v5253, %v6536
      %v6569 = vmul.f32 %v5255, %v6536
      %v6570 = vmul.f32 %v5257, %v6536
      %vm6604 = vcmask 1040384
      %v6605 = vrot.slane %v6538, 7
      %v6606 = vrot.slane %v6539, 7
      %v6607 = vsel %vm6604, %v6605, %v6606
      %v6608 = vrot.slane %v6540, 7
      %v6609 = vsel %vm6604, %v6606, %v6608
      %v6610 = vrot.slane %v6541, 7
      %v6611 = vsel %vm6604, %v6608, %v6610
      %v6612 = vrot.slane %v6542, 7
      %v6613 = vsel %vm6604, %v6610, %v6612
      %v6614 = vrot.slane %v6543, 7
      %v6615 = vsel %vm6604, %v6612, %v6614
      %v6616 = vrot.slane %v6544, 7
      %v6617 = vsel %vm6604, %v6614, %v6616
      %v6618 = vrot.slane %v6545, 7
      %v6619 = vsel %vm6604, %v6616, %v6618
      %v6620 = vrot.slane %v6546, 7
      %v6621 = vsel %vm6604, %v6618, %v6620
      %v6622 = vrot.slane %v6547, 7
      %v6623 = vsel %vm6604, %v6620, %v6622
      %v6624 = vrot.slane %v6548, 7
      %v6625 = vsel %vm6604, %v6622, %v6624
      %v6626 = vrot.slane %v6549, 7
      %v6627 = vsel %vm6604, %v6624, %v6626
      %v6628 = vrot.slane %v6550, 7
      %v6629 = vsel %vm6604, %v6626, %v6628
      %v6630 = vrot.slane %v6551, 7
      %v6631 = vsel %vm6604, %v6628, %v6630
      %v6632 = vrot.slane %v6552, 7
      %v6633 = vsel %vm6604, %v6630, %v6632
      %v6634 = vrot.slane %v6553, 7
      %v6635 = vsel %vm6604, %v6632, %v6634
      %v6636 = vrot.slane %v6554, 7
      %v6637 = vsel %vm6604, %v6634, %v6636
      %v6638 = vrot.slane %v6555, 7
      %v6639 = vsel %vm6604, %v6636, %v6638
      %v6640 = vrot.slane %v6556, 7
      %v6641 = vsel %vm6604, %v6638, %v6640
      %v6642 = vrot.slane %v6557, 7
      %v6643 = vsel %vm6604, %v6640, %v6642
      %v6644 = vrot.slane %v6558, 7
      %v6645 = vsel %vm6604, %v6642, %v6644
      %v6646 = vrot.slane %v6559, 7
      %v6647 = vsel %vm6604, %v6644, %v6646
      %v6648 = vrot.slane %v6560, 7
      %v6649 = vsel %vm6604, %v6646, %v6648
      %v6650 = vrot.slane %v6561, 7
      %v6651 = vsel %vm6604, %v6648, %v6650
      %v6652 = vrot.slane %v6562, 7
      %v6653 = vsel %vm6604, %v6650, %v6652
      %v6654 = vrot.slane %v6563, 7
      %v6655 = vsel %vm6604, %v6652, %v6654
      %v6656 = vrot.slane %v6564, 7
      %v6657 = vsel %vm6604, %v6654, %v6656
      %v6658 = vrot.slane %v6565, 7
      %v6659 = vsel %vm6604, %v6656, %v6658
      %v6660 = vrot.slane %v6566, 7
      %v6661 = vsel %vm6604, %v6658, %v6660
      %v6662 = vrot.slane %v6567, 7
      %v6663 = vsel %vm6604, %v6660, %v6662
      %v6664 = vrot.slane %v6568, 7
      %v6665 = vsel %vm6604, %v6662, %v6664
      %v6666 = vrot.slane %v6569, 7
      %v6667 = vsel %vm6604, %v6664, %v6666
      %v6668 = vrot.slane %v6570, 7
      %v6669 = vsel %vm6604, %v6666, %v6668
      %v6702 = vadd.f32 %v6501, %v6607
      %v6703 = vadd.f32 %v6502, %v6609
      %v6704 = vadd.f32 %v6503, %v6611
      %v6705 = vadd.f32 %v6504, %v6613
      %v6706 = vadd.f32 %v6505, %v6615
      %v6707 = vadd.f32 %v6506, %v6617
      %v6708 = vadd.f32 %v6507, %v6619
      %v6709 = vadd.f32 %v6508, %v6621
      %v6710 = vadd.f32 %v6509, %v6623
      %v6711 = vadd.f32 %v6510, %v6625
      %v6712 = vadd.f32 %v6511, %v6627
      %v6713 = vadd.f32 %v6512, %v6629
      %v6714 = vadd.f32 %v6513, %v6631
      %v6715 = vadd.f32 %v6514, %v6633
      %v6716 = vadd.f32 %v6515, %v6635
      %v6717 = vadd.f32 %v6516, %v6637
      %v6718 = vadd.f32 %v6517, %v6639
      %v6719 = vadd.f32 %v6518, %v6641
      %v6720 = vadd.f32 %v6519, %v6643
      %v6721 = vadd.f32 %v6520, %v6645
      %v6722 = vadd.f32 %v6521, %v6647
      %v6723 = vadd.f32 %v6522, %v6649
      %v6724 = vadd.f32 %v6523, %v6651
      %v6725 = vadd.f32 %v6524, %v6653
      %v6726 = vadd.f32 %v6525, %v6655
      %v6727 = vadd.f32 %v6526, %v6657
      %v6728 = vadd.f32 %v6527, %v6659
      %v6729 = vadd.f32 %v6528, %v6661
      %v6730 = vadd.f32 %v6529, %v6663
      %v6731 = vadd.f32 %v6530, %v6665
      %v6732 = vadd.f32 %v6531, %v6667
      %v6733 = vadd.f32 %v6532, %v6669
      %s6734 = scalar_lea.vmem %s5, 8
      %v6735 = vld [vmem:[%s6734] sm:$0x1]
      %v6737 = vperm.slane %v6735, 0
      %v6739 = vmul.f32 %v5291, %v6737
      %v6740 = vmul.f32 %v5197, %v6737
      %v6741 = vmul.f32 %v5199, %v6737
      %v6742 = vmul.f32 %v5201, %v6737
      %v6743 = vmul.f32 %v5203, %v6737
      %v6744 = vmul.f32 %v5205, %v6737
      %v6745 = vmul.f32 %v5207, %v6737
      %v6746 = vmul.f32 %v5209, %v6737
      %v6747 = vmul.f32 %v5211, %v6737
      %v6748 = vmul.f32 %v5213, %v6737
      %v6749 = vmul.f32 %v5215, %v6737
      %v6750 = vmul.f32 %v5217, %v6737
      %v6751 = vmul.f32 %v5219, %v6737
      %v6752 = vmul.f32 %v5221, %v6737
      %v6753 = vmul.f32 %v5223, %v6737
      %v6754 = vmul.f32 %v5225, %v6737
      %v6755 = vmul.f32 %v5227, %v6737
      %v6756 = vmul.f32 %v5229, %v6737
      %v6757 = vmul.f32 %v5231, %v6737
      %v6758 = vmul.f32 %v5233, %v6737
      %v6759 = vmul.f32 %v5235, %v6737
      %v6760 = vmul.f32 %v5237, %v6737
      %v6761 = vmul.f32 %v5239, %v6737
      %v6762 = vmul.f32 %v5241, %v6737
      %v6763 = vmul.f32 %v5243, %v6737
      %v6764 = vmul.f32 %v5245, %v6737
      %v6765 = vmul.f32 %v5247, %v6737
      %v6766 = vmul.f32 %v5249, %v6737
      %v6767 = vmul.f32 %v5251, %v6737
      %v6768 = vmul.f32 %v5253, %v6737
      %v6769 = vmul.f32 %v5255, %v6737
      %v6770 = vmul.f32 %v5257, %v6737
      %v6771 = vadd.f32 %v6702, %v6739
      %v6772 = vadd.f32 %v6703, %v6740
      %v6773 = vadd.f32 %v6704, %v6741
      %v6774 = vadd.f32 %v6705, %v6742
      %v6775 = vadd.f32 %v6706, %v6743
      %v6776 = vadd.f32 %v6707, %v6744
      %v6777 = vadd.f32 %v6708, %v6745
      %v6778 = vadd.f32 %v6709, %v6746
      %v6779 = vadd.f32 %v6710, %v6747
      %v6780 = vadd.f32 %v6711, %v6748
      %v6781 = vadd.f32 %v6712, %v6749
      %v6782 = vadd.f32 %v6713, %v6750
      %v6783 = vadd.f32 %v6714, %v6751
      %v6784 = vadd.f32 %v6715, %v6752
      %v6785 = vadd.f32 %v6716, %v6753
      %v6786 = vadd.f32 %v6717, %v6754
      %v6787 = vadd.f32 %v6718, %v6755
      %v6788 = vadd.f32 %v6719, %v6756
      %v6789 = vadd.f32 %v6720, %v6757
      %v6790 = vadd.f32 %v6721, %v6758
      %v6791 = vadd.f32 %v6722, %v6759
      %v6792 = vadd.f32 %v6723, %v6760
      %v6793 = vadd.f32 %v6724, %v6761
      %v6794 = vadd.f32 %v6725, %v6762
      %v6795 = vadd.f32 %v6726, %v6763
      %v6796 = vadd.f32 %v6727, %v6764
      %v6797 = vadd.f32 %v6728, %v6765
      %v6798 = vadd.f32 %v6729, %v6766
      %v6799 = vadd.f32 %v6730, %v6767
      %v6800 = vadd.f32 %v6731, %v6768
      %v6801 = vadd.f32 %v6732, %v6769
      %v6802 = vadd.f32 %v6733, %v6770
      %s6803 = scalar_lea.vmem %s5, 9
      %v6804 = vld [vmem:[%s6803] sm:$0x1]
      %v6806 = vperm.slane %v6804, 0
      %v6808 = vmul.f32 %v5291, %v6806
      %v6809 = vmul.f32 %v5197, %v6806
      %v6810 = vmul.f32 %v5199, %v6806
      %v6811 = vmul.f32 %v5201, %v6806
      %v6812 = vmul.f32 %v5203, %v6806
      %v6813 = vmul.f32 %v5205, %v6806
      %v6814 = vmul.f32 %v5207, %v6806
      %v6815 = vmul.f32 %v5209, %v6806
      %v6816 = vmul.f32 %v5211, %v6806
      %v6817 = vmul.f32 %v5213, %v6806
      %v6818 = vmul.f32 %v5215, %v6806
      %v6819 = vmul.f32 %v5217, %v6806
      %v6820 = vmul.f32 %v5219, %v6806
      %v6821 = vmul.f32 %v5221, %v6806
      %v6822 = vmul.f32 %v5223, %v6806
      %v6823 = vmul.f32 %v5225, %v6806
      %v6824 = vmul.f32 %v5227, %v6806
      %v6825 = vmul.f32 %v5229, %v6806
      %v6826 = vmul.f32 %v5231, %v6806
      %v6827 = vmul.f32 %v5233, %v6806
      %v6828 = vmul.f32 %v5235, %v6806
      %v6829 = vmul.f32 %v5237, %v6806
      %v6830 = vmul.f32 %v5239, %v6806
      %v6831 = vmul.f32 %v5241, %v6806
      %v6832 = vmul.f32 %v5243, %v6806
      %v6833 = vmul.f32 %v5245, %v6806
      %v6834 = vmul.f32 %v5247, %v6806
      %v6835 = vmul.f32 %v5249, %v6806
      %v6836 = vmul.f32 %v5251, %v6806
      %v6837 = vmul.f32 %v5253, %v6806
      %v6838 = vmul.f32 %v5255, %v6806
      %v6839 = vmul.f32 %v5257, %v6806
      %v6840 = vmul.f32 %v5292, %v6806
      %v6874 = vrot.slane %v6808, 1
      %v6875 = vrot.slane %v6809, 1
      %v6876 = vsel %vm5400, %v6874, %v6875
      %v6877 = vrot.slane %v6810, 1
      %v6878 = vsel %vm5400, %v6875, %v6877
      %v6879 = vrot.slane %v6811, 1
      %v6880 = vsel %vm5400, %v6877, %v6879
      %v6881 = vrot.slane %v6812, 1
      %v6882 = vsel %vm5400, %v6879, %v6881
      %v6883 = vrot.slane %v6813, 1
      %v6884 = vsel %vm5400, %v6881, %v6883
      %v6885 = vrot.slane %v6814, 1
      %v6886 = vsel %vm5400, %v6883, %v6885
      %v6887 = vrot.slane %v6815, 1
      %v6888 = vsel %vm5400, %v6885, %v6887
      %v6889 = vrot.slane %v6816, 1
      %v6890 = vsel %vm5400, %v6887, %v6889
      %v6891 = vrot.slane %v6817, 1
      %v6892 = vsel %vm5400, %v6889, %v6891
      %v6893 = vrot.slane %v6818, 1
      %v6894 = vsel %vm5400, %v6891, %v6893
      %v6895 = vrot.slane %v6819, 1
      %v6896 = vsel %vm5400, %v6893, %v6895
      %v6897 = vrot.slane %v6820, 1
      %v6898 = vsel %vm5400, %v6895, %v6897
      %v6899 = vrot.slane %v6821, 1
      %v6900 = vsel %vm5400, %v6897, %v6899
      %v6901 = vrot.slane %v6822, 1
      %v6902 = vsel %vm5400, %v6899, %v6901
      %v6903 = vrot.slane %v6823, 1
      %v6904 = vsel %vm5400, %v6901, %v6903
      %v6905 = vrot.slane %v6824, 1
      %v6906 = vsel %vm5400, %v6903, %v6905
      %v6907 = vrot.slane %v6825, 1
      %v6908 = vsel %vm5400, %v6905, %v6907
      %v6909 = vrot.slane %v6826, 1
      %v6910 = vsel %vm5400, %v6907, %v6909
      %v6911 = vrot.slane %v6827, 1
      %v6912 = vsel %vm5400, %v6909, %v6911
      %v6913 = vrot.slane %v6828, 1
      %v6914 = vsel %vm5400, %v6911, %v6913
      %v6915 = vrot.slane %v6829, 1
      %v6916 = vsel %vm5400, %v6913, %v6915
      %v6917 = vrot.slane %v6830, 1
      %v6918 = vsel %vm5400, %v6915, %v6917
      %v6919 = vrot.slane %v6831, 1
      %v6920 = vsel %vm5400, %v6917, %v6919
      %v6921 = vrot.slane %v6832, 1
      %v6922 = vsel %vm5400, %v6919, %v6921
      %v6923 = vrot.slane %v6833, 1
      %v6924 = vsel %vm5400, %v6921, %v6923
      %v6925 = vrot.slane %v6834, 1
      %v6926 = vsel %vm5400, %v6923, %v6925
      %v6927 = vrot.slane %v6835, 1
      %v6928 = vsel %vm5400, %v6925, %v6927
      %v6929 = vrot.slane %v6836, 1
      %v6930 = vsel %vm5400, %v6927, %v6929
      %v6931 = vrot.slane %v6837, 1
      %v6932 = vsel %vm5400, %v6929, %v6931
      %v6933 = vrot.slane %v6838, 1
      %v6934 = vsel %vm5400, %v6931, %v6933
      %v6935 = vrot.slane %v6839, 1
      %v6936 = vsel %vm5400, %v6933, %v6935
      %v6937 = vrot.slane %v6840, 1
      %v6938 = vsel %vm5400, %v6935, %v6937
      %v6971 = vadd.f32 %v6771, %v6876
      %v6972 = vadd.f32 %v6772, %v6878
      %v6973 = vadd.f32 %v6773, %v6880
      %v6974 = vadd.f32 %v6774, %v6882
      %v6975 = vadd.f32 %v6775, %v6884
      %v6976 = vadd.f32 %v6776, %v6886
      %v6977 = vadd.f32 %v6777, %v6888
      %v6978 = vadd.f32 %v6778, %v6890
      %v6979 = vadd.f32 %v6779, %v6892
      %v6980 = vadd.f32 %v6780, %v6894
      %v6981 = vadd.f32 %v6781, %v6896
      %v6982 = vadd.f32 %v6782, %v6898
      %v6983 = vadd.f32 %v6783, %v6900
      %v6984 = vadd.f32 %v6784, %v6902
      %v6985 = vadd.f32 %v6785, %v6904
      %v6986 = vadd.f32 %v6786, %v6906
      %v6987 = vadd.f32 %v6787, %v6908
      %v6988 = vadd.f32 %v6788, %v6910
      %v6989 = vadd.f32 %v6789, %v6912
      %v6990 = vadd.f32 %v6790, %v6914
      %v6991 = vadd.f32 %v6791, %v6916
      %v6992 = vadd.f32 %v6792, %v6918
      %v6993 = vadd.f32 %v6793, %v6920
      %v6994 = vadd.f32 %v6794, %v6922
      %v6995 = vadd.f32 %v6795, %v6924
      %v6996 = vadd.f32 %v6796, %v6926
      %v6997 = vadd.f32 %v6797, %v6928
      %v6998 = vadd.f32 %v6798, %v6930
      %v6999 = vadd.f32 %v6799, %v6932
      %v7000 = vadd.f32 %v6800, %v6934
      %v7001 = vadd.f32 %v6801, %v6936
      %v7002 = vadd.f32 %v6802, %v6938
      %s7003 = scalar_lea.vmem %s5, 10
      %v7004 = vld [vmem:[%s7003] sm:$0x1]
      %v7006 = vperm.slane %v7004, 0
      %v7008 = vmul.f32 %v5291, %v7006
      %v7009 = vmul.f32 %v5197, %v7006
      %v7010 = vmul.f32 %v5199, %v7006
      %v7011 = vmul.f32 %v5201, %v7006
      %v7012 = vmul.f32 %v5203, %v7006
      %v7013 = vmul.f32 %v5205, %v7006
      %v7014 = vmul.f32 %v5207, %v7006
      %v7015 = vmul.f32 %v5209, %v7006
      %v7016 = vmul.f32 %v5211, %v7006
      %v7017 = vmul.f32 %v5213, %v7006
      %v7018 = vmul.f32 %v5215, %v7006
      %v7019 = vmul.f32 %v5217, %v7006
      %v7020 = vmul.f32 %v5219, %v7006
      %v7021 = vmul.f32 %v5221, %v7006
      %v7022 = vmul.f32 %v5223, %v7006
      %v7023 = vmul.f32 %v5225, %v7006
      %v7024 = vmul.f32 %v5227, %v7006
      %v7025 = vmul.f32 %v5229, %v7006
      %v7026 = vmul.f32 %v5231, %v7006
      %v7027 = vmul.f32 %v5233, %v7006
      %v7028 = vmul.f32 %v5235, %v7006
      %v7029 = vmul.f32 %v5237, %v7006
      %v7030 = vmul.f32 %v5239, %v7006
      %v7031 = vmul.f32 %v5241, %v7006
      %v7032 = vmul.f32 %v5243, %v7006
      %v7033 = vmul.f32 %v5245, %v7006
      %v7034 = vmul.f32 %v5247, %v7006
      %v7035 = vmul.f32 %v5249, %v7006
      %v7036 = vmul.f32 %v5251, %v7006
      %v7037 = vmul.f32 %v5253, %v7006
      %v7038 = vmul.f32 %v5255, %v7006
      %v7039 = vmul.f32 %v5257, %v7006
      %v7040 = vmul.f32 %v5292, %v7006
      %v7074 = vrot.slane %v7008, 2
      %v7075 = vrot.slane %v7009, 2
      %v7076 = vsel %vm5601, %v7074, %v7075
      %v7077 = vrot.slane %v7010, 2
      %v7078 = vsel %vm5601, %v7075, %v7077
      %v7079 = vrot.slane %v7011, 2
      %v7080 = vsel %vm5601, %v7077, %v7079
      %v7081 = vrot.slane %v7012, 2
      %v7082 = vsel %vm5601, %v7079, %v7081
      %v7083 = vrot.slane %v7013, 2
      %v7084 = vsel %vm5601, %v7081, %v7083
      %v7085 = vrot.slane %v7014, 2
      %v7086 = vsel %vm5601, %v7083, %v7085
      %v7087 = vrot.slane %v7015, 2
      %v7088 = vsel %vm5601, %v7085, %v7087
      %v7089 = vrot.slane %v7016, 2
      %v7090 = vsel %vm5601, %v7087, %v7089
      %v7091 = vrot.slane %v7017, 2
      %v7092 = vsel %vm5601, %v7089, %v7091
      %v7093 = vrot.slane %v7018, 2
      %v7094 = vsel %vm5601, %v7091, %v7093
      %v7095 = vrot.slane %v7019, 2
      %v7096 = vsel %vm5601, %v7093, %v7095
      %v7097 = vrot.slane %v7020, 2
      %v7098 = vsel %vm5601, %v7095, %v7097
      %v7099 = vrot.slane %v7021, 2
      %v7100 = vsel %vm5601, %v7097, %v7099
      %v7101 = vrot.slane %v7022, 2
      %v7102 = vsel %vm5601, %v7099, %v7101
      %v7103 = vrot.slane %v7023, 2
      %v7104 = vsel %vm5601, %v7101, %v7103
      %v7105 = vrot.slane %v7024, 2
      %v7106 = vsel %vm5601, %v7103, %v7105
      %v7107 = vrot.slane %v7025, 2
      %v7108 = vsel %vm5601, %v7105, %v7107
      %v7109 = vrot.slane %v7026, 2
      %v7110 = vsel %vm5601, %v7107, %v7109
      %v7111 = vrot.slane %v7027, 2
      %v7112 = vsel %vm5601, %v7109, %v7111
      %v7113 = vrot.slane %v7028, 2
      %v7114 = vsel %vm5601, %v7111, %v7113
      %v7115 = vrot.slane %v7029, 2
      %v7116 = vsel %vm5601, %v7113, %v7115
      %v7117 = vrot.slane %v7030, 2
      %v7118 = vsel %vm5601, %v7115, %v7117
      %v7119 = vrot.slane %v7031, 2
      %v7120 = vsel %vm5601, %v7117, %v7119
      %v7121 = vrot.slane %v7032, 2
      %v7122 = vsel %vm5601, %v7119, %v7121
      %v7123 = vrot.slane %v7033, 2
      %v7124 = vsel %vm5601, %v7121, %v7123
      %v7125 = vrot.slane %v7034, 2
      %v7126 = vsel %vm5601, %v7123, %v7125
      %v7127 = vrot.slane %v7035, 2
      %v7128 = vsel %vm5601, %v7125, %v7127
      %v7129 = vrot.slane %v7036, 2
      %v7130 = vsel %vm5601, %v7127, %v7129
      %v7131 = vrot.slane %v7037, 2
      %v7132 = vsel %vm5601, %v7129, %v7131
      %v7133 = vrot.slane %v7038, 2
      %v7134 = vsel %vm5601, %v7131, %v7133
      %v7135 = vrot.slane %v7039, 2
      %v7136 = vsel %vm5601, %v7133, %v7135
      %v7137 = vrot.slane %v7040, 2
      %v7138 = vsel %vm5601, %v7135, %v7137
      %v7171 = vadd.f32 %v6971, %v7076
      %v7172 = vadd.f32 %v6972, %v7078
      %v7173 = vadd.f32 %v6973, %v7080
      %v7174 = vadd.f32 %v6974, %v7082
      %v7175 = vadd.f32 %v6975, %v7084
      %v7176 = vadd.f32 %v6976, %v7086
      %v7177 = vadd.f32 %v6977, %v7088
      %v7178 = vadd.f32 %v6978, %v7090
      %v7179 = vadd.f32 %v6979, %v7092
      %v7180 = vadd.f32 %v6980, %v7094
      %v7181 = vadd.f32 %v6981, %v7096
      %v7182 = vadd.f32 %v6982, %v7098
      %v7183 = vadd.f32 %v6983, %v7100
      %v7184 = vadd.f32 %v6984, %v7102
      %v7185 = vadd.f32 %v6985, %v7104
      %v7186 = vadd.f32 %v6986, %v7106
      %v7187 = vadd.f32 %v6987, %v7108
      %v7188 = vadd.f32 %v6988, %v7110
      %v7189 = vadd.f32 %v6989, %v7112
      %v7190 = vadd.f32 %v6990, %v7114
      %v7191 = vadd.f32 %v6991, %v7116
      %v7192 = vadd.f32 %v6992, %v7118
      %v7193 = vadd.f32 %v6993, %v7120
      %v7194 = vadd.f32 %v6994, %v7122
      %v7195 = vadd.f32 %v6995, %v7124
      %v7196 = vadd.f32 %v6996, %v7126
      %v7197 = vadd.f32 %v6997, %v7128
      %v7198 = vadd.f32 %v6998, %v7130
      %v7199 = vadd.f32 %v6999, %v7132
      %v7200 = vadd.f32 %v7000, %v7134
      %v7201 = vadd.f32 %v7001, %v7136
      %v7202 = vadd.f32 %v7002, %v7138
      %s7203 = scalar_lea.vmem %s5, 11
      %v7204 = vld [vmem:[%s7203] sm:$0x1]
      %v7206 = vperm.slane %v7204, 0
      %v7208 = vmul.f32 %v5291, %v7206
      %v7209 = vmul.f32 %v5197, %v7206
      %v7210 = vmul.f32 %v5199, %v7206
      %v7211 = vmul.f32 %v5201, %v7206
      %v7212 = vmul.f32 %v5203, %v7206
      %v7213 = vmul.f32 %v5205, %v7206
      %v7214 = vmul.f32 %v5207, %v7206
      %v7215 = vmul.f32 %v5209, %v7206
      %v7216 = vmul.f32 %v5211, %v7206
      %v7217 = vmul.f32 %v5213, %v7206
      %v7218 = vmul.f32 %v5215, %v7206
      %v7219 = vmul.f32 %v5217, %v7206
      %v7220 = vmul.f32 %v5219, %v7206
      %v7221 = vmul.f32 %v5221, %v7206
      %v7222 = vmul.f32 %v5223, %v7206
      %v7223 = vmul.f32 %v5225, %v7206
      %v7224 = vmul.f32 %v5227, %v7206
      %v7225 = vmul.f32 %v5229, %v7206
      %v7226 = vmul.f32 %v5231, %v7206
      %v7227 = vmul.f32 %v5233, %v7206
      %v7228 = vmul.f32 %v5235, %v7206
      %v7229 = vmul.f32 %v5237, %v7206
      %v7230 = vmul.f32 %v5239, %v7206
      %v7231 = vmul.f32 %v5241, %v7206
      %v7232 = vmul.f32 %v5243, %v7206
      %v7233 = vmul.f32 %v5245, %v7206
      %v7234 = vmul.f32 %v5247, %v7206
      %v7235 = vmul.f32 %v5249, %v7206
      %v7236 = vmul.f32 %v5251, %v7206
      %v7237 = vmul.f32 %v5253, %v7206
      %v7238 = vmul.f32 %v5255, %v7206
      %v7239 = vmul.f32 %v5257, %v7206
      %v7240 = vmul.f32 %v5292, %v7206
      %v7274 = vrot.slane %v7208, 3
      %v7275 = vrot.slane %v7209, 3
      %v7276 = vsel %vm5802, %v7274, %v7275
      %v7277 = vrot.slane %v7210, 3
      %v7278 = vsel %vm5802, %v7275, %v7277
      %v7279 = vrot.slane %v7211, 3
      %v7280 = vsel %vm5802, %v7277, %v7279
      %v7281 = vrot.slane %v7212, 3
      %v7282 = vsel %vm5802, %v7279, %v7281
      %v7283 = vrot.slane %v7213, 3
      %v7284 = vsel %vm5802, %v7281, %v7283
      %v7285 = vrot.slane %v7214, 3
      %v7286 = vsel %vm5802, %v7283, %v7285
      %v7287 = vrot.slane %v7215, 3
      %v7288 = vsel %vm5802, %v7285, %v7287
      %v7289 = vrot.slane %v7216, 3
      %v7290 = vsel %vm5802, %v7287, %v7289
      %v7291 = vrot.slane %v7217, 3
      %v7292 = vsel %vm5802, %v7289, %v7291
      %v7293 = vrot.slane %v7218, 3
      %v7294 = vsel %vm5802, %v7291, %v7293
      %v7295 = vrot.slane %v7219, 3
      %v7296 = vsel %vm5802, %v7293, %v7295
      %v7297 = vrot.slane %v7220, 3
      %v7298 = vsel %vm5802, %v7295, %v7297
      %v7299 = vrot.slane %v7221, 3
      %v7300 = vsel %vm5802, %v7297, %v7299
      %v7301 = vrot.slane %v7222, 3
      %v7302 = vsel %vm5802, %v7299, %v7301
      %v7303 = vrot.slane %v7223, 3
      %v7304 = vsel %vm5802, %v7301, %v7303
      %v7305 = vrot.slane %v7224, 3
      %v7306 = vsel %vm5802, %v7303, %v7305
      %v7307 = vrot.slane %v7225, 3
      %v7308 = vsel %vm5802, %v7305, %v7307
      %v7309 = vrot.slane %v7226, 3
      %v7310 = vsel %vm5802, %v7307, %v7309
      %v7311 = vrot.slane %v7227, 3
      %v7312 = vsel %vm5802, %v7309, %v7311
      %v7313 = vrot.slane %v7228, 3
      %v7314 = vsel %vm5802, %v7311, %v7313
      %v7315 = vrot.slane %v7229, 3
      %v7316 = vsel %vm5802, %v7313, %v7315
      %v7317 = vrot.slane %v7230, 3
      %v7318 = vsel %vm5802, %v7315, %v7317
      %v7319 = vrot.slane %v7231, 3
      %v7320 = vsel %vm5802, %v7317, %v7319
      %v7321 = vrot.slane %v7232, 3
      %v7322 = vsel %vm5802, %v7319, %v7321
      %v7323 = vrot.slane %v7233, 3
      %v7324 = vsel %vm5802, %v7321, %v7323
      %v7325 = vrot.slane %v7234, 3
      %v7326 = vsel %vm5802, %v7323, %v7325
      %v7327 = vrot.slane %v7235, 3
      %v7328 = vsel %vm5802, %v7325, %v7327
      %v7329 = vrot.slane %v7236, 3
      %v7330 = vsel %vm5802, %v7327, %v7329
      %v7331 = vrot.slane %v7237, 3
      %v7332 = vsel %vm5802, %v7329, %v7331
      %v7333 = vrot.slane %v7238, 3
      %v7334 = vsel %vm5802, %v7331, %v7333
      %v7335 = vrot.slane %v7239, 3
      %v7336 = vsel %vm5802, %v7333, %v7335
      %v7337 = vrot.slane %v7240, 3
      %v7338 = vsel %vm5802, %v7335, %v7337
      %v7371 = vadd.f32 %v7171, %v7276
      %v7372 = vadd.f32 %v7172, %v7278
      %v7373 = vadd.f32 %v7173, %v7280
      %v7374 = vadd.f32 %v7174, %v7282
      %v7375 = vadd.f32 %v7175, %v7284
      %v7376 = vadd.f32 %v7176, %v7286
      %v7377 = vadd.f32 %v7177, %v7288
      %v7378 = vadd.f32 %v7178, %v7290
      %v7379 = vadd.f32 %v7179, %v7292
      %v7380 = vadd.f32 %v7180, %v7294
      %v7381 = vadd.f32 %v7181, %v7296
      %v7382 = vadd.f32 %v7182, %v7298
      %v7383 = vadd.f32 %v7183, %v7300
      %v7384 = vadd.f32 %v7184, %v7302
      %v7385 = vadd.f32 %v7185, %v7304
      %v7386 = vadd.f32 %v7186, %v7306
      %v7387 = vadd.f32 %v7187, %v7308
      %v7388 = vadd.f32 %v7188, %v7310
      %v7389 = vadd.f32 %v7189, %v7312
      %v7390 = vadd.f32 %v7190, %v7314
      %v7391 = vadd.f32 %v7191, %v7316
      %v7392 = vadd.f32 %v7192, %v7318
      %v7393 = vadd.f32 %v7193, %v7320
      %v7394 = vadd.f32 %v7194, %v7322
      %v7395 = vadd.f32 %v7195, %v7324
      %v7396 = vadd.f32 %v7196, %v7326
      %v7397 = vadd.f32 %v7197, %v7328
      %v7398 = vadd.f32 %v7198, %v7330
      %v7399 = vadd.f32 %v7199, %v7332
      %v7400 = vadd.f32 %v7200, %v7334
      %v7401 = vadd.f32 %v7201, %v7336
      %v7402 = vadd.f32 %v7202, %v7338
      %s7403 = scalar_lea.vmem %s5, 12
      %v7404 = vld [vmem:[%s7403] sm:$0x1]
      %v7406 = vperm.slane %v7404, 0
      %v7408 = vmul.f32 %v5291, %v7406
      %v7409 = vmul.f32 %v5197, %v7406
      %v7410 = vmul.f32 %v5199, %v7406
      %v7411 = vmul.f32 %v5201, %v7406
      %v7412 = vmul.f32 %v5203, %v7406
      %v7413 = vmul.f32 %v5205, %v7406
      %v7414 = vmul.f32 %v5207, %v7406
      %v7415 = vmul.f32 %v5209, %v7406
      %v7416 = vmul.f32 %v5211, %v7406
      %v7417 = vmul.f32 %v5213, %v7406
      %v7418 = vmul.f32 %v5215, %v7406
      %v7419 = vmul.f32 %v5217, %v7406
      %v7420 = vmul.f32 %v5219, %v7406
      %v7421 = vmul.f32 %v5221, %v7406
      %v7422 = vmul.f32 %v5223, %v7406
      %v7423 = vmul.f32 %v5225, %v7406
      %v7424 = vmul.f32 %v5227, %v7406
      %v7425 = vmul.f32 %v5229, %v7406
      %v7426 = vmul.f32 %v5231, %v7406
      %v7427 = vmul.f32 %v5233, %v7406
      %v7428 = vmul.f32 %v5235, %v7406
      %v7429 = vmul.f32 %v5237, %v7406
      %v7430 = vmul.f32 %v5239, %v7406
      %v7431 = vmul.f32 %v5241, %v7406
      %v7432 = vmul.f32 %v5243, %v7406
      %v7433 = vmul.f32 %v5245, %v7406
      %v7434 = vmul.f32 %v5247, %v7406
      %v7435 = vmul.f32 %v5249, %v7406
      %v7436 = vmul.f32 %v5251, %v7406
      %v7437 = vmul.f32 %v5253, %v7406
      %v7438 = vmul.f32 %v5255, %v7406
      %v7439 = vmul.f32 %v5257, %v7406
      %v7440 = vmul.f32 %v5292, %v7406
      %v7474 = vrot.slane %v7408, 4
      %v7475 = vrot.slane %v7409, 4
      %v7476 = vsel %vm427, %v7474, %v7475
      %v7477 = vrot.slane %v7410, 4
      %v7478 = vsel %vm427, %v7475, %v7477
      %v7479 = vrot.slane %v7411, 4
      %v7480 = vsel %vm427, %v7477, %v7479
      %v7481 = vrot.slane %v7412, 4
      %v7482 = vsel %vm427, %v7479, %v7481
      %v7483 = vrot.slane %v7413, 4
      %v7484 = vsel %vm427, %v7481, %v7483
      %v7485 = vrot.slane %v7414, 4
      %v7486 = vsel %vm427, %v7483, %v7485
      %v7487 = vrot.slane %v7415, 4
      %v7488 = vsel %vm427, %v7485, %v7487
      %v7489 = vrot.slane %v7416, 4
      %v7490 = vsel %vm427, %v7487, %v7489
      %v7491 = vrot.slane %v7417, 4
      %v7492 = vsel %vm427, %v7489, %v7491
      %v7493 = vrot.slane %v7418, 4
      %v7494 = vsel %vm427, %v7491, %v7493
      %v7495 = vrot.slane %v7419, 4
      %v7496 = vsel %vm427, %v7493, %v7495
      %v7497 = vrot.slane %v7420, 4
      %v7498 = vsel %vm427, %v7495, %v7497
      %v7499 = vrot.slane %v7421, 4
      %v7500 = vsel %vm427, %v7497, %v7499
      %v7501 = vrot.slane %v7422, 4
      %v7502 = vsel %vm427, %v7499, %v7501
      %v7503 = vrot.slane %v7423, 4
      %v7504 = vsel %vm427, %v7501, %v7503
      %v7505 = vrot.slane %v7424, 4
      %v7506 = vsel %vm427, %v7503, %v7505
      %v7507 = vrot.slane %v7425, 4
      %v7508 = vsel %vm427, %v7505, %v7507
      %v7509 = vrot.slane %v7426, 4
      %v7510 = vsel %vm427, %v7507, %v7509
      %v7511 = vrot.slane %v7427, 4
      %v7512 = vsel %vm427, %v7509, %v7511
      %v7513 = vrot.slane %v7428, 4
      %v7514 = vsel %vm427, %v7511, %v7513
      %v7515 = vrot.slane %v7429, 4
      %v7516 = vsel %vm427, %v7513, %v7515
      %v7517 = vrot.slane %v7430, 4
      %v7518 = vsel %vm427, %v7515, %v7517
      %v7519 = vrot.slane %v7431, 4
      %v7520 = vsel %vm427, %v7517, %v7519
      %v7521 = vrot.slane %v7432, 4
      %v7522 = vsel %vm427, %v7519, %v7521
      %v7523 = vrot.slane %v7433, 4
      %v7524 = vsel %vm427, %v7521, %v7523
      %v7525 = vrot.slane %v7434, 4
      %v7526 = vsel %vm427, %v7523, %v7525
      %v7527 = vrot.slane %v7435, 4
      %v7528 = vsel %vm427, %v7525, %v7527
      %v7529 = vrot.slane %v7436, 4
      %v7530 = vsel %vm427, %v7527, %v7529
      %v7531 = vrot.slane %v7437, 4
      %v7532 = vsel %vm427, %v7529, %v7531
      %v7533 = vrot.slane %v7438, 4
      %v7534 = vsel %vm427, %v7531, %v7533
      %v7535 = vrot.slane %v7439, 4
      %v7536 = vsel %vm427, %v7533, %v7535
      %v7537 = vrot.slane %v7440, 4
      %v7538 = vsel %vm427, %v7535, %v7537
      %v7571 = vadd.f32 %v7371, %v7476
      %v7572 = vadd.f32 %v7372, %v7478
      %v7573 = vadd.f32 %v7373, %v7480
      %v7574 = vadd.f32 %v7374, %v7482
      %v7575 = vadd.f32 %v7375, %v7484
      %v7576 = vadd.f32 %v7376, %v7486
      %v7577 = vadd.f32 %v7377, %v7488
      %v7578 = vadd.f32 %v7378, %v7490
      %v7579 = vadd.f32 %v7379, %v7492
      %v7580 = vadd.f32 %v7380, %v7494
      %v7581 = vadd.f32 %v7381, %v7496
      %v7582 = vadd.f32 %v7382, %v7498
      %v7583 = vadd.f32 %v7383, %v7500
      %v7584 = vadd.f32 %v7384, %v7502
      %v7585 = vadd.f32 %v7385, %v7504
      %v7586 = vadd.f32 %v7386, %v7506
      %v7587 = vadd.f32 %v7387, %v7508
      %v7588 = vadd.f32 %v7388, %v7510
      %v7589 = vadd.f32 %v7389, %v7512
      %v7590 = vadd.f32 %v7390, %v7514
      %v7591 = vadd.f32 %v7391, %v7516
      %v7592 = vadd.f32 %v7392, %v7518
      %v7593 = vadd.f32 %v7393, %v7520
      %v7594 = vadd.f32 %v7394, %v7522
      %v7595 = vadd.f32 %v7395, %v7524
      %v7596 = vadd.f32 %v7396, %v7526
      %v7597 = vadd.f32 %v7397, %v7528
      %v7598 = vadd.f32 %v7398, %v7530
      %v7599 = vadd.f32 %v7399, %v7532
      %v7600 = vadd.f32 %v7400, %v7534
      %v7601 = vadd.f32 %v7401, %v7536
      %v7602 = vadd.f32 %v7402, %v7538
      %s7603 = scalar_lea.vmem %s5, 13
      %v7604 = vld [vmem:[%s7603] sm:$0x1]
      %v7606 = vperm.slane %v7604, 0
      %v7608 = vmul.f32 %v5291, %v7606
      %v7609 = vmul.f32 %v5197, %v7606
      %v7610 = vmul.f32 %v5199, %v7606
      %v7611 = vmul.f32 %v5201, %v7606
      %v7612 = vmul.f32 %v5203, %v7606
      %v7613 = vmul.f32 %v5205, %v7606
      %v7614 = vmul.f32 %v5207, %v7606
      %v7615 = vmul.f32 %v5209, %v7606
      %v7616 = vmul.f32 %v5211, %v7606
      %v7617 = vmul.f32 %v5213, %v7606
      %v7618 = vmul.f32 %v5215, %v7606
      %v7619 = vmul.f32 %v5217, %v7606
      %v7620 = vmul.f32 %v5219, %v7606
      %v7621 = vmul.f32 %v5221, %v7606
      %v7622 = vmul.f32 %v5223, %v7606
      %v7623 = vmul.f32 %v5225, %v7606
      %v7624 = vmul.f32 %v5227, %v7606
      %v7625 = vmul.f32 %v5229, %v7606
      %v7626 = vmul.f32 %v5231, %v7606
      %v7627 = vmul.f32 %v5233, %v7606
      %v7628 = vmul.f32 %v5235, %v7606
      %v7629 = vmul.f32 %v5237, %v7606
      %v7630 = vmul.f32 %v5239, %v7606
      %v7631 = vmul.f32 %v5241, %v7606
      %v7632 = vmul.f32 %v5243, %v7606
      %v7633 = vmul.f32 %v5245, %v7606
      %v7634 = vmul.f32 %v5247, %v7606
      %v7635 = vmul.f32 %v5249, %v7606
      %v7636 = vmul.f32 %v5251, %v7606
      %v7637 = vmul.f32 %v5253, %v7606
      %v7638 = vmul.f32 %v5255, %v7606
      %v7639 = vmul.f32 %v5257, %v7606
      %v7640 = vmul.f32 %v5292, %v7606
      %v7674 = vrot.slane %v7608, 5
      %v7675 = vrot.slane %v7609, 5
      %v7676 = vsel %vm6203, %v7674, %v7675
      %v7677 = vrot.slane %v7610, 5
      %v7678 = vsel %vm6203, %v7675, %v7677
      %v7679 = vrot.slane %v7611, 5
      %v7680 = vsel %vm6203, %v7677, %v7679
      %v7681 = vrot.slane %v7612, 5
      %v7682 = vsel %vm6203, %v7679, %v7681
      %v7683 = vrot.slane %v7613, 5
      %v7684 = vsel %vm6203, %v7681, %v7683
      %v7685 = vrot.slane %v7614, 5
      %v7686 = vsel %vm6203, %v7683, %v7685
      %v7687 = vrot.slane %v7615, 5
      %v7688 = vsel %vm6203, %v7685, %v7687
      %v7689 = vrot.slane %v7616, 5
      %v7690 = vsel %vm6203, %v7687, %v7689
      %v7691 = vrot.slane %v7617, 5
      %v7692 = vsel %vm6203, %v7689, %v7691
      %v7693 = vrot.slane %v7618, 5
      %v7694 = vsel %vm6203, %v7691, %v7693
      %v7695 = vrot.slane %v7619, 5
      %v7696 = vsel %vm6203, %v7693, %v7695
      %v7697 = vrot.slane %v7620, 5
      %v7698 = vsel %vm6203, %v7695, %v7697
      %v7699 = vrot.slane %v7621, 5
      %v7700 = vsel %vm6203, %v7697, %v7699
      %v7701 = vrot.slane %v7622, 5
      %v7702 = vsel %vm6203, %v7699, %v7701
      %v7703 = vrot.slane %v7623, 5
      %v7704 = vsel %vm6203, %v7701, %v7703
      %v7705 = vrot.slane %v7624, 5
      %v7706 = vsel %vm6203, %v7703, %v7705
      %v7707 = vrot.slane %v7625, 5
      %v7708 = vsel %vm6203, %v7705, %v7707
      %v7709 = vrot.slane %v7626, 5
      %v7710 = vsel %vm6203, %v7707, %v7709
      %v7711 = vrot.slane %v7627, 5
      %v7712 = vsel %vm6203, %v7709, %v7711
      %v7713 = vrot.slane %v7628, 5
      %v7714 = vsel %vm6203, %v7711, %v7713
      %v7715 = vrot.slane %v7629, 5
      %v7716 = vsel %vm6203, %v7713, %v7715
      %v7717 = vrot.slane %v7630, 5
      %v7718 = vsel %vm6203, %v7715, %v7717
      %v7719 = vrot.slane %v7631, 5
      %v7720 = vsel %vm6203, %v7717, %v7719
      %v7721 = vrot.slane %v7632, 5
      %v7722 = vsel %vm6203, %v7719, %v7721
      %v7723 = vrot.slane %v7633, 5
      %v7724 = vsel %vm6203, %v7721, %v7723
      %v7725 = vrot.slane %v7634, 5
      %v7726 = vsel %vm6203, %v7723, %v7725
      %v7727 = vrot.slane %v7635, 5
      %v7728 = vsel %vm6203, %v7725, %v7727
      %v7729 = vrot.slane %v7636, 5
      %v7730 = vsel %vm6203, %v7727, %v7729
      %v7731 = vrot.slane %v7637, 5
      %v7732 = vsel %vm6203, %v7729, %v7731
      %v7733 = vrot.slane %v7638, 5
      %v7734 = vsel %vm6203, %v7731, %v7733
      %v7735 = vrot.slane %v7639, 5
      %v7736 = vsel %vm6203, %v7733, %v7735
      %v7737 = vrot.slane %v7640, 5
      %v7738 = vsel %vm6203, %v7735, %v7737
      %v7771 = vadd.f32 %v7571, %v7676
      %v7772 = vadd.f32 %v7572, %v7678
      %v7773 = vadd.f32 %v7573, %v7680
      %v7774 = vadd.f32 %v7574, %v7682
      %v7775 = vadd.f32 %v7575, %v7684
      %v7776 = vadd.f32 %v7576, %v7686
      %v7777 = vadd.f32 %v7577, %v7688
      %v7778 = vadd.f32 %v7578, %v7690
      %v7779 = vadd.f32 %v7579, %v7692
      %v7780 = vadd.f32 %v7580, %v7694
      %v7781 = vadd.f32 %v7581, %v7696
      %v7782 = vadd.f32 %v7582, %v7698
      %v7783 = vadd.f32 %v7583, %v7700
      %v7784 = vadd.f32 %v7584, %v7702
      %v7785 = vadd.f32 %v7585, %v7704
      %v7786 = vadd.f32 %v7586, %v7706
      %v7787 = vadd.f32 %v7587, %v7708
      %v7788 = vadd.f32 %v7588, %v7710
      %v7789 = vadd.f32 %v7589, %v7712
      %v7790 = vadd.f32 %v7590, %v7714
      %v7791 = vadd.f32 %v7591, %v7716
      %v7792 = vadd.f32 %v7592, %v7718
      %v7793 = vadd.f32 %v7593, %v7720
      %v7794 = vadd.f32 %v7594, %v7722
      %v7795 = vadd.f32 %v7595, %v7724
      %v7796 = vadd.f32 %v7596, %v7726
      %v7797 = vadd.f32 %v7597, %v7728
      %v7798 = vadd.f32 %v7598, %v7730
      %v7799 = vadd.f32 %v7599, %v7732
      %v7800 = vadd.f32 %v7600, %v7734
      %v7801 = vadd.f32 %v7601, %v7736
      %v7802 = vadd.f32 %v7602, %v7738
      %s7803 = scalar_lea.vmem %s5, 14
      %v7804 = vld [vmem:[%s7803] sm:$0x1]
      %v7806 = vperm.slane %v7804, 0
      %v7808 = vmul.f32 %v5291, %v7806
      %v7809 = vmul.f32 %v5197, %v7806
      %v7810 = vmul.f32 %v5199, %v7806
      %v7811 = vmul.f32 %v5201, %v7806
      %v7812 = vmul.f32 %v5203, %v7806
      %v7813 = vmul.f32 %v5205, %v7806
      %v7814 = vmul.f32 %v5207, %v7806
      %v7815 = vmul.f32 %v5209, %v7806
      %v7816 = vmul.f32 %v5211, %v7806
      %v7817 = vmul.f32 %v5213, %v7806
      %v7818 = vmul.f32 %v5215, %v7806
      %v7819 = vmul.f32 %v5217, %v7806
      %v7820 = vmul.f32 %v5219, %v7806
      %v7821 = vmul.f32 %v5221, %v7806
      %v7822 = vmul.f32 %v5223, %v7806
      %v7823 = vmul.f32 %v5225, %v7806
      %v7824 = vmul.f32 %v5227, %v7806
      %v7825 = vmul.f32 %v5229, %v7806
      %v7826 = vmul.f32 %v5231, %v7806
      %v7827 = vmul.f32 %v5233, %v7806
      %v7828 = vmul.f32 %v5235, %v7806
      %v7829 = vmul.f32 %v5237, %v7806
      %v7830 = vmul.f32 %v5239, %v7806
      %v7831 = vmul.f32 %v5241, %v7806
      %v7832 = vmul.f32 %v5243, %v7806
      %v7833 = vmul.f32 %v5245, %v7806
      %v7834 = vmul.f32 %v5247, %v7806
      %v7835 = vmul.f32 %v5249, %v7806
      %v7836 = vmul.f32 %v5251, %v7806
      %v7837 = vmul.f32 %v5253, %v7806
      %v7838 = vmul.f32 %v5255, %v7806
      %v7839 = vmul.f32 %v5257, %v7806
      %v7840 = vmul.f32 %v5292, %v7806
      %v7874 = vrot.slane %v7808, 6
      %v7875 = vrot.slane %v7809, 6
      %v7876 = vsel %vm632, %v7874, %v7875
      %v7877 = vrot.slane %v7810, 6
      %v7878 = vsel %vm632, %v7875, %v7877
      %v7879 = vrot.slane %v7811, 6
      %v7880 = vsel %vm632, %v7877, %v7879
      %v7881 = vrot.slane %v7812, 6
      %v7882 = vsel %vm632, %v7879, %v7881
      %v7883 = vrot.slane %v7813, 6
      %v7884 = vsel %vm632, %v7881, %v7883
      %v7885 = vrot.slane %v7814, 6
      %v7886 = vsel %vm632, %v7883, %v7885
      %v7887 = vrot.slane %v7815, 6
      %v7888 = vsel %vm632, %v7885, %v7887
      %v7889 = vrot.slane %v7816, 6
      %v7890 = vsel %vm632, %v7887, %v7889
      %v7891 = vrot.slane %v7817, 6
      %v7892 = vsel %vm632, %v7889, %v7891
      %v7893 = vrot.slane %v7818, 6
      %v7894 = vsel %vm632, %v7891, %v7893
      %v7895 = vrot.slane %v7819, 6
      %v7896 = vsel %vm632, %v7893, %v7895
      %v7897 = vrot.slane %v7820, 6
      %v7898 = vsel %vm632, %v7895, %v7897
      %v7899 = vrot.slane %v7821, 6
      %v7900 = vsel %vm632, %v7897, %v7899
      %v7901 = vrot.slane %v7822, 6
      %v7902 = vsel %vm632, %v7899, %v7901
      %v7903 = vrot.slane %v7823, 6
      %v7904 = vsel %vm632, %v7901, %v7903
      %v7905 = vrot.slane %v7824, 6
      %v7906 = vsel %vm632, %v7903, %v7905
      %v7907 = vrot.slane %v7825, 6
      %v7908 = vsel %vm632, %v7905, %v7907
      %v7909 = vrot.slane %v7826, 6
      %v7910 = vsel %vm632, %v7907, %v7909
      %v7911 = vrot.slane %v7827, 6
      %v7912 = vsel %vm632, %v7909, %v7911
      %v7913 = vrot.slane %v7828, 6
      %v7914 = vsel %vm632, %v7911, %v7913
      %v7915 = vrot.slane %v7829, 6
      %v7916 = vsel %vm632, %v7913, %v7915
      %v7917 = vrot.slane %v7830, 6
      %v7918 = vsel %vm632, %v7915, %v7917
      %v7919 = vrot.slane %v7831, 6
      %v7920 = vsel %vm632, %v7917, %v7919
      %v7921 = vrot.slane %v7832, 6
      %v7922 = vsel %vm632, %v7919, %v7921
      %v7923 = vrot.slane %v7833, 6
      %v7924 = vsel %vm632, %v7921, %v7923
      %v7925 = vrot.slane %v7834, 6
      %v7926 = vsel %vm632, %v7923, %v7925
      %v7927 = vrot.slane %v7835, 6
      %v7928 = vsel %vm632, %v7925, %v7927
      %v7929 = vrot.slane %v7836, 6
      %v7930 = vsel %vm632, %v7927, %v7929
      %v7931 = vrot.slane %v7837, 6
      %v7932 = vsel %vm632, %v7929, %v7931
      %v7933 = vrot.slane %v7838, 6
      %v7934 = vsel %vm632, %v7931, %v7933
      %v7935 = vrot.slane %v7839, 6
      %v7936 = vsel %vm632, %v7933, %v7935
      %v7937 = vrot.slane %v7840, 6
      %v7938 = vsel %vm632, %v7935, %v7937
      %v7971 = vadd.f32 %v7771, %v7876
      %v7972 = vadd.f32 %v7772, %v7878
      %v7973 = vadd.f32 %v7773, %v7880
      %v7974 = vadd.f32 %v7774, %v7882
      %v7975 = vadd.f32 %v7775, %v7884
      %v7976 = vadd.f32 %v7776, %v7886
      %v7977 = vadd.f32 %v7777, %v7888
      %v7978 = vadd.f32 %v7778, %v7890
      %v7979 = vadd.f32 %v7779, %v7892
      %v7980 = vadd.f32 %v7780, %v7894
      %v7981 = vadd.f32 %v7781, %v7896
      %v7982 = vadd.f32 %v7782, %v7898
      %v7983 = vadd.f32 %v7783, %v7900
      %v7984 = vadd.f32 %v7784, %v7902
      %v7985 = vadd.f32 %v7785, %v7904
      %v7986 = vadd.f32 %v7786, %v7906
      %v7987 = vadd.f32 %v7787, %v7908
      %v7988 = vadd.f32 %v7788, %v7910
      %v7989 = vadd.f32 %v7789, %v7912
      %v7990 = vadd.f32 %v7790, %v7914
      %v7991 = vadd.f32 %v7791, %v7916
      %v7992 = vadd.f32 %v7792, %v7918
      %v7993 = vadd.f32 %v7793, %v7920
      %v7994 = vadd.f32 %v7794, %v7922
      %v7995 = vadd.f32 %v7795, %v7924
      %v7996 = vadd.f32 %v7796, %v7926
      %v7997 = vadd.f32 %v7797, %v7928
      %v7998 = vadd.f32 %v7798, %v7930
      %v7999 = vadd.f32 %v7799, %v7932
      %v8000 = vadd.f32 %v7800, %v7934
      %v8001 = vadd.f32 %v7801, %v7936
      %v8002 = vadd.f32 %v7802, %v7938
      %s8003 = scalar_lea.vmem %s5, 15
      %v8004 = vld [vmem:[%s8003] sm:$0x1]
      %v8006 = vperm.slane %v8004, 0
      %v8008 = vmul.f32 %v5291, %v8006
      %v8009 = vmul.f32 %v5197, %v8006
      %v8010 = vmul.f32 %v5199, %v8006
      %v8011 = vmul.f32 %v5201, %v8006
      %v8012 = vmul.f32 %v5203, %v8006
      %v8013 = vmul.f32 %v5205, %v8006
      %v8014 = vmul.f32 %v5207, %v8006
      %v8015 = vmul.f32 %v5209, %v8006
      %v8016 = vmul.f32 %v5211, %v8006
      %v8017 = vmul.f32 %v5213, %v8006
      %v8018 = vmul.f32 %v5215, %v8006
      %v8019 = vmul.f32 %v5217, %v8006
      %v8020 = vmul.f32 %v5219, %v8006
      %v8021 = vmul.f32 %v5221, %v8006
      %v8022 = vmul.f32 %v5223, %v8006
      %v8023 = vmul.f32 %v5225, %v8006
      %v8024 = vmul.f32 %v5227, %v8006
      %v8025 = vmul.f32 %v5229, %v8006
      %v8026 = vmul.f32 %v5231, %v8006
      %v8027 = vmul.f32 %v5233, %v8006
      %v8028 = vmul.f32 %v5235, %v8006
      %v8029 = vmul.f32 %v5237, %v8006
      %v8030 = vmul.f32 %v5239, %v8006
      %v8031 = vmul.f32 %v5241, %v8006
      %v8032 = vmul.f32 %v5243, %v8006
      %v8033 = vmul.f32 %v5245, %v8006
      %v8034 = vmul.f32 %v5247, %v8006
      %v8035 = vmul.f32 %v5249, %v8006
      %v8036 = vmul.f32 %v5251, %v8006
      %v8037 = vmul.f32 %v5253, %v8006
      %v8038 = vmul.f32 %v5255, %v8006
      %v8039 = vmul.f32 %v5257, %v8006
      %v8040 = vmul.f32 %v5292, %v8006
      %v8074 = vrot.slane %v8008, 7
      %v8075 = vrot.slane %v8009, 7
      %v8076 = vsel %vm6604, %v8074, %v8075
      %v8077 = vrot.slane %v8010, 7
      %v8078 = vsel %vm6604, %v8075, %v8077
      %v8079 = vrot.slane %v8011, 7
      %v8080 = vsel %vm6604, %v8077, %v8079
      %v8081 = vrot.slane %v8012, 7
      %v8082 = vsel %vm6604, %v8079, %v8081
      %v8083 = vrot.slane %v8013, 7
      %v8084 = vsel %vm6604, %v8081, %v8083
      %v8085 = vrot.slane %v8014, 7
      %v8086 = vsel %vm6604, %v8083, %v8085
      %v8087 = vrot.slane %v8015, 7
      %v8088 = vsel %vm6604, %v8085, %v8087
      %v8089 = vrot.slane %v8016, 7
      %v8090 = vsel %vm6604, %v8087, %v8089
      %v8091 = vrot.slane %v8017, 7
      %v8092 = vsel %vm6604, %v8089, %v8091
      %v8093 = vrot.slane %v8018, 7
      %v8094 = vsel %vm6604, %v8091, %v8093
      %v8095 = vrot.slane %v8019, 7
      %v8096 = vsel %vm6604, %v8093, %v8095
      %v8097 = vrot.slane %v8020, 7
      %v8098 = vsel %vm6604, %v8095, %v8097
      %v8099 = vrot.slane %v8021, 7
      %v8100 = vsel %vm6604, %v8097, %v8099
      %v8101 = vrot.slane %v8022, 7
      %v8102 = vsel %vm6604, %v8099, %v8101
      %v8103 = vrot.slane %v8023, 7
      %v8104 = vsel %vm6604, %v8101, %v8103
      %v8105 = vrot.slane %v8024, 7
      %v8106 = vsel %vm6604, %v8103, %v8105
      %v8107 = vrot.slane %v8025, 7
      %v8108 = vsel %vm6604, %v8105, %v8107
      %v8109 = vrot.slane %v8026, 7
      %v8110 = vsel %vm6604, %v8107, %v8109
      %v8111 = vrot.slane %v8027, 7
      %v8112 = vsel %vm6604, %v8109, %v8111
      %v8113 = vrot.slane %v8028, 7
      %v8114 = vsel %vm6604, %v8111, %v8113
      %v8115 = vrot.slane %v8029, 7
      %v8116 = vsel %vm6604, %v8113, %v8115
      %v8117 = vrot.slane %v8030, 7
      %v8118 = vsel %vm6604, %v8115, %v8117
      %v8119 = vrot.slane %v8031, 7
      %v8120 = vsel %vm6604, %v8117, %v8119
      %v8121 = vrot.slane %v8032, 7
      %v8122 = vsel %vm6604, %v8119, %v8121
      %v8123 = vrot.slane %v8033, 7
      %v8124 = vsel %vm6604, %v8121, %v8123
      %v8125 = vrot.slane %v8034, 7
      %v8126 = vsel %vm6604, %v8123, %v8125
      %v8127 = vrot.slane %v8035, 7
      %v8128 = vsel %vm6604, %v8125, %v8127
      %v8129 = vrot.slane %v8036, 7
      %v8130 = vsel %vm6604, %v8127, %v8129
      %v8131 = vrot.slane %v8037, 7
      %v8132 = vsel %vm6604, %v8129, %v8131
      %v8133 = vrot.slane %v8038, 7
      %v8134 = vsel %vm6604, %v8131, %v8133
      %v8135 = vrot.slane %v8039, 7
      %v8136 = vsel %vm6604, %v8133, %v8135
      %v8137 = vrot.slane %v8040, 7
      %v8138 = vsel %vm6604, %v8135, %v8137
      %v8171 = vadd.f32 %v7971, %v8076
      %v8172 = vadd.f32 %v7972, %v8078
      %v8173 = vadd.f32 %v7973, %v8080
      %v8174 = vadd.f32 %v7974, %v8082
      %v8175 = vadd.f32 %v7975, %v8084
      %v8176 = vadd.f32 %v7976, %v8086
      %v8177 = vadd.f32 %v7977, %v8088
      %v8178 = vadd.f32 %v7978, %v8090
      %v8179 = vadd.f32 %v7979, %v8092
      %v8180 = vadd.f32 %v7980, %v8094
      %v8181 = vadd.f32 %v7981, %v8096
      %v8182 = vadd.f32 %v7982, %v8098
      %v8183 = vadd.f32 %v7983, %v8100
      %v8184 = vadd.f32 %v7984, %v8102
      %v8185 = vadd.f32 %v7985, %v8104
      %v8186 = vadd.f32 %v7986, %v8106
      %v8187 = vadd.f32 %v7987, %v8108
      %v8188 = vadd.f32 %v7988, %v8110
      %v8189 = vadd.f32 %v7989, %v8112
      %v8190 = vadd.f32 %v7990, %v8114
      %v8191 = vadd.f32 %v7991, %v8116
      %v8192 = vadd.f32 %v7992, %v8118
      %v8193 = vadd.f32 %v7993, %v8120
      %v8194 = vadd.f32 %v7994, %v8122
      %v8195 = vadd.f32 %v7995, %v8124
      %v8196 = vadd.f32 %v7996, %v8126
      %v8197 = vadd.f32 %v7997, %v8128
      %v8198 = vadd.f32 %v7998, %v8130
      %v8199 = vadd.f32 %v7999, %v8132
      %v8200 = vadd.f32 %v8000, %v8134
      %v8201 = vadd.f32 %v8001, %v8136
      %v8202 = vadd.f32 %v8002, %v8138
      %s8203 = scalar_lea.vmem %s5, 16
      %v8204 = vld [vmem:[%s8203] sm:$0x1]
      %v8206 = vperm.slane %v8204, 0
      %v8208 = vmul.f32 %v5197, %v8206
      %v8209 = vmul.f32 %v5199, %v8206
      %v8210 = vmul.f32 %v5201, %v8206
      %v8211 = vmul.f32 %v5203, %v8206
      %v8212 = vmul.f32 %v5205, %v8206
      %v8213 = vmul.f32 %v5207, %v8206
      %v8214 = vmul.f32 %v5209, %v8206
      %v8215 = vmul.f32 %v5211, %v8206
      %v8216 = vmul.f32 %v5213, %v8206
      %v8217 = vmul.f32 %v5215, %v8206
      %v8218 = vmul.f32 %v5217, %v8206
      %v8219 = vmul.f32 %v5219, %v8206
      %v8220 = vmul.f32 %v5221, %v8206
      %v8221 = vmul.f32 %v5223, %v8206
      %v8222 = vmul.f32 %v5225, %v8206
      %v8223 = vmul.f32 %v5227, %v8206
      %v8224 = vmul.f32 %v5229, %v8206
      %v8225 = vmul.f32 %v5231, %v8206
      %v8226 = vmul.f32 %v5233, %v8206
      %v8227 = vmul.f32 %v5235, %v8206
      %v8228 = vmul.f32 %v5237, %v8206
      %v8229 = vmul.f32 %v5239, %v8206
      %v8230 = vmul.f32 %v5241, %v8206
      %v8231 = vmul.f32 %v5243, %v8206
      %v8232 = vmul.f32 %v5245, %v8206
      %v8233 = vmul.f32 %v5247, %v8206
      %v8234 = vmul.f32 %v5249, %v8206
      %v8235 = vmul.f32 %v5251, %v8206
      %v8236 = vmul.f32 %v5253, %v8206
      %v8237 = vmul.f32 %v5255, %v8206
      %v8238 = vmul.f32 %v5257, %v8206
      %v8239 = vmul.f32 %v5292, %v8206
      %v8240 = vadd.f32 %v8171, %v8208
      %v8241 = vadd.f32 %v8172, %v8209
      %v8242 = vadd.f32 %v8173, %v8210
      %v8243 = vadd.f32 %v8174, %v8211
      %v8244 = vadd.f32 %v8175, %v8212
      %v8245 = vadd.f32 %v8176, %v8213
      %v8246 = vadd.f32 %v8177, %v8214
      %v8247 = vadd.f32 %v8178, %v8215
      %v8248 = vadd.f32 %v8179, %v8216
      %v8249 = vadd.f32 %v8180, %v8217
      %v8250 = vadd.f32 %v8181, %v8218
      %v8251 = vadd.f32 %v8182, %v8219
      %v8252 = vadd.f32 %v8183, %v8220
      %v8253 = vadd.f32 %v8184, %v8221
      %v8254 = vadd.f32 %v8185, %v8222
      %v8255 = vadd.f32 %v8186, %v8223
      %v8256 = vadd.f32 %v8187, %v8224
      %v8257 = vadd.f32 %v8188, %v8225
      %v8258 = vadd.f32 %v8189, %v8226
      %v8259 = vadd.f32 %v8190, %v8227
      %v8260 = vadd.f32 %v8191, %v8228
      %v8261 = vadd.f32 %v8192, %v8229
      %v8262 = vadd.f32 %v8193, %v8230
      %v8263 = vadd.f32 %v8194, %v8231
      %v8264 = vadd.f32 %v8195, %v8232
      %v8265 = vadd.f32 %v8196, %v8233
      %v8266 = vadd.f32 %v8197, %v8234
      %v8267 = vadd.f32 %v8198, %v8235
      %v8268 = vadd.f32 %v8199, %v8236
      %v8269 = vadd.f32 %v8200, %v8237
      %v8270 = vadd.f32 %v8201, %v8238
      %v8271 = vadd.f32 %v8202, %v8239
      %s8272 = scalar_lea.vmem %s5, 17
      %v8273 = vld [vmem:[%s8272] sm:$0x1]
      %v8275 = vperm.slane %v8273, 0
      %v8277 = vmul.f32 %v5197, %v8275
      %v8278 = vmul.f32 %v5199, %v8275
      %v8279 = vmul.f32 %v5201, %v8275
      %v8280 = vmul.f32 %v5203, %v8275
      %v8281 = vmul.f32 %v5205, %v8275
      %v8282 = vmul.f32 %v5207, %v8275
      %v8283 = vmul.f32 %v5209, %v8275
      %v8284 = vmul.f32 %v5211, %v8275
      %v8285 = vmul.f32 %v5213, %v8275
      %v8286 = vmul.f32 %v5215, %v8275
      %v8287 = vmul.f32 %v5217, %v8275
      %v8288 = vmul.f32 %v5219, %v8275
      %v8289 = vmul.f32 %v5221, %v8275
      %v8290 = vmul.f32 %v5223, %v8275
      %v8291 = vmul.f32 %v5225, %v8275
      %v8292 = vmul.f32 %v5227, %v8275
      %v8293 = vmul.f32 %v5229, %v8275
      %v8294 = vmul.f32 %v5231, %v8275
      %v8295 = vmul.f32 %v5233, %v8275
      %v8296 = vmul.f32 %v5235, %v8275
      %v8297 = vmul.f32 %v5237, %v8275
      %v8298 = vmul.f32 %v5239, %v8275
      %v8299 = vmul.f32 %v5241, %v8275
      %v8300 = vmul.f32 %v5243, %v8275
      %v8301 = vmul.f32 %v5245, %v8275
      %v8302 = vmul.f32 %v5247, %v8275
      %v8303 = vmul.f32 %v5249, %v8275
      %v8304 = vmul.f32 %v5251, %v8275
      %v8305 = vmul.f32 %v5253, %v8275
      %v8306 = vmul.f32 %v5255, %v8275
      %v8307 = vmul.f32 %v5257, %v8275
      %v8308 = vmul.f32 %v5292, %v8275
      %v8309 = vmul.f32 %v8275, 0.0
      %v8343 = vrot.slane %v8277, 1
      %v8344 = vrot.slane %v8278, 1
      %v8345 = vsel %vm5400, %v8343, %v8344
      %v8346 = vrot.slane %v8279, 1
      %v8347 = vsel %vm5400, %v8344, %v8346
      %v8348 = vrot.slane %v8280, 1
      %v8349 = vsel %vm5400, %v8346, %v8348
      %v8350 = vrot.slane %v8281, 1
      %v8351 = vsel %vm5400, %v8348, %v8350
      %v8352 = vrot.slane %v8282, 1
      %v8353 = vsel %vm5400, %v8350, %v8352
      %v8354 = vrot.slane %v8283, 1
      %v8355 = vsel %vm5400, %v8352, %v8354
      %v8356 = vrot.slane %v8284, 1
      %v8357 = vsel %vm5400, %v8354, %v8356
      %v8358 = vrot.slane %v8285, 1
      %v8359 = vsel %vm5400, %v8356, %v8358
      %v8360 = vrot.slane %v8286, 1
      %v8361 = vsel %vm5400, %v8358, %v8360
      %v8362 = vrot.slane %v8287, 1
      %v8363 = vsel %vm5400, %v8360, %v8362
      %v8364 = vrot.slane %v8288, 1
      %v8365 = vsel %vm5400, %v8362, %v8364
      %v8366 = vrot.slane %v8289, 1
      %v8367 = vsel %vm5400, %v8364, %v8366
      %v8368 = vrot.slane %v8290, 1
      %v8369 = vsel %vm5400, %v8366, %v8368
      %v8370 = vrot.slane %v8291, 1
      %v8371 = vsel %vm5400, %v8368, %v8370
      %v8372 = vrot.slane %v8292, 1
      %v8373 = vsel %vm5400, %v8370, %v8372
      %v8374 = vrot.slane %v8293, 1
      %v8375 = vsel %vm5400, %v8372, %v8374
      %v8376 = vrot.slane %v8294, 1
      %v8377 = vsel %vm5400, %v8374, %v8376
      %v8378 = vrot.slane %v8295, 1
      %v8379 = vsel %vm5400, %v8376, %v8378
      %v8380 = vrot.slane %v8296, 1
      %v8381 = vsel %vm5400, %v8378, %v8380
      %v8382 = vrot.slane %v8297, 1
      %v8383 = vsel %vm5400, %v8380, %v8382
      %v8384 = vrot.slane %v8298, 1
      %v8385 = vsel %vm5400, %v8382, %v8384
      %v8386 = vrot.slane %v8299, 1
      %v8387 = vsel %vm5400, %v8384, %v8386
      %v8388 = vrot.slane %v8300, 1
      %v8389 = vsel %vm5400, %v8386, %v8388
      %v8390 = vrot.slane %v8301, 1
      %v8391 = vsel %vm5400, %v8388, %v8390
      %v8392 = vrot.slane %v8302, 1
      %v8393 = vsel %vm5400, %v8390, %v8392
      %v8394 = vrot.slane %v8303, 1
      %v8395 = vsel %vm5400, %v8392, %v8394
      %v8396 = vrot.slane %v8304, 1
      %v8397 = vsel %vm5400, %v8394, %v8396
      %v8398 = vrot.slane %v8305, 1
      %v8399 = vsel %vm5400, %v8396, %v8398
      %v8400 = vrot.slane %v8306, 1
      %v8401 = vsel %vm5400, %v8398, %v8400
      %v8402 = vrot.slane %v8307, 1
      %v8403 = vsel %vm5400, %v8400, %v8402
      %v8404 = vrot.slane %v8308, 1
      %v8405 = vsel %vm5400, %v8402, %v8404
      %v8406 = vrot.slane %v8309, 1
      %v8407 = vsel %vm5400, %v8404, %v8406
      %v8440 = vadd.f32 %v8240, %v8345
      %v8441 = vadd.f32 %v8241, %v8347
      %v8442 = vadd.f32 %v8242, %v8349
      %v8443 = vadd.f32 %v8243, %v8351
      %v8444 = vadd.f32 %v8244, %v8353
      %v8445 = vadd.f32 %v8245, %v8355
      %v8446 = vadd.f32 %v8246, %v8357
      %v8447 = vadd.f32 %v8247, %v8359
      %v8448 = vadd.f32 %v8248, %v8361
      %v8449 = vadd.f32 %v8249, %v8363
      %v8450 = vadd.f32 %v8250, %v8365
      %v8451 = vadd.f32 %v8251, %v8367
      %v8452 = vadd.f32 %v8252, %v8369
      %v8453 = vadd.f32 %v8253, %v8371
      %v8454 = vadd.f32 %v8254, %v8373
      %v8455 = vadd.f32 %v8255, %v8375
      %v8456 = vadd.f32 %v8256, %v8377
      %v8457 = vadd.f32 %v8257, %v8379
      %v8458 = vadd.f32 %v8258, %v8381
      %v8459 = vadd.f32 %v8259, %v8383
      %v8460 = vadd.f32 %v8260, %v8385
      %v8461 = vadd.f32 %v8261, %v8387
      %v8462 = vadd.f32 %v8262, %v8389
      %v8463 = vadd.f32 %v8263, %v8391
      %v8464 = vadd.f32 %v8264, %v8393
      %v8465 = vadd.f32 %v8265, %v8395
      %v8466 = vadd.f32 %v8266, %v8397
      %v8467 = vadd.f32 %v8267, %v8399
      %v8468 = vadd.f32 %v8268, %v8401
      %v8469 = vadd.f32 %v8269, %v8403
      %v8470 = vadd.f32 %v8270, %v8405
      %v8471 = vadd.f32 %v8271, %v8407
      %s8472 = scalar_lea.vmem %s5, 18
      %v8473 = vld [vmem:[%s8472] sm:$0x1]
      %v8475 = vperm.slane %v8473, 0
      %v8477 = vmul.f32 %v5197, %v8475
      %v8478 = vmul.f32 %v5199, %v8475
      %v8479 = vmul.f32 %v5201, %v8475
      %v8480 = vmul.f32 %v5203, %v8475
      %v8481 = vmul.f32 %v5205, %v8475
      %v8482 = vmul.f32 %v5207, %v8475
      %v8483 = vmul.f32 %v5209, %v8475
      %v8484 = vmul.f32 %v5211, %v8475
      %v8485 = vmul.f32 %v5213, %v8475
      %v8486 = vmul.f32 %v5215, %v8475
      %v8487 = vmul.f32 %v5217, %v8475
      %v8488 = vmul.f32 %v5219, %v8475
      %v8489 = vmul.f32 %v5221, %v8475
      %v8490 = vmul.f32 %v5223, %v8475
      %v8491 = vmul.f32 %v5225, %v8475
      %v8492 = vmul.f32 %v5227, %v8475
      %v8493 = vmul.f32 %v5229, %v8475
      %v8494 = vmul.f32 %v5231, %v8475
      %v8495 = vmul.f32 %v5233, %v8475
      %v8496 = vmul.f32 %v5235, %v8475
      %v8497 = vmul.f32 %v5237, %v8475
      %v8498 = vmul.f32 %v5239, %v8475
      %v8499 = vmul.f32 %v5241, %v8475
      %v8500 = vmul.f32 %v5243, %v8475
      %v8501 = vmul.f32 %v5245, %v8475
      %v8502 = vmul.f32 %v5247, %v8475
      %v8503 = vmul.f32 %v5249, %v8475
      %v8504 = vmul.f32 %v5251, %v8475
      %v8505 = vmul.f32 %v5253, %v8475
      %v8506 = vmul.f32 %v5255, %v8475
      %v8507 = vmul.f32 %v5257, %v8475
      %v8508 = vmul.f32 %v5292, %v8475
      %v8509 = vmul.f32 %v8475, 0.0
      %v8543 = vrot.slane %v8477, 2
      %v8544 = vrot.slane %v8478, 2
      %v8545 = vsel %vm5601, %v8543, %v8544
      %v8546 = vrot.slane %v8479, 2
      %v8547 = vsel %vm5601, %v8544, %v8546
      %v8548 = vrot.slane %v8480, 2
      %v8549 = vsel %vm5601, %v8546, %v8548
      %v8550 = vrot.slane %v8481, 2
      %v8551 = vsel %vm5601, %v8548, %v8550
      %v8552 = vrot.slane %v8482, 2
      %v8553 = vsel %vm5601, %v8550, %v8552
      %v8554 = vrot.slane %v8483, 2
      %v8555 = vsel %vm5601, %v8552, %v8554
      %v8556 = vrot.slane %v8484, 2
      %v8557 = vsel %vm5601, %v8554, %v8556
      %v8558 = vrot.slane %v8485, 2
      %v8559 = vsel %vm5601, %v8556, %v8558
      %v8560 = vrot.slane %v8486, 2
      %v8561 = vsel %vm5601, %v8558, %v8560
      %v8562 = vrot.slane %v8487, 2
      %v8563 = vsel %vm5601, %v8560, %v8562
      %v8564 = vrot.slane %v8488, 2
      %v8565 = vsel %vm5601, %v8562, %v8564
      %v8566 = vrot.slane %v8489, 2
      %v8567 = vsel %vm5601, %v8564, %v8566
      %v8568 = vrot.slane %v8490, 2
      %v8569 = vsel %vm5601, %v8566, %v8568
      %v8570 = vrot.slane %v8491, 2
      %v8571 = vsel %vm5601, %v8568, %v8570
      %v8572 = vrot.slane %v8492, 2
      %v8573 = vsel %vm5601, %v8570, %v8572
      %v8574 = vrot.slane %v8493, 2
      %v8575 = vsel %vm5601, %v8572, %v8574
      %v8576 = vrot.slane %v8494, 2
      %v8577 = vsel %vm5601, %v8574, %v8576
      %v8578 = vrot.slane %v8495, 2
      %v8579 = vsel %vm5601, %v8576, %v8578
      %v8580 = vrot.slane %v8496, 2
      %v8581 = vsel %vm5601, %v8578, %v8580
      %v8582 = vrot.slane %v8497, 2
      %v8583 = vsel %vm5601, %v8580, %v8582
      %v8584 = vrot.slane %v8498, 2
      %v8585 = vsel %vm5601, %v8582, %v8584
      %v8586 = vrot.slane %v8499, 2
      %v8587 = vsel %vm5601, %v8584, %v8586
      %v8588 = vrot.slane %v8500, 2
      %v8589 = vsel %vm5601, %v8586, %v8588
      %v8590 = vrot.slane %v8501, 2
      %v8591 = vsel %vm5601, %v8588, %v8590
      %v8592 = vrot.slane %v8502, 2
      %v8593 = vsel %vm5601, %v8590, %v8592
      %v8594 = vrot.slane %v8503, 2
      %v8595 = vsel %vm5601, %v8592, %v8594
      %v8596 = vrot.slane %v8504, 2
      %v8597 = vsel %vm5601, %v8594, %v8596
      %v8598 = vrot.slane %v8505, 2
      %v8599 = vsel %vm5601, %v8596, %v8598
      %v8600 = vrot.slane %v8506, 2
      %v8601 = vsel %vm5601, %v8598, %v8600
      %v8602 = vrot.slane %v8507, 2
      %v8603 = vsel %vm5601, %v8600, %v8602
      %v8604 = vrot.slane %v8508, 2
      %v8605 = vsel %vm5601, %v8602, %v8604
      %v8606 = vrot.slane %v8509, 2
      %v8607 = vsel %vm5601, %v8604, %v8606
      %v8640 = vadd.f32 %v8440, %v8545
      %v8641 = vadd.f32 %v8441, %v8547
      %v8642 = vadd.f32 %v8442, %v8549
      %v8643 = vadd.f32 %v8443, %v8551
      %v8644 = vadd.f32 %v8444, %v8553
      %v8645 = vadd.f32 %v8445, %v8555
      %v8646 = vadd.f32 %v8446, %v8557
      %v8647 = vadd.f32 %v8447, %v8559
      %v8648 = vadd.f32 %v8448, %v8561
      %v8649 = vadd.f32 %v8449, %v8563
      %v8650 = vadd.f32 %v8450, %v8565
      %v8651 = vadd.f32 %v8451, %v8567
      %v8652 = vadd.f32 %v8452, %v8569
      %v8653 = vadd.f32 %v8453, %v8571
      %v8654 = vadd.f32 %v8454, %v8573
      %v8655 = vadd.f32 %v8455, %v8575
      %v8656 = vadd.f32 %v8456, %v8577
      %v8657 = vadd.f32 %v8457, %v8579
      %v8658 = vadd.f32 %v8458, %v8581
      %v8659 = vadd.f32 %v8459, %v8583
      %v8660 = vadd.f32 %v8460, %v8585
      %v8661 = vadd.f32 %v8461, %v8587
      %v8662 = vadd.f32 %v8462, %v8589
      %v8663 = vadd.f32 %v8463, %v8591
      %v8664 = vadd.f32 %v8464, %v8593
      %v8665 = vadd.f32 %v8465, %v8595
      %v8666 = vadd.f32 %v8466, %v8597
      %v8667 = vadd.f32 %v8467, %v8599
      %v8668 = vadd.f32 %v8468, %v8601
      %v8669 = vadd.f32 %v8469, %v8603
      %v8670 = vadd.f32 %v8470, %v8605
      %v8671 = vadd.f32 %v8471, %v8607
      %s8672 = scalar_lea.vmem %s5, 19
      %v8673 = vld [vmem:[%s8672] sm:$0x1]
      %v8675 = vperm.slane %v8673, 0
      %v8677 = vmul.f32 %v5197, %v8675
      %v8678 = vmul.f32 %v5199, %v8675
      %v8679 = vmul.f32 %v5201, %v8675
      %v8680 = vmul.f32 %v5203, %v8675
      %v8681 = vmul.f32 %v5205, %v8675
      %v8682 = vmul.f32 %v5207, %v8675
      %v8683 = vmul.f32 %v5209, %v8675
      %v8684 = vmul.f32 %v5211, %v8675
      %v8685 = vmul.f32 %v5213, %v8675
      %v8686 = vmul.f32 %v5215, %v8675
      %v8687 = vmul.f32 %v5217, %v8675
      %v8688 = vmul.f32 %v5219, %v8675
      %v8689 = vmul.f32 %v5221, %v8675
      %v8690 = vmul.f32 %v5223, %v8675
      %v8691 = vmul.f32 %v5225, %v8675
      %v8692 = vmul.f32 %v5227, %v8675
      %v8693 = vmul.f32 %v5229, %v8675
      %v8694 = vmul.f32 %v5231, %v8675
      %v8695 = vmul.f32 %v5233, %v8675
      %v8696 = vmul.f32 %v5235, %v8675
      %v8697 = vmul.f32 %v5237, %v8675
      %v8698 = vmul.f32 %v5239, %v8675
      %v8699 = vmul.f32 %v5241, %v8675
      %v8700 = vmul.f32 %v5243, %v8675
      %v8701 = vmul.f32 %v5245, %v8675
      %v8702 = vmul.f32 %v5247, %v8675
      %v8703 = vmul.f32 %v5249, %v8675
      %v8704 = vmul.f32 %v5251, %v8675
      %v8705 = vmul.f32 %v5253, %v8675
      %v8706 = vmul.f32 %v5255, %v8675
      %v8707 = vmul.f32 %v5257, %v8675
      %v8708 = vmul.f32 %v5292, %v8675
      %v8709 = vmul.f32 %v8675, 0.0
      %v8743 = vrot.slane %v8677, 3
      %v8744 = vrot.slane %v8678, 3
      %v8745 = vsel %vm5802, %v8743, %v8744
      %v8746 = vrot.slane %v8679, 3
      %v8747 = vsel %vm5802, %v8744, %v8746
      %v8748 = vrot.slane %v8680, 3
      %v8749 = vsel %vm5802, %v8746, %v8748
      %v8750 = vrot.slane %v8681, 3
      %v8751 = vsel %vm5802, %v8748, %v8750
      %v8752 = vrot.slane %v8682, 3
      %v8753 = vsel %vm5802, %v8750, %v8752
      %v8754 = vrot.slane %v8683, 3
      %v8755 = vsel %vm5802, %v8752, %v8754
      %v8756 = vrot.slane %v8684, 3
      %v8757 = vsel %vm5802, %v8754, %v8756
      %v8758 = vrot.slane %v8685, 3
      %v8759 = vsel %vm5802, %v8756, %v8758
      %v8760 = vrot.slane %v8686, 3
      %v8761 = vsel %vm5802, %v8758, %v8760
      %v8762 = vrot.slane %v8687, 3
      %v8763 = vsel %vm5802, %v8760, %v8762
      %v8764 = vrot.slane %v8688, 3
      %v8765 = vsel %vm5802, %v8762, %v8764
      %v8766 = vrot.slane %v8689, 3
      %v8767 = vsel %vm5802, %v8764, %v8766
      %v8768 = vrot.slane %v8690, 3
      %v8769 = vsel %vm5802, %v8766, %v8768
      %v8770 = vrot.slane %v8691, 3
      %v8771 = vsel %vm5802, %v8768, %v8770
      %v8772 = vrot.slane %v8692, 3
      %v8773 = vsel %vm5802, %v8770, %v8772
      %v8774 = vrot.slane %v8693, 3
      %v8775 = vsel %vm5802, %v8772, %v8774
      %v8776 = vrot.slane %v8694, 3
      %v8777 = vsel %vm5802, %v8774, %v8776
      %v8778 = vrot.slane %v8695, 3
      %v8779 = vsel %vm5802, %v8776, %v8778
      %v8780 = vrot.slane %v8696, 3
      %v8781 = vsel %vm5802, %v8778, %v8780
      %v8782 = vrot.slane %v8697, 3
      %v8783 = vsel %vm5802, %v8780, %v8782
      %v8784 = vrot.slane %v8698, 3
      %v8785 = vsel %vm5802, %v8782, %v8784
      %v8786 = vrot.slane %v8699, 3
      %v8787 = vsel %vm5802, %v8784, %v8786
      %v8788 = vrot.slane %v8700, 3
      %v8789 = vsel %vm5802, %v8786, %v8788
      %v8790 = vrot.slane %v8701, 3
      %v8791 = vsel %vm5802, %v8788, %v8790
      %v8792 = vrot.slane %v8702, 3
      %v8793 = vsel %vm5802, %v8790, %v8792
      %v8794 = vrot.slane %v8703, 3
      %v8795 = vsel %vm5802, %v8792, %v8794
      %v8796 = vrot.slane %v8704, 3
      %v8797 = vsel %vm5802, %v8794, %v8796
      %v8798 = vrot.slane %v8705, 3
      %v8799 = vsel %vm5802, %v8796, %v8798
      %v8800 = vrot.slane %v8706, 3
      %v8801 = vsel %vm5802, %v8798, %v8800
      %v8802 = vrot.slane %v8707, 3
      %v8803 = vsel %vm5802, %v8800, %v8802
      %v8804 = vrot.slane %v8708, 3
      %v8805 = vsel %vm5802, %v8802, %v8804
      %v8806 = vrot.slane %v8709, 3
      %v8807 = vsel %vm5802, %v8804, %v8806
      %v8840 = vadd.f32 %v8640, %v8745
      %v8841 = vadd.f32 %v8641, %v8747
      %v8842 = vadd.f32 %v8642, %v8749
      %v8843 = vadd.f32 %v8643, %v8751
      %v8844 = vadd.f32 %v8644, %v8753
      %v8845 = vadd.f32 %v8645, %v8755
      %v8846 = vadd.f32 %v8646, %v8757
      %v8847 = vadd.f32 %v8647, %v8759
      %v8848 = vadd.f32 %v8648, %v8761
      %v8849 = vadd.f32 %v8649, %v8763
      %v8850 = vadd.f32 %v8650, %v8765
      %v8851 = vadd.f32 %v8651, %v8767
      %v8852 = vadd.f32 %v8652, %v8769
      %v8853 = vadd.f32 %v8653, %v8771
      %v8854 = vadd.f32 %v8654, %v8773
      %v8855 = vadd.f32 %v8655, %v8775
      %v8856 = vadd.f32 %v8656, %v8777
      %v8857 = vadd.f32 %v8657, %v8779
      %v8858 = vadd.f32 %v8658, %v8781
      %v8859 = vadd.f32 %v8659, %v8783
      %v8860 = vadd.f32 %v8660, %v8785
      %v8861 = vadd.f32 %v8661, %v8787
      %v8862 = vadd.f32 %v8662, %v8789
      %v8863 = vadd.f32 %v8663, %v8791
      %v8864 = vadd.f32 %v8664, %v8793
      %v8865 = vadd.f32 %v8665, %v8795
      %v8866 = vadd.f32 %v8666, %v8797
      %v8867 = vadd.f32 %v8667, %v8799
      %v8868 = vadd.f32 %v8668, %v8801
      %v8869 = vadd.f32 %v8669, %v8803
      %v8870 = vadd.f32 %v8670, %v8805
      %v8871 = vadd.f32 %v8671, %v8807
      %s8872 = scalar_lea.vmem %s5, 20
      %v8873 = vld [vmem:[%s8872] sm:$0x1]
      %v8875 = vperm.slane %v8873, 0
      %v8877 = vmul.f32 %v5197, %v8875
      %v8878 = vmul.f32 %v5199, %v8875
      %v8879 = vmul.f32 %v5201, %v8875
      %v8880 = vmul.f32 %v5203, %v8875
      %v8881 = vmul.f32 %v5205, %v8875
      %v8882 = vmul.f32 %v5207, %v8875
      %v8883 = vmul.f32 %v5209, %v8875
      %v8884 = vmul.f32 %v5211, %v8875
      %v8885 = vmul.f32 %v5213, %v8875
      %v8886 = vmul.f32 %v5215, %v8875
      %v8887 = vmul.f32 %v5217, %v8875
      %v8888 = vmul.f32 %v5219, %v8875
      %v8889 = vmul.f32 %v5221, %v8875
      %v8890 = vmul.f32 %v5223, %v8875
      %v8891 = vmul.f32 %v5225, %v8875
      %v8892 = vmul.f32 %v5227, %v8875
      %v8893 = vmul.f32 %v5229, %v8875
      %v8894 = vmul.f32 %v5231, %v8875
      %v8895 = vmul.f32 %v5233, %v8875
      %v8896 = vmul.f32 %v5235, %v8875
      %v8897 = vmul.f32 %v5237, %v8875
      %v8898 = vmul.f32 %v5239, %v8875
      %v8899 = vmul.f32 %v5241, %v8875
      %v8900 = vmul.f32 %v5243, %v8875
      %v8901 = vmul.f32 %v5245, %v8875
      %v8902 = vmul.f32 %v5247, %v8875
      %v8903 = vmul.f32 %v5249, %v8875
      %v8904 = vmul.f32 %v5251, %v8875
      %v8905 = vmul.f32 %v5253, %v8875
      %v8906 = vmul.f32 %v5255, %v8875
      %v8907 = vmul.f32 %v5257, %v8875
      %v8908 = vmul.f32 %v5292, %v8875
      %v8909 = vmul.f32 %v8875, 0.0
      %v8943 = vrot.slane %v8877, 4
      %v8944 = vrot.slane %v8878, 4
      %v8945 = vsel %vm427, %v8943, %v8944
      %v8946 = vrot.slane %v8879, 4
      %v8947 = vsel %vm427, %v8944, %v8946
      %v8948 = vrot.slane %v8880, 4
      %v8949 = vsel %vm427, %v8946, %v8948
      %v8950 = vrot.slane %v8881, 4
      %v8951 = vsel %vm427, %v8948, %v8950
      %v8952 = vrot.slane %v8882, 4
      %v8953 = vsel %vm427, %v8950, %v8952
      %v8954 = vrot.slane %v8883, 4
      %v8955 = vsel %vm427, %v8952, %v8954
      %v8956 = vrot.slane %v8884, 4
      %v8957 = vsel %vm427, %v8954, %v8956
      %v8958 = vrot.slane %v8885, 4
      %v8959 = vsel %vm427, %v8956, %v8958
      %v8960 = vrot.slane %v8886, 4
      %v8961 = vsel %vm427, %v8958, %v8960
      %v8962 = vrot.slane %v8887, 4
      %v8963 = vsel %vm427, %v8960, %v8962
      %v8964 = vrot.slane %v8888, 4
      %v8965 = vsel %vm427, %v8962, %v8964
      %v8966 = vrot.slane %v8889, 4
      %v8967 = vsel %vm427, %v8964, %v8966
      %v8968 = vrot.slane %v8890, 4
      %v8969 = vsel %vm427, %v8966, %v8968
      %v8970 = vrot.slane %v8891, 4
      %v8971 = vsel %vm427, %v8968, %v8970
      %v8972 = vrot.slane %v8892, 4
      %v8973 = vsel %vm427, %v8970, %v8972
      %v8974 = vrot.slane %v8893, 4
      %v8975 = vsel %vm427, %v8972, %v8974
      %v8976 = vrot.slane %v8894, 4
      %v8977 = vsel %vm427, %v8974, %v8976
      %v8978 = vrot.slane %v8895, 4
      %v8979 = vsel %vm427, %v8976, %v8978
      %v8980 = vrot.slane %v8896, 4
      %v8981 = vsel %vm427, %v8978, %v8980
      %v8982 = vrot.slane %v8897, 4
      %v8983 = vsel %vm427, %v8980, %v8982
      %v8984 = vrot.slane %v8898, 4
      %v8985 = vsel %vm427, %v8982, %v8984
      %v8986 = vrot.slane %v8899, 4
      %v8987 = vsel %vm427, %v8984, %v8986
      %v8988 = vrot.slane %v8900, 4
      %v8989 = vsel %vm427, %v8986, %v8988
      %v8990 = vrot.slane %v8901, 4
      %v8991 = vsel %vm427, %v8988, %v8990
      %v8992 = vrot.slane %v8902, 4
      %v8993 = vsel %vm427, %v8990, %v8992
      %v8994 = vrot.slane %v8903, 4
      %v8995 = vsel %vm427, %v8992, %v8994
      %v8996 = vrot.slane %v8904, 4
      %v8997 = vsel %vm427, %v8994, %v8996
      %v8998 = vrot.slane %v8905, 4
      %v8999 = vsel %vm427, %v8996, %v8998
      %v9000 = vrot.slane %v8906, 4
      %v9001 = vsel %vm427, %v8998, %v9000
      %v9002 = vrot.slane %v8907, 4
      %v9003 = vsel %vm427, %v9000, %v9002
      %v9004 = vrot.slane %v8908, 4
      %v9005 = vsel %vm427, %v9002, %v9004
      %v9006 = vrot.slane %v8909, 4
      %v9007 = vsel %vm427, %v9004, %v9006
      %v9040 = vadd.f32 %v8840, %v8945
      %v9041 = vadd.f32 %v8841, %v8947
      %v9042 = vadd.f32 %v8842, %v8949
      %v9043 = vadd.f32 %v8843, %v8951
      %v9044 = vadd.f32 %v8844, %v8953
      %v9045 = vadd.f32 %v8845, %v8955
      %v9046 = vadd.f32 %v8846, %v8957
      %v9047 = vadd.f32 %v8847, %v8959
      %v9048 = vadd.f32 %v8848, %v8961
      %v9049 = vadd.f32 %v8849, %v8963
      %v9050 = vadd.f32 %v8850, %v8965
      %v9051 = vadd.f32 %v8851, %v8967
      %v9052 = vadd.f32 %v8852, %v8969
      %v9053 = vadd.f32 %v8853, %v8971
      %v9054 = vadd.f32 %v8854, %v8973
      %v9055 = vadd.f32 %v8855, %v8975
      %v9056 = vadd.f32 %v8856, %v8977
      %v9057 = vadd.f32 %v8857, %v8979
      %v9058 = vadd.f32 %v8858, %v8981
      %v9059 = vadd.f32 %v8859, %v8983
      %v9060 = vadd.f32 %v8860, %v8985
      %v9061 = vadd.f32 %v8861, %v8987
      %v9062 = vadd.f32 %v8862, %v8989
      %v9063 = vadd.f32 %v8863, %v8991
      %v9064 = vadd.f32 %v8864, %v8993
      %v9065 = vadd.f32 %v8865, %v8995
      %v9066 = vadd.f32 %v8866, %v8997
      %v9067 = vadd.f32 %v8867, %v8999
      %v9068 = vadd.f32 %v8868, %v9001
      %v9069 = vadd.f32 %v8869, %v9003
      %v9070 = vadd.f32 %v8870, %v9005
      %v9071 = vadd.f32 %v8871, %v9007
      %s9072 = scalar_lea.vmem %s5, 21
      %v9073 = vld [vmem:[%s9072] sm:$0x1]
      %v9075 = vperm.slane %v9073, 0
      %v9077 = vmul.f32 %v5197, %v9075
      %v9078 = vmul.f32 %v5199, %v9075
      %v9079 = vmul.f32 %v5201, %v9075
      %v9080 = vmul.f32 %v5203, %v9075
      %v9081 = vmul.f32 %v5205, %v9075
      %v9082 = vmul.f32 %v5207, %v9075
      %v9083 = vmul.f32 %v5209, %v9075
      %v9084 = vmul.f32 %v5211, %v9075
      %v9085 = vmul.f32 %v5213, %v9075
      %v9086 = vmul.f32 %v5215, %v9075
      %v9087 = vmul.f32 %v5217, %v9075
      %v9088 = vmul.f32 %v5219, %v9075
      %v9089 = vmul.f32 %v5221, %v9075
      %v9090 = vmul.f32 %v5223, %v9075
      %v9091 = vmul.f32 %v5225, %v9075
      %v9092 = vmul.f32 %v5227, %v9075
      %v9093 = vmul.f32 %v5229, %v9075
      %v9094 = vmul.f32 %v5231, %v9075
      %v9095 = vmul.f32 %v5233, %v9075
      %v9096 = vmul.f32 %v5235, %v9075
      %v9097 = vmul.f32 %v5237, %v9075
      %v9098 = vmul.f32 %v5239, %v9075
      %v9099 = vmul.f32 %v5241, %v9075
      %v9100 = vmul.f32 %v5243, %v9075
      %v9101 = vmul.f32 %v5245, %v9075
      %v9102 = vmul.f32 %v5247, %v9075
      %v9103 = vmul.f32 %v5249, %v9075
      %v9104 = vmul.f32 %v5251, %v9075
      %v9105 = vmul.f32 %v5253, %v9075
      %v9106 = vmul.f32 %v5255, %v9075
      %v9107 = vmul.f32 %v5257, %v9075
      %v9108 = vmul.f32 %v5292, %v9075
      %v9109 = vmul.f32 %v9075, 0.0
      %v9143 = vrot.slane %v9077, 5
      %v9144 = vrot.slane %v9078, 5
      %v9145 = vsel %vm6203, %v9143, %v9144
      %v9146 = vrot.slane %v9079, 5
      %v9147 = vsel %vm6203, %v9144, %v9146
      %v9148 = vrot.slane %v9080, 5
      %v9149 = vsel %vm6203, %v9146, %v9148
      %v9150 = vrot.slane %v9081, 5
      %v9151 = vsel %vm6203, %v9148, %v9150
      %v9152 = vrot.slane %v9082, 5
      %v9153 = vsel %vm6203, %v9150, %v9152
      %v9154 = vrot.slane %v9083, 5
      %v9155 = vsel %vm6203, %v9152, %v9154
      %v9156 = vrot.slane %v9084, 5
      %v9157 = vsel %vm6203, %v9154, %v9156
      %v9158 = vrot.slane %v9085, 5
      %v9159 = vsel %vm6203, %v9156, %v9158
      %v9160 = vrot.slane %v9086, 5
      %v9161 = vsel %vm6203, %v9158, %v9160
      %v9162 = vrot.slane %v9087, 5
      %v9163 = vsel %vm6203, %v9160, %v9162
      %v9164 = vrot.slane %v9088, 5
      %v9165 = vsel %vm6203, %v9162, %v9164
      %v9166 = vrot.slane %v9089, 5
      %v9167 = vsel %vm6203, %v9164, %v9166
      %v9168 = vrot.slane %v9090, 5
      %v9169 = vsel %vm6203, %v9166, %v9168
      %v9170 = vrot.slane %v9091, 5
      %v9171 = vsel %vm6203, %v9168, %v9170
      %v9172 = vrot.slane %v9092, 5
      %v9173 = vsel %vm6203, %v9170, %v9172
      %v9174 = vrot.slane %v9093, 5
      %v9175 = vsel %vm6203, %v9172, %v9174
      %v9176 = vrot.slane %v9094, 5
      %v9177 = vsel %vm6203, %v9174, %v9176
      %v9178 = vrot.slane %v9095, 5
      %v9179 = vsel %vm6203, %v9176, %v9178
      %v9180 = vrot.slane %v9096, 5
      %v9181 = vsel %vm6203, %v9178, %v9180
      %v9182 = vrot.slane %v9097, 5
      %v9183 = vsel %vm6203, %v9180, %v9182
      %v9184 = vrot.slane %v9098, 5
      %v9185 = vsel %vm6203, %v9182, %v9184
      %v9186 = vrot.slane %v9099, 5
      %v9187 = vsel %vm6203, %v9184, %v9186
      %v9188 = vrot.slane %v9100, 5
      %v9189 = vsel %vm6203, %v9186, %v9188
      %v9190 = vrot.slane %v9101, 5
      %v9191 = vsel %vm6203, %v9188, %v9190
      %v9192 = vrot.slane %v9102, 5
      %v9193 = vsel %vm6203, %v9190, %v9192
      %v9194 = vrot.slane %v9103, 5
      %v9195 = vsel %vm6203, %v9192, %v9194
      %v9196 = vrot.slane %v9104, 5
      %v9197 = vsel %vm6203, %v9194, %v9196
      %v9198 = vrot.slane %v9105, 5
      %v9199 = vsel %vm6203, %v9196, %v9198
      %v9200 = vrot.slane %v9106, 5
      %v9201 = vsel %vm6203, %v9198, %v9200
      %v9202 = vrot.slane %v9107, 5
      %v9203 = vsel %vm6203, %v9200, %v9202
      %v9204 = vrot.slane %v9108, 5
      %v9205 = vsel %vm6203, %v9202, %v9204
      %v9206 = vrot.slane %v9109, 5
      %v9207 = vsel %vm6203, %v9204, %v9206
      %v9240 = vadd.f32 %v9040, %v9145
      %v9241 = vadd.f32 %v9041, %v9147
      %v9242 = vadd.f32 %v9042, %v9149
      %v9243 = vadd.f32 %v9043, %v9151
      %v9244 = vadd.f32 %v9044, %v9153
      %v9245 = vadd.f32 %v9045, %v9155
      %v9246 = vadd.f32 %v9046, %v9157
      %v9247 = vadd.f32 %v9047, %v9159
      %v9248 = vadd.f32 %v9048, %v9161
      %v9249 = vadd.f32 %v9049, %v9163
      %v9250 = vadd.f32 %v9050, %v9165
      %v9251 = vadd.f32 %v9051, %v9167
      %v9252 = vadd.f32 %v9052, %v9169
      %v9253 = vadd.f32 %v9053, %v9171
      %v9254 = vadd.f32 %v9054, %v9173
      %v9255 = vadd.f32 %v9055, %v9175
      %v9256 = vadd.f32 %v9056, %v9177
      %v9257 = vadd.f32 %v9057, %v9179
      %v9258 = vadd.f32 %v9058, %v9181
      %v9259 = vadd.f32 %v9059, %v9183
      %v9260 = vadd.f32 %v9060, %v9185
      %v9261 = vadd.f32 %v9061, %v9187
      %v9262 = vadd.f32 %v9062, %v9189
      %v9263 = vadd.f32 %v9063, %v9191
      %v9264 = vadd.f32 %v9064, %v9193
      %v9265 = vadd.f32 %v9065, %v9195
      %v9266 = vadd.f32 %v9066, %v9197
      %v9267 = vadd.f32 %v9067, %v9199
      %v9268 = vadd.f32 %v9068, %v9201
      %v9269 = vadd.f32 %v9069, %v9203
      %v9270 = vadd.f32 %v9070, %v9205
      %v9271 = vadd.f32 %v9071, %v9207
      %s9272 = scalar_lea.vmem %s5, 22
      %v9273 = vld [vmem:[%s9272] sm:$0x1]
      %v9275 = vperm.slane %v9273, 0
      %v9277 = vmul.f32 %v5197, %v9275
      %v9278 = vmul.f32 %v5199, %v9275
      %v9279 = vmul.f32 %v5201, %v9275
      %v9280 = vmul.f32 %v5203, %v9275
      %v9281 = vmul.f32 %v5205, %v9275
      %v9282 = vmul.f32 %v5207, %v9275
      %v9283 = vmul.f32 %v5209, %v9275
      %v9284 = vmul.f32 %v5211, %v9275
      %v9285 = vmul.f32 %v5213, %v9275
      %v9286 = vmul.f32 %v5215, %v9275
      %v9287 = vmul.f32 %v5217, %v9275
      %v9288 = vmul.f32 %v5219, %v9275
      %v9289 = vmul.f32 %v5221, %v9275
      %v9290 = vmul.f32 %v5223, %v9275
      %v9291 = vmul.f32 %v5225, %v9275
      %v9292 = vmul.f32 %v5227, %v9275
      %v9293 = vmul.f32 %v5229, %v9275
      %v9294 = vmul.f32 %v5231, %v9275
      %v9295 = vmul.f32 %v5233, %v9275
      %v9296 = vmul.f32 %v5235, %v9275
      %v9297 = vmul.f32 %v5237, %v9275
      %v9298 = vmul.f32 %v5239, %v9275
      %v9299 = vmul.f32 %v5241, %v9275
      %v9300 = vmul.f32 %v5243, %v9275
      %v9301 = vmul.f32 %v5245, %v9275
      %v9302 = vmul.f32 %v5247, %v9275
      %v9303 = vmul.f32 %v5249, %v9275
      %v9304 = vmul.f32 %v5251, %v9275
      %v9305 = vmul.f32 %v5253, %v9275
      %v9306 = vmul.f32 %v5255, %v9275
      %v9307 = vmul.f32 %v5257, %v9275
      %v9308 = vmul.f32 %v5292, %v9275
      %v9309 = vmul.f32 %v9275, 0.0
      %v9343 = vrot.slane %v9277, 6
      %v9344 = vrot.slane %v9278, 6
      %v9345 = vsel %vm632, %v9343, %v9344
      %v9346 = vrot.slane %v9279, 6
      %v9347 = vsel %vm632, %v9344, %v9346
      %v9348 = vrot.slane %v9280, 6
      %v9349 = vsel %vm632, %v9346, %v9348
      %v9350 = vrot.slane %v9281, 6
      %v9351 = vsel %vm632, %v9348, %v9350
      %v9352 = vrot.slane %v9282, 6
      %v9353 = vsel %vm632, %v9350, %v9352
      %v9354 = vrot.slane %v9283, 6
      %v9355 = vsel %vm632, %v9352, %v9354
      %v9356 = vrot.slane %v9284, 6
      %v9357 = vsel %vm632, %v9354, %v9356
      %v9358 = vrot.slane %v9285, 6
      %v9359 = vsel %vm632, %v9356, %v9358
      %v9360 = vrot.slane %v9286, 6
      %v9361 = vsel %vm632, %v9358, %v9360
      %v9362 = vrot.slane %v9287, 6
      %v9363 = vsel %vm632, %v9360, %v9362
      %v9364 = vrot.slane %v9288, 6
      %v9365 = vsel %vm632, %v9362, %v9364
      %v9366 = vrot.slane %v9289, 6
      %v9367 = vsel %vm632, %v9364, %v9366
      %v9368 = vrot.slane %v9290, 6
      %v9369 = vsel %vm632, %v9366, %v9368
      %v9370 = vrot.slane %v9291, 6
      %v9371 = vsel %vm632, %v9368, %v9370
      %v9372 = vrot.slane %v9292, 6
      %v9373 = vsel %vm632, %v9370, %v9372
      %v9374 = vrot.slane %v9293, 6
      %v9375 = vsel %vm632, %v9372, %v9374
      %v9376 = vrot.slane %v9294, 6
      %v9377 = vsel %vm632, %v9374, %v9376
      %v9378 = vrot.slane %v9295, 6
      %v9379 = vsel %vm632, %v9376, %v9378
      %v9380 = vrot.slane %v9296, 6
      %v9381 = vsel %vm632, %v9378, %v9380
      %v9382 = vrot.slane %v9297, 6
      %v9383 = vsel %vm632, %v9380, %v9382
      %v9384 = vrot.slane %v9298, 6
      %v9385 = vsel %vm632, %v9382, %v9384
      %v9386 = vrot.slane %v9299, 6
      %v9387 = vsel %vm632, %v9384, %v9386
      %v9388 = vrot.slane %v9300, 6
      %v9389 = vsel %vm632, %v9386, %v9388
      %v9390 = vrot.slane %v9301, 6
      %v9391 = vsel %vm632, %v9388, %v9390
      %v9392 = vrot.slane %v9302, 6
      %v9393 = vsel %vm632, %v9390, %v9392
      %v9394 = vrot.slane %v9303, 6
      %v9395 = vsel %vm632, %v9392, %v9394
      %v9396 = vrot.slane %v9304, 6
      %v9397 = vsel %vm632, %v9394, %v9396
      %v9398 = vrot.slane %v9305, 6
      %v9399 = vsel %vm632, %v9396, %v9398
      %v9400 = vrot.slane %v9306, 6
      %v9401 = vsel %vm632, %v9398, %v9400
      %v9402 = vrot.slane %v9307, 6
      %v9403 = vsel %vm632, %v9400, %v9402
      %v9404 = vrot.slane %v9308, 6
      %v9405 = vsel %vm632, %v9402, %v9404
      %v9406 = vrot.slane %v9309, 6
      %v9407 = vsel %vm632, %v9404, %v9406
      %v9440 = vadd.f32 %v9240, %v9345
      %v9441 = vadd.f32 %v9241, %v9347
      %v9442 = vadd.f32 %v9242, %v9349
      %v9443 = vadd.f32 %v9243, %v9351
      %v9444 = vadd.f32 %v9244, %v9353
      %v9445 = vadd.f32 %v9245, %v9355
      %v9446 = vadd.f32 %v9246, %v9357
      %v9447 = vadd.f32 %v9247, %v9359
      %v9448 = vadd.f32 %v9248, %v9361
      %v9449 = vadd.f32 %v9249, %v9363
      %v9450 = vadd.f32 %v9250, %v9365
      %v9451 = vadd.f32 %v9251, %v9367
      %v9452 = vadd.f32 %v9252, %v9369
      %v9453 = vadd.f32 %v9253, %v9371
      %v9454 = vadd.f32 %v9254, %v9373
      %v9455 = vadd.f32 %v9255, %v9375
      %v9456 = vadd.f32 %v9256, %v9377
      %v9457 = vadd.f32 %v9257, %v9379
      %v9458 = vadd.f32 %v9258, %v9381
      %v9459 = vadd.f32 %v9259, %v9383
      %v9460 = vadd.f32 %v9260, %v9385
      %v9461 = vadd.f32 %v9261, %v9387
      %v9462 = vadd.f32 %v9262, %v9389
      %v9463 = vadd.f32 %v9263, %v9391
      %v9464 = vadd.f32 %v9264, %v9393
      %v9465 = vadd.f32 %v9265, %v9395
      %v9466 = vadd.f32 %v9266, %v9397
      %v9467 = vadd.f32 %v9267, %v9399
      %v9468 = vadd.f32 %v9268, %v9401
      %v9469 = vadd.f32 %v9269, %v9403
      %v9470 = vadd.f32 %v9270, %v9405
      %v9471 = vadd.f32 %v9271, %v9407
      %s9472 = scalar_lea.vmem %s5, 23
      %v9473 = vld [vmem:[%s9472] sm:$0x1]
      %v9475 = vperm.slane %v9473, 0
      %v9477 = vmul.f32 %v5197, %v9475
      %v9478 = vmul.f32 %v5199, %v9475
      %v9479 = vmul.f32 %v5201, %v9475
      %v9480 = vmul.f32 %v5203, %v9475
      %v9481 = vmul.f32 %v5205, %v9475
      %v9482 = vmul.f32 %v5207, %v9475
      %v9483 = vmul.f32 %v5209, %v9475
      %v9484 = vmul.f32 %v5211, %v9475
      %v9485 = vmul.f32 %v5213, %v9475
      %v9486 = vmul.f32 %v5215, %v9475
      %v9487 = vmul.f32 %v5217, %v9475
      %v9488 = vmul.f32 %v5219, %v9475
      %v9489 = vmul.f32 %v5221, %v9475
      %v9490 = vmul.f32 %v5223, %v9475
      %v9491 = vmul.f32 %v5225, %v9475
      %v9492 = vmul.f32 %v5227, %v9475
      %v9493 = vmul.f32 %v5229, %v9475
      %v9494 = vmul.f32 %v5231, %v9475
      %v9495 = vmul.f32 %v5233, %v9475
      %v9496 = vmul.f32 %v5235, %v9475
      %v9497 = vmul.f32 %v5237, %v9475
      %v9498 = vmul.f32 %v5239, %v9475
      %v9499 = vmul.f32 %v5241, %v9475
      %v9500 = vmul.f32 %v5243, %v9475
      %v9501 = vmul.f32 %v5245, %v9475
      %v9502 = vmul.f32 %v5247, %v9475
      %v9503 = vmul.f32 %v5249, %v9475
      %v9504 = vmul.f32 %v5251, %v9475
      %v9505 = vmul.f32 %v5253, %v9475
      %v9506 = vmul.f32 %v5255, %v9475
      %v9507 = vmul.f32 %v5257, %v9475
      %v9508 = vmul.f32 %v5292, %v9475
      %v9509 = vmul.f32 %v9475, 0.0
      %v9543 = vrot.slane %v9477, 7
      %v9544 = vrot.slane %v9478, 7
      %v9545 = vsel %vm6604, %v9543, %v9544
      %v9546 = vrot.slane %v9479, 7
      %v9547 = vsel %vm6604, %v9544, %v9546
      %v9548 = vrot.slane %v9480, 7
      %v9549 = vsel %vm6604, %v9546, %v9548
      %v9550 = vrot.slane %v9481, 7
      %v9551 = vsel %vm6604, %v9548, %v9550
      %v9552 = vrot.slane %v9482, 7
      %v9553 = vsel %vm6604, %v9550, %v9552
      %v9554 = vrot.slane %v9483, 7
      %v9555 = vsel %vm6604, %v9552, %v9554
      %v9556 = vrot.slane %v9484, 7
      %v9557 = vsel %vm6604, %v9554, %v9556
      %v9558 = vrot.slane %v9485, 7
      %v9559 = vsel %vm6604, %v9556, %v9558
      %v9560 = vrot.slane %v9486, 7
      %v9561 = vsel %vm6604, %v9558, %v9560
      %v9562 = vrot.slane %v9487, 7
      %v9563 = vsel %vm6604, %v9560, %v9562
      %v9564 = vrot.slane %v9488, 7
      %v9565 = vsel %vm6604, %v9562, %v9564
      %v9566 = vrot.slane %v9489, 7
      %v9567 = vsel %vm6604, %v9564, %v9566
      %v9568 = vrot.slane %v9490, 7
      %v9569 = vsel %vm6604, %v9566, %v9568
      %v9570 = vrot.slane %v9491, 7
      %v9571 = vsel %vm6604, %v9568, %v9570
      %v9572 = vrot.slane %v9492, 7
      %v9573 = vsel %vm6604, %v9570, %v9572
      %v9574 = vrot.slane %v9493, 7
      %v9575 = vsel %vm6604, %v9572, %v9574
      %v9576 = vrot.slane %v9494, 7
      %v9577 = vsel %vm6604, %v9574, %v9576
      %v9578 = vrot.slane %v9495, 7
      %v9579 = vsel %vm6604, %v9576, %v9578
      %v9580 = vrot.slane %v9496, 7
      %v9581 = vsel %vm6604, %v9578, %v9580
      %v9582 = vrot.slane %v9497, 7
      %v9583 = vsel %vm6604, %v9580, %v9582
      %v9584 = vrot.slane %v9498, 7
      %v9585 = vsel %vm6604, %v9582, %v9584
      %v9586 = vrot.slane %v9499, 7
      %v9587 = vsel %vm6604, %v9584, %v9586
      %v9588 = vrot.slane %v9500, 7
      %v9589 = vsel %vm6604, %v9586, %v9588
      %v9590 = vrot.slane %v9501, 7
      %v9591 = vsel %vm6604, %v9588, %v9590
      %v9592 = vrot.slane %v9502, 7
      %v9593 = vsel %vm6604, %v9590, %v9592
      %v9594 = vrot.slane %v9503, 7
      %v9595 = vsel %vm6604, %v9592, %v9594
      %v9596 = vrot.slane %v9504, 7
      %v9597 = vsel %vm6604, %v9594, %v9596
      %v9598 = vrot.slane %v9505, 7
      %v9599 = vsel %vm6604, %v9596, %v9598
      %v9600 = vrot.slane %v9506, 7
      %v9601 = vsel %vm6604, %v9598, %v9600
      %v9602 = vrot.slane %v9507, 7
      %v9603 = vsel %vm6604, %v9600, %v9602
      %v9604 = vrot.slane %v9508, 7
      %v9605 = vsel %vm6604, %v9602, %v9604
      %v9606 = vrot.slane %v9509, 7
      %v9607 = vsel %vm6604, %v9604, %v9606
      %v9640 = vadd.f32 %v9440, %v9545
      %v9641 = vadd.f32 %v9441, %v9547
      %v9642 = vadd.f32 %v9442, %v9549
      %v9643 = vadd.f32 %v9443, %v9551
      %v9644 = vadd.f32 %v9444, %v9553
      %v9645 = vadd.f32 %v9445, %v9555
      %v9646 = vadd.f32 %v9446, %v9557
      %v9647 = vadd.f32 %v9447, %v9559
      %v9648 = vadd.f32 %v9448, %v9561
      %v9649 = vadd.f32 %v9449, %v9563
      %v9650 = vadd.f32 %v9450, %v9565
      %v9651 = vadd.f32 %v9451, %v9567
      %v9652 = vadd.f32 %v9452, %v9569
      %v9653 = vadd.f32 %v9453, %v9571
      %v9654 = vadd.f32 %v9454, %v9573
      %v9655 = vadd.f32 %v9455, %v9575
      %v9656 = vadd.f32 %v9456, %v9577
      %v9657 = vadd.f32 %v9457, %v9579
      %v9658 = vadd.f32 %v9458, %v9581
      %v9659 = vadd.f32 %v9459, %v9583
      %v9660 = vadd.f32 %v9460, %v9585
      %v9661 = vadd.f32 %v9461, %v9587
      %v9662 = vadd.f32 %v9462, %v9589
      %v9663 = vadd.f32 %v9463, %v9591
      %v9664 = vadd.f32 %v9464, %v9593
      %v9665 = vadd.f32 %v9465, %v9595
      %v9666 = vadd.f32 %v9466, %v9597
      %v9667 = vadd.f32 %v9467, %v9599
      %v9668 = vadd.f32 %v9468, %v9601
      %v9669 = vadd.f32 %v9469, %v9603
      %v9670 = vadd.f32 %v9470, %v9605
      %v9671 = vadd.f32 %v9471, %v9607
      %s9672 = scalar_lea.vmem %s5, 24
      %v9673 = vld [vmem:[%s9672] sm:$0x1]
      %v9675 = vperm.slane %v9673, 0
      %v9677 = vmul.f32 %v5199, %v9675
      %v9678 = vmul.f32 %v5201, %v9675
      %v9679 = vmul.f32 %v5203, %v9675
      %v9680 = vmul.f32 %v5205, %v9675
      %v9681 = vmul.f32 %v5207, %v9675
      %v9682 = vmul.f32 %v5209, %v9675
      %v9683 = vmul.f32 %v5211, %v9675
      %v9684 = vmul.f32 %v5213, %v9675
      %v9685 = vmul.f32 %v5215, %v9675
      %v9686 = vmul.f32 %v5217, %v9675
      %v9687 = vmul.f32 %v5219, %v9675
      %v9688 = vmul.f32 %v5221, %v9675
      %v9689 = vmul.f32 %v5223, %v9675
      %v9690 = vmul.f32 %v5225, %v9675
      %v9691 = vmul.f32 %v5227, %v9675
      %v9692 = vmul.f32 %v5229, %v9675
      %v9693 = vmul.f32 %v5231, %v9675
      %v9694 = vmul.f32 %v5233, %v9675
      %v9695 = vmul.f32 %v5235, %v9675
      %v9696 = vmul.f32 %v5237, %v9675
      %v9697 = vmul.f32 %v5239, %v9675
      %v9698 = vmul.f32 %v5241, %v9675
      %v9699 = vmul.f32 %v5243, %v9675
      %v9700 = vmul.f32 %v5245, %v9675
      %v9701 = vmul.f32 %v5247, %v9675
      %v9702 = vmul.f32 %v5249, %v9675
      %v9703 = vmul.f32 %v5251, %v9675
      %v9704 = vmul.f32 %v5253, %v9675
      %v9705 = vmul.f32 %v5255, %v9675
      %v9706 = vmul.f32 %v5257, %v9675
      %v9707 = vmul.f32 %v5292, %v9675
      %v9708 = vmul.f32 %v9675, 0.0
      %v9709 = vadd.f32 %v9640, %v9677
      %v9710 = vadd.f32 %v9641, %v9678
      %v9711 = vadd.f32 %v9642, %v9679
      %v9712 = vadd.f32 %v9643, %v9680
      %v9713 = vadd.f32 %v9644, %v9681
      %v9714 = vadd.f32 %v9645, %v9682
      %v9715 = vadd.f32 %v9646, %v9683
      %v9716 = vadd.f32 %v9647, %v9684
      %v9717 = vadd.f32 %v9648, %v9685
      %v9718 = vadd.f32 %v9649, %v9686
      %v9719 = vadd.f32 %v9650, %v9687
      %v9720 = vadd.f32 %v9651, %v9688
      %v9721 = vadd.f32 %v9652, %v9689
      %v9722 = vadd.f32 %v9653, %v9690
      %v9723 = vadd.f32 %v9654, %v9691
      %v9724 = vadd.f32 %v9655, %v9692
      %v9725 = vadd.f32 %v9656, %v9693
      %v9726 = vadd.f32 %v9657, %v9694
      %v9727 = vadd.f32 %v9658, %v9695
      %v9728 = vadd.f32 %v9659, %v9696
      %v9729 = vadd.f32 %v9660, %v9697
      %v9730 = vadd.f32 %v9661, %v9698
      %v9731 = vadd.f32 %v9662, %v9699
      %v9732 = vadd.f32 %v9663, %v9700
      %v9733 = vadd.f32 %v9664, %v9701
      %v9734 = vadd.f32 %v9665, %v9702
      %v9735 = vadd.f32 %v9666, %v9703
      %v9736 = vadd.f32 %v9667, %v9704
      %v9737 = vadd.f32 %v9668, %v9705
      %v9738 = vadd.f32 %v9669, %v9706
      %v9739 = vadd.f32 %v9670, %v9707
      %v9740 = vadd.f32 %v9671, %v9708
      %v9741 = vsel %vm894, %v9709, 0.0
      %9742 = vadd.xlane.f32.xlu0 %v9741
      %v9743 = vpop.xlane.xlu0 %9742
      %v9744 = vsel %vm894, %v9710, 0.0
      %9745 = vadd.xlane.f32.xlu0 %v9744
      %v9746 = vpop.xlane.xlu0 %9745
      %v9747 = vsel %vm894, %v9711, 0.0
      %9748 = vadd.xlane.f32.xlu0 %v9747
      %v9749 = vpop.xlane.xlu0 %9748
      %v9750 = vsel %vm894, %v9712, 0.0
      %9751 = vadd.xlane.f32.xlu0 %v9750
      %v9752 = vpop.xlane.xlu0 %9751
      %v9753 = vsel %vm894, %v9713, 0.0
      %9754 = vadd.xlane.f32.xlu0 %v9753
      %v9755 = vpop.xlane.xlu0 %9754
      %v9756 = vsel %vm894, %v9714, 0.0
      %9757 = vadd.xlane.f32.xlu0 %v9756
      %v9758 = vpop.xlane.xlu0 %9757
      %v9759 = vsel %vm894, %v9715, 0.0
      %9760 = vadd.xlane.f32.xlu0 %v9759
      %v9761 = vpop.xlane.xlu0 %9760
      %v9762 = vsel %vm894, %v9716, 0.0
      %9763 = vadd.xlane.f32.xlu0 %v9762
      %v9764 = vpop.xlane.xlu0 %9763
      %v9765 = vsel %vm894, %v9717, 0.0
      %9766 = vadd.xlane.f32.xlu0 %v9765
      %v9767 = vpop.xlane.xlu0 %9766
      %v9768 = vsel %vm894, %v9718, 0.0
      %9769 = vadd.xlane.f32.xlu0 %v9768
      %v9770 = vpop.xlane.xlu0 %9769
      %v9771 = vsel %vm894, %v9719, 0.0
      %9772 = vadd.xlane.f32.xlu0 %v9771
      %v9773 = vpop.xlane.xlu0 %9772
      %v9774 = vsel %vm894, %v9720, 0.0
      %9775 = vadd.xlane.f32.xlu0 %v9774
      %v9776 = vpop.xlane.xlu0 %9775
      %v9777 = vsel %vm894, %v9721, 0.0
      %9778 = vadd.xlane.f32.xlu0 %v9777
      %v9779 = vpop.xlane.xlu0 %9778
      %v9780 = vsel %vm894, %v9722, 0.0
      %9781 = vadd.xlane.f32.xlu0 %v9780
      %v9782 = vpop.xlane.xlu0 %9781
      %v9783 = vsel %vm894, %v9723, 0.0
      %9784 = vadd.xlane.f32.xlu0 %v9783
      %v9785 = vpop.xlane.xlu0 %9784
      %v9786 = vsel %vm894, %v9724, 0.0
      %9787 = vadd.xlane.f32.xlu0 %v9786
      %v9788 = vpop.xlane.xlu0 %9787
      %v9789 = vsel %vm894, %v9725, 0.0
      %9790 = vadd.xlane.f32.xlu0 %v9789
      %v9791 = vpop.xlane.xlu0 %9790
      %v9792 = vsel %vm894, %v9726, 0.0
      %9793 = vadd.xlane.f32.xlu0 %v9792
      %v9794 = vpop.xlane.xlu0 %9793
      %v9795 = vsel %vm894, %v9727, 0.0
      %9796 = vadd.xlane.f32.xlu0 %v9795
      %v9797 = vpop.xlane.xlu0 %9796
      %v9798 = vsel %vm894, %v9728, 0.0
      %9799 = vadd.xlane.f32.xlu0 %v9798
      %v9800 = vpop.xlane.xlu0 %9799
      %v9801 = vsel %vm894, %v9729, 0.0
      %9802 = vadd.xlane.f32.xlu0 %v9801
      %v9803 = vpop.xlane.xlu0 %9802
      %v9804 = vsel %vm894, %v9730, 0.0
      %9805 = vadd.xlane.f32.xlu0 %v9804
      %v9806 = vpop.xlane.xlu0 %9805
      %v9807 = vsel %vm894, %v9731, 0.0
      %9808 = vadd.xlane.f32.xlu0 %v9807
      %v9809 = vpop.xlane.xlu0 %9808
      %v9810 = vsel %vm894, %v9732, 0.0
      %9811 = vadd.xlane.f32.xlu0 %v9810
      %v9812 = vpop.xlane.xlu0 %9811
      %v9813 = vsel %vm894, %v9733, 0.0
      %9814 = vadd.xlane.f32.xlu0 %v9813
      %v9815 = vpop.xlane.xlu0 %9814
      %v9816 = vsel %vm894, %v9734, 0.0
      %9817 = vadd.xlane.f32.xlu0 %v9816
      %v9818 = vpop.xlane.xlu0 %9817
      %v9819 = vsel %vm894, %v9735, 0.0
      %9820 = vadd.xlane.f32.xlu0 %v9819
      %v9821 = vpop.xlane.xlu0 %9820
      %v9822 = vsel %vm894, %v9736, 0.0
      %9823 = vadd.xlane.f32.xlu0 %v9822
      %v9824 = vpop.xlane.xlu0 %9823
      %v9825 = vsel %vm894, %v9737, 0.0
      %9826 = vadd.xlane.f32.xlu0 %v9825
      %v9827 = vpop.xlane.xlu0 %9826
      %v9828 = vsel %vm894, %v9738, 0.0
      %9829 = vadd.xlane.f32.xlu0 %v9828
      %v9830 = vpop.xlane.xlu0 %9829
      %v9831 = vsel %vm894, %v9739, 0.0
      %9832 = vadd.xlane.f32.xlu0 %v9831
      %v9833 = vpop.xlane.xlu0 %9832
      %v9834 = vsel %vm894, %v9740, 0.0
      %9835 = vadd.xlane.f32.xlu0 %v9834
      %v9836 = vpop.xlane.xlu0 %9835
      %v9837 = vld [vmem:[#allocation2] sm:$0x1]
      %v9839 = vperm.slane %v9837, 0
      %v9841 = vadd.f32 %v9743, %v9839
      %v9842 = vadd.f32 %v9746, %v9839
      %v9843 = vadd.f32 %v9749, %v9839
      %v9844 = vadd.f32 %v9752, %v9839
      %v9845 = vadd.f32 %v9755, %v9839
      %v9846 = vadd.f32 %v9758, %v9839
      %v9847 = vadd.f32 %v9761, %v9839
      %v9848 = vadd.f32 %v9764, %v9839
      %v9849 = vadd.f32 %v9767, %v9839
      %v9850 = vadd.f32 %v9770, %v9839
      %v9851 = vadd.f32 %v9773, %v9839
      %v9852 = vadd.f32 %v9776, %v9839
      %v9853 = vadd.f32 %v9779, %v9839
      %v9854 = vadd.f32 %v9782, %v9839
      %v9855 = vadd.f32 %v9785, %v9839
      %v9856 = vadd.f32 %v9788, %v9839
      %v9857 = vadd.f32 %v9791, %v9839
      %v9858 = vadd.f32 %v9794, %v9839
      %v9859 = vadd.f32 %v9797, %v9839
      %v9860 = vadd.f32 %v9800, %v9839
      %v9861 = vadd.f32 %v9803, %v9839
      %v9862 = vadd.f32 %v9806, %v9839
      %v9863 = vadd.f32 %v9809, %v9839
      %v9864 = vadd.f32 %v9812, %v9839
      %v9865 = vadd.f32 %v9815, %v9839
      %v9866 = vadd.f32 %v9818, %v9839
      %v9867 = vadd.f32 %v9821, %v9839
      %v9868 = vadd.f32 %v9824, %v9839
      %v9869 = vadd.f32 %v9827, %v9839
      %v9870 = vadd.f32 %v9830, %v9839
      %v9871 = vadd.f32 %v9833, %v9839
      %v9872 = vadd.f32 %v9836, %v9839
      %vm9873 = vcmask 7168
      %9874 = vst.msk [vmem:[%s280] sm:$0xff] %vm9873, %v9841
      %9875 = vst.msk [vmem:[%s280 + $0x8] sm:$0xff] %vm9873, %v9842
      %9876 = vst.msk [vmem:[%s280 + $0x10] sm:$0xff] %vm9873, %v9843
      %9877 = vst.msk [vmem:[%s280 + $0x18] sm:$0xff] %vm9873, %v9844
      %9878 = vst.msk [vmem:[%s280 + $0x20] sm:$0xff] %vm9873, %v9845
      %9879 = vst.msk [vmem:[%s280 + $0x28] sm:$0xff] %vm9873, %v9846
      %9880 = vst.msk [vmem:[%s280 + $0x30] sm:$0xff] %vm9873, %v9847
      %9881 = vst.msk [vmem:[%s280 + $0x38] sm:$0xff] %vm9873, %v9848
      %9882 = vst.msk [vmem:[%s280 + $0x40] sm:$0xff] %vm9873, %v9849
      %9883 = vst.msk [vmem:[%s280 + $0x48] sm:$0xff] %vm9873, %v9850
      %9884 = vst.msk [vmem:[%s280 + $0x50] sm:$0xff] %vm9873, %v9851
      %9885 = vst.msk [vmem:[%s280 + $0x58] sm:$0xff] %vm9873, %v9852
      %9886 = vst.msk [vmem:[%s280 + $0x60] sm:$0xff] %vm9873, %v9853
      %9887 = vst.msk [vmem:[%s280 + $0x68] sm:$0xff] %vm9873, %v9854
      %9888 = vst.msk [vmem:[%s280 + $0x70] sm:$0xff] %vm9873, %v9855
      %9889 = vst.msk [vmem:[%s280 + $0x78] sm:$0xff] %vm9873, %v9856
      %9890 = vst.msk [vmem:[%s280 + $0x80] sm:$0xff] %vm9873, %v9857
      %9891 = vst.msk [vmem:[%s280 + $0x88] sm:$0xff] %vm9873, %v9858
      %9892 = vst.msk [vmem:[%s280 + $0x90] sm:$0xff] %vm9873, %v9859
      %9893 = vst.msk [vmem:[%s280 + $0x98] sm:$0xff] %vm9873, %v9860
      %9894 = vst.msk [vmem:[%s280 + $0xa0] sm:$0xff] %vm9873, %v9861
      %9895 = vst.msk [vmem:[%s280 + $0xa8] sm:$0xff] %vm9873, %v9862
      %9896 = vst.msk [vmem:[%s280 + $0xb0] sm:$0xff] %vm9873, %v9863
      %9897 = vst.msk [vmem:[%s280 + $0xb8] sm:$0xff] %vm9873, %v9864
      %9898 = vst.msk [vmem:[%s280 + $0xc0] sm:$0xff] %vm9873, %v9865
      %9899 = vst.msk [vmem:[%s280 + $0xc8] sm:$0xff] %vm9873, %v9866
      %9900 = vst.msk [vmem:[%s280 + $0xd0] sm:$0xff] %vm9873, %v9867
      %9901 = vst.msk [vmem:[%s280 + $0xd8] sm:$0xff] %vm9873, %v9868
      %9902 = vst.msk [vmem:[%s280 + $0xe0] sm:$0xff] %vm9873, %v9869
      %9903 = vst.msk [vmem:[%s280 + $0xe8] sm:$0xff] %vm9873, %v9870
      %9904 = vst.msk [vmem:[%s280 + $0xf0] sm:$0xff] %vm9873, %v9871
      %9905 = vst.msk [vmem:[%s280 + $0xf8] sm:$0xff] %vm9873, %v9872
      %p9906 = scmp.lt.s32.totalorder %s20, 1
      %s9907 = scalar_select %p9906, %s20, 1
      %s9908 = smul.addr %s9907, 32
      %s9909 = smul.addr %s9908, 8
      %s9910 = scalar_lea.vmem %s7, %s9909
      // Predicated region
      $region49: #{tpu_custom_call.1} parent=47 // pred_check
        %p9911 = pneg %p190
      $region50: #{tpu_custom_call.1} parent=47 // pred_check_branch
        %9913 = sbr.rel (%p9911) target = $region52
      $region51: #{tpu_custom_call.1} parent=47 // pred_region
        _
      $region52: #{tpu_custom_call.1} parent=47 // pred_fallthru
        _
    $region48: #{tpu_custom_call.1} parent=5 // pred_fallthru
      _
    %p9914 = scmp.le.s32.totalorder 2, %s15
    // Predicated region
    $region53: #{tpu_custom_call.1} parent=5 // pred_check
      %p9915 = pneg %p9914
    $region54: #{tpu_custom_call.1} parent=5 // pred_check_branch
      %9917 = sbr.rel (%p9915) target = $region56
    $region55: #{tpu_custom_call.1} parent=5 // pred_region
      %s9918 = ssub.s32 %s15, 2
      // Predicated region
      $region57: #{tpu_custom_call.1} parent=55 // pred_check
        %p9919 = pneg %p196
      $region58: #{tpu_custom_call.1} parent=55 // pred_check_branch
        %9921 = sbr.rel (%p9919) target = $region60
      $region59: #{tpu_custom_call.1} parent=55 // pred_region
        %p9922 = scmp.lt.s32.totalorder %s21, 1
        %s9923 = scalar_select %p9922, %s21, 1
        %s9924 = smul.addr %s9923, 32
        %s9925 = smul.addr %s9924, 8
        %s9926 = scalar_lea.vmem %s7, %s9925
      $region60: #{tpu_custom_call.1} parent=55 // pred_fallthru
        _
    $region56: #{tpu_custom_call.1} parent=5 // pred_fallthru
      _
  $region6: #{tpu_custom_call.1} parent=0 // loop_footer
    %s19 = sadd.s32 1, %s15
  $region7: #{tpu_custom_call.1} parent=0 // loop_footer_branch
    %14 = sbr.rel target = $region3
  $region8: #{tpu_custom_call.1} parent=0 // loop_exit
    _

</llo_original>
